<compile_context>
chip_gen: v7x
topology: tpu7x:2x2x1
jax: 0.10.0
libtpu: 0.0.40
codegen_flags: <defaults>
</compile_context>

<pallas_src>
import math
import functools

import jax
import jax.numpy as jnp
from jax.experimental import pallas as pl
from jax.experimental.pallas import tpu as pltpu


def make_divisible(x, divisor):
    return int(math.ceil(x / divisor) * divisor)


# ----------------------------------------------------------------------------
# In-kernel helpers (values are VMEM/vreg resident, epilogue math in f32)
# ----------------------------------------------------------------------------
def _bn_silu(x, g, b, eps, act=True):
    """Training-mode BatchNorm (biased batch stats over all N*H*W rows) + SiLU.

    One-pass moments (sum / sumsq). Conv outputs with kaiming weights are
    ~zero-mean, so the E[x^2]-E[x]^2 cancellation is benign; var is clamped to
    guard tiny negative round-off."""
    m = x.shape[0]
    s1 = jnp.sum(x, axis=0, keepdims=True)
    s2 = jnp.sum(x * x, axis=0, keepdims=True)
    mu = s1 * (1.0 / m)
    var = jnp.maximum(s2 * (1.0 / m) - mu * mu, 0.0)
    y = (x - mu) * jax.lax.rsqrt(var + eps) * g + b
    if act:
        y = y * jax.nn.sigmoid(y)
    return y


# ----------------------------------------------------------------------------
# Kernel 1/2: 3x3 stride-2 Conv + BN + SiLU (stem layers 0 and 1)
# ----------------------------------------------------------------------------
def _phase_pack(x):
    """Zero-pad (1 px) an NHWC tensor and split it into its 4 stride-2 phases,
    packed into ONE array of shape (4*N, H//2+1, W//2+1, C) so the kernel gets a
    single DMA and every tap is a static, unstrided window.
    phase[a*2+b] block holds xpad[:, a::2, b::2, :]."""
    xp = jnp.pad(x, ((0, 0), (1, 1), (1, 1), (0, 0)))
    return jnp.concatenate([xp[:, a::2, b::2, :] for a in (0, 1) for b in (0, 1)],
                           axis=0)


def _stem_conv_kernel(ph_ref, w_ref, g_ref, b_ref, o_ref, *, nhw, eps):
    # ph_ref: (4*N, Ho+1, Wo+1, Cin)  phase-packed zero-padded input
    # w_ref : (9*Cin, Cout) bf16, rows in (tap = di*3+dj, cin) order
    # o_ref : (N*Ho*Wo, Cout) bf16
    N, Ho, Wo = nhw
    M = N * Ho * Wo
    cin = ph_ref.shape[-1]

    ph = ph_ref[...]
    taps = []
    for di in range(3):
        for dj in range(3):
            base = ((di % 2) * 2 + (dj % 2)) * N
            win = ph[base:base + N,
                     di // 2:di // 2 + Ho,
                     dj // 2:dj // 2 + Wo, :]
            taps.append(win.reshape(M, cin))
    im2col = jnp.concatenate(taps, axis=-1).astype(jnp.bfloat16)     # (M, 9*Cin)
    acc = jnp.dot(im2col, w_ref[...], preferred_element_type=jnp.float32)
    o_ref[...] = _bn_silu(acc, g_ref[...], b_ref[...], eps).astype(o_ref.dtype)


# ----------------------------------------------------------------------------
# Kernel 3: layers 2..6 fused  (C3 -> SPPF -> Concat -> 1x1 Conv -> Detect)
# ----------------------------------------------------------------------------
def _tail_kernel(*refs, n, add, nhw, pool_k, eps):
    N, H, W = nhw
    M = N * H * W
    it = iter(refs)
    x_ref = next(it)                                         # (M, c2) bf16 (layer-1 out)
    wc1, gc1, bc1 = next(it), next(it), next(it)
    wc2, gc2, bc2 = next(it), next(it), next(it)
    blocks = [tuple(next(it) for _ in range(6)) for _ in range(n)]
    wc3, gc3, bc3 = next(it), next(it), next(it)
    ws1, gs1, bs1 = next(it), next(it), next(it)
    ws2, gs2, bs2 = next(it), next(it), next(it)
    w5, g5, b5 = next(it), next(it), next(it)
    wd, bd = next(it), next(it)
    o_ref = next(it)
    pad3, padw, padh = next(it), next(it), next(it)          # VMEM scratch

    x = x_ref[...]                                           # bf16, reused for Concat
    cc3 = wc1.shape[-1]                                      # C3 hidden width
    csp = ws1.shape[-1]                                      # SPPF hidden width

    # ---------------- C3 (layer 2) ----------------
    a = _bn_silu(jnp.dot(x, wc1[...], preferred_element_type=jnp.float32),
                 gc1[...], bc1[...], eps)
    c = _bn_silu(jnp.dot(x, wc2[...], preferred_element_type=jnp.float32),
                 gc2[...], bc2[...], eps)
    # 1-px zero border written ONCE (hoisted out of the block loop);
    # the interior is fully overwritten every bottleneck iteration.
    pad3[...] = jnp.zeros(pad3.shape, jnp.float32)
    for (wb1, gb1, bb1, wb2, gb2, bb2) in blocks:
        t = _bn_silu(jnp.dot(a.astype(jnp.bfloat16), wb1[...],
                             preferred_element_type=jnp.float32),
                     gb1[...], bb1[...], eps)
        pad3[:, 1:1 + H, 1:1 + W, :] = t.reshape(N, H, W, cc3)
        taps = [pad3[:, di:di + H, dj:dj + W, :].reshape(M, cc3)
                for di in range(3) for dj in range(3)]
        im2col = jnp.concatenate(taps, axis=-1).astype(jnp.bfloat16)  # (M, 9*cc3)
        u = _bn_silu(jnp.dot(im2col, wb2[...], preferred_element_type=jnp.float32),
                     gb2[...], bb2[...], eps)
        a = (a + u) if add else u                            # residual fused in-kernel
    ac = jnp.concatenate([a, c], axis=-1).astype(jnp.bfloat16)        # cat order [m(cv1), cv2]
    y3 = _bn_silu(jnp.dot(ac, wc3[...], preferred_element_type=jnp.float32),
                  gc3[...], bc3[...], eps)

    # ---------------- SPPF (layer 3) ----------------
    s = _bn_silu(jnp.dot(y3.astype(jnp.bfloat16), ws1[...],
                         preferred_element_type=jnp.float32),
                 gs1[...], bs1[...], eps)
    p = pool_k // 2
    padw[...] = jnp.full(padw.shape, -jnp.inf, jnp.float32)  # -inf borders written once
    padh[...] = jnp.full(padh.shape, -jnp.inf, jnp.float32)

    def pool(v4):                                            # separable k x k / s1 max pool
        padw[:, :, p:p + W, :] = v4
        m = padw[:, :, 0:W, :]
        for d in range(1, pool_k):
            m = jnp.maximum(m, padw[:, :, d:d + W, :])
        padh[:, p:p + H, :, :] = m
        r = padh[:, 0:H, :, :]
        for d in range(1, pool_k):
            r = jnp.maximum(r, padh[:, d:d + H, :, :])
        return r

    s4 = s.reshape(N, H, W, csp)
    y1 = pool(s4)
    y2 = pool(y1)
    ym = pool(y2)
    sp = jnp.concatenate([s, y1.reshape(M, csp), y2.reshape(M, csp),
                          ym.reshape(M, csp)], axis=-1).astype(jnp.bfloat16)
    ysp = _bn_silu(jnp.dot(sp, ws2[...], preferred_element_type=jnp.float32),
                   gs2[...], bs2[...], eps)

    # -------- Concat([-1, layer1]) -> 1x1 Conv (layers 4 + 5) --------
    cat5 = jnp.concatenate([ysp.astype(jnp.bfloat16), x], axis=-1)
    y5 = _bn_silu(jnp.dot(cat5, w5[...], preferred_element_type=jnp.float32),
                  g5[...], b5[...], eps)

    # -------- Detect head (layer 6, training-mode): 1x1 conv + bias --------
    yd = jnp.dot(y5.astype(jnp.bfloat16), wd[...],
                 preferred_element_type=jnp.float32) + bd[...]
    o_ref[...] = yd


# ----------------------------------------------------------------------------
# Deterministic parameter init (initialize_weights semantics)
# ----------------------------------------------------------------------------
def kaiming_normal(key, shape):
    cout, _, kh, kw = shape
    std = math.sqrt(2.0 / (cout * kh * kw))                  # mode='fan_out', relu
    return std * jax.random.normal(key, shape, jnp.float32)


def _conv1x1(key, cin, cout):
    w = kaiming_normal(key, (cout, cin, 1, 1))
    return jnp.transpose(w, (2, 3, 1, 0)).reshape(cin, cout).astype(jnp.bfloat16)


def _conv3x3(key, cin, cout):
    # rows ordered (tap = di*3 + dj, cin) to match the in-kernel tap concat
    w = kaiming_normal(key, (cout, cin, 3, 3))
    return jnp.transpose(w, (2, 3, 1, 0)).reshape(9 * cin, cout).astype(jnp.bfloat16)


def _bn_params(c):
    return jnp.ones((1, c), jnp.float32), jnp.zeros((1, c), jnp.float32)


# ----------------------------------------------------------------------------
# Modules (parameter holders; stem Convs also own their fused kernel call)
# ----------------------------------------------------------------------------
class PConv:  # Conv2d(bias=False) + BatchNorm2d(train) + SiLU
    def __init__(self, key, c1, c2, k=1, s=1):
        self.c1, self.c2, self.k, self.s = c1, c2, k, s
        w = kaiming_normal(key, (c2, c1, k, k))
        self.w = jnp.transpose(w, (2, 3, 1, 0)).reshape(k * k * c1, c2).astype(jnp.bfloat16)
        self.gamma, self.beta = _bn_params(c2)

    def __call__(self, x):
        # standalone fused kernel only needed for the 3x3/s2 stem convs; the
        # head's 1x1 Conv is folded into the tail kernel (params read there).
        assert self.k == 3 and self.s == 2
        N, H, W, _ = x.shape
        Ho, Wo = H // 2, W // 2
        ph = _phase_pack(x)
        out = pl.pallas_call(
            functools.partial(_stem_conv_kernel, nhw=(N, Ho, Wo), eps=1e-3),
            out_shape=jax.ShapeDtypeStruct((N * Ho * Wo, self.c2), jnp.bfloat16),
        )(ph, self.w, self.gamma, self.beta)
        return out.reshape(N, Ho, Wo, self.c2)


class PC3:  # parameters of a C3 block (executed inside the fused tail kernel)
    def __init__(self, key, c1, c2, n=1, shortcut=True, e=0.5):
        c_ = int(c2 * e)
        self.c1, self.c2, self.c_, self.n, self.add = c1, c2, c_, n, shortcut
        keys = jax.random.split(key, 3 + 2 * n)
        self.w1 = _conv1x1(keys[0], c1, c_)
        self.w2 = _conv1x1(keys[1], c1, c_)
        self.w3 = _conv1x1(keys[2], 2 * c_, c2)              # rows [m(cv1) | cv2] (cat order)
        self.g1, self.b1 = _bn_params(c_)
        self.g2, self.b2 = _bn_params(c_)
        self.g3, self.b3 = _bn_params(c2)
        self.blocks = []
        for j in range(n):
            wb1 = _conv1x1(keys[3 + 2 * j], c_, c_)
            wb2 = _conv3x3(keys[4 + 2 * j], c_, c_)
            gb1, bb1 = _bn_params(c_)
            gb2, bb2 = _bn_params(c_)
            self.blocks.append((wb1, gb1, bb1, wb2, gb2, bb2))


class PSPPF:  # parameters of SPPF (executed inside the fused tail kernel)
    def __init__(self, key, c1, c2, k=5):
        c_ = c1 // 2
        self.c1, self.c2, self.c_, self.k = c1, c2, c_, k
        k1, k2 = jax.random.split(key)
        self.w1 = _conv1x1(k1, c1, c_)
        self.w2 = _conv1x1(k2, 4 * c_, c2)                   # cin order [x, y1, y2, y3]
        self.g1, self.b1 = _bn_params(c_)
        self.g2, self.b2 = _bn_params(c2)


class PConcat:
    def __init__(self, key, dim=1):
        del key
        self.dim = dim                                       # fused into the next 1x1 conv


class PDetect:  # training-mode Detect: per-level 1x1 conv (bias) + view/permute
    def __init__(self, key, nc, anchors, ch):
        self.nc = nc
        self.no = nc + 5
        self.na = len(anchors[0]) // 2
        self.nl = len(anchors)
        keys = jax.random.split(key, len(ch))
        # _initialize_biases() in the original is overwritten by
        # initialize_weights() (constant_(bias, 0)), so biases end up zero.
        self.m = [(_conv1x1(k, c, self.na * self.no),
                   jnp.zeros((1, self.na * self.no), jnp.float32))
                  for k, c in zip(keys, ch)]


def tail_forward(c3, sppf, conv5, det, x1):
    """Layers 2..6 (C3 -> SPPF -> Concat -> 1x1 Conv -> Detect) in ONE pallas_call."""
    N, H, W, C = x1.shape
    M = N * H * W
    wd, bd = det.m[0]
    cd = wd.shape[-1]
    refs = [x1.reshape(M, C),
            c3.w1, c3.g1, c3.b1, c3.w2, c3.g2, c3.b2]
    for blk in c3.blocks:
        refs += list(blk)
    refs += [c3.w3, c3.g3, c3.b3,
             sppf.w1, sppf.g1, sppf.b1, sppf.w2, sppf.g2, sppf.b2,
             conv5.w, conv5.gamma, conv5.beta,
             wd, bd]
    out = pl.pallas_call(
        functools.partial(_tail_kernel, n=c3.n, add=c3.add, nhw=(N, H, W),
                          pool_k=sppf.k, eps=1e-3),
        out_shape=jax.ShapeDtypeStruct((M, cd), jnp.float32),
        scratch_shapes=[
            pltpu.VMEM((N, H + 2, W + 2, c3.c_), jnp.float32),           # 3x3 zero pad
            pltpu.VMEM((N, H, W + sppf.k - 1, sppf.c_), jnp.float32),    # pool W pass
            pltpu.VMEM((N, H + sppf.k - 1, W, sppf.c_), jnp.float32),    # pool H pass
        ],
    )(*refs)
    # NCHW view(bs, na, no, ny, nx).permute(0,1,3,4,2)  ==  in NHWC:
    y = out.reshape(N, H, W, det.na, det.no).transpose(0, 3, 1, 2, 4)
    return [y]


# ----------------------------------------------------------------------------
# Mini parse_model + fused forward (same channel/save bookkeeping as torch)
# ----------------------------------------------------------------------------
CFG = {
    'ch': 3,
    'nc': 2,
    'depth_multiple': 1.0,
    'width_multiple': 1.0,
    'anchors': [[10, 13, 16, 30, 33, 23]],
    'backbone': [
        [-1, 1, 'Conv', [16, 3, 2]],           # 0  /2
        [-1, 1, 'Conv', [32, 3, 2]],           # 1  /4
        [-1, 1, 'C3',   [32]],                 # 2
        [-1, 1, 'SPPF', [32, 5]],              # 3
    ],
    'head': [
        [[-1, 1], 1, 'Concat', [1]],           # 4
        [-1, 1, 'Conv', [32, 1, 1]],           # 5
        [[5], 1, 'Detect', ['nc', 'anchors']],  # 6
    ],
}

_MODULES = {'Conv': PConv, 'C3': PC3, 'SPPF': PSPPF,
            'Concat': PConcat, 'Detect': PDetect}


def build_model(d, ch_in, key):
    anchors, nc = d['anchors'], d['nc']
    gd, gw = d['depth_multiple'], d['width_multiple']
    na = len(anchors[0]) // 2
    no = na * (nc + 5)
    layers, save, ch = [], [], [ch_in]
    c2 = ch[-1]
    keys = iter(jax.random.split(key, 64))
    for i, (f, n, m, args) in enumerate(d['backbone'] + d['head']):
        args = [({'nc': nc, 'anchors': anchors}.get(a, a) if isinstance(a, str) else a)
                for a in args]
        n = max(round(n * gd), 1) if n > 1 else n
        if m in ('Conv', 'C3', 'SPPF'):
            c1, c2 = ch[f], args[0]
            if c2 != no:
                c2 = make_divisible(c2 * gw, 8)
            args = [c1, c2, *args[1:]]
            if m == 'C3':
                args.insert(2, n)
                n = 1
        elif m == 'Concat':
            c2 = sum(ch[x] for x in f)
        elif m == 'Detect':
            args.append([ch[x] for x in f])
        else:
            c2 = ch[f]
        mod = _MODULES[m](next(keys), *args)
        mod.i, mod.f = i, f
        save.extend(x % i for x in ([f] if isinstance(f, int) else f) if x != -1)
        layers.append(mod)
        if i == 0:
            ch = []
        ch.append(c2)
    return layers, sorted(set(save))


def forward(layers, save, x_nchw):
    del save  # the fused 3-kernel graph carries the needed activations explicitly
    l0, l1, c3, sppf, _concat, conv5, det = layers
    x = jnp.transpose(x_nchw.astype(jnp.float32), (0, 2, 3, 1))   # NCHW -> NHWC
    x0 = l0(x)                   # pallas_call 1: Conv 3->16,  3x3/s2 (bf16 out)
    x1 = l1(x0)                  # pallas_call 2: Conv 16->32, 3x3/s2 (bf16 out)
    return tail_forward(c3, sppf, conv5, det, x1)   # pallas_call 3: layers 2..6


# ----------------------------------------------------------------------------
if __name__ == "__main__":
    key = jax.random.PRNGKey(0)
    kparam, kin = jax.random.split(key)

    layers, save = build_model(CFG, CFG['ch'], kparam)

    x = jax.random.normal(kin, (2, 3, 32, 32), jnp.float32)   # NCHW like torch
    fwd = jax.jit(functools.partial(forward, layers, save))
    out = jax.block_until_ready(fwd(x))

    assert isinstance(out, list) and len(out) == 1
    assert out[0].shape == (2, 3, 8, 8, CFG['nc'] + 5)
    assert bool(jnp.all(jnp.isfinite(out[0])))
    print("KERNEL_OK")
</pallas_src>

<mosaic_0001>
module attributes {stable_mosaic.version = 11 : i64} {
  func.func @_stem_conv_kernel(%arg0: memref<8x17x17x3xf32, #tpu.memory_space<vmem>>, %arg1: memref<27x16xbf16, #tpu.memory_space<vmem>>, %arg2: memref<1x16xf32, #tpu.memory_space<vmem>>, %arg3: memref<1x16xf32, #tpu.memory_space<vmem>>, %arg4: memref<512x16xbf16, #tpu.memory_space<vmem>>) attributes {dimension_semantics = [], scalar_prefetch = 0 : i64, scratch_operands = 0 : i64, tpu.core_type = #tpu.core_type<tc>} {
    %c0 = arith.constant 0 : index
    %c0_0 = arith.constant 0 : index
    %c0_1 = arith.constant 0 : index
    %c0_2 = arith.constant 0 : index
    %0 = vector.load %arg0[%c0, %c0_0, %c0_1, %c0_2] : memref<8x17x17x3xf32, #tpu.memory_space<vmem>>, vector<8x17x17x3xf32>
    %1 = vector.extract_strided_slice %0 {offsets = [0, 0, 0, 0], sizes = [2, 16, 16, 3], strides = [1, 1, 1, 1]} : vector<8x17x17x3xf32> to vector<2x16x16x3xf32>
    %2 = vector.shape_cast %1 : vector<2x16x16x3xf32> to vector<512x3xf32>
    %3 = vector.extract_strided_slice %0 {offsets = [2, 0, 0, 0], sizes = [2, 16, 16, 3], strides = [1, 1, 1, 1]} : vector<8x17x17x3xf32> to vector<2x16x16x3xf32>
    %4 = vector.shape_cast %3 : vector<2x16x16x3xf32> to vector<512x3xf32>
    %5 = vector.extract_strided_slice %0 {offsets = [0, 0, 1, 0], sizes = [2, 16, 16, 3], strides = [1, 1, 1, 1]} : vector<8x17x17x3xf32> to vector<2x16x16x3xf32>
    %6 = vector.shape_cast %5 : vector<2x16x16x3xf32> to vector<512x3xf32>
    %7 = vector.extract_strided_slice %0 {offsets = [4, 0, 0, 0], sizes = [2, 16, 16, 3], strides = [1, 1, 1, 1]} : vector<8x17x17x3xf32> to vector<2x16x16x3xf32>
    %8 = vector.shape_cast %7 : vector<2x16x16x3xf32> to vector<512x3xf32>
    %9 = vector.extract_strided_slice %0 {offsets = [6, 0, 0, 0], sizes = [2, 16, 16, 3], strides = [1, 1, 1, 1]} : vector<8x17x17x3xf32> to vector<2x16x16x3xf32>
    %10 = vector.shape_cast %9 : vector<2x16x16x3xf32> to vector<512x3xf32>
    %11 = vector.extract_strided_slice %0 {offsets = [4, 0, 1, 0], sizes = [2, 16, 16, 3], strides = [1, 1, 1, 1]} : vector<8x17x17x3xf32> to vector<2x16x16x3xf32>
    %12 = vector.shape_cast %11 : vector<2x16x16x3xf32> to vector<512x3xf32>
    %13 = vector.extract_strided_slice %0 {offsets = [0, 1, 0, 0], sizes = [2, 16, 16, 3], strides = [1, 1, 1, 1]} : vector<8x17x17x3xf32> to vector<2x16x16x3xf32>
    %14 = vector.shape_cast %13 : vector<2x16x16x3xf32> to vector<512x3xf32>
    %15 = vector.extract_strided_slice %0 {offsets = [2, 1, 0, 0], sizes = [2, 16, 16, 3], strides = [1, 1, 1, 1]} : vector<8x17x17x3xf32> to vector<2x16x16x3xf32>
    %16 = vector.shape_cast %15 : vector<2x16x16x3xf32> to vector<512x3xf32>
    %17 = vector.extract_strided_slice %0 {offsets = [0, 1, 1, 0], sizes = [2, 16, 16, 3], strides = [1, 1, 1, 1]} : vector<8x17x17x3xf32> to vector<2x16x16x3xf32>
    %18 = vector.shape_cast %17 : vector<2x16x16x3xf32> to vector<512x3xf32>
    %19 = tpu.concatenate %2, %4, %6, %8, %10, %12, %14, %16, %18 in 1 : vector<512x3xf32>, vector<512x3xf32>, vector<512x3xf32>, vector<512x3xf32>, vector<512x3xf32>, vector<512x3xf32>, vector<512x3xf32>, vector<512x3xf32>, vector<512x3xf32> -> vector<512x27xf32>
    %20 = arith.truncf %19 : vector<512x27xf32> to vector<512x27xbf16>
    %c0_3 = arith.constant 0 : index
    %c0_4 = arith.constant 0 : index
    %21 = vector.load %arg1[%c0_3, %c0_4] : memref<27x16xbf16, #tpu.memory_space<vmem>>, vector<27x16xbf16>
    %cst = arith.constant dense<0.000000e+00> : vector<512x16xf32>
    %22 = tpu.matmul %20, %21, %cst {dimension_numbers = #tpu.dot_dimension_numbers<[1], [0], [0], [1], [0, 0, 1, 1], [], []>} : vector<512x27xbf16>, vector<27x16xbf16>, vector<512x16xf32> -> vector<512x16xf32>
    %c0_5 = arith.constant 0 : index
    %c0_6 = arith.constant 0 : index
    %23 = vector.load %arg2[%c0_5, %c0_6] : memref<1x16xf32, #tpu.memory_space<vmem>>, vector<1x16xf32>
    %c0_7 = arith.constant 0 : index
    %c0_8 = arith.constant 0 : index
    %24 = vector.load %arg3[%c0_7, %c0_8] : memref<1x16xf32, #tpu.memory_space<vmem>>, vector<1x16xf32>
    %cst_9 = arith.constant dense<0.000000e+00> : vector<16xf32>
    %25 = vector.multi_reduction <add>, %22, %cst_9 [0] : vector<512x16xf32> to vector<16xf32>
    %26 = vector.shape_cast %25 : vector<16xf32> to vector<1x16xf32>
    %27 = arith.mulf %22, %22 : vector<512x16xf32>
    %cst_10 = arith.constant dense<0.000000e+00> : vector<16xf32>
    %28 = vector.multi_reduction <add>, %27, %cst_10 [0] : vector<512x16xf32> to vector<16xf32>
    %29 = vector.shape_cast %28 : vector<16xf32> to vector<1x16xf32>
    %cst_11 = arith.constant 0.001953125 : f32
    %30 = vector.broadcast %cst_11 : f32 to vector<1x16xf32>
    %31 = arith.mulf %26, %30 : vector<1x16xf32>
    %cst_12 = arith.constant 0.001953125 : f32
    %32 = vector.broadcast %cst_12 : f32 to vector<1x16xf32>
    %33 = arith.mulf %29, %32 : vector<1x16xf32>
    %34 = arith.mulf %31, %31 : vector<1x16xf32>
    %35 = arith.subf %33, %34 : vector<1x16xf32>
    %cst_13 = arith.constant 0.000000e+00 : f32
    %36 = vector.broadcast %cst_13 : f32 to vector<1x16xf32>
    %37 = arith.maximumf %35, %36 : vector<1x16xf32>
    %38 = vector.broadcast %31 : vector<1x16xf32> to vector<512x16xf32>
    %39 = arith.subf %22, %38 : vector<512x16xf32>
    %cst_14 = arith.constant 1.000000e-03 : f32
    %40 = vector.broadcast %cst_14 : f32 to vector<1x16xf32>
    %41 = arith.addf %37, %40 : vector<1x16xf32>
    %42 = math.rsqrt %41 : vector<1x16xf32>
    %43 = vector.broadcast %42 : vector<1x16xf32> to vector<512x16xf32>
    %44 = arith.mulf %39, %43 : vector<512x16xf32>
    %45 = vector.broadcast %23 : vector<1x16xf32> to vector<512x16xf32>
    %46 = arith.mulf %44, %45 : vector<512x16xf32>
    %47 = vector.broadcast %24 : vector<1x16xf32> to vector<512x16xf32>
    %48 = arith.addf %46, %47 : vector<512x16xf32>
    %49 = arith.negf %48 : vector<512x16xf32>
    %50 = math.exp %49 : vector<512x16xf32>
    %cst_15 = arith.constant 1.000000e+00 : f32
    %51 = vector.broadcast %cst_15 : f32 to vector<512x16xf32>
    %52 = arith.addf %51, %50 : vector<512x16xf32>
    %53 = arith.divf %51, %52 : vector<512x16xf32>
    %54 = arith.mulf %48, %53 : vector<512x16xf32>
    %55 = arith.truncf %54 : vector<512x16xf32> to vector<512x16xbf16>
    %c0_16 = arith.constant 0 : index
    %c0_17 = arith.constant 0 : index
    %56 = vector.load %arg4[%c0_16, %c0_17] : memref<512x16xbf16, #tpu.memory_space<vmem>>, vector<512x16xbf16>
    tpu.vector_store %arg4[%c0_16, %c0_17], %55 {strides = array<i32>} : memref<512x16xbf16, #tpu.memory_space<vmem>>, vector<512x16xbf16>,
    return
  }
}

module attributes {stable_mosaic.version = 11 : i64} {
  func.func @_stem_conv_kernel(%arg0: memref<8x9x9x16xbf16, #tpu.memory_space<vmem>>, %arg1: memref<144x32xbf16, #tpu.memory_space<vmem>>, %arg2: memref<1x32xf32, #tpu.memory_space<vmem>>, %arg3: memref<1x32xf32, #tpu.memory_space<vmem>>, %arg4: memref<128x32xbf16, #tpu.memory_space<vmem>>) attributes {dimension_semantics = [], scalar_prefetch = 0 : i64, scratch_operands = 0 : i64, tpu.core_type = #tpu.core_type<tc>} {
    %c0 = arith.constant 0 : index
    %c0_0 = arith.constant 0 : index
    %c0_1 = arith.constant 0 : index
    %c0_2 = arith.constant 0 : index
    %0 = vector.load %arg0[%c0, %c0_0, %c0_1, %c0_2] : memref<8x9x9x16xbf16, #tpu.memory_space<vmem>>, vector<8x9x9x16xbf16>
    %1 = vector.extract_strided_slice %0 {offsets = [0, 0, 0, 0], sizes = [2, 8, 8, 16], strides = [1, 1, 1, 1]} : vector<8x9x9x16xbf16> to vector<2x8x8x16xbf16>
    %2 = vector.shape_cast %1 : vector<2x8x8x16xbf16> to vector<128x16xbf16>
    %3 = vector.extract_strided_slice %0 {offsets = [2, 0, 0, 0], sizes = [2, 8, 8, 16], strides = [1, 1, 1, 1]} : vector<8x9x9x16xbf16> to vector<2x8x8x16xbf16>
    %4 = vector.shape_cast %3 : vector<2x8x8x16xbf16> to vector<128x16xbf16>
    %5 = vector.extract_strided_slice %0 {offsets = [0, 0, 1, 0], sizes = [2, 8, 8, 16], strides = [1, 1, 1, 1]} : vector<8x9x9x16xbf16> to vector<2x8x8x16xbf16>
    %6 = vector.shape_cast %5 : vector<2x8x8x16xbf16> to vector<128x16xbf16>
    %7 = vector.extract_strided_slice %0 {offsets = [4, 0, 0, 0], sizes = [2, 8, 8, 16], strides = [1, 1, 1, 1]} : vector<8x9x9x16xbf16> to vector<2x8x8x16xbf16>
    %8 = vector.shape_cast %7 : vector<2x8x8x16xbf16> to vector<128x16xbf16>
    %9 = vector.extract_strided_slice %0 {offsets = [6, 0, 0, 0], sizes = [2, 8, 8, 16], strides = [1, 1, 1, 1]} : vector<8x9x9x16xbf16> to vector<2x8x8x16xbf16>
    %10 = vector.shape_cast %9 : vector<2x8x8x16xbf16> to vector<128x16xbf16>
    %11 = vector.extract_strided_slice %0 {offsets = [4, 0, 1, 0], sizes = [2, 8, 8, 16], strides = [1, 1, 1, 1]} : vector<8x9x9x16xbf16> to vector<2x8x8x16xbf16>
    %12 = vector.shape_cast %11 : vector<2x8x8x16xbf16> to vector<128x16xbf16>
    %13 = vector.extract_strided_slice %0 {offsets = [0, 1, 0, 0], sizes = [2, 8, 8, 16], strides = [1, 1, 1, 1]} : vector<8x9x9x16xbf16> to vector<2x8x8x16xbf16>
    %14 = vector.shape_cast %13 : vector<2x8x8x16xbf16> to vector<128x16xbf16>
    %15 = vector.extract_strided_slice %0 {offsets = [2, 1, 0, 0], sizes = [2, 8, 8, 16], strides = [1, 1, 1, 1]} : vector<8x9x9x16xbf16> to vector<2x8x8x16xbf16>
    %16 = vector.shape_cast %15 : vector<2x8x8x16xbf16> to vector<128x16xbf16>
    %17 = vector.extract_strided_slice %0 {offsets = [0, 1, 1, 0], sizes = [2, 8, 8, 16], strides = [1, 1, 1, 1]} : vector<8x9x9x16xbf16> to vector<2x8x8x16xbf16>
    %18 = vector.shape_cast %17 : vector<2x8x8x16xbf16> to vector<128x16xbf16>
    %19 = tpu.concatenate %2, %4, %6, %8, %10, %12, %14, %16, %18 in 1 : vector<128x16xbf16>, vector<128x16xbf16>, vector<128x16xbf16>, vector<128x16xbf16>, vector<128x16xbf16>, vector<128x16xbf16>, vector<128x16xbf16>, vector<128x16xbf16>, vector<128x16xbf16> -> vector<128x144xbf16>
    %c0_3 = arith.constant 0 : index
    %c0_4 = arith.constant 0 : index
    %20 = vector.load %arg1[%c0_3, %c0_4] : memref<144x32xbf16, #tpu.memory_space<vmem>>, vector<144x32xbf16>
    %cst = arith.constant dense<0.000000e+00> : vector<128x32xf32>
    %21 = tpu.matmul %19, %20, %cst {dimension_numbers = #tpu.dot_dimension_numbers<[1], [0], [0], [1], [0, 0, 1, 1], [], []>} : vector<128x144xbf16>, vector<144x32xbf16>, vector<128x32xf32> -> vector<128x32xf32>
    %c0_5 = arith.constant 0 : index
    %c0_6 = arith.constant 0 : index
    %22 = vector.load %arg2[%c0_5, %c0_6] : memref<1x32xf32, #tpu.memory_space<vmem>>, vector<1x32xf32>
    %c0_7 = arith.constant 0 : index
    %c0_8 = arith.constant 0 : index
    %23 = vector.load %arg3[%c0_7, %c0_8] : memref<1x32xf32, #tpu.memory_space<vmem>>, vector<1x32xf32>
    %cst_9 = arith.constant dense<0.000000e+00> : vector<32xf32>
    %24 = vector.multi_reduction <add>, %21, %cst_9 [0] : vector<128x32xf32> to vector<32xf32>
    %25 = vector.shape_cast %24 : vector<32xf32> to vector<1x32xf32>
    %26 = arith.mulf %21, %21 : vector<128x32xf32>
    %cst_10 = arith.constant dense<0.000000e+00> : vector<32xf32>
    %27 = vector.multi_reduction <add>, %26, %cst_10 [0] : vector<128x32xf32> to vector<32xf32>
    %28 = vector.shape_cast %27 : vector<32xf32> to vector<1x32xf32>
    %cst_11 = arith.constant 7.812500e-03 : f32
    %29 = vector.broadcast %cst_11 : f32 to vector<1x32xf32>
    %30 = arith.mulf %25, %29 : vector<1x32xf32>
    %cst_12 = arith.constant 7.812500e-03 : f32
    %31 = vector.broadcast %cst_12 : f32 to vector<1x32xf32>
    %32 = arith.mulf %28, %31 : vector<1x32xf32>
    %33 = arith.mulf %30, %30 : vector<1x32xf32>
    %34 = arith.subf %32, %33 : vector<1x32xf32>
    %cst_13 = arith.constant 0.000000e+00 : f32
    %35 = vector.broadcast %cst_13 : f32 to vector<1x32xf32>
    %36 = arith.maximumf %34, %35 : vector<1x32xf32>
    %37 = vector.broadcast %30 : vector<1x32xf32> to vector<128x32xf32>
    %38 = arith.subf %21, %37 : vector<128x32xf32>
    %cst_14 = arith.constant 1.000000e-03 : f32
    %39 = vector.broadcast %cst_14 : f32 to vector<1x32xf32>
    %40 = arith.addf %36, %39 : vector<1x32xf32>
    %41 = math.rsqrt %40 : vector<1x32xf32>
    %42 = vector.broadcast %41 : vector<1x32xf32> to vector<128x32xf32>
    %43 = arith.mulf %38, %42 : vector<128x32xf32>
    %44 = vector.broadcast %22 : vector<1x32xf32> to vector<128x32xf32>
    %45 = arith.mulf %43, %44 : vector<128x32xf32>
    %46 = vector.broadcast %23 : vector<1x32xf32> to vector<128x32xf32>
    %47 = arith.addf %45, %46 : vector<128x32xf32>
    %48 = arith.negf %47 : vector<128x32xf32>
    %49 = math.exp %48 : vector<128x32xf32>
    %cst_15 = arith.constant 1.000000e+00 : f32
    %50 = vector.broadcast %cst_15 : f32 to vector<128x32xf32>
    %51 = arith.addf %50, %49 : vector<128x32xf32>
    %52 = arith.divf %50, %51 : vector<128x32xf32>
    %53 = arith.mulf %47, %52 : vector<128x32xf32>
    %54 = arith.truncf %53 : vector<128x32xf32> to vector<128x32xbf16>
    %c0_16 = arith.constant 0 : index
    %c0_17 = arith.constant 0 : index
    %55 = vector.load %arg4[%c0_16, %c0_17] : memref<128x32xbf16, #tpu.memory_space<vmem>>, vector<128x32xbf16>
    tpu.vector_store %arg4[%c0_16, %c0_17], %54 {strides = array<i32>} : memref<128x32xbf16, #tpu.memory_space<vmem>>, vector<128x32xbf16>,
    return
  }
}

module attributes {stable_mosaic.version = 11 : i64} {
  func.func @_tail_kernel(%arg0: memref<128x32xbf16, #tpu.memory_space<vmem>>, %arg1: memref<32x16xbf16, #tpu.memory_space<vmem>>, %arg2: memref<1x16xf32, #tpu.memory_space<vmem>>, %arg3: memref<1x16xf32, #tpu.memory_space<vmem>>, %arg4: memref<32x16xbf16, #tpu.memory_space<vmem>>, %arg5: memref<1x16xf32, #tpu.memory_space<vmem>>, %arg6: memref<1x16xf32, #tpu.memory_space<vmem>>, %arg7: memref<16x16xbf16, #tpu.memory_space<vmem>>, %arg8: memref<1x16xf32, #tpu.memory_space<vmem>>, %arg9: memref<1x16xf32, #tpu.memory_space<vmem>>, %arg10: memref<144x16xbf16, #tpu.memory_space<vmem>>, %arg11: memref<1x16xf32, #tpu.memory_space<vmem>>, %arg12: memref<1x16xf32, #tpu.memory_space<vmem>>, %arg13: memref<32x32xbf16, #tpu.memory_space<vmem>>, %arg14: memref<1x32xf32, #tpu.memory_space<vmem>>, %arg15: memref<1x32xf32, #tpu.memory_space<vmem>>, %arg16: memref<32x16xbf16, #tpu.memory_space<vmem>>, %arg17: memref<1x16xf32, #tpu.memory_space<vmem>>, %arg18: memref<1x16xf32, #tpu.memory_space<vmem>>, %arg19: memref<64x32xbf16, #tpu.memory_space<vmem>>, %arg20: memref<1x32xf32, #tpu.memory_space<vmem>>, %arg21: memref<1x32xf32, #tpu.memory_space<vmem>>, %arg22: memref<64x32xbf16, #tpu.memory_space<vmem>>, %arg23: memref<1x32xf32, #tpu.memory_space<vmem>>, %arg24: memref<1x32xf32, #tpu.memory_space<vmem>>, %arg25: memref<32x21xbf16, #tpu.memory_space<vmem>>, %arg26: memref<1x21xf32, #tpu.memory_space<vmem>>, %arg27: memref<128x21xf32, #tpu.memory_space<vmem>>, %arg28: memref<2x10x10x16xf32, #tpu.memory_space<vmem>>, %arg29: memref<2x8x12x16xf32, #tpu.memory_space<vmem>>, %arg30: memref<2x12x8x16xf32, #tpu.memory_space<vmem>>) attributes {dimension_semantics = [], scalar_prefetch = 0 : i64, scratch_operands = 3 : i64, tpu.core_type = #tpu.core_type<tc>} {
    %c0 = arith.constant 0 : index
    %c0_0 = arith.constant 0 : index
    %0 = vector.load %arg0[%c0, %c0_0] : memref<128x32xbf16, #tpu.memory_space<vmem>>, vector<128x32xbf16>
    %c0_1 = arith.constant 0 : index
    %c0_2 = arith.constant 0 : index
    %1 = vector.load %arg1[%c0_1, %c0_2] : memref<32x16xbf16, #tpu.memory_space<vmem>>, vector<32x16xbf16>
    %cst = arith.constant dense<0.000000e+00> : vector<128x16xf32>
    %2 = tpu.matmul %0, %1, %cst {dimension_numbers = #tpu.dot_dimension_numbers<[1], [0], [0], [1], [0, 0, 1, 1], [], []>} : vector<128x32xbf16>, vector<32x16xbf16>, vector<128x16xf32> -> vector<128x16xf32>
    %c0_3 = arith.constant 0 : index
    %c0_4 = arith.constant 0 : index
    %3 = vector.load %arg2[%c0_3, %c0_4] : memref<1x16xf32, #tpu.memory_space<vmem>>, vector<1x16xf32>
    %c0_5 = arith.constant 0 : index
    %c0_6 = arith.constant 0 : index
    %4 = vector.load %arg3[%c0_5, %c0_6] : memref<1x16xf32, #tpu.memory_space<vmem>>, vector<1x16xf32>
    %cst_7 = arith.constant dense<0.000000e+00> : vector<16xf32>
    %5 = vector.multi_reduction <add>, %2, %cst_7 [0] : vector<128x16xf32> to vector<16xf32>
    %6 = vector.shape_cast %5 : vector<16xf32> to vector<1x16xf32>
    %7 = arith.mulf %2, %2 : vector<128x16xf32>
    %cst_8 = arith.constant dense<0.000000e+00> : vector<16xf32>
    %8 = vector.multi_reduction <add>, %7, %cst_8 [0] : vector<128x16xf32> to vector<16xf32>
    %9 = vector.shape_cast %8 : vector<16xf32> to vector<1x16xf32>
    %cst_9 = arith.constant 7.812500e-03 : f32
    %10 = vector.broadcast %cst_9 : f32 to vector<1x16xf32>
    %11 = arith.mulf %6, %10 : vector<1x16xf32>
    %cst_10 = arith.constant 7.812500e-03 : f32
    %12 = vector.broadcast %cst_10 : f32 to vector<1x16xf32>
    %13 = arith.mulf %9, %12 : vector<1x16xf32>
    %14 = arith.mulf %11, %11 : vector<1x16xf32>
    %15 = arith.subf %13, %14 : vector<1x16xf32>
    %cst_11 = arith.constant 0.000000e+00 : f32
    %16 = vector.broadcast %cst_11 : f32 to vector<1x16xf32>
    %17 = arith.maximumf %15, %16 : vector<1x16xf32>
    %18 = vector.broadcast %11 : vector<1x16xf32> to vector<128x16xf32>
    %19 = arith.subf %2, %18 : vector<128x16xf32>
    %cst_12 = arith.constant 1.000000e-03 : f32
    %20 = vector.broadcast %cst_12 : f32 to vector<1x16xf32>
    %21 = arith.addf %17, %20 : vector<1x16xf32>
    %22 = math.rsqrt %21 : vector<1x16xf32>
    %23 = vector.broadcast %22 : vector<1x16xf32> to vector<128x16xf32>
    %24 = arith.mulf %19, %23 : vector<128x16xf32>
    %25 = vector.broadcast %3 : vector<1x16xf32> to vector<128x16xf32>
    %26 = arith.mulf %24, %25 : vector<128x16xf32>
    %27 = vector.broadcast %4 : vector<1x16xf32> to vector<128x16xf32>
    %28 = arith.addf %26, %27 : vector<128x16xf32>
    %29 = arith.negf %28 : vector<128x16xf32>
    %30 = math.exp %29 : vector<128x16xf32>
    %cst_13 = arith.constant 1.000000e+00 : f32
    %31 = vector.broadcast %cst_13 : f32 to vector<128x16xf32>
    %32 = arith.addf %31, %30 : vector<128x16xf32>
    %33 = arith.divf %31, %32 : vector<128x16xf32>
    %34 = arith.mulf %28, %33 : vector<128x16xf32>
    %c0_14 = arith.constant 0 : index
    %c0_15 = arith.constant 0 : index
    %35 = vector.load %arg4[%c0_14, %c0_15] : memref<32x16xbf16, #tpu.memory_space<vmem>>, vector<32x16xbf16>
    %cst_16 = arith.constant dense<0.000000e+00> : vector<128x16xf32>
    %36 = tpu.matmul %0, %35, %cst_16 {dimension_numbers = #tpu.dot_dimension_numbers<[1], [0], [0], [1], [0, 0, 1, 1], [], []>} : vector<128x32xbf16>, vector<32x16xbf16>, vector<128x16xf32> -> vector<128x16xf32>
    %c0_17 = arith.constant 0 : index
    %c0_18 = arith.constant 0 : index
    %37 = vector.load %arg5[%c0_17, %c0_18] : memref<1x16xf32, #tpu.memory_space<vmem>>, vector<1x16xf32>
    %c0_19 = arith.constant 0 : index
    %c0_20 = arith.constant 0 : index
    %38 = vector.load %arg6[%c0_19, %c0_20] : memref<1x16xf32, #tpu.memory_space<vmem>>, vector<1x16xf32>
    %cst_21 = arith.constant dense<0.000000e+00> : vector<16xf32>
    %39 = vector.multi_reduction <add>, %36, %cst_21 [0] : vector<128x16xf32> to vector<16xf32>
    %40 = vector.shape_cast %39 : vector<16xf32> to vector<1x16xf32>
    %41 = arith.mulf %36, %36 : vector<128x16xf32>
    %cst_22 = arith.constant dense<0.000000e+00> : vector<16xf32>
    %42 = vector.multi_reduction <add>, %41, %cst_22 [0] : vector<128x16xf32> to vector<16xf32>
    %43 = vector.shape_cast %42 : vector<16xf32> to vector<1x16xf32>
    %cst_23 = arith.constant 7.812500e-03 : f32
    %44 = vector.broadcast %cst_23 : f32 to vector<1x16xf32>
    %45 = arith.mulf %40, %44 : vector<1x16xf32>
    %cst_24 = arith.constant 7.812500e-03 : f32
    %46 = vector.broadcast %cst_24 : f32 to vector<1x16xf32>
    %47 = arith.mulf %43, %46 : vector<1x16xf32>
    %48 = arith.mulf %45, %45 : vector<1x16xf32>
    %49 = arith.subf %47, %48 : vector<1x16xf32>
    %cst_25 = arith.constant 0.000000e+00 : f32
    %50 = vector.broadcast %cst_25 : f32 to vector<1x16xf32>
    %51 = arith.maximumf %49, %50 : vector<1x16xf32>
    %52 = vector.broadcast %45 : vector<1x16xf32> to vector<128x16xf32>
    %53 = arith.subf %36, %52 : vector<128x16xf32>
    %cst_26 = arith.constant 1.000000e-03 : f32
    %54 = vector.broadcast %cst_26 : f32 to vector<1x16xf32>
    %55 = arith.addf %51, %54 : vector<1x16xf32>
    %56 = math.rsqrt %55 : vector<1x16xf32>
    %57 = vector.broadcast %56 : vector<1x16xf32> to vector<128x16xf32>
    %58 = arith.mulf %53, %57 : vector<128x16xf32>
    %59 = vector.broadcast %37 : vector<1x16xf32> to vector<128x16xf32>
    %60 = arith.mulf %58, %59 : vector<128x16xf32>
    %61 = vector.broadcast %38 : vector<1x16xf32> to vector<128x16xf32>
    %62 = arith.addf %60, %61 : vector<128x16xf32>
    %63 = arith.negf %62 : vector<128x16xf32>
    %64 = math.exp %63 : vector<128x16xf32>
    %cst_27 = arith.constant 1.000000e+00 : f32
    %65 = vector.broadcast %cst_27 : f32 to vector<128x16xf32>
    %66 = arith.addf %65, %64 : vector<128x16xf32>
    %67 = arith.divf %65, %66 : vector<128x16xf32>
    %68 = arith.mulf %62, %67 : vector<128x16xf32>
    %cst_28 = arith.constant 0.000000e+00 : f32
    %69 = vector.broadcast %cst_28 : f32 to vector<2x10x10x16xf32>
    %c0_29 = arith.constant 0 : index
    %c0_30 = arith.constant 0 : index
    %c0_31 = arith.constant 0 : index
    %c0_32 = arith.constant 0 : index
    %70 = vector.load %arg28[%c0_29, %c0_30, %c0_31, %c0_32] : memref<2x10x10x16xf32, #tpu.memory_space<vmem>>, vector<2x10x10x16xf32>
    tpu.vector_store %arg28[%c0_29, %c0_30, %c0_31, %c0_32], %69 {strides = array<i32>} : memref<2x10x10x16xf32, #tpu.memory_space<vmem>>, vector<2x10x10x16xf32>,
    %71 = arith.truncf %34 : vector<128x16xf32> to vector<128x16xbf16>
    %c0_33 = arith.constant 0 : index
    %c0_34 = arith.constant 0 : index
    %72 = vector.load %arg7[%c0_33, %c0_34] : memref<16x16xbf16, #tpu.memory_space<vmem>>, vector<16x16xbf16>
    %cst_35 = arith.constant dense<0.000000e+00> : vector<128x16xf32>
    %73 = tpu.matmul %71, %72, %cst_35 {dimension_numbers = #tpu.dot_dimension_numbers<[1], [0], [0], [1], [0, 0, 1, 1], [], []>} : vector<128x16xbf16>, vector<16x16xbf16>, vector<128x16xf32> -> vector<128x16xf32>
    %c0_36 = arith.constant 0 : index
    %c0_37 = arith.constant 0 : index
    %74 = vector.load %arg8[%c0_36, %c0_37] : memref<1x16xf32, #tpu.memory_space<vmem>>, vector<1x16xf32>
    %c0_38 = arith.constant 0 : index
    %c0_39 = arith.constant 0 : index
    %75 = vector.load %arg9[%c0_38, %c0_39] : memref<1x16xf32, #tpu.memory_space<vmem>>, vector<1x16xf32>
    %cst_40 = arith.constant dense<0.000000e+00> : vector<16xf32>
    %76 = vector.multi_reduction <add>, %73, %cst_40 [0] : vector<128x16xf32> to vector<16xf32>
    %77 = vector.shape_cast %76 : vector<16xf32> to vector<1x16xf32>
    %78 = arith.mulf %73, %73 : vector<128x16xf32>
    %cst_41 = arith.constant dense<0.000000e+00> : vector<16xf32>
    %79 = vector.multi_reduction <add>, %78, %cst_41 [0] : vector<128x16xf32> to vector<16xf32>
    %80 = vector.shape_cast %79 : vector<16xf32> to vector<1x16xf32>
    %cst_42 = arith.constant 7.812500e-03 : f32
    %81 = vector.broadcast %cst_42 : f32 to vector<1x16xf32>
    %82 = arith.mulf %77, %81 : vector<1x16xf32>
    %cst_43 = arith.constant 7.812500e-03 : f32
    %83 = vector.broadcast %cst_43 : f32 to vector<1x16xf32>
    %84 = arith.mulf %80, %83 : vector<1x16xf32>
    %85 = arith.mulf %82, %82 : vector<1x16xf32>
    %86 = arith.subf %84, %85 : vector<1x16xf32>
    %cst_44 = arith.constant 0.000000e+00 : f32
    %87 = vector.broadcast %cst_44 : f32 to vector<1x16xf32>
    %88 = arith.maximumf %86, %87 : vector<1x16xf32>
    %89 = vector.broadcast %82 : vector<1x16xf32> to vector<128x16xf32>
    %90 = arith.subf %73, %89 : vector<128x16xf32>
    %cst_45 = arith.constant 1.000000e-03 : f32
    %91 = vector.broadcast %cst_45 : f32 to vector<1x16xf32>
    %92 = arith.addf %88, %91 : vector<1x16xf32>
    %93 = math.rsqrt %92 : vector<1x16xf32>
    %94 = vector.broadcast %93 : vector<1x16xf32> to vector<128x16xf32>
    %95 = arith.mulf %90, %94 : vector<128x16xf32>
    %96 = vector.broadcast %74 : vector<1x16xf32> to vector<128x16xf32>
    %97 = arith.mulf %95, %96 : vector<128x16xf32>
    %98 = vector.broadcast %75 : vector<1x16xf32> to vector<128x16xf32>
    %99 = arith.addf %97, %98 : vector<128x16xf32>
    %100 = arith.negf %99 : vector<128x16xf32>
    %101 = math.exp %100 : vector<128x16xf32>
    %cst_46 = arith.constant 1.000000e+00 : f32
    %102 = vector.broadcast %cst_46 : f32 to vector<128x16xf32>
    %103 = arith.addf %102, %101 : vector<128x16xf32>
    %104 = arith.divf %102, %103 : vector<128x16xf32>
    %105 = arith.mulf %99, %104 : vector<128x16xf32>
    %106 = vector.shape_cast %105 : vector<128x16xf32> to vector<2x8x8x16xf32>
    %c0_47 = arith.constant 0 : index
    %c1 = arith.constant 1 : index
    %c1_48 = arith.constant 1 : index
    %c0_49 = arith.constant 0 : index
    %107 = vector.load %arg28[%c0_47, %c1, %c1_48, %c0_49] : memref<2x10x10x16xf32, #tpu.memory_space<vmem>>, vector<2x8x8x16xf32>
    tpu.vector_store %arg28[%c0_47, %c1, %c1_48, %c0_49], %106 {strides = array<i32>} : memref<2x10x10x16xf32, #tpu.memory_space<vmem>>, vector<2x8x8x16xf32>,
    %c0_50 = arith.constant 0 : index
    %c0_51 = arith.constant 0 : index
    %c0_52 = arith.constant 0 : index
    %c0_53 = arith.constant 0 : index
    %108 = vector.load %arg28[%c0_50, %c0_51, %c0_52, %c0_53] : memref<2x10x10x16xf32, #tpu.memory_space<vmem>>, vector<2x8x8x16xf32>
    %109 = vector.shape_cast %108 : vector<2x8x8x16xf32> to vector<128x16xf32>
    %c0_54 = arith.constant 0 : index
    %c0_55 = arith.constant 0 : index
    %c1_56 = arith.constant 1 : index
    %c0_57 = arith.constant 0 : index
    %110 = vector.load %arg28[%c0_54, %c0_55, %c1_56, %c0_57] : memref<2x10x10x16xf32, #tpu.memory_space<vmem>>, vector<2x8x8x16xf32>
    %111 = vector.shape_cast %110 : vector<2x8x8x16xf32> to vector<128x16xf32>
    %c0_58 = arith.constant 0 : index
    %c0_59 = arith.constant 0 : index
    %c2 = arith.constant 2 : index
    %c0_60 = arith.constant 0 : index
    %112 = vector.load %arg28[%c0_58, %c0_59, %c2, %c0_60] : memref<2x10x10x16xf32, #tpu.memory_space<vmem>>, vector<2x8x8x16xf32>
    %113 = vector.shape_cast %112 : vector<2x8x8x16xf32> to vector<128x16xf32>
    %c0_61 = arith.constant 0 : index
    %c1_62 = arith.constant 1 : index
    %c0_63 = arith.constant 0 : index
    %c0_64 = arith.constant 0 : index
    %114 = vector.load %arg28[%c0_61, %c1_62, %c0_63, %c0_64] : memref<2x10x10x16xf32, #tpu.memory_space<vmem>>, vector<2x8x8x16xf32>
    %115 = vector.shape_cast %114 : vector<2x8x8x16xf32> to vector<128x16xf32>
    %c0_65 = arith.constant 0 : index
    %c1_66 = arith.constant 1 : index
    %c1_67 = arith.constant 1 : index
    %c0_68 = arith.constant 0 : index
    %116 = vector.load %arg28[%c0_65, %c1_66, %c1_67, %c0_68] : memref<2x10x10x16xf32, #tpu.memory_space<vmem>>, vector<2x8x8x16xf32>
    %117 = vector.shape_cast %116 : vector<2x8x8x16xf32> to vector<128x16xf32>
    %c0_69 = arith.constant 0 : index
    %c1_70 = arith.constant 1 : index
    %c2_71 = arith.constant 2 : index
    %c0_72 = arith.constant 0 : index
    %118 = vector.load %arg28[%c0_69, %c1_70, %c2_71, %c0_72] : memref<2x10x10x16xf32, #tpu.memory_space<vmem>>, vector<2x8x8x16xf32>
    %119 = vector.shape_cast %118 : vector<2x8x8x16xf32> to vector<128x16xf32>
    %c0_73 = arith.constant 0 : index
    %c2_74 = arith.constant 2 : index
    %c0_75 = arith.constant 0 : index
    %c0_76 = arith.constant 0 : index
    %120 = vector.load %arg28[%c0_73, %c2_74, %c0_75, %c0_76] : memref<2x10x10x16xf32, #tpu.memory_space<vmem>>, vector<2x8x8x16xf32>
    %121 = vector.shape_cast %120 : vector<2x8x8x16xf32> to vector<128x16xf32>
    %c0_77 = arith.constant 0 : index
    %c2_78 = arith.constant 2 : index
    %c1_79 = arith.constant 1 : index
    %c0_80 = arith.constant 0 : index
    %122 = vector.load %arg28[%c0_77, %c2_78, %c1_79, %c0_80] : memref<2x10x10x16xf32, #tpu.memory_space<vmem>>, vector<2x8x8x16xf32>
    %123 = vector.shape_cast %122 : vector<2x8x8x16xf32> to vector<128x16xf32>
    %c0_81 = arith.constant 0 : index
    %c2_82 = arith.constant 2 : index
    %c2_83 = arith.constant 2 : index
    %c0_84 = arith.constant 0 : index
    %124 = vector.load %arg28[%c0_81, %c2_82, %c2_83, %c0_84] : memref<2x10x10x16xf32, #tpu.memory_space<vmem>>, vector<2x8x8x16xf32>
    %125 = vector.shape_cast %124 : vector<2x8x8x16xf32> to vector<128x16xf32>
    %126 = tpu.concatenate %109, %111, %113, %115, %117, %119, %121, %123, %125 in 1 : vector<128x16xf32>, vector<128x16xf32>, vector<128x16xf32>, vector<128x16xf32>, vector<128x16xf32>, vector<128x16xf32>, vector<128x16xf32>, vector<128x16xf32>, vector<128x16xf32> -> vector<128x144xf32>
    %127 = arith.truncf %126 : vector<128x144xf32> to vector<128x144xbf16>
    %c0_85 = arith.constant 0 : index
    %c0_86 = arith.constant 0 : index
    %128 = vector.load %arg10[%c0_85, %c0_86] : memref<144x16xbf16, #tpu.memory_space<vmem>>, vector<144x16xbf16>
    %cst_87 = arith.constant dense<0.000000e+00> : vector<128x16xf32>
    %129 = tpu.matmul %127, %128, %cst_87 {dimension_numbers = #tpu.dot_dimension_numbers<[1], [0], [0], [1], [0, 0, 1, 1], [], []>} : vector<128x144xbf16>, vector<144x16xbf16>, vector<128x16xf32> -> vector<128x16xf32>
    %c0_88 = arith.constant 0 : index
    %c0_89 = arith.constant 0 : index
    %130 = vector.load %arg11[%c0_88, %c0_89] : memref<1x16xf32, #tpu.memory_space<vmem>>, vector<1x16xf32>
    %c0_90 = arith.constant 0 : index
    %c0_91 = arith.constant 0 : index
    %131 = vector.load %arg12[%c0_90, %c0_91] : memref<1x16xf32, #tpu.memory_space<vmem>>, vector<1x16xf32>
    %cst_92 = arith.constant dense<0.000000e+00> : vector<16xf32>
    %132 = vector.multi_reduction <add>, %129, %cst_92 [0] : vector<128x16xf32> to vector<16xf32>
    %133 = vector.shape_cast %132 : vector<16xf32> to vector<1x16xf32>
    %134 = arith.mulf %129, %129 : vector<128x16xf32>
    %cst_93 = arith.constant dense<0.000000e+00> : vector<16xf32>
    %135 = vector.multi_reduction <add>, %134, %cst_93 [0] : vector<128x16xf32> to vector<16xf32>
    %136 = vector.shape_cast %135 : vector<16xf32> to vector<1x16xf32>
    %cst_94 = arith.constant 7.812500e-03 : f32
    %137 = vector.broadcast %cst_94 : f32 to vector<1x16xf32>
    %138 = arith.mulf %133, %137 : vector<1x16xf32>
    %cst_95 = arith.constant 7.812500e-03 : f32
    %139 = vector.broadcast %cst_95 : f32 to vector<1x16xf32>
    %140 = arith.mulf %136, %139 : vector<1x16xf32>
    %141 = arith.mulf %138, %138 : vector<1x16xf32>
    %142 = arith.subf %140, %141 : vector<1x16xf32>
    %cst_96 = arith.constant 0.000000e+00 : f32
    %143 = vector.broadcast %cst_96 : f32 to vector<1x16xf32>
    %144 = arith.maximumf %142, %143 : vector<1x16xf32>
    %145 = vector.broadcast %138 : vector<1x16xf32> to vector<128x16xf32>
    %146 = arith.subf %129, %145 : vector<128x16xf32>
    %cst_97 = arith.constant 1.000000e-03 : f32
    %147 = vector.broadcast %cst_97 : f32 to vector<1x16xf32>
    %148 = arith.addf %144, %147 : vector<1x16xf32>
    %149 = math.rsqrt %148 : vector<1x16xf32>
    %150 = vector.broadcast %149 : vector<1x16xf32> to vector<128x16xf32>
    %151 = arith.mulf %146, %150 : vector<128x16xf32>
    %152 = vector.broadcast %130 : vector<1x16xf32> to vector<128x16xf32>
    %153 = arith.mulf %151, %152 : vector<128x16xf32>
    %154 = vector.broadcast %131 : vector<1x16xf32> to vector<128x16xf32>
    %155 = arith.addf %153, %154 : vector<128x16xf32>
    %156 = arith.negf %155 : vector<128x16xf32>
    %157 = math.exp %156 : vector<128x16xf32>
    %cst_98 = arith.constant 1.000000e+00 : f32
    %158 = vector.broadcast %cst_98 : f32 to vector<128x16xf32>
    %159 = arith.addf %158, %157 : vector<128x16xf32>
    %160 = arith.divf %158, %159 : vector<128x16xf32>
    %161 = arith.mulf %155, %160 : vector<128x16xf32>
    %162 = arith.addf %34, %161 : vector<128x16xf32>
    %163 = tpu.concatenate %162, %68 in 1 : vector<128x16xf32>, vector<128x16xf32> -> vector<128x32xf32>
    %164 = arith.truncf %163 : vector<128x32xf32> to vector<128x32xbf16>
    %c0_99 = arith.constant 0 : index
    %c0_100 = arith.constant 0 : index
    %165 = vector.load %arg13[%c0_99, %c0_100] : memref<32x32xbf16, #tpu.memory_space<vmem>>, vector<32x32xbf16>
    %cst_101 = arith.constant dense<0.000000e+00> : vector<128x32xf32>
    %166 = tpu.matmul %164, %165, %cst_101 {dimension_numbers = #tpu.dot_dimension_numbers<[1], [0], [0], [1], [0, 0, 1, 1], [], []>} : vector<128x32xbf16>, vector<32x32xbf16>, vector<128x32xf32> -> vector<128x32xf32>
    %c0_102 = arith.constant 0 : index
    %c0_103 = arith.constant 0 : index
    %167 = vector.load %arg14[%c0_102, %c0_103] : memref<1x32xf32, #tpu.memory_space<vmem>>, vector<1x32xf32>
    %c0_104 = arith.constant 0 : index
    %c0_105 = arith.constant 0 : index
    %168 = vector.load %arg15[%c0_104, %c0_105] : memref<1x32xf32, #tpu.memory_space<vmem>>, vector<1x32xf32>
    %cst_106 = arith.constant dense<0.000000e+00> : vector<32xf32>
    %169 = vector.multi_reduction <add>, %166, %cst_106 [0] : vector<128x32xf32> to vector<32xf32>
    %170 = vector.shape_cast %169 : vector<32xf32> to vector<1x32xf32>
    %171 = arith.mulf %166, %166 : vector<128x32xf32>
    %cst_107 = arith.constant dense<0.000000e+00> : vector<32xf32>
    %172 = vector.multi_reduction <add>, %171, %cst_107 [0] : vector<128x32xf32> to vector<32xf32>
    %173 = vector.shape_cast %172 : vector<32xf32> to vector<1x32xf32>
    %cst_108 = arith.constant 7.812500e-03 : f32
    %174 = vector.broadcast %cst_108 : f32 to vector<1x32xf32>
    %175 = arith.mulf %170, %174 : vector<1x32xf32>
    %cst_109 = arith.constant 7.812500e-03 : f32
    %176 = vector.broadcast %cst_109 : f32 to vector<1x32xf32>
    %177 = arith.mulf %173, %176 : vector<1x32xf32>
    %178 = arith.mulf %175, %175 : vector<1x32xf32>
    %179 = arith.subf %177, %178 : vector<1x32xf32>
    %cst_110 = arith.constant 0.000000e+00 : f32
    %180 = vector.broadcast %cst_110 : f32 to vector<1x32xf32>
    %181 = arith.maximumf %179, %180 : vector<1x32xf32>
    %182 = vector.broadcast %175 : vector<1x32xf32> to vector<128x32xf32>
    %183 = arith.subf %166, %182 : vector<128x32xf32>
    %cst_111 = arith.constant 1.000000e-03 : f32
    %184 = vector.broadcast %cst_111 : f32 to vector<1x32xf32>
    %185 = arith.addf %181, %184 : vector<1x32xf32>
    %186 = math.rsqrt %185 : vector<1x32xf32>
    %187 = vector.broadcast %186 : vector<1x32xf32> to vector<128x32xf32>
    %188 = arith.mulf %183, %187 : vector<128x32xf32>
    %189 = vector.broadcast %167 : vector<1x32xf32> to vector<128x32xf32>
    %190 = arith.mulf %188, %189 : vector<128x32xf32>
    %191 = vector.broadcast %168 : vector<1x32xf32> to vector<128x32xf32>
    %192 = arith.addf %190, %191 : vector<128x32xf32>
    %193 = arith.negf %192 : vector<128x32xf32>
    %194 = math.exp %193 : vector<128x32xf32>
    %cst_112 = arith.constant 1.000000e+00 : f32
    %195 = vector.broadcast %cst_112 : f32 to vector<128x32xf32>
    %196 = arith.addf %195, %194 : vector<128x32xf32>
    %197 = arith.divf %195, %196 : vector<128x32xf32>
    %198 = arith.mulf %192, %197 : vector<128x32xf32>
    %199 = arith.truncf %198 : vector<128x32xf32> to vector<128x32xbf16>
    %c0_113 = arith.constant 0 : index
    %c0_114 = arith.constant 0 : index
    %200 = vector.load %arg16[%c0_113, %c0_114] : memref<32x16xbf16, #tpu.memory_space<vmem>>, vector<32x16xbf16>
    %cst_115 = arith.constant dense<0.000000e+00> : vector<128x16xf32>
    %201 = tpu.matmul %199, %200, %cst_115 {dimension_numbers = #tpu.dot_dimension_numbers<[1], [0], [0], [1], [0, 0, 1, 1], [], []>} : vector<128x32xbf16>, vector<32x16xbf16>, vector<128x16xf32> -> vector<128x16xf32>
    %c0_116 = arith.constant 0 : index
    %c0_117 = arith.constant 0 : index
    %202 = vector.load %arg17[%c0_116, %c0_117] : memref<1x16xf32, #tpu.memory_space<vmem>>, vector<1x16xf32>
    %c0_118 = arith.constant 0 : index
    %c0_119 = arith.constant 0 : index
    %203 = vector.load %arg18[%c0_118, %c0_119] : memref<1x16xf32, #tpu.memory_space<vmem>>, vector<1x16xf32>
    %cst_120 = arith.constant dense<0.000000e+00> : vector<16xf32>
    %204 = vector.multi_reduction <add>, %201, %cst_120 [0] : vector<128x16xf32> to vector<16xf32>
    %205 = vector.shape_cast %204 : vector<16xf32> to vector<1x16xf32>
    %206 = arith.mulf %201, %201 : vector<128x16xf32>
    %cst_121 = arith.constant dense<0.000000e+00> : vector<16xf32>
    %207 = vector.multi_reduction <add>, %206, %cst_121 [0] : vector<128x16xf32> to vector<16xf32>
    %208 = vector.shape_cast %207 : vector<16xf32> to vector<1x16xf32>
    %cst_122 = arith.constant 7.812500e-03 : f32
    %209 = vector.broadcast %cst_122 : f32 to vector<1x16xf32>
    %210 = arith.mulf %205, %209 : vector<1x16xf32>
    %cst_123 = arith.constant 7.812500e-03 : f32
    %211 = vector.broadcast %cst_123 : f32 to vector<1x16xf32>
    %212 = arith.mulf %208, %211 : vector<1x16xf32>
    %213 = arith.mulf %210, %210 : vector<1x16xf32>
    %214 = arith.subf %212, %213 : vector<1x16xf32>
    %cst_124 = arith.constant 0.000000e+00 : f32
    %215 = vector.broadcast %cst_124 : f32 to vector<1x16xf32>
    %216 = arith.maximumf %214, %215 : vector<1x16xf32>
    %217 = vector.broadcast %210 : vector<1x16xf32> to vector<128x16xf32>
    %218 = arith.subf %201, %217 : vector<128x16xf32>
    %cst_125 = arith.constant 1.000000e-03 : f32
    %219 = vector.broadcast %cst_125 : f32 to vector<1x16xf32>
    %220 = arith.addf %216, %219 : vector<1x16xf32>
    %221 = math.rsqrt %220 : vector<1x16xf32>
    %222 = vector.broadcast %221 : vector<1x16xf32> to vector<128x16xf32>
    %223 = arith.mulf %218, %222 : vector<128x16xf32>
    %224 = vector.broadcast %202 : vector<1x16xf32> to vector<128x16xf32>
    %225 = arith.mulf %223, %224 : vector<128x16xf32>
    %226 = vector.broadcast %203 : vector<1x16xf32> to vector<128x16xf32>
    %227 = arith.addf %225, %226 : vector<128x16xf32>
    %228 = arith.negf %227 : vector<128x16xf32>
    %229 = math.exp %228 : vector<128x16xf32>
    %cst_126 = arith.constant 1.000000e+00 : f32
    %230 = vector.broadcast %cst_126 : f32 to vector<128x16xf32>
    %231 = arith.addf %230, %229 : vector<128x16xf32>
    %232 = arith.divf %230, %231 : vector<128x16xf32>
    %233 = arith.mulf %227, %232 : vector<128x16xf32>
    %cst_127 = arith.constant 0xFF800000 : f32
    %234 = vector.broadcast %cst_127 : f32 to vector<2x8x12x16xf32>
    %c0_128 = arith.constant 0 : index
    %c0_129 = arith.constant 0 : index
    %c0_130 = arith.constant 0 : index
    %c0_131 = arith.constant 0 : index
    %235 = vector.load %arg29[%c0_128, %c0_129, %c0_130, %c0_131] : memref<2x8x12x16xf32, #tpu.memory_space<vmem>>, vector<2x8x12x16xf32>
    tpu.vector_store %arg29[%c0_128, %c0_129, %c0_130, %c0_131], %234 {strides = array<i32>} : memref<2x8x12x16xf32, #tpu.memory_space<vmem>>, vector<2x8x12x16xf32>,
    %cst_132 = arith.constant 0xFF800000 : f32
    %236 = vector.broadcast %cst_132 : f32 to vector<2x12x8x16xf32>
    %c0_133 = arith.constant 0 : index
    %c0_134 = arith.constant 0 : index
    %c0_135 = arith.constant 0 : index
    %c0_136 = arith.constant 0 : index
    %237 = vector.load %arg30[%c0_133, %c0_134, %c0_135, %c0_136] : memref<2x12x8x16xf32, #tpu.memory_space<vmem>>, vector<2x12x8x16xf32>
    tpu.vector_store %arg30[%c0_133, %c0_134, %c0_135, %c0_136], %236 {strides = array<i32>} : memref<2x12x8x16xf32, #tpu.memory_space<vmem>>, vector<2x12x8x16xf32>,
    %238 = vector.shape_cast %233 : vector<128x16xf32> to vector<2x8x8x16xf32>
    %c0_137 = arith.constant 0 : index
    %c0_138 = arith.constant 0 : index
    %c2_139 = arith.constant 2 : index
    %c0_140 = arith.constant 0 : index
    %239 = vector.load %arg29[%c0_137, %c0_138, %c2_139, %c0_140] : memref<2x8x12x16xf32, #tpu.memory_space<vmem>>, vector<2x8x8x16xf32>
    tpu.vector_store %arg29[%c0_137, %c0_138, %c2_139, %c0_140], %238 {strides = array<i32>} : memref<2x8x12x16xf32, #tpu.memory_space<vmem>>, vector<2x8x8x16xf32>,
    %c0_141 = arith.constant 0 : index
    %c0_142 = arith.constant 0 : index
    %c0_143 = arith.constant 0 : index
    %c0_144 = arith.constant 0 : index
    %240 = vector.load %arg29[%c0_141, %c0_142, %c0_143, %c0_144] : memref<2x8x12x16xf32, #tpu.memory_space<vmem>>, vector<2x8x8x16xf32>
    %c0_145 = arith.constant 0 : index
    %c0_146 = arith.constant 0 : index
    %c1_147 = arith.constant 1 : index
    %c0_148 = arith.constant 0 : index
    %241 = vector.load %arg29[%c0_145, %c0_146, %c1_147, %c0_148] : memref<2x8x12x16xf32, #tpu.memory_space<vmem>>, vector<2x8x8x16xf32>
    %242 = arith.maximumf %240, %241 : vector<2x8x8x16xf32>
    %c0_149 = arith.constant 0 : index
    %c0_150 = arith.constant 0 : index
    %c2_151 = arith.constant 2 : index
    %c0_152 = arith.constant 0 : index
    %243 = vector.load %arg29[%c0_149, %c0_150, %c2_151, %c0_152] : memref<2x8x12x16xf32, #tpu.memory_space<vmem>>, vector<2x8x8x16xf32>
    %244 = arith.maximumf %242, %243 : vector<2x8x8x16xf32>
    %c0_153 = arith.constant 0 : index
    %c0_154 = arith.constant 0 : index
    %c3 = arith.constant 3 : index
    %c0_155 = arith.constant 0 : index
    %245 = vector.load %arg29[%c0_153, %c0_154, %c3, %c0_155] : memref<2x8x12x16xf32, #tpu.memory_space<vmem>>, vector<2x8x8x16xf32>
    %246 = arith.maximumf %244, %245 : vector<2x8x8x16xf32>
    %c0_156 = arith.constant 0 : index
    %c0_157 = arith.constant 0 : index
    %c4 = arith.constant 4 : index
    %c0_158 = arith.constant 0 : index
    %247 = vector.load %arg29[%c0_156, %c0_157, %c4, %c0_158] : memref<2x8x12x16xf32, #tpu.memory_space<vmem>>, vector<2x8x8x16xf32>
    %248 = arith.maximumf %246, %247 : vector<2x8x8x16xf32>
    %c0_159 = arith.constant 0 : index
    %c2_160 = arith.constant 2 : index
    %c0_161 = arith.constant 0 : index
    %c0_162 = arith.constant 0 : index
    %249 = vector.load %arg30[%c0_159, %c2_160, %c0_161, %c0_162] : memref<2x12x8x16xf32, #tpu.memory_space<vmem>>, vector<2x8x8x16xf32>
    tpu.vector_store %arg30[%c0_159, %c2_160, %c0_161, %c0_162], %248 {strides = array<i32>} : memref<2x12x8x16xf32, #tpu.memory_space<vmem>>, vector<2x8x8x16xf32>,
    %c0_163 = arith.constant 0 : index
    %c0_164 = arith.constant 0 : index
    %c0_165 = arith.constant 0 : index
    %c0_166 = arith.constant 0 : index
    %250 = vector.load %arg30[%c0_163, %c0_164, %c0_165, %c0_166] : memref<2x12x8x16xf32, #tpu.memory_space<vmem>>, vector<2x8x8x16xf32>
    %c0_167 = arith.constant 0 : index
    %c1_168 = arith.constant 1 : index
    %c0_169 = arith.constant 0 : index
    %c0_170 = arith.constant 0 : index
    %251 = vector.load %arg30[%c0_167, %c1_168, %c0_169, %c0_170] : memref<2x12x8x16xf32, #tpu.memory_space<vmem>>, vector<2x8x8x16xf32>
    %252 = arith.maximumf %250, %251 : vector<2x8x8x16xf32>
    %c0_171 = arith.constant 0 : index
    %c2_172 = arith.constant 2 : index
    %c0_173 = arith.constant 0 : index
    %c0_174 = arith.constant 0 : index
    %253 = vector.load %arg30[%c0_171, %c2_172, %c0_173, %c0_174] : memref<2x12x8x16xf32, #tpu.memory_space<vmem>>, vector<2x8x8x16xf32>
    %254 = arith.maximumf %252, %253 : vector<2x8x8x16xf32>
    %c0_175 = arith.constant 0 : index
    %c3_176 = arith.constant 3 : index
    %c0_177 = arith.constant 0 : index
    %c0_178 = arith.constant 0 : index
    %255 = vector.load %arg30[%c0_175, %c3_176, %c0_177, %c0_178] : memref<2x12x8x16xf32, #tpu.memory_space<vmem>>, vector<2x8x8x16xf32>
    %256 = arith.maximumf %254, %255 : vector<2x8x8x16xf32>
    %c0_179 = arith.constant 0 : index
    %c4_180 = arith.constant 4 : index
    %c0_181 = arith.constant 0 : index
    %c0_182 = arith.constant 0 : index
    %257 = vector.load %arg30[%c0_179, %c4_180, %c0_181, %c0_182] : memref<2x12x8x16xf32, #tpu.memory_space<vmem>>, vector<2x8x8x16xf32>
    %258 = arith.maximumf %256, %257 : vector<2x8x8x16xf32>
    %c0_183 = arith.constant 0 : index
    %c0_184 = arith.constant 0 : index
    %c2_185 = arith.constant 2 : index
    %c0_186 = arith.constant 0 : index
    %259 = vector.load %arg29[%c0_183, %c0_184, %c2_185, %c0_186] : memref<2x8x12x16xf32, #tpu.memory_space<vmem>>, vector<2x8x8x16xf32>
    tpu.vector_store %arg29[%c0_183, %c0_184, %c2_185, %c0_186], %258 {strides = array<i32>} : memref<2x8x12x16xf32, #tpu.memory_space<vmem>>, vector<2x8x8x16xf32>,
    %c0_187 = arith.constant 0 : index
    %c0_188 = arith.constant 0 : index
    %c0_189 = arith.constant 0 : index
    %c0_190 = arith.constant 0 : index
    %260 = vector.load %arg29[%c0_187, %c0_188, %c0_189, %c0_190] : memref<2x8x12x16xf32, #tpu.memory_space<vmem>>, vector<2x8x8x16xf32>
    %c0_191 = arith.constant 0 : index
    %c0_192 = arith.constant 0 : index
    %c1_193 = arith.constant 1 : index
    %c0_194 = arith.constant 0 : index
    %261 = vector.load %arg29[%c0_191, %c0_192, %c1_193, %c0_194] : memref<2x8x12x16xf32, #tpu.memory_space<vmem>>, vector<2x8x8x16xf32>
    %262 = arith.maximumf %260, %261 : vector<2x8x8x16xf32>
    %c0_195 = arith.constant 0 : index
    %c0_196 = arith.constant 0 : index
    %c2_197 = arith.constant 2 : index
    %c0_198 = arith.constant 0 : index
    %263 = vector.load %arg29[%c0_195, %c0_196, %c2_197, %c0_198] : memref<2x8x12x16xf32, #tpu.memory_space<vmem>>, vector<2x8x8x16xf32>
    %264 = arith.maximumf %262, %263 : vector<2x8x8x16xf32>
    %c0_199 = arith.constant 0 : index
    %c0_200 = arith.constant 0 : index
    %c3_201 = arith.constant 3 : index
    %c0_202 = arith.constant 0 : index
    %265 = vector.load %arg29[%c0_199, %c0_200, %c3_201, %c0_202] : memref<2x8x12x16xf32, #tpu.memory_space<vmem>>, vector<2x8x8x16xf32>
    %266 = arith.maximumf %264, %265 : vector<2x8x8x16xf32>
    %c0_203 = arith.constant 0 : index
    %c0_204 = arith.constant 0 : index
    %c4_205 = arith.constant 4 : index
    %c0_206 = arith.constant 0 : index
    %267 = vector.load %arg29[%c0_203, %c0_204, %c4_205, %c0_206] : memref<2x8x12x16xf32, #tpu.memory_space<vmem>>, vector<2x8x8x16xf32>
    %268 = arith.maximumf %266, %267 : vector<2x8x8x16xf32>
    %c0_207 = arith.constant 0 : index
    %c2_208 = arith.constant 2 : index
    %c0_209 = arith.constant 0 : index
    %c0_210 = arith.constant 0 : index
    %269 = vector.load %arg30[%c0_207, %c2_208, %c0_209, %c0_210] : memref<2x12x8x16xf32, #tpu.memory_space<vmem>>, vector<2x8x8x16xf32>
    tpu.vector_store %arg30[%c0_207, %c2_208, %c0_209, %c0_210], %268 {strides = array<i32>} : memref<2x12x8x16xf32, #tpu.memory_space<vmem>>, vector<2x8x8x16xf32>,
    %c0_211 = arith.constant 0 : index
    %c0_212 = arith.constant 0 : index
    %c0_213 = arith.constant 0 : index
    %c0_214 = arith.constant 0 : index
    %270 = vector.load %arg30[%c0_211, %c0_212, %c0_213, %c0_214] : memref<2x12x8x16xf32, #tpu.memory_space<vmem>>, vector<2x8x8x16xf32>
    %c0_215 = arith.constant 0 : index
    %c1_216 = arith.constant 1 : index
    %c0_217 = arith.constant 0 : index
    %c0_218 = arith.constant 0 : index
    %271 = vector.load %arg30[%c0_215, %c1_216, %c0_217, %c0_218] : memref<2x12x8x16xf32, #tpu.memory_space<vmem>>, vector<2x8x8x16xf32>
    %272 = arith.maximumf %270, %271 : vector<2x8x8x16xf32>
    %c0_219 = arith.constant 0 : index
    %c2_220 = arith.constant 2 : index
    %c0_221 = arith.constant 0 : index
    %c0_222 = arith.constant 0 : index
    %273 = vector.load %arg30[%c0_219, %c2_220, %c0_221, %c0_222] : memref<2x12x8x16xf32, #tpu.memory_space<vmem>>, vector<2x8x8x16xf32>
    %274 = arith.maximumf %272, %273 : vector<2x8x8x16xf32>
    %c0_223 = arith.constant 0 : index
    %c3_224 = arith.constant 3 : index
    %c0_225 = arith.constant 0 : index
    %c0_226 = arith.constant 0 : index
    %275 = vector.load %arg30[%c0_223, %c3_224, %c0_225, %c0_226] : memref<2x12x8x16xf32, #tpu.memory_space<vmem>>, vector<2x8x8x16xf32>
    %276 = arith.maximumf %274, %275 : vector<2x8x8x16xf32>
    %c0_227 = arith.constant 0 : index
    %c4_228 = arith.constant 4 : index
    %c0_229 = arith.constant 0 : index
    %c0_230 = arith.constant 0 : index
    %277 = vector.load %arg30[%c0_227, %c4_228, %c0_229, %c0_230] : memref<2x12x8x16xf32, #tpu.memory_space<vmem>>, vector<2x8x8x16xf32>
    %278 = arith.maximumf %276, %277 : vector<2x8x8x16xf32>
    %c0_231 = arith.constant 0 : index
    %c0_232 = arith.constant 0 : index
    %c2_233 = arith.constant 2 : index
    %c0_234 = arith.constant 0 : index
    %279 = vector.load %arg29[%c0_231, %c0_232, %c2_233, %c0_234] : memref<2x8x12x16xf32, #tpu.memory_space<vmem>>, vector<2x8x8x16xf32>
    tpu.vector_store %arg29[%c0_231, %c0_232, %c2_233, %c0_234], %278 {strides = array<i32>} : memref<2x8x12x16xf32, #tpu.memory_space<vmem>>, vector<2x8x8x16xf32>,
    %c0_235 = arith.constant 0 : index
    %c0_236 = arith.constant 0 : index
    %c0_237 = arith.constant 0 : index
    %c0_238 = arith.constant 0 : index
    %280 = vector.load %arg29[%c0_235, %c0_236, %c0_237, %c0_238] : memref<2x8x12x16xf32, #tpu.memory_space<vmem>>, vector<2x8x8x16xf32>
    %c0_239 = arith.constant 0 : index
    %c0_240 = arith.constant 0 : index
    %c1_241 = arith.constant 1 : index
    %c0_242 = arith.constant 0 : index
    %281 = vector.load %arg29[%c0_239, %c0_240, %c1_241, %c0_242] : memref<2x8x12x16xf32, #tpu.memory_space<vmem>>, vector<2x8x8x16xf32>
    %282 = arith.maximumf %280, %281 : vector<2x8x8x16xf32>
    %c0_243 = arith.constant 0 : index
    %c0_244 = arith.constant 0 : index
    %c2_245 = arith.constant 2 : index
    %c0_246 = arith.constant 0 : index
    %283 = vector.load %arg29[%c0_243, %c0_244, %c2_245, %c0_246] : memref<2x8x12x16xf32, #tpu.memory_space<vmem>>, vector<2x8x8x16xf32>
    %284 = arith.maximumf %282, %283 : vector<2x8x8x16xf32>
    %c0_247 = arith.constant 0 : index
    %c0_248 = arith.constant 0 : index
    %c3_249 = arith.constant 3 : index
    %c0_250 = arith.constant 0 : index
    %285 = vector.load %arg29[%c0_247, %c0_248, %c3_249, %c0_250] : memref<2x8x12x16xf32, #tpu.memory_space<vmem>>, vector<2x8x8x16xf32>
    %286 = arith.maximumf %284, %285 : vector<2x8x8x16xf32>
    %c0_251 = arith.constant 0 : index
    %c0_252 = arith.constant 0 : index
    %c4_253 = arith.constant 4 : index
    %c0_254 = arith.constant 0 : index
    %287 = vector.load %arg29[%c0_251, %c0_252, %c4_253, %c0_254] : memref<2x8x12x16xf32, #tpu.memory_space<vmem>>, vector<2x8x8x16xf32>
    %288 = arith.maximumf %286, %287 : vector<2x8x8x16xf32>
    %c0_255 = arith.constant 0 : index
    %c2_256 = arith.constant 2 : index
    %c0_257 = arith.constant 0 : index
    %c0_258 = arith.constant 0 : index
    %289 = vector.load %arg30[%c0_255, %c2_256, %c0_257, %c0_258] : memref<2x12x8x16xf32, #tpu.memory_space<vmem>>, vector<2x8x8x16xf32>
    tpu.vector_store %arg30[%c0_255, %c2_256, %c0_257, %c0_258], %288 {strides = array<i32>} : memref<2x12x8x16xf32, #tpu.memory_space<vmem>>, vector<2x8x8x16xf32>,
    %c0_259 = arith.constant 0 : index
    %c0_260 = arith.constant 0 : index
    %c0_261 = arith.constant 0 : index
    %c0_262 = arith.constant 0 : index
    %290 = vector.load %arg30[%c0_259, %c0_260, %c0_261, %c0_262] : memref<2x12x8x16xf32, #tpu.memory_space<vmem>>, vector<2x8x8x16xf32>
    %c0_263 = arith.constant 0 : index
    %c1_264 = arith.constant 1 : index
    %c0_265 = arith.constant 0 : index
    %c0_266 = arith.constant 0 : index
    %291 = vector.load %arg30[%c0_263, %c1_264, %c0_265, %c0_266] : memref<2x12x8x16xf32, #tpu.memory_space<vmem>>, vector<2x8x8x16xf32>
    %292 = arith.maximumf %290, %291 : vector<2x8x8x16xf32>
    %c0_267 = arith.constant 0 : index
    %c2_268 = arith.constant 2 : index
    %c0_269 = arith.constant 0 : index
    %c0_270 = arith.constant 0 : index
    %293 = vector.load %arg30[%c0_267, %c2_268, %c0_269, %c0_270] : memref<2x12x8x16xf32, #tpu.memory_space<vmem>>, vector<2x8x8x16xf32>
    %294 = arith.maximumf %292, %293 : vector<2x8x8x16xf32>
    %c0_271 = arith.constant 0 : index
    %c3_272 = arith.constant 3 : index
    %c0_273 = arith.constant 0 : index
    %c0_274 = arith.constant 0 : index
    %295 = vector.load %arg30[%c0_271, %c3_272, %c0_273, %c0_274] : memref<2x12x8x16xf32, #tpu.memory_space<vmem>>, vector<2x8x8x16xf32>
    %296 = arith.maximumf %294, %295 : vector<2x8x8x16xf32>
    %c0_275 = arith.constant 0 : index
    %c4_276 = arith.constant 4 : index
    %c0_277 = arith.constant 0 : index
    %c0_278 = arith.constant 0 : index
    %297 = vector.load %arg30[%c0_275, %c4_276, %c0_277, %c0_278] : memref<2x12x8x16xf32, #tpu.memory_space<vmem>>, vector<2x8x8x16xf32>
    %298 = arith.maximumf %296, %297 : vector<2x8x8x16xf32>
    %299 = vector.shape_cast %258 : vector<2x8x8x16xf32> to vector<128x16xf32>
    %300 = vector.shape_cast %278 : vector<2x8x8x16xf32> to vector<128x16xf32>
    %301 = vector.shape_cast %298 : vector<2x8x8x16xf32> to vector<128x16xf32>
    %302 = tpu.concatenate %233, %299, %300, %301 in 1 : vector<128x16xf32>, vector<128x16xf32>, vector<128x16xf32>, vector<128x16xf32> -> vector<128x64xf32>
    %303 = arith.truncf %302 : vector<128x64xf32> to vector<128x64xbf16>
    %c0_279 = arith.constant 0 : index
    %c0_280 = arith.constant 0 : index
    %304 = vector.load %arg19[%c0_279, %c0_280] : memref<64x32xbf16, #tpu.memory_space<vmem>>, vector<64x32xbf16>
    %cst_281 = arith.constant dense<0.000000e+00> : vector<128x32xf32>
    %305 = tpu.matmul %303, %304, %cst_281 {dimension_numbers = #tpu.dot_dimension_numbers<[1], [0], [0], [1], [0, 0, 1, 1], [], []>} : vector<128x64xbf16>, vector<64x32xbf16>, vector<128x32xf32> -> vector<128x32xf32>
    %c0_282 = arith.constant 0 : index
    %c0_283 = arith.constant 0 : index
    %306 = vector.load %arg20[%c0_282, %c0_283] : memref<1x32xf32, #tpu.memory_space<vmem>>, vector<1x32xf32>
    %c0_284 = arith.constant 0 : index
    %c0_285 = arith.constant 0 : index
    %307 = vector.load %arg21[%c0_284, %c0_285] : memref<1x32xf32, #tpu.memory_space<vmem>>, vector<1x32xf32>
    %cst_286 = arith.constant dense<0.000000e+00> : vector<32xf32>
    %308 = vector.multi_reduction <add>, %305, %cst_286 [0] : vector<128x32xf32> to vector<32xf32>
    %309 = vector.shape_cast %308 : vector<32xf32> to vector<1x32xf32>
    %310 = arith.mulf %305, %305 : vector<128x32xf32>
    %cst_287 = arith.constant dense<0.000000e+00> : vector<32xf32>
    %311 = vector.multi_reduction <add>, %310, %cst_287 [0] : vector<128x32xf32> to vector<32xf32>
    %312 = vector.shape_cast %311 : vector<32xf32> to vector<1x32xf32>
    %cst_288 = arith.constant 7.812500e-03 : f32
    %313 = vector.broadcast %cst_288 : f32 to vector<1x32xf32>
    %314 = arith.mulf %309, %313 : vector<1x32xf32>
    %cst_289 = arith.constant 7.812500e-03 : f32
    %315 = vector.broadcast %cst_289 : f32 to vector<1x32xf32>
    %316 = arith.mulf %312, %315 : vector<1x32xf32>
    %317 = arith.mulf %314, %314 : vector<1x32xf32>
    %318 = arith.subf %316, %317 : vector<1x32xf32>
    %cst_290 = arith.constant 0.000000e+00 : f32
    %319 = vector.broadcast %cst_290 : f32 to vector<1x32xf32>
    %320 = arith.maximumf %318, %319 : vector<1x32xf32>
    %321 = vector.broadcast %314 : vector<1x32xf32> to vector<128x32xf32>
    %322 = arith.subf %305, %321 : vector<128x32xf32>
    %cst_291 = arith.constant 1.000000e-03 : f32
    %323 = vector.broadcast %cst_291 : f32 to vector<1x32xf32>
    %324 = arith.addf %320, %323 : vector<1x32xf32>
    %325 = math.rsqrt %324 : vector<1x32xf32>
    %326 = vector.broadcast %325 : vector<1x32xf32> to vector<128x32xf32>
    %327 = arith.mulf %322, %326 : vector<128x32xf32>
    %328 = vector.broadcast %306 : vector<1x32xf32> to vector<128x32xf32>
    %329 = arith.mulf %327, %328 : vector<128x32xf32>
    %330 = vector.broadcast %307 : vector<1x32xf32> to vector<128x32xf32>
    %331 = arith.addf %329, %330 : vector<128x32xf32>
    %332 = arith.negf %331 : vector<128x32xf32>
    %333 = math.exp %332 : vector<128x32xf32>
    %cst_292 = arith.constant 1.000000e+00 : f32
    %334 = vector.broadcast %cst_292 : f32 to vector<128x32xf32>
    %335 = arith.addf %334, %333 : vector<128x32xf32>
    %336 = arith.divf %334, %335 : vector<128x32xf32>
    %337 = arith.mulf %331, %336 : vector<128x32xf32>
    %338 = arith.truncf %337 : vector<128x32xf32> to vector<128x32xbf16>
    %339 = tpu.concatenate %338, %0 in 1 : vector<128x32xbf16>, vector<128x32xbf16> -> vector<128x64xbf16>
    %c0_293 = arith.constant 0 : index
    %c0_294 = arith.constant 0 : index
    %340 = vector.load %arg22[%c0_293, %c0_294] : memref<64x32xbf16, #tpu.memory_space<vmem>>, vector<64x32xbf16>
    %cst_295 = arith.constant dense<0.000000e+00> : vector<128x32xf32>
    %341 = tpu.matmul %339, %340, %cst_295 {dimension_numbers = #tpu.dot_dimension_numbers<[1], [0], [0], [1], [0, 0, 1, 1], [], []>} : vector<128x64xbf16>, vector<64x32xbf16>, vector<128x32xf32> -> vector<128x32xf32>
    %c0_296 = arith.constant 0 : index
    %c0_297 = arith.constant 0 : index
    %342 = vector.load %arg23[%c0_296, %c0_297] : memref<1x32xf32, #tpu.memory_space<vmem>>, vector<1x32xf32>
    %c0_298 = arith.constant 0 : index
    %c0_299 = arith.constant 0 : index
    %343 = vector.load %arg24[%c0_298, %c0_299] : memref<1x32xf32, #tpu.memory_space<vmem>>, vector<1x32xf32>
    %cst_300 = arith.constant dense<0.000000e+00> : vector<32xf32>
    %344 = vector.multi_reduction <add>, %341, %cst_300 [0] : vector<128x32xf32> to vector<32xf32>
    %345 = vector.shape_cast %344 : vector<32xf32> to vector<1x32xf32>
    %346 = arith.mulf %341, %341 : vector<128x32xf32>
    %cst_301 = arith.constant dense<0.000000e+00> : vector<32xf32>
    %347 = vector.multi_reduction <add>, %346, %cst_301 [0] : vector<128x32xf32> to vector<32xf32>
    %348 = vector.shape_cast %347 : vector<32xf32> to vector<1x32xf32>
    %cst_302 = arith.constant 7.812500e-03 : f32
    %349 = vector.broadcast %cst_302 : f32 to vector<1x32xf32>
    %350 = arith.mulf %345, %349 : vector<1x32xf32>
    %cst_303 = arith.constant 7.812500e-03 : f32
    %351 = vector.broadcast %cst_303 : f32 to vector<1x32xf32>
    %352 = arith.mulf %348, %351 : vector<1x32xf32>
    %353 = arith.mulf %350, %350 : vector<1x32xf32>
    %354 = arith.subf %352, %353 : vector<1x32xf32>
    %cst_304 = arith.constant 0.000000e+00 : f32
    %355 = vector.broadcast %cst_304 : f32 to vector<1x32xf32>
    %356 = arith.maximumf %354, %355 : vector<1x32xf32>
    %357 = vector.broadcast %350 : vector<1x32xf32> to vector<128x32xf32>
    %358 = arith.subf %341, %357 : vector<128x32xf32>
    %cst_305 = arith.constant 1.000000e-03 : f32
    %359 = vector.broadcast %cst_305 : f32 to vector<1x32xf32>
    %360 = arith.addf %356, %359 : vector<1x32xf32>
    %361 = math.rsqrt %360 : vector<1x32xf32>
    %362 = vector.broadcast %361 : vector<1x32xf32> to vector<128x32xf32>
    %363 = arith.mulf %358, %362 : vector<128x32xf32>
    %364 = vector.broadcast %342 : vector<1x32xf32> to vector<128x32xf32>
    %365 = arith.mulf %363, %364 : vector<128x32xf32>
    %366 = vector.broadcast %343 : vector<1x32xf32> to vector<128x32xf32>
    %367 = arith.addf %365, %366 : vector<128x32xf32>
    %368 = arith.negf %367 : vector<128x32xf32>
    %369 = math.exp %368 : vector<128x32xf32>
    %cst_306 = arith.constant 1.000000e+00 : f32
    %370 = vector.broadcast %cst_306 : f32 to vector<128x32xf32>
    %371 = arith.addf %370, %369 : vector<128x32xf32>
    %372 = arith.divf %370, %371 : vector<128x32xf32>
    %373 = arith.mulf %367, %372 : vector<128x32xf32>
    %374 = arith.truncf %373 : vector<128x32xf32> to vector<128x32xbf16>
    %c0_307 = arith.constant 0 : index
    %c0_308 = arith.constant 0 : index
    %375 = vector.load %arg25[%c0_307, %c0_308] : memref<32x21xbf16, #tpu.memory_space<vmem>>, vector<32x21xbf16>
    %cst_309 = arith.constant dense<0.000000e+00> : vector<128x21xf32>
    %376 = tpu.matmul %374, %375, %cst_309 {dimension_numbers = #tpu.dot_dimension_numbers<[1], [0], [0], [1], [0, 0, 1, 1], [], []>} : vector<128x32xbf16>, vector<32x21xbf16>, vector<128x21xf32> -> vector<128x21xf32>
    %c0_310 = arith.constant 0 : index
    %c0_311 = arith.constant 0 : index
    %377 = vector.load %arg26[%c0_310, %c0_311] : memref<1x21xf32, #tpu.memory_space<vmem>>, vector<1x21xf32>
    %378 = vector.broadcast %377 : vector<1x21xf32> to vector<128x21xf32>
    %379 = arith.addf %376, %378 : vector<128x21xf32>
    %c0_312 = arith.constant 0 : index
    %c0_313 = arith.constant 0 : index
    %380 = vector.load %arg27[%c0_312, %c0_313] : memref<128x21xf32, #tpu.memory_space<vmem>>, vector<128x21xf32>
    tpu.vector_store %arg27[%c0_312, %c0_313], %379 {strides = array<i32>} : memref<128x21xf32, #tpu.memory_space<vmem>>, vector<128x21xf32>,
    return
  }
}

</mosaic_0001>

<llo_original>
// kernel: forward.4
$region0: #{forward.4}
  #allocation0 [shape = 'u32[]', space=smem, size = 0x4, offset = 0x4, fixed_abs, tag = 'smem constant byte address 0x4 - core index']
  #allocation1 [shape = 'u32[144,128]{1,0:T(1,128)}', space=vmem, size = 0x12000, scoped, tag = 'internal scratch']
  %s0 = inlined_call_operand.vmem [shape: bf16[8,9,9,16], index: 0, kind: input, shape index: {}]
  %s1 = inlined_call_operand.vmem [shape: bf16[144,32], index: 1, kind: input, shape index: {}]
  %s2 = inlined_call_operand.vmem [shape: f32[1,32], index: 2, kind: input, shape index: {}]
  %s3 = inlined_call_operand.vmem [shape: f32[1,32], index: 3, kind: input, shape index: {}]
  %s4 = inlined_call_operand.vmem [shape: bf16[128,32], index: 4, kind: output, shape index: {}]
  %s5 = sld [smem:[#allocation0]]
  $region26: #{forward.4} parent=0
    _
  %s7 = ssub.s32 1, %s5
  %s8 = scalar_select 0, %s7, %s5
  // Predicated region
  $region2: #{forward.4} parent=0 // pred_check
    _
  $region3: #{forward.4} parent=0 // pred_check_branch
    %10 = sbr.rel (0) target = $region5
  $region4: #{forward.4} parent=0 // pred_region
    _
  $region5: #{forward.4} parent=0 // pred_fallthru
    _
  // Predicated region
  $region6: #{forward.4} parent=0 // pred_check
    _
  $region7: #{forward.4} parent=0 // pred_check_branch
    %12 = sbr.rel (0) target = $region9
  $region8: #{forward.4} parent=0 // pred_region
    _
  $region9: #{forward.4} parent=0 // pred_fallthru
    _
  // Predicated region
  $region10: #{forward.4} parent=0 // pred_check
    _
  $region11: #{forward.4} parent=0 // pred_check_branch
    %14 = sbr.rel (0) target = $region13
  $region12: #{forward.4} parent=0 // pred_region
    _
  $region13: #{forward.4} parent=0 // pred_fallthru
    _
  // Predicated region
  $region14: #{forward.4} parent=0 // pred_check
    _
  $region15: #{forward.4} parent=0 // pred_check_branch
    %16 = sbr.rel (0) target = $region17
  $region16: #{forward.4} parent=0 // pred_region
    _
  $region17: #{forward.4} parent=0 // pred_fallthru
    _
  %v18 = vld [vmem:[%s0] sm:$0xf]
  %v19 = vld [vmem:[%s0 + $0x4] sm:$0x1]
  %v20 = vld [vmem:[%s0 + $0x8] sm:$0xf]
  %v21 = vld [vmem:[%s0 + $0xc] sm:$0x1]
  %v22 = vld [vmem:[%s0 + $0x10] sm:$0xf]
  %v23 = vld [vmem:[%s0 + $0x14] sm:$0x1]
  %v24 = vld [vmem:[%s0 + $0x18] sm:$0xf]
  %v25 = vld [vmem:[%s0 + $0x1c] sm:$0x1]
  %v26 = vld [vmem:[%s0 + $0x20] sm:$0xf]
  %v27 = vld [vmem:[%s0 + $0x24] sm:$0x1]
  %v28 = vld [vmem:[%s0 + $0x28] sm:$0xf]
  %v29 = vld [vmem:[%s0 + $0x2c] sm:$0x1]
  %v30 = vld [vmem:[%s0 + $0x30] sm:$0xf]
  %v31 = vld [vmem:[%s0 + $0x34] sm:$0x1]
  %v32 = vld [vmem:[%s0 + $0x38] sm:$0xf]
  %v33 = vld [vmem:[%s0 + $0x3c] sm:$0x1]
  %v34 = vld [vmem:[%s0 + $0x40] sm:$0xf]
  %v35 = vld [vmem:[%s0 + $0x44] sm:$0x1]
  %v36 = vld [vmem:[%s0 + $0x48] sm:$0xf]
  %v37 = vld [vmem:[%s0 + $0x4c] sm:$0x1]
  %v38 = vld [vmem:[%s0 + $0x50] sm:$0xf]
  %v39 = vld [vmem:[%s0 + $0x54] sm:$0x1]
  %v40 = vld [vmem:[%s0 + $0x58] sm:$0xf]
  %v41 = vld [vmem:[%s0 + $0x5c] sm:$0x1]
  %v42 = vld [vmem:[%s0 + $0x60] sm:$0xf]
  %v43 = vld [vmem:[%s0 + $0x64] sm:$0x1]
  %v44 = vld [vmem:[%s0 + $0x68] sm:$0xf]
  %v45 = vld [vmem:[%s0 + $0x6c] sm:$0x1]
  %v46 = vld [vmem:[%s0 + $0x70] sm:$0xf]
  %v47 = vld [vmem:[%s0 + $0x74] sm:$0x1]
  %v48 = vld [vmem:[%s0 + $0x78] sm:$0xf]
  %v49 = vld [vmem:[%s0 + $0x7c] sm:$0x1]
  %v50 = vld [vmem:[%s0 + $0x80] sm:$0xf]
  %v51 = vld [vmem:[%s0 + $0x84] sm:$0x1]
  %v52 = vld [vmem:[%s0 + $0x88] sm:$0xf]
  %v53 = vld [vmem:[%s0 + $0x8c] sm:$0x1]
  %v54 = vld [vmem:[%s0 + $0x90] sm:$0xf]
  %v55 = vld [vmem:[%s0 + $0x98] sm:$0xf]
  %v56 = vld [vmem:[%s0 + $0xa0] sm:$0xf]
  %v57 = vld [vmem:[%s0 + $0xa8] sm:$0xf]
  %v58 = vld [vmem:[%s0 + $0xb0] sm:$0xf]
  %v59 = vld [vmem:[%s0 + $0xb8] sm:$0xf]
  %v60 = vld [vmem:[%s0 + $0xc0] sm:$0xf]
  %v61 = vld [vmem:[%s0 + $0xc8] sm:$0xf]
  %v62 = vld [vmem:[%s0 + $0xd0] sm:$0xf]
  %v63 = vld [vmem:[%s0 + $0xd8] sm:$0xf]
  %v64 = vld [vmem:[%s0 + $0xe0] sm:$0xf]
  %v65 = vld [vmem:[%s0 + $0xe8] sm:$0xf]
  %v66 = vld [vmem:[%s0 + $0xf0] sm:$0xf]
  %v67 = vld [vmem:[%s0 + $0xf8] sm:$0xf]
  %v68 = vld [vmem:[%s0 + $0x100] sm:$0xf]
  %v69 = vld [vmem:[%s0 + $0x108] sm:$0xf]
  %v70 = vld [vmem:[%s0 + $0x110] sm:$0xf]
  %v71 = vld [vmem:[%s0 + $0x118] sm:$0xf]
  %v72 = vld [vmem:[%s0 + $0x120] sm:$0xf]
  %v73 = vld [vmem:[%s0 + $0x124] sm:$0x1]
  %v74 = vld [vmem:[%s0 + $0x128] sm:$0xf]
  %v75 = vld [vmem:[%s0 + $0x12c] sm:$0x1]
  %v76 = vld [vmem:[%s0 + $0x130] sm:$0xf]
  %v77 = vld [vmem:[%s0 + $0x134] sm:$0x1]
  %v78 = vld [vmem:[%s0 + $0x138] sm:$0xf]
  %v79 = vld [vmem:[%s0 + $0x13c] sm:$0x1]
  %v80 = vld [vmem:[%s0 + $0x140] sm:$0xf]
  %v81 = vld [vmem:[%s0 + $0x144] sm:$0x1]
  %v82 = vld [vmem:[%s0 + $0x148] sm:$0xf]
  %v83 = vld [vmem:[%s0 + $0x14c] sm:$0x1]
  %v84 = vld [vmem:[%s0 + $0x150] sm:$0xf]
  %v85 = vld [vmem:[%s0 + $0x154] sm:$0x1]
  %v86 = vld [vmem:[%s0 + $0x158] sm:$0xf]
  %v87 = vld [vmem:[%s0 + $0x15c] sm:$0x1]
  %v88 = vld [vmem:[%s0 + $0x168] sm:$0xf]
  %v89 = vld [vmem:[%s0 + $0x16c] sm:$0x1]
  %v90 = vld [vmem:[%s0 + $0x170] sm:$0xf]
  %v91 = vld [vmem:[%s0 + $0x174] sm:$0x1]
  %v92 = vld [vmem:[%s0 + $0x178] sm:$0xf]
  %v93 = vld [vmem:[%s0 + $0x17c] sm:$0x1]
  %v94 = vld [vmem:[%s0 + $0x180] sm:$0xf]
  %v95 = vld [vmem:[%s0 + $0x184] sm:$0x1]
  %v96 = vld [vmem:[%s0 + $0x188] sm:$0xf]
  %v97 = vld [vmem:[%s0 + $0x18c] sm:$0x1]
  %v98 = vld [vmem:[%s0 + $0x190] sm:$0xf]
  %v99 = vld [vmem:[%s0 + $0x194] sm:$0x1]
  %v100 = vld [vmem:[%s0 + $0x198] sm:$0xf]
  %v101 = vld [vmem:[%s0 + $0x19c] sm:$0x1]
  %v102 = vld [vmem:[%s0 + $0x1a0] sm:$0xf]
  %v103 = vld [vmem:[%s0 + $0x1a4] sm:$0x1]
  %v104 = vld [vmem:[%s0 + $0x1b0] sm:$0xf]
  %v105 = vld [vmem:[%s0 + $0x1b8] sm:$0xf]
  %v106 = vld [vmem:[%s0 + $0x1c0] sm:$0xf]
  %v107 = vld [vmem:[%s0 + $0x1c8] sm:$0xf]
  %v108 = vld [vmem:[%s0 + $0x1d0] sm:$0xf]
  %v109 = vld [vmem:[%s0 + $0x1d8] sm:$0xf]
  %v110 = vld [vmem:[%s0 + $0x1e0] sm:$0xf]
  %v111 = vld [vmem:[%s0 + $0x1e8] sm:$0xf]
  %v112 = vld [vmem:[%s0 + $0x1f8] sm:$0xf]
  %v113 = vld [vmem:[%s0 + $0x200] sm:$0xf]
  %v114 = vld [vmem:[%s0 + $0x208] sm:$0xf]
  %v115 = vld [vmem:[%s0 + $0x210] sm:$0xf]
  %v116 = vld [vmem:[%s0 + $0x218] sm:$0xf]
  %v117 = vld [vmem:[%s0 + $0x220] sm:$0xf]
  %v118 = vld [vmem:[%s0 + $0x228] sm:$0xf]
  %v119 = vld [vmem:[%s0 + $0x230] sm:$0xf]
  %vm120 = vsmask.f32 3328
  %vm121 = vsmask.f32 7440
  %vm122 = vmor %vm120, %vm121
  %v124 = vshrl.u32 %v18, 16
  %v126 = vrot.slane %v124, 4
  %v127 = vshll.u32 %v18, 16
  %v129 = vrot.slane %v127, 5
  %v130 = vor.u32 %v126, %v129
  %v131 = vrot.slane %v130, 4
  %v133 = vshll.u32 %v19, 16
  %v135 = vrot.slane %v133, 5
  %v136 = vsel %vm122, %v131, %v135
  %v138 = vshrl.u32 %v20, 16
  %v140 = vrot.slane %v138, 4
  %v141 = vshll.u32 %v20, 16
  %v143 = vrot.slane %v141, 5
  %v144 = vor.u32 %v140, %v143
  %v145 = vrot.slane %v144, 4
  %v147 = vshll.u32 %v21, 16
  %v149 = vrot.slane %v147, 5
  %v150 = vsel %vm122, %v145, %v149
  %v152 = vshrl.u32 %v22, 16
  %v154 = vrot.slane %v152, 4
  %v155 = vshll.u32 %v22, 16
  %v157 = vrot.slane %v155, 5
  %v158 = vor.u32 %v154, %v157
  %v159 = vrot.slane %v158, 4
  %v161 = vshll.u32 %v23, 16
  %v163 = vrot.slane %v161, 5
  %v164 = vsel %vm122, %v159, %v163
  %v166 = vshrl.u32 %v24, 16
  %v168 = vrot.slane %v166, 4
  %v169 = vshll.u32 %v24, 16
  %v171 = vrot.slane %v169, 5
  %v172 = vor.u32 %v168, %v171
  %v173 = vrot.slane %v172, 4
  %v175 = vshll.u32 %v25, 16
  %v177 = vrot.slane %v175, 5
  %v178 = vsel %vm122, %v173, %v177
  %v180 = vshrl.u32 %v26, 16
  %v182 = vrot.slane %v180, 4
  %v183 = vshll.u32 %v26, 16
  %v185 = vrot.slane %v183, 5
  %v186 = vor.u32 %v182, %v185
  %v187 = vrot.slane %v186, 4
  %v189 = vshll.u32 %v27, 16
  %v191 = vrot.slane %v189, 5
  %v192 = vsel %vm122, %v187, %v191
  %v194 = vshrl.u32 %v28, 16
  %v196 = vrot.slane %v194, 4
  %v197 = vshll.u32 %v28, 16
  %v199 = vrot.slane %v197, 5
  %v200 = vor.u32 %v196, %v199
  %v201 = vrot.slane %v200, 4
  %v203 = vshll.u32 %v29, 16
  %v205 = vrot.slane %v203, 5
  %v206 = vsel %vm122, %v201, %v205
  %v208 = vshrl.u32 %v30, 16
  %v210 = vrot.slane %v208, 4
  %v211 = vshll.u32 %v30, 16
  %v213 = vrot.slane %v211, 5
  %v214 = vor.u32 %v210, %v213
  %v215 = vrot.slane %v214, 4
  %v217 = vshll.u32 %v31, 16
  %v219 = vrot.slane %v217, 5
  %v220 = vsel %vm122, %v215, %v219
  %v222 = vshrl.u32 %v32, 16
  %v224 = vrot.slane %v222, 4
  %v225 = vshll.u32 %v32, 16
  %v227 = vrot.slane %v225, 5
  %v228 = vor.u32 %v224, %v227
  %v229 = vrot.slane %v228, 4
  %v231 = vshll.u32 %v33, 16
  %v233 = vrot.slane %v231, 5
  %v234 = vsel %vm122, %v229, %v233
  %v236 = vshrl.u32 %v36, 16
  %v238 = vrot.slane %v236, 4
  %v239 = vshll.u32 %v36, 16
  %v241 = vrot.slane %v239, 5
  %v242 = vor.u32 %v238, %v241
  %v243 = vrot.slane %v242, 4
  %v245 = vshll.u32 %v37, 16
  %v247 = vrot.slane %v245, 5
  %v248 = vsel %vm122, %v243, %v247
  %v250 = vshrl.u32 %v38, 16
  %v252 = vrot.slane %v250, 4
  %v253 = vshll.u32 %v38, 16
  %v255 = vrot.slane %v253, 5
  %v256 = vor.u32 %v252, %v255
  %v257 = vrot.slane %v256, 4
  %v259 = vshll.u32 %v39, 16
  %v261 = vrot.slane %v259, 5
  %v262 = vsel %vm122, %v257, %v261
  %v264 = vshrl.u32 %v40, 16
  %v266 = vrot.slane %v264, 4
  %v267 = vshll.u32 %v40, 16
  %v269 = vrot.slane %v267, 5
  %v270 = vor.u32 %v266, %v269
  %v271 = vrot.slane %v270, 4
  %v273 = vshll.u32 %v41, 16
  %v275 = vrot.slane %v273, 5
  %v276 = vsel %vm122, %v271, %v275
  %v278 = vshrl.u32 %v42, 16
  %v280 = vrot.slane %v278, 4
  %v281 = vshll.u32 %v42, 16
  %v283 = vrot.slane %v281, 5
  %v284 = vor.u32 %v280, %v283
  %v285 = vrot.slane %v284, 4
  %v287 = vshll.u32 %v43, 16
  %v289 = vrot.slane %v287, 5
  %v290 = vsel %vm122, %v285, %v289
  %v292 = vshrl.u32 %v44, 16
  %v294 = vrot.slane %v292, 4
  %v295 = vshll.u32 %v44, 16
  %v297 = vrot.slane %v295, 5
  %v298 = vor.u32 %v294, %v297
  %v299 = vrot.slane %v298, 4
  %v301 = vshll.u32 %v45, 16
  %v303 = vrot.slane %v301, 5
  %v304 = vsel %vm122, %v299, %v303
  %v306 = vshrl.u32 %v46, 16
  %v308 = vrot.slane %v306, 4
  %v309 = vshll.u32 %v46, 16
  %v311 = vrot.slane %v309, 5
  %v312 = vor.u32 %v308, %v311
  %v313 = vrot.slane %v312, 4
  %v315 = vshll.u32 %v47, 16
  %v317 = vrot.slane %v315, 5
  %v318 = vsel %vm122, %v313, %v317
  %v320 = vshrl.u32 %v48, 16
  %v322 = vrot.slane %v320, 4
  %v323 = vshll.u32 %v48, 16
  %v325 = vrot.slane %v323, 5
  %v326 = vor.u32 %v322, %v325
  %v327 = vrot.slane %v326, 4
  %v329 = vshll.u32 %v49, 16
  %v331 = vrot.slane %v329, 5
  %v332 = vsel %vm122, %v327, %v331
  %v334 = vshrl.u32 %v50, 16
  %v336 = vrot.slane %v334, 4
  %v337 = vshll.u32 %v50, 16
  %v339 = vrot.slane %v337, 5
  %v340 = vor.u32 %v336, %v339
  %v341 = vrot.slane %v340, 4
  %v343 = vshll.u32 %v51, 16
  %v345 = vrot.slane %v343, 5
  %v346 = vsel %vm122, %v341, %v345
  %v348 = vshrl.u32 %v72, 16
  %v350 = vrot.slane %v348, 4
  %v351 = vshll.u32 %v72, 16
  %v353 = vrot.slane %v351, 5
  %v354 = vor.u32 %v350, %v353
  %v355 = vrot.slane %v354, 4
  %v357 = vshll.u32 %v73, 16
  %v359 = vrot.slane %v357, 5
  %v360 = vsel %vm122, %v355, %v359
  %v362 = vshrl.u32 %v74, 16
  %v364 = vrot.slane %v362, 4
  %v365 = vshll.u32 %v74, 16
  %v367 = vrot.slane %v365, 5
  %v368 = vor.u32 %v364, %v367
  %v369 = vrot.slane %v368, 4
  %v371 = vshll.u32 %v75, 16
  %v373 = vrot.slane %v371, 5
  %v374 = vsel %vm122, %v369, %v373
  %v376 = vshrl.u32 %v76, 16
  %v378 = vrot.slane %v376, 4
  %v379 = vshll.u32 %v76, 16
  %v381 = vrot.slane %v379, 5
  %v382 = vor.u32 %v378, %v381
  %v383 = vrot.slane %v382, 4
  %v385 = vshll.u32 %v77, 16
  %v387 = vrot.slane %v385, 5
  %v388 = vsel %vm122, %v383, %v387
  %v390 = vshrl.u32 %v78, 16
  %v392 = vrot.slane %v390, 4
  %v393 = vshll.u32 %v78, 16
  %v395 = vrot.slane %v393, 5
  %v396 = vor.u32 %v392, %v395
  %v397 = vrot.slane %v396, 4
  %v399 = vshll.u32 %v79, 16
  %v401 = vrot.slane %v399, 5
  %v402 = vsel %vm122, %v397, %v401
  %v404 = vshrl.u32 %v80, 16
  %v406 = vrot.slane %v404, 4
  %v407 = vshll.u32 %v80, 16
  %v409 = vrot.slane %v407, 5
  %v410 = vor.u32 %v406, %v409
  %v411 = vrot.slane %v410, 4
  %v413 = vshll.u32 %v81, 16
  %v415 = vrot.slane %v413, 5
  %v416 = vsel %vm122, %v411, %v415
  %v418 = vshrl.u32 %v82, 16
  %v420 = vrot.slane %v418, 4
  %v421 = vshll.u32 %v82, 16
  %v423 = vrot.slane %v421, 5
  %v424 = vor.u32 %v420, %v423
  %v425 = vrot.slane %v424, 4
  %v427 = vshll.u32 %v83, 16
  %v429 = vrot.slane %v427, 5
  %v430 = vsel %vm122, %v425, %v429
  %v432 = vshrl.u32 %v84, 16
  %v434 = vrot.slane %v432, 4
  %v435 = vshll.u32 %v84, 16
  %v437 = vrot.slane %v435, 5
  %v438 = vor.u32 %v434, %v437
  %v439 = vrot.slane %v438, 4
  %v441 = vshll.u32 %v85, 16
  %v443 = vrot.slane %v441, 5
  %v444 = vsel %vm122, %v439, %v443
  %v446 = vshrl.u32 %v86, 16
  %v448 = vrot.slane %v446, 4
  %v449 = vshll.u32 %v86, 16
  %v451 = vrot.slane %v449, 5
  %v452 = vor.u32 %v448, %v451
  %v453 = vrot.slane %v452, 4
  %v455 = vshll.u32 %v87, 16
  %v457 = vrot.slane %v455, 5
  %v458 = vsel %vm122, %v453, %v457
  %v460 = vshrl.u32 %v88, 16
  %v462 = vrot.slane %v460, 4
  %v463 = vshll.u32 %v88, 16
  %v465 = vrot.slane %v463, 5
  %v466 = vor.u32 %v462, %v465
  %v467 = vrot.slane %v466, 4
  %v469 = vshll.u32 %v89, 16
  %v471 = vrot.slane %v469, 5
  %v472 = vsel %vm122, %v467, %v471
  %v474 = vshrl.u32 %v90, 16
  %v476 = vrot.slane %v474, 4
  %v477 = vshll.u32 %v90, 16
  %v479 = vrot.slane %v477, 5
  %v480 = vor.u32 %v476, %v479
  %v481 = vrot.slane %v480, 4
  %v483 = vshll.u32 %v91, 16
  %v485 = vrot.slane %v483, 5
  %v486 = vsel %vm122, %v481, %v485
  %v488 = vshrl.u32 %v92, 16
  %v490 = vrot.slane %v488, 4
  %v491 = vshll.u32 %v92, 16
  %v493 = vrot.slane %v491, 5
  %v494 = vor.u32 %v490, %v493
  %v495 = vrot.slane %v494, 4
  %v497 = vshll.u32 %v93, 16
  %v499 = vrot.slane %v497, 5
  %v500 = vsel %vm122, %v495, %v499
  %v502 = vshrl.u32 %v94, 16
  %v504 = vrot.slane %v502, 4
  %v505 = vshll.u32 %v94, 16
  %v507 = vrot.slane %v505, 5
  %v508 = vor.u32 %v504, %v507
  %v509 = vrot.slane %v508, 4
  %v511 = vshll.u32 %v95, 16
  %v513 = vrot.slane %v511, 5
  %v514 = vsel %vm122, %v509, %v513
  %v516 = vshrl.u32 %v96, 16
  %v518 = vrot.slane %v516, 4
  %v519 = vshll.u32 %v96, 16
  %v521 = vrot.slane %v519, 5
  %v522 = vor.u32 %v518, %v521
  %v523 = vrot.slane %v522, 4
  %v525 = vshll.u32 %v97, 16
  %v527 = vrot.slane %v525, 5
  %v528 = vsel %vm122, %v523, %v527
  %v530 = vshrl.u32 %v98, 16
  %v532 = vrot.slane %v530, 4
  %v533 = vshll.u32 %v98, 16
  %v535 = vrot.slane %v533, 5
  %v536 = vor.u32 %v532, %v535
  %v537 = vrot.slane %v536, 4
  %v539 = vshll.u32 %v99, 16
  %v541 = vrot.slane %v539, 5
  %v542 = vsel %vm122, %v537, %v541
  %v544 = vshrl.u32 %v100, 16
  %v546 = vrot.slane %v544, 4
  %v547 = vshll.u32 %v100, 16
  %v549 = vrot.slane %v547, 5
  %v550 = vor.u32 %v546, %v549
  %v551 = vrot.slane %v550, 4
  %v553 = vshll.u32 %v101, 16
  %v555 = vrot.slane %v553, 5
  %v556 = vsel %vm122, %v551, %v555
  %v558 = vshrl.u32 %v102, 16
  %v560 = vrot.slane %v558, 4
  %v561 = vshll.u32 %v102, 16
  %v563 = vrot.slane %v561, 5
  %v564 = vor.u32 %v560, %v563
  %v565 = vrot.slane %v564, 4
  %v567 = vshll.u32 %v103, 16
  %v569 = vrot.slane %v567, 5
  %v570 = vsel %vm122, %v565, %v569
  %v572 = vshrl.u32 %v34, 16
  %v574 = vrot.slane %v572, 4
  %v575 = vshll.u32 %v34, 16
  %v577 = vrot.slane %v575, 5
  %v578 = vor.u32 %v574, %v577
  %v579 = vrot.slane %v578, 4
  %v581 = vshll.u32 %v35, 16
  %v583 = vrot.slane %v581, 5
  %v584 = vsel %vm122, %v579, %v583
  %v586 = vshrl.u32 %v52, 16
  %v588 = vrot.slane %v586, 4
  %v589 = vshll.u32 %v52, 16
  %v591 = vrot.slane %v589, 5
  %v592 = vor.u32 %v588, %v591
  %v593 = vrot.slane %v592, 4
  %v595 = vshll.u32 %v53, 16
  %v597 = vrot.slane %v595, 5
  %v598 = vsel %vm122, %v593, %v597
  %v615 = vunpack.c.l.b16 %v18
  %v616 = vunpack.c.l.b16 %v20
  %v617 = vunpack.c.l.b16 %v22
  %v618 = vunpack.c.l.b16 %v24
  %v619 = vunpack.c.l.b16 %v26
  %v620 = vunpack.c.l.b16 %v28
  %v621 = vunpack.c.l.b16 %v30
  %v622 = vunpack.c.l.b16 %v32
  %v623 = vunpack.c.l.b16 %v36
  %v624 = vunpack.c.l.b16 %v38
  %v625 = vunpack.c.l.b16 %v40
  %v626 = vunpack.c.l.b16 %v42
  %v627 = vunpack.c.l.b16 %v44
  %v628 = vunpack.c.l.b16 %v46
  %v629 = vunpack.c.l.b16 %v48
  %v630 = vunpack.c.l.b16 %v50
  %v631 = vpack.c.b16 %v616, %v615
  %v632 = vpack.c.b16 %v618, %v617
  %v633 = vpack.c.b16 %v620, %v619
  %v634 = vpack.c.b16 %v622, %v621
  %v635 = vpack.c.b16 %v624, %v623
  %v636 = vpack.c.b16 %v626, %v625
  %v637 = vpack.c.b16 %v628, %v627
  %v638 = vpack.c.b16 %v630, %v629
  %v655 = vunpack.c.l.b16 %v54
  %v656 = vunpack.c.l.b16 %v55
  %v657 = vunpack.c.l.b16 %v56
  %v658 = vunpack.c.l.b16 %v57
  %v659 = vunpack.c.l.b16 %v58
  %v660 = vunpack.c.l.b16 %v59
  %v661 = vunpack.c.l.b16 %v60
  %v662 = vunpack.c.l.b16 %v61
  %v663 = vunpack.c.l.b16 %v63
  %v664 = vunpack.c.l.b16 %v64
  %v665 = vunpack.c.l.b16 %v65
  %v666 = vunpack.c.l.b16 %v66
  %v667 = vunpack.c.l.b16 %v67
  %v668 = vunpack.c.l.b16 %v68
  %v669 = vunpack.c.l.b16 %v69
  %v670 = vunpack.c.l.b16 %v70
  %v671 = vpack.c.b16 %v656, %v655
  %v672 = vpack.c.b16 %v658, %v657
  %v673 = vpack.c.b16 %v660, %v659
  %v674 = vpack.c.b16 %v662, %v661
  %v675 = vpack.c.b16 %v664, %v663
  %v676 = vpack.c.b16 %v666, %v665
  %v677 = vpack.c.b16 %v668, %v667
  %v678 = vpack.c.b16 %v670, %v669
  %679 = vrot.lane.b32.xlu0 %v671, 16
  %v680 = vpop.permute.xlu0 %679
  %681 = vrot.lane.b32.xlu0 %v672, 16
  %v682 = vpop.permute.xlu0 %681
  %683 = vrot.lane.b32.xlu0 %v673, 16
  %v684 = vpop.permute.xlu0 %683
  %685 = vrot.lane.b32.xlu0 %v674, 16
  %v686 = vpop.permute.xlu0 %685
  %687 = vrot.lane.b32.xlu0 %v675, 16
  %v688 = vpop.permute.xlu0 %687
  %689 = vrot.lane.b32.xlu0 %v676, 16
  %v690 = vpop.permute.xlu0 %689
  %691 = vrot.lane.b32.xlu0 %v677, 16
  %v692 = vpop.permute.xlu0 %691
  %693 = vrot.lane.b32.xlu0 %v678, 16
  %v694 = vpop.permute.xlu0 %693
  %v695 = vunpack.c.l.b16 %v136
  %v696 = vunpack.c.l.b16 %v150
  %v697 = vunpack.c.l.b16 %v164
  %v698 = vunpack.c.l.b16 %v178
  %v699 = vunpack.c.l.b16 %v192
  %v700 = vunpack.c.l.b16 %v206
  %v701 = vunpack.c.l.b16 %v220
  %v702 = vunpack.c.l.b16 %v234
  %v703 = vunpack.c.l.b16 %v248
  %v704 = vunpack.c.l.b16 %v262
  %v705 = vunpack.c.l.b16 %v276
  %v706 = vunpack.c.l.b16 %v290
  %v707 = vunpack.c.l.b16 %v304
  %v708 = vunpack.c.l.b16 %v318
  %v709 = vunpack.c.l.b16 %v332
  %v710 = vunpack.c.l.b16 %v346
  %v711 = vpack.c.b16 %v696, %v695
  %v712 = vpack.c.b16 %v698, %v697
  %v713 = vpack.c.b16 %v700, %v699
  %v714 = vpack.c.b16 %v702, %v701
  %v715 = vpack.c.b16 %v704, %v703
  %v716 = vpack.c.b16 %v706, %v705
  %v717 = vpack.c.b16 %v708, %v707
  %v718 = vpack.c.b16 %v710, %v709
  %719 = vrot.lane.b32.xlu0 %v711, 32
  %v720 = vpop.permute.xlu0 %719
  %721 = vrot.lane.b32.xlu0 %v712, 32
  %v722 = vpop.permute.xlu0 %721
  %723 = vrot.lane.b32.xlu0 %v713, 32
  %v724 = vpop.permute.xlu0 %723
  %725 = vrot.lane.b32.xlu0 %v714, 32
  %v726 = vpop.permute.xlu0 %725
  %727 = vrot.lane.b32.xlu0 %v715, 32
  %v728 = vpop.permute.xlu0 %727
  %729 = vrot.lane.b32.xlu0 %v716, 32
  %v730 = vpop.permute.xlu0 %729
  %731 = vrot.lane.b32.xlu0 %v717, 32
  %v732 = vpop.permute.xlu0 %731
  %733 = vrot.lane.b32.xlu0 %v718, 32
  %v734 = vpop.permute.xlu0 %733
  %v751 = vunpack.c.l.b16 %v72
  %v752 = vunpack.c.l.b16 %v74
  %v753 = vunpack.c.l.b16 %v76
  %v754 = vunpack.c.l.b16 %v78
  %v755 = vunpack.c.l.b16 %v80
  %v756 = vunpack.c.l.b16 %v82
  %v757 = vunpack.c.l.b16 %v84
  %v758 = vunpack.c.l.b16 %v86
  %v759 = vunpack.c.l.b16 %v88
  %v760 = vunpack.c.l.b16 %v90
  %v761 = vunpack.c.l.b16 %v92
  %v762 = vunpack.c.l.b16 %v94
  %v763 = vunpack.c.l.b16 %v96
  %v764 = vunpack.c.l.b16 %v98
  %v765 = vunpack.c.l.b16 %v100
  %v766 = vunpack.c.l.b16 %v102
  %v767 = vpack.c.b16 %v752, %v751
  %v768 = vpack.c.b16 %v754, %v753
  %v769 = vpack.c.b16 %v756, %v755
  %v770 = vpack.c.b16 %v758, %v757
  %v771 = vpack.c.b16 %v760, %v759
  %v772 = vpack.c.b16 %v762, %v761
  %v773 = vpack.c.b16 %v764, %v763
  %v774 = vpack.c.b16 %v766, %v765
  %775 = vrot.lane.b32.xlu0 %v767, 48
  %v776 = vpop.permute.xlu0 %775
  %777 = vrot.lane.b32.xlu0 %v768, 48
  %v778 = vpop.permute.xlu0 %777
  %779 = vrot.lane.b32.xlu0 %v769, 48
  %v780 = vpop.permute.xlu0 %779
  %781 = vrot.lane.b32.xlu0 %v770, 48
  %v782 = vpop.permute.xlu0 %781
  %783 = vrot.lane.b32.xlu0 %v771, 48
  %v784 = vpop.permute.xlu0 %783
  %785 = vrot.lane.b32.xlu0 %v772, 48
  %v786 = vpop.permute.xlu0 %785
  %787 = vrot.lane.b32.xlu0 %v773, 48
  %v788 = vpop.permute.xlu0 %787
  %789 = vrot.lane.b32.xlu0 %v774, 48
  %v790 = vpop.permute.xlu0 %789
  %v807 = vunpack.c.l.b16 %v104
  %v808 = vunpack.c.l.b16 %v105
  %v809 = vunpack.c.l.b16 %v106
  %v810 = vunpack.c.l.b16 %v107
  %v811 = vunpack.c.l.b16 %v108
  %v812 = vunpack.c.l.b16 %v109
  %v813 = vunpack.c.l.b16 %v110
  %v814 = vunpack.c.l.b16 %v111
  %v815 = vunpack.c.l.b16 %v112
  %v816 = vunpack.c.l.b16 %v113
  %v817 = vunpack.c.l.b16 %v114
  %v818 = vunpack.c.l.b16 %v115
  %v819 = vunpack.c.l.b16 %v116
  %v820 = vunpack.c.l.b16 %v117
  %v821 = vunpack.c.l.b16 %v118
  %v822 = vunpack.c.l.b16 %v119
  %v823 = vpack.c.b16 %v808, %v807
  %v824 = vpack.c.b16 %v810, %v809
  %v825 = vpack.c.b16 %v812, %v811
  %v826 = vpack.c.b16 %v814, %v813
  %v827 = vpack.c.b16 %v816, %v815
  %v828 = vpack.c.b16 %v818, %v817
  %v829 = vpack.c.b16 %v820, %v819
  %v830 = vpack.c.b16 %v822, %v821
  %831 = vrot.lane.b32.xlu0 %v823, 64
  %v832 = vpop.permute.xlu0 %831
  %833 = vrot.lane.b32.xlu0 %v824, 64
  %v834 = vpop.permute.xlu0 %833
  %835 = vrot.lane.b32.xlu0 %v825, 64
  %v836 = vpop.permute.xlu0 %835
  %837 = vrot.lane.b32.xlu0 %v826, 64
  %v838 = vpop.permute.xlu0 %837
  %839 = vrot.lane.b32.xlu0 %v827, 64
  %v840 = vpop.permute.xlu0 %839
  %841 = vrot.lane.b32.xlu0 %v828, 64
  %v842 = vpop.permute.xlu0 %841
  %843 = vrot.lane.b32.xlu0 %v829, 64
  %v844 = vpop.permute.xlu0 %843
  %845 = vrot.lane.b32.xlu0 %v830, 64
  %v846 = vpop.permute.xlu0 %845
  %v847 = vunpack.c.l.b16 %v360
  %v848 = vunpack.c.l.b16 %v374
  %v849 = vunpack.c.l.b16 %v388
  %v850 = vunpack.c.l.b16 %v402
  %v851 = vunpack.c.l.b16 %v416
  %v852 = vunpack.c.l.b16 %v430
  %v853 = vunpack.c.l.b16 %v444
  %v854 = vunpack.c.l.b16 %v458
  %v855 = vunpack.c.l.b16 %v472
  %v856 = vunpack.c.l.b16 %v486
  %v857 = vunpack.c.l.b16 %v500
  %v858 = vunpack.c.l.b16 %v514
  %v859 = vunpack.c.l.b16 %v528
  %v860 = vunpack.c.l.b16 %v542
  %v861 = vunpack.c.l.b16 %v556
  %v862 = vunpack.c.l.b16 %v570
  %v863 = vpack.c.b16 %v848, %v847
  %v864 = vpack.c.b16 %v850, %v849
  %v865 = vpack.c.b16 %v852, %v851
  %v866 = vpack.c.b16 %v854, %v853
  %v867 = vpack.c.b16 %v856, %v855
  %v868 = vpack.c.b16 %v858, %v857
  %v869 = vpack.c.b16 %v860, %v859
  %v870 = vpack.c.b16 %v862, %v861
  %871 = vrot.lane.b32.xlu0 %v863, 80
  %v872 = vpop.permute.xlu0 %871
  %873 = vrot.lane.b32.xlu0 %v864, 80
  %v874 = vpop.permute.xlu0 %873
  %875 = vrot.lane.b32.xlu0 %v865, 80
  %v876 = vpop.permute.xlu0 %875
  %877 = vrot.lane.b32.xlu0 %v866, 80
  %v878 = vpop.permute.xlu0 %877
  %879 = vrot.lane.b32.xlu0 %v867, 80
  %v880 = vpop.permute.xlu0 %879
  %881 = vrot.lane.b32.xlu0 %v868, 80
  %v882 = vpop.permute.xlu0 %881
  %883 = vrot.lane.b32.xlu0 %v869, 80
  %v884 = vpop.permute.xlu0 %883
  %885 = vrot.lane.b32.xlu0 %v870, 80
  %v886 = vpop.permute.xlu0 %885
  %v889 = vunpack.c.l.b16 %v34
  %v890 = vunpack.c.l.b16 %v52
  %v891 = vpack.c.b16 %v617, %v616
  %v892 = vpack.c.b16 %v619, %v618
  %v893 = vpack.c.b16 %v621, %v620
  %v894 = vpack.c.b16 %v889, %v622
  %v895 = vpack.c.b16 %v625, %v624
  %v896 = vpack.c.b16 %v627, %v626
  %v897 = vpack.c.b16 %v629, %v628
  %v898 = vpack.c.b16 %v890, %v630
  %899 = vrot.lane.b32.xlu0 %v891, 96
  %v900 = vpop.permute.xlu0 %899
  %901 = vrot.lane.b32.xlu0 %v892, 96
  %v902 = vpop.permute.xlu0 %901
  %903 = vrot.lane.b32.xlu0 %v893, 96
  %v904 = vpop.permute.xlu0 %903
  %905 = vrot.lane.b32.xlu0 %v894, 96
  %v906 = vpop.permute.xlu0 %905
  %907 = vrot.lane.b32.xlu0 %v895, 96
  %v908 = vpop.permute.xlu0 %907
  %909 = vrot.lane.b32.xlu0 %v896, 96
  %v910 = vpop.permute.xlu0 %909
  %911 = vrot.lane.b32.xlu0 %v897, 96
  %v912 = vpop.permute.xlu0 %911
  %913 = vrot.lane.b32.xlu0 %v898, 96
  %v914 = vpop.permute.xlu0 %913
  %v917 = vunpack.c.l.b16 %v62
  %v918 = vunpack.c.l.b16 %v71
  %v919 = vpack.c.b16 %v657, %v656
  %v920 = vpack.c.b16 %v659, %v658
  %v921 = vpack.c.b16 %v661, %v660
  %v922 = vpack.c.b16 %v917, %v662
  %v923 = vpack.c.b16 %v665, %v664
  %v924 = vpack.c.b16 %v667, %v666
  %v925 = vpack.c.b16 %v669, %v668
  %v926 = vpack.c.b16 %v918, %v670
  %927 = vrot.lane.b32.xlu0 %v919, 112
  %v928 = vpop.permute.xlu0 %927
  %929 = vrot.lane.b32.xlu0 %v920, 112
  %v930 = vpop.permute.xlu0 %929
  %931 = vrot.lane.b32.xlu0 %v921, 112
  %v932 = vpop.permute.xlu0 %931
  %933 = vrot.lane.b32.xlu0 %v922, 112
  %v934 = vpop.permute.xlu0 %933
  %935 = vrot.lane.b32.xlu0 %v923, 112
  %v936 = vpop.permute.xlu0 %935
  %937 = vrot.lane.b32.xlu0 %v924, 112
  %v938 = vpop.permute.xlu0 %937
  %939 = vrot.lane.b32.xlu0 %v925, 112
  %v940 = vpop.permute.xlu0 %939
  %941 = vrot.lane.b32.xlu0 %v926, 112
  %v942 = vpop.permute.xlu0 %941
  %v943 = vunpack.c.l.b16 %v584
  %v944 = vunpack.c.l.b16 %v598
  %v945 = vpack.c.b16 %v697, %v696
  %v946 = vpack.c.b16 %v699, %v698
  %v947 = vpack.c.b16 %v701, %v700
  %v948 = vpack.c.b16 %v943, %v702
  %v949 = vpack.c.b16 %v705, %v704
  %v950 = vpack.c.b16 %v707, %v706
  %v951 = vpack.c.b16 %v709, %v708
  %v952 = vpack.c.b16 %v944, %v710
  %vm953 = vcmask 130048
  %v956 = vsel %vm953, %v631, %v680
  %v959 = vsel %vm953, %v632, %v682
  %v962 = vsel %vm953, %v633, %v684
  %v965 = vsel %vm953, %v634, %v686
  %v968 = vsel %vm953, %v635, %v688
  %v971 = vsel %vm953, %v636, %v690
  %v974 = vsel %vm953, %v637, %v692
  %v977 = vsel %vm953, %v638, %v694
  %vm978 = vcmask 261120
  %v980 = vsel %vm978, %v956, %v720
  %v982 = vsel %vm978, %v959, %v722
  %v984 = vsel %vm978, %v962, %v724
  %v986 = vsel %vm978, %v965, %v726
  %v988 = vsel %vm978, %v968, %v728
  %v990 = vsel %vm978, %v971, %v730
  %v992 = vsel %vm978, %v974, %v732
  %v994 = vsel %vm978, %v977, %v734
  %vm995 = vcmask 392192
  %v997 = vsel %vm995, %v980, %v776
  %v999 = vsel %vm995, %v982, %v778
  %v1001 = vsel %vm995, %v984, %v780
  %v1003 = vsel %vm995, %v986, %v782
  %v1005 = vsel %vm995, %v988, %v784
  %v1007 = vsel %vm995, %v990, %v786
  %v1009 = vsel %vm995, %v992, %v788
  %v1011 = vsel %vm995, %v994, %v790
  %vm1012 = vcmask 523264
  %v1014 = vsel %vm1012, %v997, %v832
  %v1016 = vsel %vm1012, %v999, %v834
  %v1018 = vsel %vm1012, %v1001, %v836
  %v1020 = vsel %vm1012, %v1003, %v838
  %v1022 = vsel %vm1012, %v1005, %v840
  %v1024 = vsel %vm1012, %v1007, %v842
  %v1026 = vsel %vm1012, %v1009, %v844
  %v1028 = vsel %vm1012, %v1011, %v846
  %vm1029 = vcmask 654336
  %v1031 = vsel %vm1029, %v1014, %v872
  %v1033 = vsel %vm1029, %v1016, %v874
  %v1035 = vsel %vm1029, %v1018, %v876
  %v1037 = vsel %vm1029, %v1020, %v878
  %v1039 = vsel %vm1029, %v1022, %v880
  %v1041 = vsel %vm1029, %v1024, %v882
  %v1043 = vsel %vm1029, %v1026, %v884
  %v1045 = vsel %vm1029, %v1028, %v886
  %vm1046 = vcmask 785408
  %v1048 = vsel %vm1046, %v1031, %v900
  %v1050 = vsel %vm1046, %v1033, %v902
  %v1052 = vsel %vm1046, %v1035, %v904
  %v1054 = vsel %vm1046, %v1037, %v906
  %v1056 = vsel %vm1046, %v1039, %v908
  %v1058 = vsel %vm1046, %v1041, %v910
  %v1060 = vsel %vm1046, %v1043, %v912
  %v1062 = vsel %vm1046, %v1045, %v914
  %vm1063 = vcmask 916480
  %v1065 = vsel %vm1063, %v1048, %v928
  %v1068 = vsel %vm1063, %v1050, %v930
  %v1071 = vsel %vm1063, %v1052, %v932
  %v1074 = vsel %vm1063, %v1054, %v934
  %v1077 = vsel %vm1063, %v1056, %v936
  %v1080 = vsel %vm1063, %v1058, %v938
  %v1083 = vsel %vm1063, %v1060, %v940
  %v1086 = vsel %vm1063, %v1062, %v942
  %v1088 = vld [vmem:[%s1] sm:$0xf]
  %v1089 = vld [vmem:[%s1 + $0x4] sm:$0xf]
  %v1090 = vld [vmem:[%s1 + $0x8] sm:$0xf]
  %v1091 = vld [vmem:[%s1 + $0xc] sm:$0xf]
  %v1092 = vld [vmem:[%s1 + $0x10] sm:$0xf]
  %v1093 = vld [vmem:[%s1 + $0x14] sm:$0xf]
  %v1094 = vld [vmem:[%s1 + $0x18] sm:$0xf]
  %v1095 = vld [vmem:[%s1 + $0x1c] sm:$0xf]
  %v1096 = vld [vmem:[%s1 + $0x20] sm:$0xf]
  %v1097 = vld [vmem:[%s1 + $0x24] sm:$0xf]
  %v1098 = vld [vmem:[%s1 + $0x28] sm:$0xf]
  %v1099 = vld [vmem:[%s1 + $0x2c] sm:$0xf]
  %v1100 = vld [vmem:[%s1 + $0x30] sm:$0xf]
  %v1101 = vld [vmem:[%s1 + $0x34] sm:$0xf]
  %v1102 = vld [vmem:[%s1 + $0x38] sm:$0xf]
  %v1103 = vld [vmem:[%s1 + $0x3c] sm:$0xf]
  %v1104 = vld [vmem:[%s1 + $0x40] sm:$0xf]
  %v1105 = vld [vmem:[%s1 + $0x44] sm:$0xf]
  %v1124 = vunpack.c.l.b16 %v1088
  %v1125 = vunpack.c.l.b16 %v1089
  %v1126 = vunpack.c.l.b16 %v1090
  %v1127 = vunpack.c.l.b16 %v1091
  %v1128 = vunpack.c.l.b16 %v1092
  %v1129 = vunpack.c.l.b16 %v1093
  %v1130 = vunpack.c.l.b16 %v1094
  %v1131 = vunpack.c.l.b16 %v1095
  %v1132 = vunpack.c.l.b16 %v1096
  %v1133 = vunpack.c.l.b16 %v1097
  %v1134 = vunpack.c.l.b16 %v1098
  %v1135 = vunpack.c.l.b16 %v1099
  %v1136 = vunpack.c.l.b16 %v1100
  %v1137 = vunpack.c.l.b16 %v1101
  %v1138 = vunpack.c.l.b16 %v1102
  %v1139 = vunpack.c.l.b16 %v1103
  %v1140 = vunpack.c.l.b16 %v1104
  %v1141 = vunpack.c.l.b16 %v1105
  %v1142 = vpack.c.b16 %v1125, %v1124
  %v1143 = vpack.c.b16 %v1127, %v1126
  %v1144 = vpack.c.b16 %v1129, %v1128
  %v1145 = vpack.c.b16 %v1131, %v1130
  %v1146 = vpack.c.b16 %v1133, %v1132
  %v1147 = vpack.c.b16 %v1135, %v1134
  %v1148 = vpack.c.b16 %v1137, %v1136
  %v1149 = vpack.c.b16 %v1139, %v1138
  %v1150 = vpack.c.b16 %v1141, %v1140
  %v1161 = vsel %vm953, %v945, 0
  %v1164 = vsel %vm953, %v946, 0
  %v1167 = vsel %vm953, %v947, 0
  %v1170 = vsel %vm953, %v948, 0
  %v1173 = vsel %vm953, %v949, 0
  %v1176 = vsel %vm953, %v950, 0
  %v1179 = vsel %vm953, %v951, 0
  %v1182 = vsel %vm953, %v952, 0
  %1184 = vmatprep.subr.bf16.mxu0 0
  %1185 = vmatpush1.bf16.msra.mxu0 %v1142
  %1186 = vmatprep.subr.bf16.mxu0 0
  %1187 = vmatpush1.bf16.msra.mxu0 %v1143
  %1188 = vmatprep.subr.bf16.mxu0 0
  %1189 = vmatpush1.bf16.msra.mxu0 %v1144
  %1190 = vmatprep.subr.bf16.mxu0 0
  %1191 = vmatpush1.bf16.msra.mxu0 %v1145
  %1192 = vmatprep.subr.bf16.mxu0 0
  %1193 = vmatpush1.bf16.msra.mxu0 %v1146
  %1194 = vmatprep.subr.bf16.mxu0 0
  %1195 = vmatpush1.bf16.msra.mxu0 %v1147
  %1196 = vmatprep.subr.bf16.mxu0 0
  %1197 = vmatpush1.bf16.msra.mxu0 %v1148
  %1198 = vmatprep.subr.bf16.mxu0 0
  %1199 = vmatpush1.bf16.msra.mxu0 %v1149
  %1200 = vmatprep.subr.bf16.mxu0 0
  %1201 = vmatpush1.bf16.msra.mxu0 %v1150
  %1202 = vmatprep.subr.bf16.mxu0 0
  %1203 = vmatpush1.bf16.msra.mxu0 0
  %1204 = vmatprep.subr.bf16.mxu0 0
  %1205 = vmatpush1.bf16.msra.mxu0 0
  %1206 = vmatprep.subr.bf16.mxu0 0
  %1207 = vmatpush1.bf16.msra.mxu0 0
  %1208 = vmatprep.subr.bf16.mxu0 0
  %1209 = vmatpush1.bf16.msra.mxu0 0
  %1210 = vmatprep.subr.bf16.mxu0 0
  %1211 = vmatpush1.bf16.msra.mxu0 0
  %1212 = vmatprep.subr.bf16.mxu0 0
  %1213 = vmatpush1.bf16.msra.mxu0 0
  %1214 = vmatprep.subr.bf16.mxu0 0
  %1215 = vmatpush1.bf16.msra.mxu0 0
  %1216 = vmatprep.mubr.bf16.mxu0 %v1161
  %1217 = vmatmul.mubr.bf16.gmra.mrb[0].mxu0 %v1065
  %v1218 = vpop.f32.mrb[0].mxu0
  %v1219 = vadd.f32 0.0, %v1218
  %v1220 = vpop.f32.mrb[0].mxu0
  %v1221 = vpop.f32.mrb[0].mxu0
  %v1222 = vadd.f32 0.0, %v1221
  %v1223 = vpop.f32.mrb[0].mxu0
  %1224 = vmatprep.mubr.bf16.mxu0 %v1164
  %1225 = vmatmul.mubr.bf16.gmra.mrb[0].mxu0 %v1068
  %v1226 = vpop.f32.mrb[0].mxu0
  %v1227 = vadd.f32 0.0, %v1226
  %v1228 = vpop.f32.mrb[0].mxu0
  %v1229 = vpop.f32.mrb[0].mxu0
  %v1230 = vadd.f32 0.0, %v1229
  %v1231 = vpop.f32.mrb[0].mxu0
  %1232 = vmatprep.mubr.bf16.mxu0 %v1167
  %1233 = vmatmul.mubr.bf16.gmra.mrb[0].mxu0 %v1071
  %v1234 = vpop.f32.mrb[0].mxu0
  %v1235 = vadd.f32 0.0, %v1234
  %v1236 = vpop.f32.mrb[0].mxu0
  %v1237 = vpop.f32.mrb[0].mxu0
  %v1238 = vadd.f32 0.0, %v1237
  %v1239 = vpop.f32.mrb[0].mxu0
  %1240 = vmatprep.mubr.bf16.mxu0 %v1170
  %1241 = vmatmul.mubr.bf16.gmra.mrb[0].mxu0 %v1074
  %v1242 = vpop.f32.mrb[0].mxu0
  %v1243 = vadd.f32 0.0, %v1242
  %v1244 = vpop.f32.mrb[0].mxu0
  %v1245 = vpop.f32.mrb[0].mxu0
  %v1246 = vadd.f32 0.0, %v1245
  %v1247 = vpop.f32.mrb[0].mxu0
  %1248 = vmatprep.mubr.bf16.mxu0 %v1173
  %1249 = vmatmul.mubr.bf16.gmra.mrb[0].mxu0 %v1077
  %v1250 = vpop.f32.mrb[0].mxu0
  %v1251 = vadd.f32 0.0, %v1250
  %v1252 = vpop.f32.mrb[0].mxu0
  %v1253 = vpop.f32.mrb[0].mxu0
  %v1254 = vadd.f32 0.0, %v1253
  %v1255 = vpop.f32.mrb[0].mxu0
  %1256 = vmatprep.mubr.bf16.mxu0 %v1176
  %1257 = vmatmul.mubr.bf16.gmra.mrb[0].mxu0 %v1080
  %v1258 = vpop.f32.mrb[0].mxu0
  %v1259 = vadd.f32 0.0, %v1258
  %v1260 = vpop.f32.mrb[0].mxu0
  %v1261 = vpop.f32.mrb[0].mxu0
  %v1262 = vadd.f32 0.0, %v1261
  %v1263 = vpop.f32.mrb[0].mxu0
  %1264 = vmatprep.mubr.bf16.mxu0 %v1179
  %1265 = vmatmul.mubr.bf16.gmra.mrb[0].mxu0 %v1083
  %v1266 = vpop.f32.mrb[0].mxu0
  %v1267 = vadd.f32 0.0, %v1266
  %v1268 = vpop.f32.mrb[0].mxu0
  %v1269 = vpop.f32.mrb[0].mxu0
  %v1270 = vadd.f32 0.0, %v1269
  %v1271 = vpop.f32.mrb[0].mxu0
  %1272 = vmatprep.mubr.bf16.mxu0 %v1182
  %1273 = vmatmul.mubr.bf16.gmra.mrb[0].mxu0 %v1086
  %v1274 = vpop.f32.mrb[0].mxu0
  %v1275 = vadd.f32 0.0, %v1274
  %v1276 = vpop.f32.mrb[0].mxu0
  %v1277 = vpop.f32.mrb[0].mxu0
  %v1278 = vadd.f32 0.0, %v1277
  %v1279 = vpop.f32.mrb[0].mxu0
  %1280 = vdwg.mxu0
  %v1281 = vld [vmem:[%s2] sm:$0x1]
  %v1282 = vld [vmem:[%s3] sm:$0x1]
  %v1283 = vsel %vm978, %v1219, 0.0
  %v1284 = vsel %vm978, %v1222, 0.0
  %v1285 = vadd.f32 %v1283, %v1284
  %v1286 = vsel %vm978, %v1227, 0.0
  %v1287 = vadd.f32 %v1285, %v1286
  %v1288 = vsel %vm978, %v1230, 0.0
  %v1289 = vadd.f32 %v1287, %v1288
  %v1290 = vsel %vm978, %v1235, 0.0
  %v1291 = vadd.f32 %v1289, %v1290
  %v1292 = vsel %vm978, %v1238, 0.0
  %v1293 = vadd.f32 %v1291, %v1292
  %v1294 = vsel %vm978, %v1243, 0.0
  %v1295 = vadd.f32 %v1293, %v1294
  %v1296 = vsel %vm978, %v1246, 0.0
  %v1297 = vadd.f32 %v1295, %v1296
  %v1298 = vsel %vm978, %v1251, 0.0
  %v1299 = vadd.f32 %v1297, %v1298
  %v1300 = vsel %vm978, %v1254, 0.0
  %v1301 = vadd.f32 %v1299, %v1300
  %v1302 = vsel %vm978, %v1259, 0.0
  %v1303 = vadd.f32 %v1301, %v1302
  %v1304 = vsel %vm978, %v1262, 0.0
  %v1305 = vadd.f32 %v1303, %v1304
  %v1306 = vsel %vm978, %v1267, 0.0
  %v1307 = vadd.f32 %v1305, %v1306
  %v1308 = vsel %vm978, %v1270, 0.0
  %v1309 = vadd.f32 %v1307, %v1308
  %v1310 = vsel %vm978, %v1275, 0.0
  %v1311 = vadd.f32 %v1309, %v1310
  %v1312 = vsel %vm978, %v1278, 0.0
  %v1313 = vadd.f32 %v1311, %v1312
  %v1314 = vrot.slane %v1313, 4
  %v1315 = vadd.f32 %v1313, %v1314
  %v1316 = vrot.slane %v1315, 2
  %v1317 = vadd.f32 %v1315, %v1316
  %v1318 = vrot.slane %v1317, 1
  %v1319 = vadd.f32 %v1317, %v1318
  %v1320 = vmul.f32 %v1219, %v1219
  %v1321 = vmul.f32 %v1222, %v1222
  %v1322 = vmul.f32 %v1227, %v1227
  %v1323 = vmul.f32 %v1230, %v1230
  %v1324 = vmul.f32 %v1235, %v1235
  %v1325 = vmul.f32 %v1238, %v1238
  %v1326 = vmul.f32 %v1243, %v1243
  %v1327 = vmul.f32 %v1246, %v1246
  %v1328 = vmul.f32 %v1251, %v1251
  %v1329 = vmul.f32 %v1254, %v1254
  %v1330 = vmul.f32 %v1259, %v1259
  %v1331 = vmul.f32 %v1262, %v1262
  %v1332 = vmul.f32 %v1267, %v1267
  %v1333 = vmul.f32 %v1270, %v1270
  %v1334 = vmul.f32 %v1275, %v1275
  %v1335 = vmul.f32 %v1278, %v1278
  %v1336 = vsel %vm978, %v1320, 0.0
  %v1337 = vsel %vm978, %v1321, 0.0
  %v1338 = vadd.f32 %v1336, %v1337
  %v1339 = vsel %vm978, %v1322, 0.0
  %v1340 = vadd.f32 %v1338, %v1339
  %v1341 = vsel %vm978, %v1323, 0.0
  %v1342 = vadd.f32 %v1340, %v1341
  %v1343 = vsel %vm978, %v1324, 0.0
  %v1344 = vadd.f32 %v1342, %v1343
  %v1345 = vsel %vm978, %v1325, 0.0
  %v1346 = vadd.f32 %v1344, %v1345
  %v1347 = vsel %vm978, %v1326, 0.0
  %v1348 = vadd.f32 %v1346, %v1347
  %v1349 = vsel %vm978, %v1327, 0.0
  %v1350 = vadd.f32 %v1348, %v1349
  %v1351 = vsel %vm978, %v1328, 0.0
  %v1352 = vadd.f32 %v1350, %v1351
  %v1353 = vsel %vm978, %v1329, 0.0
  %v1354 = vadd.f32 %v1352, %v1353
  %v1355 = vsel %vm978, %v1330, 0.0
  %v1356 = vadd.f32 %v1354, %v1355
  %v1357 = vsel %vm978, %v1331, 0.0
  %v1358 = vadd.f32 %v1356, %v1357
  %v1359 = vsel %vm978, %v1332, 0.0
  %v1360 = vadd.f32 %v1358, %v1359
  %v1361 = vsel %vm978, %v1333, 0.0
  %v1362 = vadd.f32 %v1360, %v1361
  %v1363 = vsel %vm978, %v1334, 0.0
  %v1364 = vadd.f32 %v1362, %v1363
  %v1365 = vsel %vm978, %v1335, 0.0
  %v1366 = vadd.f32 %v1364, %v1365
  %v1367 = vrot.slane %v1366, 4
  %v1368 = vadd.f32 %v1366, %v1367
  %v1369 = vrot.slane %v1368, 2
  %v1370 = vadd.f32 %v1368, %v1369
  %v1371 = vrot.slane %v1370, 1
  %v1372 = vadd.f32 %v1370, %v1371
  %v1373 = vmul.f32 %v1319, 0.0078125
  %v1374 = vmul.f32 %v1372, 0.0078125
  %v1375 = vmul.f32 %v1373, %v1373
  %v1376 = vsub.f32 %v1374, %v1375
  %v1377 = vmax.f32 %v1376, 0.0
  %v1378 = vsub.f32 %v1219, %v1373
  %v1379 = vsub.f32 %v1222, %v1373
  %v1380 = vsub.f32 %v1227, %v1373
  %v1381 = vsub.f32 %v1230, %v1373
  %v1382 = vsub.f32 %v1235, %v1373
  %v1383 = vsub.f32 %v1238, %v1373
  %v1384 = vsub.f32 %v1243, %v1373
  %v1385 = vsub.f32 %v1246, %v1373
  %v1386 = vsub.f32 %v1251, %v1373
  %v1387 = vsub.f32 %v1254, %v1373
  %v1388 = vsub.f32 %v1259, %v1373
  %v1389 = vsub.f32 %v1262, %v1373
  %v1390 = vsub.f32 %v1267, %v1373
  %v1391 = vsub.f32 %v1270, %v1373
  %v1392 = vsub.f32 %v1275, %v1373
  %v1393 = vsub.f32 %v1278, %v1373
  %v1394 = vadd.f32 %v1377, 0.001
  %v1395 = vrsqrt.pop %v1394
  %v1396 = vmul.f32 %v1378, %v1395
  %v1397 = vmul.f32 %v1379, %v1395
  %v1398 = vmul.f32 %v1380, %v1395
  %v1399 = vmul.f32 %v1381, %v1395
  %v1400 = vmul.f32 %v1382, %v1395
  %v1401 = vmul.f32 %v1383, %v1395
  %v1402 = vmul.f32 %v1384, %v1395
  %v1403 = vmul.f32 %v1385, %v1395
  %v1404 = vmul.f32 %v1386, %v1395
  %v1405 = vmul.f32 %v1387, %v1395
  %v1406 = vmul.f32 %v1388, %v1395
  %v1407 = vmul.f32 %v1389, %v1395
  %v1408 = vmul.f32 %v1390, %v1395
  %v1409 = vmul.f32 %v1391, %v1395
  %v1410 = vmul.f32 %v1392, %v1395
  %v1411 = vmul.f32 %v1393, %v1395
  %v1413 = vlaneseq
  %v1414 = vshrl.u32 %v1413, 7
  %v1415 = vsub.s32 0, %v1414
  %v1416 = vrot.slane %v1281, %v1415
  %v1418 = vmul.f32 %v1396, %v1416
  %v1419 = vmul.f32 %v1397, %v1416
  %v1420 = vmul.f32 %v1398, %v1416
  %v1421 = vmul.f32 %v1399, %v1416
  %v1422 = vmul.f32 %v1400, %v1416
  %v1423 = vmul.f32 %v1401, %v1416
  %v1424 = vmul.f32 %v1402, %v1416
  %v1425 = vmul.f32 %v1403, %v1416
  %v1426 = vmul.f32 %v1404, %v1416
  %v1427 = vmul.f32 %v1405, %v1416
  %v1428 = vmul.f32 %v1406, %v1416
  %v1429 = vmul.f32 %v1407, %v1416
  %v1430 = vmul.f32 %v1408, %v1416
  %v1431 = vmul.f32 %v1409, %v1416
  %v1432 = vmul.f32 %v1410, %v1416
  %v1433 = vmul.f32 %v1411, %v1416
  %v1435 = vlaneseq
  %v1436 = vshrl.u32 %v1435, 7
  %v1437 = vsub.s32 0, %v1436
  %v1438 = vrot.slane %v1282, %v1437
  %v1440 = vadd.f32 %v1418, %v1438
  %v1441 = vadd.f32 %v1419, %v1438
  %v1442 = vadd.f32 %v1420, %v1438
  %v1443 = vadd.f32 %v1421, %v1438
  %v1444 = vadd.f32 %v1422, %v1438
  %v1445 = vadd.f32 %v1423, %v1438
  %v1446 = vadd.f32 %v1424, %v1438
  %v1447 = vadd.f32 %v1425, %v1438
  %v1448 = vadd.f32 %v1426, %v1438
  %v1449 = vadd.f32 %v1427, %v1438
  %v1450 = vadd.f32 %v1428, %v1438
  %v1451 = vadd.f32 %v1429, %v1438
  %v1452 = vadd.f32 %v1430, %v1438
  %v1453 = vadd.f32 %v1431, %v1438
  %v1454 = vadd.f32 %v1432, %v1438
  %v1455 = vadd.f32 %v1433, %v1438
  %v1456 = vxor.u32 %v1440, 2147483648
  %v1457 = vxor.u32 %v1441, 2147483648
  %v1458 = vxor.u32 %v1442, 2147483648
  %v1459 = vxor.u32 %v1443, 2147483648
  %v1460 = vxor.u32 %v1444, 2147483648
  %v1461 = vxor.u32 %v1445, 2147483648
  %v1462 = vxor.u32 %v1446, 2147483648
  %v1463 = vxor.u32 %v1447, 2147483648
  %v1464 = vxor.u32 %v1448, 2147483648
  %v1465 = vxor.u32 %v1449, 2147483648
  %v1466 = vxor.u32 %v1450, 2147483648
  %v1467 = vxor.u32 %v1451, 2147483648
  %v1468 = vxor.u32 %v1452, 2147483648
  %v1469 = vxor.u32 %v1453, 2147483648
  %v1470 = vxor.u32 %v1454, 2147483648
  %v1471 = vxor.u32 %v1455, 2147483648
  %v1472 = vmul.f32 %v1456, 1.442695
  %v1473 = vpow.pop %v1472
  %v1474 = vmul.f32 %v1457, 1.442695
  %v1475 = vpow.pop %v1474
  %v1476 = vmul.f32 %v1458, 1.442695
  %v1477 = vpow.pop %v1476
  %v1478 = vmul.f32 %v1459, 1.442695
  %v1479 = vpow.pop %v1478
  %v1480 = vmul.f32 %v1460, 1.442695
  %v1481 = vpow.pop %v1480
  %v1482 = vmul.f32 %v1461, 1.442695
  %v1483 = vpow.pop %v1482
  %v1484 = vmul.f32 %v1462, 1.442695
  %v1485 = vpow.pop %v1484
  %v1486 = vmul.f32 %v1463, 1.442695
  %v1487 = vpow.pop %v1486
  %v1488 = vmul.f32 %v1464, 1.442695
  %v1489 = vpow.pop %v1488
  %v1490 = vmul.f32 %v1465, 1.442695
  %v1491 = vpow.pop %v1490
  %v1492 = vmul.f32 %v1466, 1.442695
  %v1493 = vpow.pop %v1492
  %v1494 = vmul.f32 %v1467, 1.442695
  %v1495 = vpow.pop %v1494
  %v1496 = vmul.f32 %v1468, 1.442695
  %v1497 = vpow.pop %v1496
  %v1498 = vmul.f32 %v1469, 1.442695
  %v1499 = vpow.pop %v1498
  %v1500 = vmul.f32 %v1470, 1.442695
  %v1501 = vpow.pop %v1500
  %v1502 = vmul.f32 %v1471, 1.442695
  %v1503 = vpow.pop %v1502
  %v1504 = vadd.f32 %v1473, 1.0
  %v1505 = vadd.f32 %v1475, 1.0
  %v1506 = vadd.f32 %v1477, 1.0
  %v1507 = vadd.f32 %v1479, 1.0
  %v1508 = vadd.f32 %v1481, 1.0
  %v1509 = vadd.f32 %v1483, 1.0
  %v1510 = vadd.f32 %v1485, 1.0
  %v1511 = vadd.f32 %v1487, 1.0
  %v1512 = vadd.f32 %v1489, 1.0
  %v1513 = vadd.f32 %v1491, 1.0
  %v1514 = vadd.f32 %v1493, 1.0
  %v1515 = vadd.f32 %v1495, 1.0
  %v1516 = vadd.f32 %v1497, 1.0
  %v1517 = vadd.f32 %v1499, 1.0
  %v1518 = vadd.f32 %v1501, 1.0
  %v1519 = vadd.f32 %v1503, 1.0
  %v1520 = vrcp.pop %v1504
  %v1521 = vmul.f32 1.0, %v1520
  %v1522 = vrcp.pop %v1505
  %v1523 = vmul.f32 1.0, %v1522
  %v1524 = vrcp.pop %v1506
  %v1525 = vmul.f32 1.0, %v1524
  %v1526 = vrcp.pop %v1507
  %v1527 = vmul.f32 1.0, %v1526
  %v1528 = vrcp.pop %v1508
  %v1529 = vmul.f32 1.0, %v1528
  %v1530 = vrcp.pop %v1509
  %v1531 = vmul.f32 1.0, %v1530
  %v1532 = vrcp.pop %v1510
  %v1533 = vmul.f32 1.0, %v1532
  %v1534 = vrcp.pop %v1511
  %v1535 = vmul.f32 1.0, %v1534
  %v1536 = vrcp.pop %v1512
  %v1537 = vmul.f32 1.0, %v1536
  %v1538 = vrcp.pop %v1513
  %v1539 = vmul.f32 1.0, %v1538
  %v1540 = vrcp.pop %v1514
  %v1541 = vmul.f32 1.0, %v1540
  %v1542 = vrcp.pop %v1515
  %v1543 = vmul.f32 1.0, %v1542
  %v1544 = vrcp.pop %v1516
  %v1545 = vmul.f32 1.0, %v1544
  %v1546 = vrcp.pop %v1517
  %v1547 = vmul.f32 1.0, %v1546
  %v1548 = vrcp.pop %v1518
  %v1549 = vmul.f32 1.0, %v1548
  %v1550 = vrcp.pop %v1519
  %v1551 = vmul.f32 1.0, %v1550
  %v1552 = vmul.f32 %v1440, %v1521
  %v1553 = vmul.f32 %v1441, %v1523
  %v1554 = vmul.f32 %v1442, %v1525
  %v1555 = vmul.f32 %v1443, %v1527
  %v1556 = vmul.f32 %v1444, %v1529
  %v1557 = vmul.f32 %v1445, %v1531
  %v1558 = vmul.f32 %v1446, %v1533
  %v1559 = vmul.f32 %v1447, %v1535
  %v1560 = vmul.f32 %v1448, %v1537
  %v1561 = vmul.f32 %v1449, %v1539
  %v1562 = vmul.f32 %v1450, %v1541
  %v1563 = vmul.f32 %v1451, %v1543
  %v1564 = vmul.f32 %v1452, %v1545
  %v1565 = vmul.f32 %v1453, %v1547
  %v1566 = vmul.f32 %v1454, %v1549
  %v1567 = vmul.f32 %v1455, %v1551
  %v1568 = vpack.c.bf16 %v1553, %v1552
  %v1569 = vpack.c.bf16 %v1555, %v1554
  %v1570 = vpack.c.bf16 %v1557, %v1556
  %v1571 = vpack.c.bf16 %v1559, %v1558
  %v1572 = vpack.c.bf16 %v1561, %v1560
  %v1573 = vpack.c.bf16 %v1563, %v1562
  %v1574 = vpack.c.bf16 %v1565, %v1564
  %v1575 = vpack.c.bf16 %v1567, %v1566
  %v1584 = vunpack.c.l.b16 %v1568
  %v1585 = vunpack.c.h.b16 %v1568
  %v1586 = vunpack.c.l.b16 %v1569
  %v1587 = vunpack.c.h.b16 %v1569
  %v1588 = vunpack.c.l.b16 %v1570
  %v1589 = vunpack.c.h.b16 %v1570
  %v1590 = vunpack.c.l.b16 %v1571
  %v1591 = vunpack.c.h.b16 %v1571
  %v1592 = vunpack.c.l.b16 %v1572
  %v1593 = vunpack.c.h.b16 %v1572
  %v1594 = vunpack.c.l.b16 %v1573
  %v1595 = vunpack.c.h.b16 %v1573
  %v1596 = vunpack.c.l.b16 %v1574
  %v1597 = vunpack.c.h.b16 %v1574
  %v1598 = vunpack.c.l.b16 %v1575
  %v1599 = vunpack.c.h.b16 %v1575
  %v1600 = vpack.c.b16 %v1584, %v1584
  %v1601 = vpack.c.b16 %v1585, %v1585
  %v1602 = vpack.c.b16 %v1586, %v1586
  %v1603 = vpack.c.b16 %v1587, %v1587
  %v1604 = vpack.c.b16 %v1588, %v1588
  %v1605 = vpack.c.b16 %v1589, %v1589
  %v1606 = vpack.c.b16 %v1590, %v1590
  %v1607 = vpack.c.b16 %v1591, %v1591
  %v1608 = vpack.c.b16 %v1592, %v1592
  %v1609 = vpack.c.b16 %v1593, %v1593
  %v1610 = vpack.c.b16 %v1594, %v1594
  %v1611 = vpack.c.b16 %v1595, %v1595
  %v1612 = vpack.c.b16 %v1596, %v1596
  %v1613 = vpack.c.b16 %v1597, %v1597
  %v1614 = vpack.c.b16 %v1598, %v1598
  %v1615 = vpack.c.b16 %v1599, %v1599
  %vm1632 = vcmask 257024
  %1633 = vst.msk [vmem:[%s4] sm:$0xf] %vm1632, %v1600
  %1634 = vst.msk [vmem:[%s4 + $0x4] sm:$0xf] %vm1632, %v1601
  %1635 = vst.msk [vmem:[%s4 + $0x8] sm:$0xf] %vm1632, %v1602
  %1636 = vst.msk [vmem:[%s4 + $0xc] sm:$0xf] %vm1632, %v1603
  %1637 = vst.msk [vmem:[%s4 + $0x10] sm:$0xf] %vm1632, %v1604
  %1638 = vst.msk [vmem:[%s4 + $0x14] sm:$0xf] %vm1632, %v1605
  %1639 = vst.msk [vmem:[%s4 + $0x18] sm:$0xf] %vm1632, %v1606
  %1640 = vst.msk [vmem:[%s4 + $0x1c] sm:$0xf] %vm1632, %v1607
  %1641 = vst.msk [vmem:[%s4 + $0x20] sm:$0xf] %vm1632, %v1608
  %1642 = vst.msk [vmem:[%s4 + $0x24] sm:$0xf] %vm1632, %v1609
  %1643 = vst.msk [vmem:[%s4 + $0x28] sm:$0xf] %vm1632, %v1610
  %1644 = vst.msk [vmem:[%s4 + $0x2c] sm:$0xf] %vm1632, %v1611
  %1645 = vst.msk [vmem:[%s4 + $0x30] sm:$0xf] %vm1632, %v1612
  %1646 = vst.msk [vmem:[%s4 + $0x34] sm:$0xf] %vm1632, %v1613
  %1647 = vst.msk [vmem:[%s4 + $0x38] sm:$0xf] %vm1632, %v1614
  %1648 = vst.msk [vmem:[%s4 + $0x3c] sm:$0xf] %vm1632, %v1615
  // Predicated region
  $region18: #{forward.4} parent=0 // pred_check
    _
  $region19: #{forward.4} parent=0 // pred_check_branch
    %1650 = sbr.rel (0) target = $region21
  $region20: #{forward.4} parent=0 // pred_region
    _
  $region21: #{forward.4} parent=0 // pred_fallthru
    _
  // Predicated region
  $region22: #{forward.4} parent=0 // pred_check
    _
  $region23: #{forward.4} parent=0 // pred_check_branch
    %1652 = sbr.rel (0) target = $region25
  $region24: #{forward.4} parent=0 // pred_region
    _
  $region25: #{forward.4} parent=0 // pred_fallthru
    _

// kernel: forward.3
$region0: #{forward.3}
  #allocation0 [shape = 'u32[]', space=smem, size = 0x4, offset = 0x4, fixed_abs, tag = 'smem constant byte address 0x4 - core index']
  #allocation1 [shape = 'u32[144,128]{1,0:T(1,128)}', space=vmem, size = 0x12000, scoped, tag = 'internal scratch']
  %s0 = inlined_call_operand.vmem [shape: f32[8,17,17,3], index: 0, kind: input, shape index: {}]
  %s1 = inlined_call_operand.vmem [shape: bf16[27,16], index: 1, kind: input, shape index: {}]
  %s2 = inlined_call_operand.vmem [shape: f32[1,16], index: 2, kind: input, shape index: {}]
  %s3 = inlined_call_operand.vmem [shape: f32[1,16], index: 3, kind: input, shape index: {}]
  %s4 = inlined_call_operand.vmem [shape: bf16[512,16], index: 4, kind: output, shape index: {}]
  %s5 = sld [smem:[#allocation0]]
  $region26: #{forward.3} parent=0
    _
  %s7 = ssub.s32 1, %s5
  %s8 = scalar_select 0, %s7, %s5
  // Predicated region
  $region2: #{forward.3} parent=0 // pred_check
    _
  $region3: #{forward.3} parent=0 // pred_check_branch
    %10 = sbr.rel (0) target = $region5
  $region4: #{forward.3} parent=0 // pred_region
    _
  $region5: #{forward.3} parent=0 // pred_fallthru
    _
  // Predicated region
  $region6: #{forward.3} parent=0 // pred_check
    _
  $region7: #{forward.3} parent=0 // pred_check_branch
    %12 = sbr.rel (0) target = $region9
  $region8: #{forward.3} parent=0 // pred_region
    _
  $region9: #{forward.3} parent=0 // pred_fallthru
    _
  // Predicated region
  $region10: #{forward.3} parent=0 // pred_check
    _
  $region11: #{forward.3} parent=0 // pred_check_branch
    %14 = sbr.rel (0) target = $region13
  $region12: #{forward.3} parent=0 // pred_region
    _
  $region13: #{forward.3} parent=0 // pred_fallthru
    _
  // Predicated region
  $region14: #{forward.3} parent=0 // pred_check
    _
  $region15: #{forward.3} parent=0 // pred_check_branch
    %16 = sbr.rel (0) target = $region17
  $region16: #{forward.3} parent=0 // pred_region
    _
  $region17: #{forward.3} parent=0 // pred_fallthru
    _
  %v18 = vld [vmem:[%s0] sm:$0xff]
  %v19 = vld [vmem:[%s0 + $0x8] sm:$0xff]
  %v20 = vld [vmem:[%s0 + $0x10] sm:$0x1]
  %v21 = vld [vmem:[%s0 + $0x18] sm:$0xff]
  %v22 = vld [vmem:[%s0 + $0x20] sm:$0xff]
  %v23 = vld [vmem:[%s0 + $0x28] sm:$0x1]
  %v24 = vld [vmem:[%s0 + $0x30] sm:$0xff]
  %v25 = vld [vmem:[%s0 + $0x38] sm:$0xff]
  %v26 = vld [vmem:[%s0 + $0x40] sm:$0x1]
  %v27 = vld [vmem:[%s0 + $0x48] sm:$0xff]
  %v28 = vld [vmem:[%s0 + $0x50] sm:$0xff]
  %v29 = vld [vmem:[%s0 + $0x58] sm:$0x1]
  %v30 = vld [vmem:[%s0 + $0x60] sm:$0xff]
  %v31 = vld [vmem:[%s0 + $0x68] sm:$0xff]
  %v32 = vld [vmem:[%s0 + $0x70] sm:$0x1]
  %v33 = vld [vmem:[%s0 + $0x78] sm:$0xff]
  %v34 = vld [vmem:[%s0 + $0x80] sm:$0xff]
  %v35 = vld [vmem:[%s0 + $0x88] sm:$0x1]
  %v36 = vld [vmem:[%s0 + $0x90] sm:$0xff]
  %v37 = vld [vmem:[%s0 + $0x98] sm:$0xff]
  %v38 = vld [vmem:[%s0 + $0xa0] sm:$0x1]
  %v39 = vld [vmem:[%s0 + $0xa8] sm:$0xff]
  %v40 = vld [vmem:[%s0 + $0xb0] sm:$0xff]
  %v41 = vld [vmem:[%s0 + $0xb8] sm:$0x1]
  %v42 = vld [vmem:[%s0 + $0xc0] sm:$0xff]
  %v43 = vld [vmem:[%s0 + $0xc8] sm:$0xff]
  %v44 = vld [vmem:[%s0 + $0xd0] sm:$0x1]
  %v45 = vld [vmem:[%s0 + $0xd8] sm:$0xff]
  %v46 = vld [vmem:[%s0 + $0xe0] sm:$0xff]
  %v47 = vld [vmem:[%s0 + $0xe8] sm:$0x1]
  %v48 = vld [vmem:[%s0 + $0xf0] sm:$0xff]
  %v49 = vld [vmem:[%s0 + $0xf8] sm:$0xff]
  %v50 = vld [vmem:[%s0 + $0x100] sm:$0x1]
  %v51 = vld [vmem:[%s0 + $0x108] sm:$0xff]
  %v52 = vld [vmem:[%s0 + $0x110] sm:$0xff]
  %v53 = vld [vmem:[%s0 + $0x118] sm:$0x1]
  %v54 = vld [vmem:[%s0 + $0x120] sm:$0xff]
  %v55 = vld [vmem:[%s0 + $0x128] sm:$0xff]
  %v56 = vld [vmem:[%s0 + $0x130] sm:$0x1]
  %v57 = vld [vmem:[%s0 + $0x138] sm:$0xff]
  %v58 = vld [vmem:[%s0 + $0x140] sm:$0xff]
  %v59 = vld [vmem:[%s0 + $0x148] sm:$0x1]
  %v60 = vld [vmem:[%s0 + $0x150] sm:$0xff]
  %v61 = vld [vmem:[%s0 + $0x158] sm:$0xff]
  %v62 = vld [vmem:[%s0 + $0x160] sm:$0x1]
  %v63 = vld [vmem:[%s0 + $0x168] sm:$0xff]
  %v64 = vld [vmem:[%s0 + $0x170] sm:$0xff]
  %v65 = vld [vmem:[%s0 + $0x178] sm:$0x1]
  %v66 = vld [vmem:[%s0 + $0x180] sm:$0xff]
  %v67 = vld [vmem:[%s0 + $0x188] sm:$0xff]
  %v68 = vld [vmem:[%s0 + $0x190] sm:$0x1]
  %v69 = vld [vmem:[%s0 + $0x198] sm:$0xff]
  %v70 = vld [vmem:[%s0 + $0x1a0] sm:$0xff]
  %v71 = vld [vmem:[%s0 + $0x1a8] sm:$0x1]
  %v72 = vld [vmem:[%s0 + $0x1b0] sm:$0xff]
  %v73 = vld [vmem:[%s0 + $0x1b8] sm:$0xff]
  %v74 = vld [vmem:[%s0 + $0x1c0] sm:$0x1]
  %v75 = vld [vmem:[%s0 + $0x1c8] sm:$0xff]
  %v76 = vld [vmem:[%s0 + $0x1d0] sm:$0xff]
  %v77 = vld [vmem:[%s0 + $0x1d8] sm:$0x1]
  %v78 = vld [vmem:[%s0 + $0x1e0] sm:$0xff]
  %v79 = vld [vmem:[%s0 + $0x1e8] sm:$0xff]
  %v80 = vld [vmem:[%s0 + $0x1f0] sm:$0x1]
  %v81 = vld [vmem:[%s0 + $0x1f8] sm:$0xff]
  %v82 = vld [vmem:[%s0 + $0x200] sm:$0xff]
  %v83 = vld [vmem:[%s0 + $0x208] sm:$0x1]
  %v84 = vld [vmem:[%s0 + $0x210] sm:$0xff]
  %v85 = vld [vmem:[%s0 + $0x218] sm:$0xff]
  %v86 = vld [vmem:[%s0 + $0x220] sm:$0x1]
  %v87 = vld [vmem:[%s0 + $0x228] sm:$0xff]
  %v88 = vld [vmem:[%s0 + $0x230] sm:$0xff]
  %v89 = vld [vmem:[%s0 + $0x238] sm:$0x1]
  %v90 = vld [vmem:[%s0 + $0x240] sm:$0xff]
  %v91 = vld [vmem:[%s0 + $0x248] sm:$0xff]
  %v92 = vld [vmem:[%s0 + $0x250] sm:$0x1]
  %v93 = vld [vmem:[%s0 + $0x258] sm:$0xff]
  %v94 = vld [vmem:[%s0 + $0x260] sm:$0xff]
  %v95 = vld [vmem:[%s0 + $0x268] sm:$0x1]
  %v96 = vld [vmem:[%s0 + $0x270] sm:$0xff]
  %v97 = vld [vmem:[%s0 + $0x278] sm:$0xff]
  %v98 = vld [vmem:[%s0 + $0x280] sm:$0x1]
  %v99 = vld [vmem:[%s0 + $0x288] sm:$0xff]
  %v100 = vld [vmem:[%s0 + $0x290] sm:$0xff]
  %v101 = vld [vmem:[%s0 + $0x298] sm:$0x1]
  %v102 = vld [vmem:[%s0 + $0x2a0] sm:$0xff]
  %v103 = vld [vmem:[%s0 + $0x2a8] sm:$0xff]
  %v104 = vld [vmem:[%s0 + $0x2b0] sm:$0x1]
  %v105 = vld [vmem:[%s0 + $0x2b8] sm:$0xff]
  %v106 = vld [vmem:[%s0 + $0x2c0] sm:$0xff]
  %v107 = vld [vmem:[%s0 + $0x2c8] sm:$0x1]
  %v108 = vld [vmem:[%s0 + $0x2d0] sm:$0xff]
  %v109 = vld [vmem:[%s0 + $0x2d8] sm:$0xff]
  %v110 = vld [vmem:[%s0 + $0x2e0] sm:$0x1]
  %v111 = vld [vmem:[%s0 + $0x2e8] sm:$0xff]
  %v112 = vld [vmem:[%s0 + $0x2f0] sm:$0xff]
  %v113 = vld [vmem:[%s0 + $0x2f8] sm:$0x1]
  %v114 = vld [vmem:[%s0 + $0x300] sm:$0xff]
  %v115 = vld [vmem:[%s0 + $0x308] sm:$0xff]
  %v116 = vld [vmem:[%s0 + $0x310] sm:$0x1]
  %v117 = vld [vmem:[%s0 + $0x318] sm:$0xff]
  %v118 = vld [vmem:[%s0 + $0x320] sm:$0xff]
  %v119 = vld [vmem:[%s0 + $0x328] sm:$0x1]
  %v120 = vld [vmem:[%s0 + $0x330] sm:$0xff]
  %v121 = vld [vmem:[%s0 + $0x338] sm:$0xff]
  %v122 = vld [vmem:[%s0 + $0x348] sm:$0xff]
  %v123 = vld [vmem:[%s0 + $0x350] sm:$0xff]
  %v124 = vld [vmem:[%s0 + $0x360] sm:$0xff]
  %v125 = vld [vmem:[%s0 + $0x368] sm:$0xff]
  %v126 = vld [vmem:[%s0 + $0x378] sm:$0xff]
  %v127 = vld [vmem:[%s0 + $0x380] sm:$0xff]
  %v128 = vld [vmem:[%s0 + $0x390] sm:$0xff]
  %v129 = vld [vmem:[%s0 + $0x398] sm:$0xff]
  %v130 = vld [vmem:[%s0 + $0x3a8] sm:$0xff]
  %v131 = vld [vmem:[%s0 + $0x3b0] sm:$0xff]
  %v132 = vld [vmem:[%s0 + $0x3c0] sm:$0xff]
  %v133 = vld [vmem:[%s0 + $0x3c8] sm:$0xff]
  %v134 = vld [vmem:[%s0 + $0x3d8] sm:$0xff]
  %v135 = vld [vmem:[%s0 + $0x3e0] sm:$0xff]
  %v136 = vld [vmem:[%s0 + $0x3f0] sm:$0xff]
  %v137 = vld [vmem:[%s0 + $0x3f8] sm:$0xff]
  %v138 = vld [vmem:[%s0 + $0x408] sm:$0xff]
  %v139 = vld [vmem:[%s0 + $0x410] sm:$0xff]
  %v140 = vld [vmem:[%s0 + $0x420] sm:$0xff]
  %v141 = vld [vmem:[%s0 + $0x428] sm:$0xff]
  %v142 = vld [vmem:[%s0 + $0x438] sm:$0xff]
  %v143 = vld [vmem:[%s0 + $0x440] sm:$0xff]
  %v144 = vld [vmem:[%s0 + $0x450] sm:$0xff]
  %v145 = vld [vmem:[%s0 + $0x458] sm:$0xff]
  %v146 = vld [vmem:[%s0 + $0x468] sm:$0xff]
  %v147 = vld [vmem:[%s0 + $0x470] sm:$0xff]
  %v148 = vld [vmem:[%s0 + $0x480] sm:$0xff]
  %v149 = vld [vmem:[%s0 + $0x488] sm:$0xff]
  %v150 = vld [vmem:[%s0 + $0x498] sm:$0xff]
  %v151 = vld [vmem:[%s0 + $0x4a0] sm:$0xff]
  %v152 = vld [vmem:[%s0 + $0x4b0] sm:$0xff]
  %v153 = vld [vmem:[%s0 + $0x4b8] sm:$0xff]
  %v154 = vld [vmem:[%s0 + $0x4c8] sm:$0xff]
  %v155 = vld [vmem:[%s0 + $0x4d0] sm:$0xff]
  %v156 = vld [vmem:[%s0 + $0x4e0] sm:$0xff]
  %v157 = vld [vmem:[%s0 + $0x4e8] sm:$0xff]
  %v158 = vld [vmem:[%s0 + $0x4f8] sm:$0xff]
  %v159 = vld [vmem:[%s0 + $0x500] sm:$0xff]
  %v160 = vld [vmem:[%s0 + $0x510] sm:$0xff]
  %v161 = vld [vmem:[%s0 + $0x518] sm:$0xff]
  %v162 = vld [vmem:[%s0 + $0x528] sm:$0xff]
  %v163 = vld [vmem:[%s0 + $0x530] sm:$0xff]
  %v164 = vld [vmem:[%s0 + $0x540] sm:$0xff]
  %v165 = vld [vmem:[%s0 + $0x548] sm:$0xff]
  %v166 = vld [vmem:[%s0 + $0x558] sm:$0xff]
  %v167 = vld [vmem:[%s0 + $0x560] sm:$0xff]
  %v168 = vld [vmem:[%s0 + $0x570] sm:$0xff]
  %v169 = vld [vmem:[%s0 + $0x578] sm:$0xff]
  %v170 = vld [vmem:[%s0 + $0x588] sm:$0xff]
  %v171 = vld [vmem:[%s0 + $0x590] sm:$0xff]
  %v172 = vld [vmem:[%s0 + $0x5a0] sm:$0xff]
  %v173 = vld [vmem:[%s0 + $0x5a8] sm:$0xff]
  %v174 = vld [vmem:[%s0 + $0x5b8] sm:$0xff]
  %v175 = vld [vmem:[%s0 + $0x5c0] sm:$0xff]
  %v176 = vld [vmem:[%s0 + $0x5d0] sm:$0xff]
  %v177 = vld [vmem:[%s0 + $0x5d8] sm:$0xff]
  %v178 = vld [vmem:[%s0 + $0x5e8] sm:$0xff]
  %v179 = vld [vmem:[%s0 + $0x5f0] sm:$0xff]
  %v180 = vld [vmem:[%s0 + $0x600] sm:$0xff]
  %v181 = vld [vmem:[%s0 + $0x608] sm:$0xff]
  %v182 = vld [vmem:[%s0 + $0x618] sm:$0xff]
  %v183 = vld [vmem:[%s0 + $0x620] sm:$0xff]
  %v184 = vld [vmem:[%s0 + $0x630] sm:$0xff]
  %v185 = vld [vmem:[%s0 + $0x638] sm:$0xff]
  %v186 = vld [vmem:[%s0 + $0x648] sm:$0xff]
  %v187 = vld [vmem:[%s0 + $0x650] sm:$0xff]
  %v188 = vld [vmem:[%s0 + $0x660] sm:$0xff]
  %v189 = vld [vmem:[%s0 + $0x668] sm:$0xff]
  %v190 = vld [vmem:[%s0 + $0x670] sm:$0x1]
  %v191 = vld [vmem:[%s0 + $0x678] sm:$0xff]
  %v192 = vld [vmem:[%s0 + $0x680] sm:$0xff]
  %v193 = vld [vmem:[%s0 + $0x688] sm:$0x1]
  %v194 = vld [vmem:[%s0 + $0x690] sm:$0xff]
  %v195 = vld [vmem:[%s0 + $0x698] sm:$0xff]
  %v196 = vld [vmem:[%s0 + $0x6a0] sm:$0x1]
  %v197 = vld [vmem:[%s0 + $0x6a8] sm:$0xff]
  %v198 = vld [vmem:[%s0 + $0x6b0] sm:$0xff]
  %v199 = vld [vmem:[%s0 + $0x6b8] sm:$0x1]
  %v200 = vld [vmem:[%s0 + $0x6c0] sm:$0xff]
  %v201 = vld [vmem:[%s0 + $0x6c8] sm:$0xff]
  %v202 = vld [vmem:[%s0 + $0x6d0] sm:$0x1]
  %v203 = vld [vmem:[%s0 + $0x6d8] sm:$0xff]
  %v204 = vld [vmem:[%s0 + $0x6e0] sm:$0xff]
  %v205 = vld [vmem:[%s0 + $0x6e8] sm:$0x1]
  %v206 = vld [vmem:[%s0 + $0x6f0] sm:$0xff]
  %v207 = vld [vmem:[%s0 + $0x6f8] sm:$0xff]
  %v208 = vld [vmem:[%s0 + $0x700] sm:$0x1]
  %v209 = vld [vmem:[%s0 + $0x708] sm:$0xff]
  %v210 = vld [vmem:[%s0 + $0x710] sm:$0xff]
  %v211 = vld [vmem:[%s0 + $0x718] sm:$0x1]
  %v212 = vld [vmem:[%s0 + $0x720] sm:$0xff]
  %v213 = vld [vmem:[%s0 + $0x728] sm:$0xff]
  %v214 = vld [vmem:[%s0 + $0x730] sm:$0x1]
  %v215 = vld [vmem:[%s0 + $0x738] sm:$0xff]
  %v216 = vld [vmem:[%s0 + $0x740] sm:$0xff]
  %v217 = vld [vmem:[%s0 + $0x748] sm:$0x1]
  %v218 = vld [vmem:[%s0 + $0x750] sm:$0xff]
  %v219 = vld [vmem:[%s0 + $0x758] sm:$0xff]
  %v220 = vld [vmem:[%s0 + $0x760] sm:$0x1]
  %v221 = vld [vmem:[%s0 + $0x768] sm:$0xff]
  %v222 = vld [vmem:[%s0 + $0x770] sm:$0xff]
  %v223 = vld [vmem:[%s0 + $0x778] sm:$0x1]
  %v224 = vld [vmem:[%s0 + $0x780] sm:$0xff]
  %v225 = vld [vmem:[%s0 + $0x788] sm:$0xff]
  %v226 = vld [vmem:[%s0 + $0x790] sm:$0x1]
  %v227 = vld [vmem:[%s0 + $0x798] sm:$0xff]
  %v228 = vld [vmem:[%s0 + $0x7a0] sm:$0xff]
  %v229 = vld [vmem:[%s0 + $0x7a8] sm:$0x1]
  %v230 = vld [vmem:[%s0 + $0x7b0] sm:$0xff]
  %v231 = vld [vmem:[%s0 + $0x7b8] sm:$0xff]
  %v232 = vld [vmem:[%s0 + $0x7c0] sm:$0x1]
  %v233 = vld [vmem:[%s0 + $0x7c8] sm:$0xff]
  %v234 = vld [vmem:[%s0 + $0x7d0] sm:$0xff]
  %v235 = vld [vmem:[%s0 + $0x7d8] sm:$0x1]
  %v236 = vld [vmem:[%s0 + $0x7f8] sm:$0xff]
  %v237 = vld [vmem:[%s0 + $0x800] sm:$0xff]
  %v238 = vld [vmem:[%s0 + $0x808] sm:$0x1]
  %v239 = vld [vmem:[%s0 + $0x810] sm:$0xff]
  %v240 = vld [vmem:[%s0 + $0x818] sm:$0xff]
  %v241 = vld [vmem:[%s0 + $0x820] sm:$0x1]
  %v242 = vld [vmem:[%s0 + $0x828] sm:$0xff]
  %v243 = vld [vmem:[%s0 + $0x830] sm:$0xff]
  %v244 = vld [vmem:[%s0 + $0x838] sm:$0x1]
  %v245 = vld [vmem:[%s0 + $0x840] sm:$0xff]
  %v246 = vld [vmem:[%s0 + $0x848] sm:$0xff]
  %v247 = vld [vmem:[%s0 + $0x850] sm:$0x1]
  %v248 = vld [vmem:[%s0 + $0x858] sm:$0xff]
  %v249 = vld [vmem:[%s0 + $0x860] sm:$0xff]
  %v250 = vld [vmem:[%s0 + $0x868] sm:$0x1]
  %v251 = vld [vmem:[%s0 + $0x870] sm:$0xff]
  %v252 = vld [vmem:[%s0 + $0x878] sm:$0xff]
  %v253 = vld [vmem:[%s0 + $0x880] sm:$0x1]
  %v254 = vld [vmem:[%s0 + $0x888] sm:$0xff]
  %v255 = vld [vmem:[%s0 + $0x890] sm:$0xff]
  %v256 = vld [vmem:[%s0 + $0x898] sm:$0x1]
  %v257 = vld [vmem:[%s0 + $0x8a0] sm:$0xff]
  %v258 = vld [vmem:[%s0 + $0x8a8] sm:$0xff]
  %v259 = vld [vmem:[%s0 + $0x8b0] sm:$0x1]
  %v260 = vld [vmem:[%s0 + $0x8b8] sm:$0xff]
  %v261 = vld [vmem:[%s0 + $0x8c0] sm:$0xff]
  %v262 = vld [vmem:[%s0 + $0x8c8] sm:$0x1]
  %v263 = vld [vmem:[%s0 + $0x8d0] sm:$0xff]
  %v264 = vld [vmem:[%s0 + $0x8d8] sm:$0xff]
  %v265 = vld [vmem:[%s0 + $0x8e0] sm:$0x1]
  %v266 = vld [vmem:[%s0 + $0x8e8] sm:$0xff]
  %v267 = vld [vmem:[%s0 + $0x8f0] sm:$0xff]
  %v268 = vld [vmem:[%s0 + $0x8f8] sm:$0x1]
  %v269 = vld [vmem:[%s0 + $0x900] sm:$0xff]
  %v270 = vld [vmem:[%s0 + $0x908] sm:$0xff]
  %v271 = vld [vmem:[%s0 + $0x910] sm:$0x1]
  %v272 = vld [vmem:[%s0 + $0x918] sm:$0xff]
  %v273 = vld [vmem:[%s0 + $0x920] sm:$0xff]
  %v274 = vld [vmem:[%s0 + $0x928] sm:$0x1]
  %v275 = vld [vmem:[%s0 + $0x930] sm:$0xff]
  %v276 = vld [vmem:[%s0 + $0x938] sm:$0xff]
  %v277 = vld [vmem:[%s0 + $0x940] sm:$0x1]
  %v278 = vld [vmem:[%s0 + $0x948] sm:$0xff]
  %v279 = vld [vmem:[%s0 + $0x950] sm:$0xff]
  %v280 = vld [vmem:[%s0 + $0x958] sm:$0x1]
  %v281 = vld [vmem:[%s0 + $0x960] sm:$0xff]
  %v282 = vld [vmem:[%s0 + $0x968] sm:$0xff]
  %v283 = vld [vmem:[%s0 + $0x970] sm:$0x1]
  %v284 = vld [vmem:[%s0 + $0x990] sm:$0xff]
  %v285 = vld [vmem:[%s0 + $0x998] sm:$0xff]
  %v286 = vld [vmem:[%s0 + $0x9a8] sm:$0xff]
  %v287 = vld [vmem:[%s0 + $0x9b0] sm:$0xff]
  %v288 = vld [vmem:[%s0 + $0x9c0] sm:$0xff]
  %v289 = vld [vmem:[%s0 + $0x9c8] sm:$0xff]
  %v290 = vld [vmem:[%s0 + $0x9d8] sm:$0xff]
  %v291 = vld [vmem:[%s0 + $0x9e0] sm:$0xff]
  %v292 = vld [vmem:[%s0 + $0x9f0] sm:$0xff]
  %v293 = vld [vmem:[%s0 + $0x9f8] sm:$0xff]
  %v294 = vld [vmem:[%s0 + $0xa08] sm:$0xff]
  %v295 = vld [vmem:[%s0 + $0xa10] sm:$0xff]
  %v296 = vld [vmem:[%s0 + $0xa20] sm:$0xff]
  %v297 = vld [vmem:[%s0 + $0xa28] sm:$0xff]
  %v298 = vld [vmem:[%s0 + $0xa38] sm:$0xff]
  %v299 = vld [vmem:[%s0 + $0xa40] sm:$0xff]
  %v300 = vld [vmem:[%s0 + $0xa50] sm:$0xff]
  %v301 = vld [vmem:[%s0 + $0xa58] sm:$0xff]
  %v302 = vld [vmem:[%s0 + $0xa68] sm:$0xff]
  %v303 = vld [vmem:[%s0 + $0xa70] sm:$0xff]
  %v304 = vld [vmem:[%s0 + $0xa80] sm:$0xff]
  %v305 = vld [vmem:[%s0 + $0xa88] sm:$0xff]
  %v306 = vld [vmem:[%s0 + $0xa98] sm:$0xff]
  %v307 = vld [vmem:[%s0 + $0xaa0] sm:$0xff]
  %v308 = vld [vmem:[%s0 + $0xab0] sm:$0xff]
  %v309 = vld [vmem:[%s0 + $0xab8] sm:$0xff]
  %v310 = vld [vmem:[%s0 + $0xac8] sm:$0xff]
  %v311 = vld [vmem:[%s0 + $0xad0] sm:$0xff]
  %v312 = vld [vmem:[%s0 + $0xae0] sm:$0xff]
  %v313 = vld [vmem:[%s0 + $0xae8] sm:$0xff]
  %v314 = vld [vmem:[%s0 + $0xaf8] sm:$0xff]
  %v315 = vld [vmem:[%s0 + $0xb00] sm:$0xff]
  %v316 = vld [vmem:[%s0 + $0xb28] sm:$0xff]
  %v317 = vld [vmem:[%s0 + $0xb30] sm:$0xff]
  %v318 = vld [vmem:[%s0 + $0xb40] sm:$0xff]
  %v319 = vld [vmem:[%s0 + $0xb48] sm:$0xff]
  %v320 = vld [vmem:[%s0 + $0xb58] sm:$0xff]
  %v321 = vld [vmem:[%s0 + $0xb60] sm:$0xff]
  %v322 = vld [vmem:[%s0 + $0xb70] sm:$0xff]
  %v323 = vld [vmem:[%s0 + $0xb78] sm:$0xff]
  %v324 = vld [vmem:[%s0 + $0xb88] sm:$0xff]
  %v325 = vld [vmem:[%s0 + $0xb90] sm:$0xff]
  %v326 = vld [vmem:[%s0 + $0xba0] sm:$0xff]
  %v327 = vld [vmem:[%s0 + $0xba8] sm:$0xff]
  %v328 = vld [vmem:[%s0 + $0xbb8] sm:$0xff]
  %v329 = vld [vmem:[%s0 + $0xbc0] sm:$0xff]
  %v330 = vld [vmem:[%s0 + $0xbd0] sm:$0xff]
  %v331 = vld [vmem:[%s0 + $0xbd8] sm:$0xff]
  %v332 = vld [vmem:[%s0 + $0xbe8] sm:$0xff]
  %v333 = vld [vmem:[%s0 + $0xbf0] sm:$0xff]
  %v334 = vld [vmem:[%s0 + $0xc00] sm:$0xff]
  %v335 = vld [vmem:[%s0 + $0xc08] sm:$0xff]
  %v336 = vld [vmem:[%s0 + $0xc18] sm:$0xff]
  %v337 = vld [vmem:[%s0 + $0xc20] sm:$0xff]
  %v338 = vld [vmem:[%s0 + $0xc30] sm:$0xff]
  %v339 = vld [vmem:[%s0 + $0xc38] sm:$0xff]
  %v340 = vld [vmem:[%s0 + $0xc48] sm:$0xff]
  %v341 = vld [vmem:[%s0 + $0xc50] sm:$0xff]
  %v342 = vld [vmem:[%s0 + $0xc60] sm:$0xff]
  %v343 = vld [vmem:[%s0 + $0xc68] sm:$0xff]
  %v344 = vld [vmem:[%s0 + $0xc78] sm:$0xff]
  %v345 = vld [vmem:[%s0 + $0xc80] sm:$0xff]
  %v346 = vld [vmem:[%s0 + $0xc90] sm:$0xff]
  %v347 = vld [vmem:[%s0 + $0xc98] sm:$0xff]
  %vm444 = vcmask 1046528
  %v445 = vrot.slane %v18, 1
  %v446 = vrot.slane %v19, 1
  %v447 = vsel %vm444, %v445, %v446
  %v448 = vrot.slane %v20, 1
  %v449 = vsel %vm444, %v446, %v448
  %v450 = vrot.slane %v21, 1
  %v451 = vrot.slane %v22, 1
  %v452 = vsel %vm444, %v450, %v451
  %v453 = vrot.slane %v23, 1
  %v454 = vsel %vm444, %v451, %v453
  %v455 = vrot.slane %v24, 1
  %v456 = vrot.slane %v25, 1
  %v457 = vsel %vm444, %v455, %v456
  %v458 = vrot.slane %v26, 1
  %v459 = vsel %vm444, %v456, %v458
  %v460 = vrot.slane %v27, 1
  %v461 = vrot.slane %v28, 1
  %v462 = vsel %vm444, %v460, %v461
  %v463 = vrot.slane %v29, 1
  %v464 = vsel %vm444, %v461, %v463
  %v465 = vrot.slane %v30, 1
  %v466 = vrot.slane %v31, 1
  %v467 = vsel %vm444, %v465, %v466
  %v468 = vrot.slane %v32, 1
  %v469 = vsel %vm444, %v466, %v468
  %v470 = vrot.slane %v33, 1
  %v471 = vrot.slane %v34, 1
  %v472 = vsel %vm444, %v470, %v471
  %v473 = vrot.slane %v35, 1
  %v474 = vsel %vm444, %v471, %v473
  %v475 = vrot.slane %v36, 1
  %v476 = vrot.slane %v37, 1
  %v477 = vsel %vm444, %v475, %v476
  %v478 = vrot.slane %v38, 1
  %v479 = vsel %vm444, %v476, %v478
  %v480 = vrot.slane %v39, 1
  %v481 = vrot.slane %v40, 1
  %v482 = vsel %vm444, %v480, %v481
  %v483 = vrot.slane %v41, 1
  %v484 = vsel %vm444, %v481, %v483
  %v485 = vrot.slane %v42, 1
  %v486 = vrot.slane %v43, 1
  %v487 = vsel %vm444, %v485, %v486
  %v488 = vrot.slane %v44, 1
  %v489 = vsel %vm444, %v486, %v488
  %v490 = vrot.slane %v45, 1
  %v491 = vrot.slane %v46, 1
  %v492 = vsel %vm444, %v490, %v491
  %v493 = vrot.slane %v47, 1
  %v494 = vsel %vm444, %v491, %v493
  %v495 = vrot.slane %v48, 1
  %v496 = vrot.slane %v49, 1
  %v497 = vsel %vm444, %v495, %v496
  %v498 = vrot.slane %v50, 1
  %v499 = vsel %vm444, %v496, %v498
  %v500 = vrot.slane %v51, 1
  %v501 = vrot.slane %v52, 1
  %v502 = vsel %vm444, %v500, %v501
  %v503 = vrot.slane %v53, 1
  %v504 = vsel %vm444, %v501, %v503
  %v505 = vrot.slane %v54, 1
  %v506 = vrot.slane %v55, 1
  %v507 = vsel %vm444, %v505, %v506
  %v508 = vrot.slane %v56, 1
  %v509 = vsel %vm444, %v506, %v508
  %v510 = vrot.slane %v57, 1
  %v511 = vrot.slane %v58, 1
  %v512 = vsel %vm444, %v510, %v511
  %v513 = vrot.slane %v59, 1
  %v514 = vsel %vm444, %v511, %v513
  %v515 = vrot.slane %v60, 1
  %v516 = vrot.slane %v61, 1
  %v517 = vsel %vm444, %v515, %v516
  %v518 = vrot.slane %v62, 1
  %v519 = vsel %vm444, %v516, %v518
  %v520 = vrot.slane %v63, 1
  %v521 = vrot.slane %v64, 1
  %v522 = vsel %vm444, %v520, %v521
  %v523 = vrot.slane %v65, 1
  %v524 = vsel %vm444, %v521, %v523
  %v525 = vrot.slane %v69, 1
  %v526 = vrot.slane %v70, 1
  %v527 = vsel %vm444, %v525, %v526
  %v528 = vrot.slane %v71, 1
  %v529 = vsel %vm444, %v526, %v528
  %v530 = vrot.slane %v72, 1
  %v531 = vrot.slane %v73, 1
  %v532 = vsel %vm444, %v530, %v531
  %v533 = vrot.slane %v74, 1
  %v534 = vsel %vm444, %v531, %v533
  %v535 = vrot.slane %v75, 1
  %v536 = vrot.slane %v76, 1
  %v537 = vsel %vm444, %v535, %v536
  %v538 = vrot.slane %v77, 1
  %v539 = vsel %vm444, %v536, %v538
  %v540 = vrot.slane %v78, 1
  %v541 = vrot.slane %v79, 1
  %v542 = vsel %vm444, %v540, %v541
  %v543 = vrot.slane %v80, 1
  %v544 = vsel %vm444, %v541, %v543
  %v545 = vrot.slane %v81, 1
  %v546 = vrot.slane %v82, 1
  %v547 = vsel %vm444, %v545, %v546
  %v548 = vrot.slane %v83, 1
  %v549 = vsel %vm444, %v546, %v548
  %v550 = vrot.slane %v84, 1
  %v551 = vrot.slane %v85, 1
  %v552 = vsel %vm444, %v550, %v551
  %v553 = vrot.slane %v86, 1
  %v554 = vsel %vm444, %v551, %v553
  %v555 = vrot.slane %v87, 1
  %v556 = vrot.slane %v88, 1
  %v557 = vsel %vm444, %v555, %v556
  %v558 = vrot.slane %v89, 1
  %v559 = vsel %vm444, %v556, %v558
  %v560 = vrot.slane %v90, 1
  %v561 = vrot.slane %v91, 1
  %v562 = vsel %vm444, %v560, %v561
  %v563 = vrot.slane %v92, 1
  %v564 = vsel %vm444, %v561, %v563
  %v565 = vrot.slane %v93, 1
  %v566 = vrot.slane %v94, 1
  %v567 = vsel %vm444, %v565, %v566
  %v568 = vrot.slane %v95, 1
  %v569 = vsel %vm444, %v566, %v568
  %v570 = vrot.slane %v96, 1
  %v571 = vrot.slane %v97, 1
  %v572 = vsel %vm444, %v570, %v571
  %v573 = vrot.slane %v98, 1
  %v574 = vsel %vm444, %v571, %v573
  %v575 = vrot.slane %v99, 1
  %v576 = vrot.slane %v100, 1
  %v577 = vsel %vm444, %v575, %v576
  %v578 = vrot.slane %v101, 1
  %v579 = vsel %vm444, %v576, %v578
  %v580 = vrot.slane %v102, 1
  %v581 = vrot.slane %v103, 1
  %v582 = vsel %vm444, %v580, %v581
  %v583 = vrot.slane %v104, 1
  %v584 = vsel %vm444, %v581, %v583
  %v585 = vrot.slane %v105, 1
  %v586 = vrot.slane %v106, 1
  %v587 = vsel %vm444, %v585, %v586
  %v588 = vrot.slane %v107, 1
  %v589 = vsel %vm444, %v586, %v588
  %v590 = vrot.slane %v108, 1
  %v591 = vrot.slane %v109, 1
  %v592 = vsel %vm444, %v590, %v591
  %v593 = vrot.slane %v110, 1
  %v594 = vsel %vm444, %v591, %v593
  %v595 = vrot.slane %v111, 1
  %v596 = vrot.slane %v112, 1
  %v597 = vsel %vm444, %v595, %v596
  %v598 = vrot.slane %v113, 1
  %v599 = vsel %vm444, %v596, %v598
  %v600 = vrot.slane %v114, 1
  %v601 = vrot.slane %v115, 1
  %v602 = vsel %vm444, %v600, %v601
  %v603 = vrot.slane %v116, 1
  %v604 = vsel %vm444, %v601, %v603
  %v701 = vrot.slane %v188, 1
  %v702 = vrot.slane %v189, 1
  %v703 = vsel %vm444, %v701, %v702
  %v704 = vrot.slane %v190, 1
  %v705 = vsel %vm444, %v702, %v704
  %v706 = vrot.slane %v191, 1
  %v707 = vrot.slane %v192, 1
  %v708 = vsel %vm444, %v706, %v707
  %v709 = vrot.slane %v193, 1
  %v710 = vsel %vm444, %v707, %v709
  %v711 = vrot.slane %v194, 1
  %v712 = vrot.slane %v195, 1
  %v713 = vsel %vm444, %v711, %v712
  %v714 = vrot.slane %v196, 1
  %v715 = vsel %vm444, %v712, %v714
  %v716 = vrot.slane %v197, 1
  %v717 = vrot.slane %v198, 1
  %v718 = vsel %vm444, %v716, %v717
  %v719 = vrot.slane %v199, 1
  %v720 = vsel %vm444, %v717, %v719
  %v721 = vrot.slane %v200, 1
  %v722 = vrot.slane %v201, 1
  %v723 = vsel %vm444, %v721, %v722
  %v724 = vrot.slane %v202, 1
  %v725 = vsel %vm444, %v722, %v724
  %v726 = vrot.slane %v203, 1
  %v727 = vrot.slane %v204, 1
  %v728 = vsel %vm444, %v726, %v727
  %v729 = vrot.slane %v205, 1
  %v730 = vsel %vm444, %v727, %v729
  %v731 = vrot.slane %v206, 1
  %v732 = vrot.slane %v207, 1
  %v733 = vsel %vm444, %v731, %v732
  %v734 = vrot.slane %v208, 1
  %v735 = vsel %vm444, %v732, %v734
  %v736 = vrot.slane %v209, 1
  %v737 = vrot.slane %v210, 1
  %v738 = vsel %vm444, %v736, %v737
  %v739 = vrot.slane %v211, 1
  %v740 = vsel %vm444, %v737, %v739
  %v741 = vrot.slane %v212, 1
  %v742 = vrot.slane %v213, 1
  %v743 = vsel %vm444, %v741, %v742
  %v744 = vrot.slane %v214, 1
  %v745 = vsel %vm444, %v742, %v744
  %v746 = vrot.slane %v215, 1
  %v747 = vrot.slane %v216, 1
  %v748 = vsel %vm444, %v746, %v747
  %v749 = vrot.slane %v217, 1
  %v750 = vsel %vm444, %v747, %v749
  %v751 = vrot.slane %v218, 1
  %v752 = vrot.slane %v219, 1
  %v753 = vsel %vm444, %v751, %v752
  %v754 = vrot.slane %v220, 1
  %v755 = vsel %vm444, %v752, %v754
  %v756 = vrot.slane %v221, 1
  %v757 = vrot.slane %v222, 1
  %v758 = vsel %vm444, %v756, %v757
  %v759 = vrot.slane %v223, 1
  %v760 = vsel %vm444, %v757, %v759
  %v761 = vrot.slane %v224, 1
  %v762 = vrot.slane %v225, 1
  %v763 = vsel %vm444, %v761, %v762
  %v764 = vrot.slane %v226, 1
  %v765 = vsel %vm444, %v762, %v764
  %v766 = vrot.slane %v227, 1
  %v767 = vrot.slane %v228, 1
  %v768 = vsel %vm444, %v766, %v767
  %v769 = vrot.slane %v229, 1
  %v770 = vsel %vm444, %v767, %v769
  %v771 = vrot.slane %v230, 1
  %v772 = vrot.slane %v231, 1
  %v773 = vsel %vm444, %v771, %v772
  %v774 = vrot.slane %v232, 1
  %v775 = vsel %vm444, %v772, %v774
  %v776 = vrot.slane %v233, 1
  %v777 = vrot.slane %v234, 1
  %v778 = vsel %vm444, %v776, %v777
  %v779 = vrot.slane %v235, 1
  %v780 = vsel %vm444, %v777, %v779
  %v781 = vrot.slane %v236, 1
  %v782 = vrot.slane %v237, 1
  %v783 = vsel %vm444, %v781, %v782
  %v784 = vrot.slane %v238, 1
  %v785 = vsel %vm444, %v782, %v784
  %v786 = vrot.slane %v239, 1
  %v787 = vrot.slane %v240, 1
  %v788 = vsel %vm444, %v786, %v787
  %v789 = vrot.slane %v241, 1
  %v790 = vsel %vm444, %v787, %v789
  %v791 = vrot.slane %v242, 1
  %v792 = vrot.slane %v243, 1
  %v793 = vsel %vm444, %v791, %v792
  %v794 = vrot.slane %v244, 1
  %v795 = vsel %vm444, %v792, %v794
  %v796 = vrot.slane %v245, 1
  %v797 = vrot.slane %v246, 1
  %v798 = vsel %vm444, %v796, %v797
  %v799 = vrot.slane %v247, 1
  %v800 = vsel %vm444, %v797, %v799
  %v801 = vrot.slane %v248, 1
  %v802 = vrot.slane %v249, 1
  %v803 = vsel %vm444, %v801, %v802
  %v804 = vrot.slane %v250, 1
  %v805 = vsel %vm444, %v802, %v804
  %v806 = vrot.slane %v251, 1
  %v807 = vrot.slane %v252, 1
  %v808 = vsel %vm444, %v806, %v807
  %v809 = vrot.slane %v253, 1
  %v810 = vsel %vm444, %v807, %v809
  %v811 = vrot.slane %v254, 1
  %v812 = vrot.slane %v255, 1
  %v813 = vsel %vm444, %v811, %v812
  %v814 = vrot.slane %v256, 1
  %v815 = vsel %vm444, %v812, %v814
  %v816 = vrot.slane %v257, 1
  %v817 = vrot.slane %v258, 1
  %v818 = vsel %vm444, %v816, %v817
  %v819 = vrot.slane %v259, 1
  %v820 = vsel %vm444, %v817, %v819
  %v821 = vrot.slane %v260, 1
  %v822 = vrot.slane %v261, 1
  %v823 = vsel %vm444, %v821, %v822
  %v824 = vrot.slane %v262, 1
  %v825 = vsel %vm444, %v822, %v824
  %v826 = vrot.slane %v263, 1
  %v827 = vrot.slane %v264, 1
  %v828 = vsel %vm444, %v826, %v827
  %v829 = vrot.slane %v265, 1
  %v830 = vsel %vm444, %v827, %v829
  %v831 = vrot.slane %v266, 1
  %v832 = vrot.slane %v267, 1
  %v833 = vsel %vm444, %v831, %v832
  %v834 = vrot.slane %v268, 1
  %v835 = vsel %vm444, %v832, %v834
  %v836 = vrot.slane %v269, 1
  %v837 = vrot.slane %v270, 1
  %v838 = vsel %vm444, %v836, %v837
  %v839 = vrot.slane %v271, 1
  %v840 = vsel %vm444, %v837, %v839
  %v841 = vrot.slane %v272, 1
  %v842 = vrot.slane %v273, 1
  %v843 = vsel %vm444, %v841, %v842
  %v844 = vrot.slane %v274, 1
  %v845 = vsel %vm444, %v842, %v844
  %v846 = vrot.slane %v275, 1
  %v847 = vrot.slane %v276, 1
  %v848 = vsel %vm444, %v846, %v847
  %v849 = vrot.slane %v277, 1
  %v850 = vsel %vm444, %v847, %v849
  %v851 = vrot.slane %v278, 1
  %v852 = vrot.slane %v279, 1
  %v853 = vsel %vm444, %v851, %v852
  %v854 = vrot.slane %v280, 1
  %v855 = vsel %vm444, %v852, %v854
  %v856 = vrot.slane %v281, 1
  %v857 = vrot.slane %v282, 1
  %v858 = vsel %vm444, %v856, %v857
  %v859 = vrot.slane %v283, 1
  %v860 = vsel %vm444, %v857, %v859
  %v867 = vrot.slane %v66, 1
  %v868 = vrot.slane %v67, 1
  %v869 = vsel %vm444, %v867, %v868
  %v870 = vrot.slane %v68, 1
  %v871 = vsel %vm444, %v868, %v870
  %v872 = vrot.slane %v117, 1
  %v873 = vrot.slane %v118, 1
  %v874 = vsel %vm444, %v872, %v873
  %v875 = vrot.slane %v119, 1
  %v876 = vsel %vm444, %v873, %v875
  %941 = vrot.lane.b32.xlu0 %v120, 3
  %v942 = vpop.permute.xlu0 %941
  %943 = vrot.lane.b32.xlu0 %v121, 3
  %v944 = vpop.permute.xlu0 %943
  %945 = vrot.lane.b32.xlu0 %v122, 3
  %v946 = vpop.permute.xlu0 %945
  %947 = vrot.lane.b32.xlu0 %v123, 3
  %v948 = vpop.permute.xlu0 %947
  %949 = vrot.lane.b32.xlu0 %v124, 3
  %v950 = vpop.permute.xlu0 %949
  %951 = vrot.lane.b32.xlu0 %v125, 3
  %v952 = vpop.permute.xlu0 %951
  %953 = vrot.lane.b32.xlu0 %v126, 3
  %v954 = vpop.permute.xlu0 %953
  %955 = vrot.lane.b32.xlu0 %v127, 3
  %v956 = vpop.permute.xlu0 %955
  %957 = vrot.lane.b32.xlu0 %v128, 3
  %v958 = vpop.permute.xlu0 %957
  %959 = vrot.lane.b32.xlu0 %v129, 3
  %v960 = vpop.permute.xlu0 %959
  %961 = vrot.lane.b32.xlu0 %v130, 3
  %v962 = vpop.permute.xlu0 %961
  %963 = vrot.lane.b32.xlu0 %v131, 3
  %v964 = vpop.permute.xlu0 %963
  %965 = vrot.lane.b32.xlu0 %v132, 3
  %v966 = vpop.permute.xlu0 %965
  %967 = vrot.lane.b32.xlu0 %v133, 3
  %v968 = vpop.permute.xlu0 %967
  %969 = vrot.lane.b32.xlu0 %v134, 3
  %v970 = vpop.permute.xlu0 %969
  %971 = vrot.lane.b32.xlu0 %v135, 3
  %v972 = vpop.permute.xlu0 %971
  %973 = vrot.lane.b32.xlu0 %v136, 3
  %v974 = vpop.permute.xlu0 %973
  %975 = vrot.lane.b32.xlu0 %v137, 3
  %v976 = vpop.permute.xlu0 %975
  %977 = vrot.lane.b32.xlu0 %v138, 3
  %v978 = vpop.permute.xlu0 %977
  %979 = vrot.lane.b32.xlu0 %v139, 3
  %v980 = vpop.permute.xlu0 %979
  %981 = vrot.lane.b32.xlu0 %v140, 3
  %v982 = vpop.permute.xlu0 %981
  %983 = vrot.lane.b32.xlu0 %v141, 3
  %v984 = vpop.permute.xlu0 %983
  %985 = vrot.lane.b32.xlu0 %v142, 3
  %v986 = vpop.permute.xlu0 %985
  %987 = vrot.lane.b32.xlu0 %v143, 3
  %v988 = vpop.permute.xlu0 %987
  %989 = vrot.lane.b32.xlu0 %v144, 3
  %v990 = vpop.permute.xlu0 %989
  %991 = vrot.lane.b32.xlu0 %v145, 3
  %v992 = vpop.permute.xlu0 %991
  %993 = vrot.lane.b32.xlu0 %v146, 3
  %v994 = vpop.permute.xlu0 %993
  %995 = vrot.lane.b32.xlu0 %v147, 3
  %v996 = vpop.permute.xlu0 %995
  %997 = vrot.lane.b32.xlu0 %v148, 3
  %v998 = vpop.permute.xlu0 %997
  %999 = vrot.lane.b32.xlu0 %v149, 3
  %v1000 = vpop.permute.xlu0 %999
  %1001 = vrot.lane.b32.xlu0 %v150, 3
  %v1002 = vpop.permute.xlu0 %1001
  %1003 = vrot.lane.b32.xlu0 %v151, 3
  %v1004 = vpop.permute.xlu0 %1003
  %1005 = vrot.lane.b32.xlu0 %v154, 3
  %v1006 = vpop.permute.xlu0 %1005
  %1007 = vrot.lane.b32.xlu0 %v155, 3
  %v1008 = vpop.permute.xlu0 %1007
  %1009 = vrot.lane.b32.xlu0 %v156, 3
  %v1010 = vpop.permute.xlu0 %1009
  %1011 = vrot.lane.b32.xlu0 %v157, 3
  %v1012 = vpop.permute.xlu0 %1011
  %1013 = vrot.lane.b32.xlu0 %v158, 3
  %v1014 = vpop.permute.xlu0 %1013
  %1015 = vrot.lane.b32.xlu0 %v159, 3
  %v1016 = vpop.permute.xlu0 %1015
  %1017 = vrot.lane.b32.xlu0 %v160, 3
  %v1018 = vpop.permute.xlu0 %1017
  %1019 = vrot.lane.b32.xlu0 %v161, 3
  %v1020 = vpop.permute.xlu0 %1019
  %1021 = vrot.lane.b32.xlu0 %v162, 3
  %v1022 = vpop.permute.xlu0 %1021
  %1023 = vrot.lane.b32.xlu0 %v163, 3
  %v1024 = vpop.permute.xlu0 %1023
  %1025 = vrot.lane.b32.xlu0 %v164, 3
  %v1026 = vpop.permute.xlu0 %1025
  %1027 = vrot.lane.b32.xlu0 %v165, 3
  %v1028 = vpop.permute.xlu0 %1027
  %1029 = vrot.lane.b32.xlu0 %v166, 3
  %v1030 = vpop.permute.xlu0 %1029
  %1031 = vrot.lane.b32.xlu0 %v167, 3
  %v1032 = vpop.permute.xlu0 %1031
  %1033 = vrot.lane.b32.xlu0 %v168, 3
  %v1034 = vpop.permute.xlu0 %1033
  %1035 = vrot.lane.b32.xlu0 %v169, 3
  %v1036 = vpop.permute.xlu0 %1035
  %1037 = vrot.lane.b32.xlu0 %v170, 3
  %v1038 = vpop.permute.xlu0 %1037
  %1039 = vrot.lane.b32.xlu0 %v171, 3
  %v1040 = vpop.permute.xlu0 %1039
  %1041 = vrot.lane.b32.xlu0 %v172, 3
  %v1042 = vpop.permute.xlu0 %1041
  %1043 = vrot.lane.b32.xlu0 %v173, 3
  %v1044 = vpop.permute.xlu0 %1043
  %1045 = vrot.lane.b32.xlu0 %v174, 3
  %v1046 = vpop.permute.xlu0 %1045
  %1047 = vrot.lane.b32.xlu0 %v175, 3
  %v1048 = vpop.permute.xlu0 %1047
  %1049 = vrot.lane.b32.xlu0 %v176, 3
  %v1050 = vpop.permute.xlu0 %1049
  %1051 = vrot.lane.b32.xlu0 %v177, 3
  %v1052 = vpop.permute.xlu0 %1051
  %1053 = vrot.lane.b32.xlu0 %v178, 3
  %v1054 = vpop.permute.xlu0 %1053
  %1055 = vrot.lane.b32.xlu0 %v179, 3
  %v1056 = vpop.permute.xlu0 %1055
  %1057 = vrot.lane.b32.xlu0 %v180, 3
  %v1058 = vpop.permute.xlu0 %1057
  %1059 = vrot.lane.b32.xlu0 %v181, 3
  %v1060 = vpop.permute.xlu0 %1059
  %1061 = vrot.lane.b32.xlu0 %v182, 3
  %v1062 = vpop.permute.xlu0 %1061
  %1063 = vrot.lane.b32.xlu0 %v183, 3
  %v1064 = vpop.permute.xlu0 %1063
  %1065 = vrot.lane.b32.xlu0 %v184, 3
  %v1066 = vpop.permute.xlu0 %1065
  %1067 = vrot.lane.b32.xlu0 %v185, 3
  %v1068 = vpop.permute.xlu0 %1067
  %1133 = vrot.lane.b32.xlu0 %v447, 6
  %v1134 = vpop.permute.xlu0 %1133
  %1135 = vrot.lane.b32.xlu0 %v449, 6
  %v1136 = vpop.permute.xlu0 %1135
  %1137 = vrot.lane.b32.xlu0 %v452, 6
  %v1138 = vpop.permute.xlu0 %1137
  %1139 = vrot.lane.b32.xlu0 %v454, 6
  %v1140 = vpop.permute.xlu0 %1139
  %1141 = vrot.lane.b32.xlu0 %v457, 6
  %v1142 = vpop.permute.xlu0 %1141
  %1143 = vrot.lane.b32.xlu0 %v459, 6
  %v1144 = vpop.permute.xlu0 %1143
  %1145 = vrot.lane.b32.xlu0 %v462, 6
  %v1146 = vpop.permute.xlu0 %1145
  %1147 = vrot.lane.b32.xlu0 %v464, 6
  %v1148 = vpop.permute.xlu0 %1147
  %1149 = vrot.lane.b32.xlu0 %v467, 6
  %v1150 = vpop.permute.xlu0 %1149
  %1151 = vrot.lane.b32.xlu0 %v469, 6
  %v1152 = vpop.permute.xlu0 %1151
  %1153 = vrot.lane.b32.xlu0 %v472, 6
  %v1154 = vpop.permute.xlu0 %1153
  %1155 = vrot.lane.b32.xlu0 %v474, 6
  %v1156 = vpop.permute.xlu0 %1155
  %1157 = vrot.lane.b32.xlu0 %v477, 6
  %v1158 = vpop.permute.xlu0 %1157
  %1159 = vrot.lane.b32.xlu0 %v479, 6
  %v1160 = vpop.permute.xlu0 %1159
  %1161 = vrot.lane.b32.xlu0 %v482, 6
  %v1162 = vpop.permute.xlu0 %1161
  %1163 = vrot.lane.b32.xlu0 %v484, 6
  %v1164 = vpop.permute.xlu0 %1163
  %1165 = vrot.lane.b32.xlu0 %v487, 6
  %v1166 = vpop.permute.xlu0 %1165
  %1167 = vrot.lane.b32.xlu0 %v489, 6
  %v1168 = vpop.permute.xlu0 %1167
  %1169 = vrot.lane.b32.xlu0 %v492, 6
  %v1170 = vpop.permute.xlu0 %1169
  %1171 = vrot.lane.b32.xlu0 %v494, 6
  %v1172 = vpop.permute.xlu0 %1171
  %1173 = vrot.lane.b32.xlu0 %v497, 6
  %v1174 = vpop.permute.xlu0 %1173
  %1175 = vrot.lane.b32.xlu0 %v499, 6
  %v1176 = vpop.permute.xlu0 %1175
  %1177 = vrot.lane.b32.xlu0 %v502, 6
  %v1178 = vpop.permute.xlu0 %1177
  %1179 = vrot.lane.b32.xlu0 %v504, 6
  %v1180 = vpop.permute.xlu0 %1179
  %1181 = vrot.lane.b32.xlu0 %v507, 6
  %v1182 = vpop.permute.xlu0 %1181
  %1183 = vrot.lane.b32.xlu0 %v509, 6
  %v1184 = vpop.permute.xlu0 %1183
  %1185 = vrot.lane.b32.xlu0 %v512, 6
  %v1186 = vpop.permute.xlu0 %1185
  %1187 = vrot.lane.b32.xlu0 %v514, 6
  %v1188 = vpop.permute.xlu0 %1187
  %1189 = vrot.lane.b32.xlu0 %v517, 6
  %v1190 = vpop.permute.xlu0 %1189
  %1191 = vrot.lane.b32.xlu0 %v519, 6
  %v1192 = vpop.permute.xlu0 %1191
  %1193 = vrot.lane.b32.xlu0 %v522, 6
  %v1194 = vpop.permute.xlu0 %1193
  %1195 = vrot.lane.b32.xlu0 %v524, 6
  %v1196 = vpop.permute.xlu0 %1195
  %1197 = vrot.lane.b32.xlu0 %v527, 6
  %v1198 = vpop.permute.xlu0 %1197
  %1199 = vrot.lane.b32.xlu0 %v529, 6
  %v1200 = vpop.permute.xlu0 %1199
  %1201 = vrot.lane.b32.xlu0 %v532, 6
  %v1202 = vpop.permute.xlu0 %1201
  %1203 = vrot.lane.b32.xlu0 %v534, 6
  %v1204 = vpop.permute.xlu0 %1203
  %1205 = vrot.lane.b32.xlu0 %v537, 6
  %v1206 = vpop.permute.xlu0 %1205
  %1207 = vrot.lane.b32.xlu0 %v539, 6
  %v1208 = vpop.permute.xlu0 %1207
  %1209 = vrot.lane.b32.xlu0 %v542, 6
  %v1210 = vpop.permute.xlu0 %1209
  %1211 = vrot.lane.b32.xlu0 %v544, 6
  %v1212 = vpop.permute.xlu0 %1211
  %1213 = vrot.lane.b32.xlu0 %v547, 6
  %v1214 = vpop.permute.xlu0 %1213
  %1215 = vrot.lane.b32.xlu0 %v549, 6
  %v1216 = vpop.permute.xlu0 %1215
  %1217 = vrot.lane.b32.xlu0 %v552, 6
  %v1218 = vpop.permute.xlu0 %1217
  %1219 = vrot.lane.b32.xlu0 %v554, 6
  %v1220 = vpop.permute.xlu0 %1219
  %1221 = vrot.lane.b32.xlu0 %v557, 6
  %v1222 = vpop.permute.xlu0 %1221
  %1223 = vrot.lane.b32.xlu0 %v559, 6
  %v1224 = vpop.permute.xlu0 %1223
  %1225 = vrot.lane.b32.xlu0 %v562, 6
  %v1226 = vpop.permute.xlu0 %1225
  %1227 = vrot.lane.b32.xlu0 %v564, 6
  %v1228 = vpop.permute.xlu0 %1227
  %1229 = vrot.lane.b32.xlu0 %v567, 6
  %v1230 = vpop.permute.xlu0 %1229
  %1231 = vrot.lane.b32.xlu0 %v569, 6
  %v1232 = vpop.permute.xlu0 %1231
  %1233 = vrot.lane.b32.xlu0 %v572, 6
  %v1234 = vpop.permute.xlu0 %1233
  %1235 = vrot.lane.b32.xlu0 %v574, 6
  %v1236 = vpop.permute.xlu0 %1235
  %1237 = vrot.lane.b32.xlu0 %v577, 6
  %v1238 = vpop.permute.xlu0 %1237
  %1239 = vrot.lane.b32.xlu0 %v579, 6
  %v1240 = vpop.permute.xlu0 %1239
  %1241 = vrot.lane.b32.xlu0 %v582, 6
  %v1242 = vpop.permute.xlu0 %1241
  %1243 = vrot.lane.b32.xlu0 %v584, 6
  %v1244 = vpop.permute.xlu0 %1243
  %1245 = vrot.lane.b32.xlu0 %v587, 6
  %v1246 = vpop.permute.xlu0 %1245
  %1247 = vrot.lane.b32.xlu0 %v589, 6
  %v1248 = vpop.permute.xlu0 %1247
  %1249 = vrot.lane.b32.xlu0 %v592, 6
  %v1250 = vpop.permute.xlu0 %1249
  %1251 = vrot.lane.b32.xlu0 %v594, 6
  %v1252 = vpop.permute.xlu0 %1251
  %1253 = vrot.lane.b32.xlu0 %v597, 6
  %v1254 = vpop.permute.xlu0 %1253
  %1255 = vrot.lane.b32.xlu0 %v599, 6
  %v1256 = vpop.permute.xlu0 %1255
  %1257 = vrot.lane.b32.xlu0 %v602, 6
  %v1258 = vpop.permute.xlu0 %1257
  %1259 = vrot.lane.b32.xlu0 %v604, 6
  %v1260 = vpop.permute.xlu0 %1259
  %1325 = vrot.lane.b32.xlu0 %v188, 9
  %v1326 = vpop.permute.xlu0 %1325
  %1327 = vrot.lane.b32.xlu0 %v189, 9
  %v1328 = vpop.permute.xlu0 %1327
  %1329 = vrot.lane.b32.xlu0 %v191, 9
  %v1330 = vpop.permute.xlu0 %1329
  %1331 = vrot.lane.b32.xlu0 %v192, 9
  %v1332 = vpop.permute.xlu0 %1331
  %1333 = vrot.lane.b32.xlu0 %v194, 9
  %v1334 = vpop.permute.xlu0 %1333
  %1335 = vrot.lane.b32.xlu0 %v195, 9
  %v1336 = vpop.permute.xlu0 %1335
  %1337 = vrot.lane.b32.xlu0 %v197, 9
  %v1338 = vpop.permute.xlu0 %1337
  %1339 = vrot.lane.b32.xlu0 %v198, 9
  %v1340 = vpop.permute.xlu0 %1339
  %1341 = vrot.lane.b32.xlu0 %v200, 9
  %v1342 = vpop.permute.xlu0 %1341
  %1343 = vrot.lane.b32.xlu0 %v201, 9
  %v1344 = vpop.permute.xlu0 %1343
  %1345 = vrot.lane.b32.xlu0 %v203, 9
  %v1346 = vpop.permute.xlu0 %1345
  %1347 = vrot.lane.b32.xlu0 %v204, 9
  %v1348 = vpop.permute.xlu0 %1347
  %1349 = vrot.lane.b32.xlu0 %v206, 9
  %v1350 = vpop.permute.xlu0 %1349
  %1351 = vrot.lane.b32.xlu0 %v207, 9
  %v1352 = vpop.permute.xlu0 %1351
  %1353 = vrot.lane.b32.xlu0 %v209, 9
  %v1354 = vpop.permute.xlu0 %1353
  %1355 = vrot.lane.b32.xlu0 %v210, 9
  %v1356 = vpop.permute.xlu0 %1355
  %1357 = vrot.lane.b32.xlu0 %v212, 9
  %v1358 = vpop.permute.xlu0 %1357
  %1359 = vrot.lane.b32.xlu0 %v213, 9
  %v1360 = vpop.permute.xlu0 %1359
  %1361 = vrot.lane.b32.xlu0 %v215, 9
  %v1362 = vpop.permute.xlu0 %1361
  %1363 = vrot.lane.b32.xlu0 %v216, 9
  %v1364 = vpop.permute.xlu0 %1363
  %1365 = vrot.lane.b32.xlu0 %v218, 9
  %v1366 = vpop.permute.xlu0 %1365
  %1367 = vrot.lane.b32.xlu0 %v219, 9
  %v1368 = vpop.permute.xlu0 %1367
  %1369 = vrot.lane.b32.xlu0 %v221, 9
  %v1370 = vpop.permute.xlu0 %1369
  %1371 = vrot.lane.b32.xlu0 %v222, 9
  %v1372 = vpop.permute.xlu0 %1371
  %1373 = vrot.lane.b32.xlu0 %v224, 9
  %v1374 = vpop.permute.xlu0 %1373
  %1375 = vrot.lane.b32.xlu0 %v225, 9
  %v1376 = vpop.permute.xlu0 %1375
  %1377 = vrot.lane.b32.xlu0 %v227, 9
  %v1378 = vpop.permute.xlu0 %1377
  %1379 = vrot.lane.b32.xlu0 %v228, 9
  %v1380 = vpop.permute.xlu0 %1379
  %1381 = vrot.lane.b32.xlu0 %v230, 9
  %v1382 = vpop.permute.xlu0 %1381
  %1383 = vrot.lane.b32.xlu0 %v231, 9
  %v1384 = vpop.permute.xlu0 %1383
  %1385 = vrot.lane.b32.xlu0 %v233, 9
  %v1386 = vpop.permute.xlu0 %1385
  %1387 = vrot.lane.b32.xlu0 %v234, 9
  %v1388 = vpop.permute.xlu0 %1387
  %1389 = vrot.lane.b32.xlu0 %v236, 9
  %v1390 = vpop.permute.xlu0 %1389
  %1391 = vrot.lane.b32.xlu0 %v237, 9
  %v1392 = vpop.permute.xlu0 %1391
  %1393 = vrot.lane.b32.xlu0 %v239, 9
  %v1394 = vpop.permute.xlu0 %1393
  %1395 = vrot.lane.b32.xlu0 %v240, 9
  %v1396 = vpop.permute.xlu0 %1395
  %1397 = vrot.lane.b32.xlu0 %v242, 9
  %v1398 = vpop.permute.xlu0 %1397
  %1399 = vrot.lane.b32.xlu0 %v243, 9
  %v1400 = vpop.permute.xlu0 %1399
  %1401 = vrot.lane.b32.xlu0 %v245, 9
  %v1402 = vpop.permute.xlu0 %1401
  %1403 = vrot.lane.b32.xlu0 %v246, 9
  %v1404 = vpop.permute.xlu0 %1403
  %1405 = vrot.lane.b32.xlu0 %v248, 9
  %v1406 = vpop.permute.xlu0 %1405
  %1407 = vrot.lane.b32.xlu0 %v249, 9
  %v1408 = vpop.permute.xlu0 %1407
  %1409 = vrot.lane.b32.xlu0 %v251, 9
  %v1410 = vpop.permute.xlu0 %1409
  %1411 = vrot.lane.b32.xlu0 %v252, 9
  %v1412 = vpop.permute.xlu0 %1411
  %1413 = vrot.lane.b32.xlu0 %v254, 9
  %v1414 = vpop.permute.xlu0 %1413
  %1415 = vrot.lane.b32.xlu0 %v255, 9
  %v1416 = vpop.permute.xlu0 %1415
  %1417 = vrot.lane.b32.xlu0 %v257, 9
  %v1418 = vpop.permute.xlu0 %1417
  %1419 = vrot.lane.b32.xlu0 %v258, 9
  %v1420 = vpop.permute.xlu0 %1419
  %1421 = vrot.lane.b32.xlu0 %v260, 9
  %v1422 = vpop.permute.xlu0 %1421
  %1423 = vrot.lane.b32.xlu0 %v261, 9
  %v1424 = vpop.permute.xlu0 %1423
  %1425 = vrot.lane.b32.xlu0 %v263, 9
  %v1426 = vpop.permute.xlu0 %1425
  %1427 = vrot.lane.b32.xlu0 %v264, 9
  %v1428 = vpop.permute.xlu0 %1427
  %1429 = vrot.lane.b32.xlu0 %v266, 9
  %v1430 = vpop.permute.xlu0 %1429
  %1431 = vrot.lane.b32.xlu0 %v267, 9
  %v1432 = vpop.permute.xlu0 %1431
  %1433 = vrot.lane.b32.xlu0 %v269, 9
  %v1434 = vpop.permute.xlu0 %1433
  %1435 = vrot.lane.b32.xlu0 %v270, 9
  %v1436 = vpop.permute.xlu0 %1435
  %1437 = vrot.lane.b32.xlu0 %v272, 9
  %v1438 = vpop.permute.xlu0 %1437
  %1439 = vrot.lane.b32.xlu0 %v273, 9
  %v1440 = vpop.permute.xlu0 %1439
  %1441 = vrot.lane.b32.xlu0 %v275, 9
  %v1442 = vpop.permute.xlu0 %1441
  %1443 = vrot.lane.b32.xlu0 %v276, 9
  %v1444 = vpop.permute.xlu0 %1443
  %1445 = vrot.lane.b32.xlu0 %v278, 9
  %v1446 = vpop.permute.xlu0 %1445
  %1447 = vrot.lane.b32.xlu0 %v279, 9
  %v1448 = vpop.permute.xlu0 %1447
  %1449 = vrot.lane.b32.xlu0 %v281, 9
  %v1450 = vpop.permute.xlu0 %1449
  %1451 = vrot.lane.b32.xlu0 %v282, 9
  %v1452 = vpop.permute.xlu0 %1451
  %1581 = vrot.lane.b32.xlu0 %v284, 12
  %v1582 = vpop.permute.xlu0 %1581
  %1583 = vrot.lane.b32.xlu0 %v285, 12
  %v1584 = vpop.permute.xlu0 %1583
  %1585 = vrot.lane.b32.xlu0 %v286, 12
  %v1586 = vpop.permute.xlu0 %1585
  %1587 = vrot.lane.b32.xlu0 %v287, 12
  %v1588 = vpop.permute.xlu0 %1587
  %1589 = vrot.lane.b32.xlu0 %v288, 12
  %v1590 = vpop.permute.xlu0 %1589
  %1591 = vrot.lane.b32.xlu0 %v289, 12
  %v1592 = vpop.permute.xlu0 %1591
  %1593 = vrot.lane.b32.xlu0 %v290, 12
  %v1594 = vpop.permute.xlu0 %1593
  %1595 = vrot.lane.b32.xlu0 %v291, 12
  %v1596 = vpop.permute.xlu0 %1595
  %1597 = vrot.lane.b32.xlu0 %v292, 12
  %v1598 = vpop.permute.xlu0 %1597
  %1599 = vrot.lane.b32.xlu0 %v293, 12
  %v1600 = vpop.permute.xlu0 %1599
  %1601 = vrot.lane.b32.xlu0 %v294, 12
  %v1602 = vpop.permute.xlu0 %1601
  %1603 = vrot.lane.b32.xlu0 %v295, 12
  %v1604 = vpop.permute.xlu0 %1603
  %1605 = vrot.lane.b32.xlu0 %v296, 12
  %v1606 = vpop.permute.xlu0 %1605
  %1607 = vrot.lane.b32.xlu0 %v297, 12
  %v1608 = vpop.permute.xlu0 %1607
  %1609 = vrot.lane.b32.xlu0 %v298, 12
  %v1610 = vpop.permute.xlu0 %1609
  %1611 = vrot.lane.b32.xlu0 %v299, 12
  %v1612 = vpop.permute.xlu0 %1611
  %1613 = vrot.lane.b32.xlu0 %v300, 12
  %v1614 = vpop.permute.xlu0 %1613
  %1615 = vrot.lane.b32.xlu0 %v301, 12
  %v1616 = vpop.permute.xlu0 %1615
  %1617 = vrot.lane.b32.xlu0 %v302, 12
  %v1618 = vpop.permute.xlu0 %1617
  %1619 = vrot.lane.b32.xlu0 %v303, 12
  %v1620 = vpop.permute.xlu0 %1619
  %1621 = vrot.lane.b32.xlu0 %v304, 12
  %v1622 = vpop.permute.xlu0 %1621
  %1623 = vrot.lane.b32.xlu0 %v305, 12
  %v1624 = vpop.permute.xlu0 %1623
  %1625 = vrot.lane.b32.xlu0 %v306, 12
  %v1626 = vpop.permute.xlu0 %1625
  %1627 = vrot.lane.b32.xlu0 %v307, 12
  %v1628 = vpop.permute.xlu0 %1627
  %1629 = vrot.lane.b32.xlu0 %v308, 12
  %v1630 = vpop.permute.xlu0 %1629
  %1631 = vrot.lane.b32.xlu0 %v309, 12
  %v1632 = vpop.permute.xlu0 %1631
  %1633 = vrot.lane.b32.xlu0 %v310, 12
  %v1634 = vpop.permute.xlu0 %1633
  %1635 = vrot.lane.b32.xlu0 %v311, 12
  %v1636 = vpop.permute.xlu0 %1635
  %1637 = vrot.lane.b32.xlu0 %v312, 12
  %v1638 = vpop.permute.xlu0 %1637
  %1639 = vrot.lane.b32.xlu0 %v313, 12
  %v1640 = vpop.permute.xlu0 %1639
  %1641 = vrot.lane.b32.xlu0 %v314, 12
  %v1642 = vpop.permute.xlu0 %1641
  %1643 = vrot.lane.b32.xlu0 %v315, 12
  %v1644 = vpop.permute.xlu0 %1643
  %1645 = vrot.lane.b32.xlu0 %v316, 12
  %v1646 = vpop.permute.xlu0 %1645
  %1647 = vrot.lane.b32.xlu0 %v317, 12
  %v1648 = vpop.permute.xlu0 %1647
  %1649 = vrot.lane.b32.xlu0 %v318, 12
  %v1650 = vpop.permute.xlu0 %1649
  %1651 = vrot.lane.b32.xlu0 %v319, 12
  %v1652 = vpop.permute.xlu0 %1651
  %1653 = vrot.lane.b32.xlu0 %v320, 12
  %v1654 = vpop.permute.xlu0 %1653
  %1655 = vrot.lane.b32.xlu0 %v321, 12
  %v1656 = vpop.permute.xlu0 %1655
  %1657 = vrot.lane.b32.xlu0 %v322, 12
  %v1658 = vpop.permute.xlu0 %1657
  %1659 = vrot.lane.b32.xlu0 %v323, 12
  %v1660 = vpop.permute.xlu0 %1659
  %1661 = vrot.lane.b32.xlu0 %v324, 12
  %v1662 = vpop.permute.xlu0 %1661
  %1663 = vrot.lane.b32.xlu0 %v325, 12
  %v1664 = vpop.permute.xlu0 %1663
  %1665 = vrot.lane.b32.xlu0 %v326, 12
  %v1666 = vpop.permute.xlu0 %1665
  %1667 = vrot.lane.b32.xlu0 %v327, 12
  %v1668 = vpop.permute.xlu0 %1667
  %1669 = vrot.lane.b32.xlu0 %v328, 12
  %v1670 = vpop.permute.xlu0 %1669
  %1671 = vrot.lane.b32.xlu0 %v329, 12
  %v1672 = vpop.permute.xlu0 %1671
  %1673 = vrot.lane.b32.xlu0 %v330, 12
  %v1674 = vpop.permute.xlu0 %1673
  %1675 = vrot.lane.b32.xlu0 %v331, 12
  %v1676 = vpop.permute.xlu0 %1675
  %1677 = vrot.lane.b32.xlu0 %v332, 12
  %v1678 = vpop.permute.xlu0 %1677
  %1679 = vrot.lane.b32.xlu0 %v333, 12
  %v1680 = vpop.permute.xlu0 %1679
  %1681 = vrot.lane.b32.xlu0 %v334, 12
  %v1682 = vpop.permute.xlu0 %1681
  %1683 = vrot.lane.b32.xlu0 %v335, 12
  %v1684 = vpop.permute.xlu0 %1683
  %1685 = vrot.lane.b32.xlu0 %v336, 12
  %v1686 = vpop.permute.xlu0 %1685
  %1687 = vrot.lane.b32.xlu0 %v337, 12
  %v1688 = vpop.permute.xlu0 %1687
  %1689 = vrot.lane.b32.xlu0 %v338, 12
  %v1690 = vpop.permute.xlu0 %1689
  %1691 = vrot.lane.b32.xlu0 %v339, 12
  %v1692 = vpop.permute.xlu0 %1691
  %1693 = vrot.lane.b32.xlu0 %v340, 12
  %v1694 = vpop.permute.xlu0 %1693
  %1695 = vrot.lane.b32.xlu0 %v341, 12
  %v1696 = vpop.permute.xlu0 %1695
  %1697 = vrot.lane.b32.xlu0 %v342, 12
  %v1698 = vpop.permute.xlu0 %1697
  %1699 = vrot.lane.b32.xlu0 %v343, 12
  %v1700 = vpop.permute.xlu0 %1699
  %1701 = vrot.lane.b32.xlu0 %v344, 12
  %v1702 = vpop.permute.xlu0 %1701
  %1703 = vrot.lane.b32.xlu0 %v345, 12
  %v1704 = vpop.permute.xlu0 %1703
  %1705 = vrot.lane.b32.xlu0 %v346, 12
  %v1706 = vpop.permute.xlu0 %1705
  %1707 = vrot.lane.b32.xlu0 %v347, 12
  %v1708 = vpop.permute.xlu0 %1707
  %1773 = vrot.lane.b32.xlu0 %v703, 15
  %v1774 = vpop.permute.xlu0 %1773
  %1775 = vrot.lane.b32.xlu0 %v705, 15
  %v1776 = vpop.permute.xlu0 %1775
  %1777 = vrot.lane.b32.xlu0 %v708, 15
  %v1778 = vpop.permute.xlu0 %1777
  %1779 = vrot.lane.b32.xlu0 %v710, 15
  %v1780 = vpop.permute.xlu0 %1779
  %1781 = vrot.lane.b32.xlu0 %v713, 15
  %v1782 = vpop.permute.xlu0 %1781
  %1783 = vrot.lane.b32.xlu0 %v715, 15
  %v1784 = vpop.permute.xlu0 %1783
  %1785 = vrot.lane.b32.xlu0 %v718, 15
  %v1786 = vpop.permute.xlu0 %1785
  %1787 = vrot.lane.b32.xlu0 %v720, 15
  %v1788 = vpop.permute.xlu0 %1787
  %1789 = vrot.lane.b32.xlu0 %v723, 15
  %v1790 = vpop.permute.xlu0 %1789
  %1791 = vrot.lane.b32.xlu0 %v725, 15
  %v1792 = vpop.permute.xlu0 %1791
  %1793 = vrot.lane.b32.xlu0 %v728, 15
  %v1794 = vpop.permute.xlu0 %1793
  %1795 = vrot.lane.b32.xlu0 %v730, 15
  %v1796 = vpop.permute.xlu0 %1795
  %1797 = vrot.lane.b32.xlu0 %v733, 15
  %v1798 = vpop.permute.xlu0 %1797
  %1799 = vrot.lane.b32.xlu0 %v735, 15
  %v1800 = vpop.permute.xlu0 %1799
  %1801 = vrot.lane.b32.xlu0 %v738, 15
  %v1802 = vpop.permute.xlu0 %1801
  %1803 = vrot.lane.b32.xlu0 %v740, 15
  %v1804 = vpop.permute.xlu0 %1803
  %1805 = vrot.lane.b32.xlu0 %v743, 15
  %v1806 = vpop.permute.xlu0 %1805
  %1807 = vrot.lane.b32.xlu0 %v745, 15
  %v1808 = vpop.permute.xlu0 %1807
  %1809 = vrot.lane.b32.xlu0 %v748, 15
  %v1810 = vpop.permute.xlu0 %1809
  %1811 = vrot.lane.b32.xlu0 %v750, 15
  %v1812 = vpop.permute.xlu0 %1811
  %1813 = vrot.lane.b32.xlu0 %v753, 15
  %v1814 = vpop.permute.xlu0 %1813
  %1815 = vrot.lane.b32.xlu0 %v755, 15
  %v1816 = vpop.permute.xlu0 %1815
  %1817 = vrot.lane.b32.xlu0 %v758, 15
  %v1818 = vpop.permute.xlu0 %1817
  %1819 = vrot.lane.b32.xlu0 %v760, 15
  %v1820 = vpop.permute.xlu0 %1819
  %1821 = vrot.lane.b32.xlu0 %v763, 15
  %v1822 = vpop.permute.xlu0 %1821
  %1823 = vrot.lane.b32.xlu0 %v765, 15
  %v1824 = vpop.permute.xlu0 %1823
  %1825 = vrot.lane.b32.xlu0 %v768, 15
  %v1826 = vpop.permute.xlu0 %1825
  %1827 = vrot.lane.b32.xlu0 %v770, 15
  %v1828 = vpop.permute.xlu0 %1827
  %1829 = vrot.lane.b32.xlu0 %v773, 15
  %v1830 = vpop.permute.xlu0 %1829
  %1831 = vrot.lane.b32.xlu0 %v775, 15
  %v1832 = vpop.permute.xlu0 %1831
  %1833 = vrot.lane.b32.xlu0 %v778, 15
  %v1834 = vpop.permute.xlu0 %1833
  %1835 = vrot.lane.b32.xlu0 %v780, 15
  %v1836 = vpop.permute.xlu0 %1835
  %1837 = vrot.lane.b32.xlu0 %v783, 15
  %v1838 = vpop.permute.xlu0 %1837
  %1839 = vrot.lane.b32.xlu0 %v785, 15
  %v1840 = vpop.permute.xlu0 %1839
  %1841 = vrot.lane.b32.xlu0 %v788, 15
  %v1842 = vpop.permute.xlu0 %1841
  %1843 = vrot.lane.b32.xlu0 %v790, 15
  %v1844 = vpop.permute.xlu0 %1843
  %1845 = vrot.lane.b32.xlu0 %v793, 15
  %v1846 = vpop.permute.xlu0 %1845
  %1847 = vrot.lane.b32.xlu0 %v795, 15
  %v1848 = vpop.permute.xlu0 %1847
  %1849 = vrot.lane.b32.xlu0 %v798, 15
  %v1850 = vpop.permute.xlu0 %1849
  %1851 = vrot.lane.b32.xlu0 %v800, 15
  %v1852 = vpop.permute.xlu0 %1851
  %1853 = vrot.lane.b32.xlu0 %v803, 15
  %v1854 = vpop.permute.xlu0 %1853
  %1855 = vrot.lane.b32.xlu0 %v805, 15
  %v1856 = vpop.permute.xlu0 %1855
  %1857 = vrot.lane.b32.xlu0 %v808, 15
  %v1858 = vpop.permute.xlu0 %1857
  %1859 = vrot.lane.b32.xlu0 %v810, 15
  %v1860 = vpop.permute.xlu0 %1859
  %1861 = vrot.lane.b32.xlu0 %v813, 15
  %v1862 = vpop.permute.xlu0 %1861
  %1863 = vrot.lane.b32.xlu0 %v815, 15
  %v1864 = vpop.permute.xlu0 %1863
  %1865 = vrot.lane.b32.xlu0 %v818, 15
  %v1866 = vpop.permute.xlu0 %1865
  %1867 = vrot.lane.b32.xlu0 %v820, 15
  %v1868 = vpop.permute.xlu0 %1867
  %1869 = vrot.lane.b32.xlu0 %v823, 15
  %v1870 = vpop.permute.xlu0 %1869
  %1871 = vrot.lane.b32.xlu0 %v825, 15
  %v1872 = vpop.permute.xlu0 %1871
  %1873 = vrot.lane.b32.xlu0 %v828, 15
  %v1874 = vpop.permute.xlu0 %1873
  %1875 = vrot.lane.b32.xlu0 %v830, 15
  %v1876 = vpop.permute.xlu0 %1875
  %1877 = vrot.lane.b32.xlu0 %v833, 15
  %v1878 = vpop.permute.xlu0 %1877
  %1879 = vrot.lane.b32.xlu0 %v835, 15
  %v1880 = vpop.permute.xlu0 %1879
  %1881 = vrot.lane.b32.xlu0 %v838, 15
  %v1882 = vpop.permute.xlu0 %1881
  %1883 = vrot.lane.b32.xlu0 %v840, 15
  %v1884 = vpop.permute.xlu0 %1883
  %1885 = vrot.lane.b32.xlu0 %v843, 15
  %v1886 = vpop.permute.xlu0 %1885
  %1887 = vrot.lane.b32.xlu0 %v845, 15
  %v1888 = vpop.permute.xlu0 %1887
  %1889 = vrot.lane.b32.xlu0 %v848, 15
  %v1890 = vpop.permute.xlu0 %1889
  %1891 = vrot.lane.b32.xlu0 %v850, 15
  %v1892 = vpop.permute.xlu0 %1891
  %1893 = vrot.lane.b32.xlu0 %v853, 15
  %v1894 = vpop.permute.xlu0 %1893
  %1895 = vrot.lane.b32.xlu0 %v855, 15
  %v1896 = vpop.permute.xlu0 %1895
  %1897 = vrot.lane.b32.xlu0 %v858, 15
  %v1898 = vpop.permute.xlu0 %1897
  %1899 = vrot.lane.b32.xlu0 %v860, 15
  %v1900 = vpop.permute.xlu0 %1899
  %1965 = vrot.lane.b32.xlu0 %v21, 18
  %v1966 = vpop.permute.xlu0 %1965
  %1967 = vrot.lane.b32.xlu0 %v22, 18
  %v1968 = vpop.permute.xlu0 %1967
  %1969 = vrot.lane.b32.xlu0 %v24, 18
  %v1970 = vpop.permute.xlu0 %1969
  %1971 = vrot.lane.b32.xlu0 %v25, 18
  %v1972 = vpop.permute.xlu0 %1971
  %1973 = vrot.lane.b32.xlu0 %v27, 18
  %v1974 = vpop.permute.xlu0 %1973
  %1975 = vrot.lane.b32.xlu0 %v28, 18
  %v1976 = vpop.permute.xlu0 %1975
  %1977 = vrot.lane.b32.xlu0 %v30, 18
  %v1978 = vpop.permute.xlu0 %1977
  %1979 = vrot.lane.b32.xlu0 %v31, 18
  %v1980 = vpop.permute.xlu0 %1979
  %1981 = vrot.lane.b32.xlu0 %v33, 18
  %v1982 = vpop.permute.xlu0 %1981
  %1983 = vrot.lane.b32.xlu0 %v34, 18
  %v1984 = vpop.permute.xlu0 %1983
  %1985 = vrot.lane.b32.xlu0 %v36, 18
  %v1986 = vpop.permute.xlu0 %1985
  %1987 = vrot.lane.b32.xlu0 %v37, 18
  %v1988 = vpop.permute.xlu0 %1987
  %1989 = vrot.lane.b32.xlu0 %v39, 18
  %v1990 = vpop.permute.xlu0 %1989
  %1991 = vrot.lane.b32.xlu0 %v40, 18
  %v1992 = vpop.permute.xlu0 %1991
  %1993 = vrot.lane.b32.xlu0 %v42, 18
  %v1994 = vpop.permute.xlu0 %1993
  %1995 = vrot.lane.b32.xlu0 %v43, 18
  %v1996 = vpop.permute.xlu0 %1995
  %1997 = vrot.lane.b32.xlu0 %v45, 18
  %v1998 = vpop.permute.xlu0 %1997
  %1999 = vrot.lane.b32.xlu0 %v46, 18
  %v2000 = vpop.permute.xlu0 %1999
  %2001 = vrot.lane.b32.xlu0 %v48, 18
  %v2002 = vpop.permute.xlu0 %2001
  %2003 = vrot.lane.b32.xlu0 %v49, 18
  %v2004 = vpop.permute.xlu0 %2003
  %2005 = vrot.lane.b32.xlu0 %v51, 18
  %v2006 = vpop.permute.xlu0 %2005
  %2007 = vrot.lane.b32.xlu0 %v52, 18
  %v2008 = vpop.permute.xlu0 %2007
  %2009 = vrot.lane.b32.xlu0 %v54, 18
  %v2010 = vpop.permute.xlu0 %2009
  %2011 = vrot.lane.b32.xlu0 %v55, 18
  %v2012 = vpop.permute.xlu0 %2011
  %2013 = vrot.lane.b32.xlu0 %v57, 18
  %v2014 = vpop.permute.xlu0 %2013
  %2015 = vrot.lane.b32.xlu0 %v58, 18
  %v2016 = vpop.permute.xlu0 %2015
  %2017 = vrot.lane.b32.xlu0 %v60, 18
  %v2018 = vpop.permute.xlu0 %2017
  %2019 = vrot.lane.b32.xlu0 %v61, 18
  %v2020 = vpop.permute.xlu0 %2019
  %2021 = vrot.lane.b32.xlu0 %v63, 18
  %v2022 = vpop.permute.xlu0 %2021
  %2023 = vrot.lane.b32.xlu0 %v64, 18
  %v2024 = vpop.permute.xlu0 %2023
  %2025 = vrot.lane.b32.xlu0 %v66, 18
  %v2026 = vpop.permute.xlu0 %2025
  %2027 = vrot.lane.b32.xlu0 %v67, 18
  %v2028 = vpop.permute.xlu0 %2027
  %2029 = vrot.lane.b32.xlu0 %v72, 18
  %v2030 = vpop.permute.xlu0 %2029
  %2031 = vrot.lane.b32.xlu0 %v73, 18
  %v2032 = vpop.permute.xlu0 %2031
  %2033 = vrot.lane.b32.xlu0 %v75, 18
  %v2034 = vpop.permute.xlu0 %2033
  %2035 = vrot.lane.b32.xlu0 %v76, 18
  %v2036 = vpop.permute.xlu0 %2035
  %2037 = vrot.lane.b32.xlu0 %v78, 18
  %v2038 = vpop.permute.xlu0 %2037
  %2039 = vrot.lane.b32.xlu0 %v79, 18
  %v2040 = vpop.permute.xlu0 %2039
  %2041 = vrot.lane.b32.xlu0 %v81, 18
  %v2042 = vpop.permute.xlu0 %2041
  %2043 = vrot.lane.b32.xlu0 %v82, 18
  %v2044 = vpop.permute.xlu0 %2043
  %2045 = vrot.lane.b32.xlu0 %v84, 18
  %v2046 = vpop.permute.xlu0 %2045
  %2047 = vrot.lane.b32.xlu0 %v85, 18
  %v2048 = vpop.permute.xlu0 %2047
  %2049 = vrot.lane.b32.xlu0 %v87, 18
  %v2050 = vpop.permute.xlu0 %2049
  %2051 = vrot.lane.b32.xlu0 %v88, 18
  %v2052 = vpop.permute.xlu0 %2051
  %2053 = vrot.lane.b32.xlu0 %v90, 18
  %v2054 = vpop.permute.xlu0 %2053
  %2055 = vrot.lane.b32.xlu0 %v91, 18
  %v2056 = vpop.permute.xlu0 %2055
  %2057 = vrot.lane.b32.xlu0 %v93, 18
  %v2058 = vpop.permute.xlu0 %2057
  %2059 = vrot.lane.b32.xlu0 %v94, 18
  %v2060 = vpop.permute.xlu0 %2059
  %2061 = vrot.lane.b32.xlu0 %v96, 18
  %v2062 = vpop.permute.xlu0 %2061
  %2063 = vrot.lane.b32.xlu0 %v97, 18
  %v2064 = vpop.permute.xlu0 %2063
  %2065 = vrot.lane.b32.xlu0 %v99, 18
  %v2066 = vpop.permute.xlu0 %2065
  %2067 = vrot.lane.b32.xlu0 %v100, 18
  %v2068 = vpop.permute.xlu0 %2067
  %2069 = vrot.lane.b32.xlu0 %v102, 18
  %v2070 = vpop.permute.xlu0 %2069
  %2071 = vrot.lane.b32.xlu0 %v103, 18
  %v2072 = vpop.permute.xlu0 %2071
  %2073 = vrot.lane.b32.xlu0 %v105, 18
  %v2074 = vpop.permute.xlu0 %2073
  %2075 = vrot.lane.b32.xlu0 %v106, 18
  %v2076 = vpop.permute.xlu0 %2075
  %2077 = vrot.lane.b32.xlu0 %v108, 18
  %v2078 = vpop.permute.xlu0 %2077
  %2079 = vrot.lane.b32.xlu0 %v109, 18
  %v2080 = vpop.permute.xlu0 %2079
  %2081 = vrot.lane.b32.xlu0 %v111, 18
  %v2082 = vpop.permute.xlu0 %2081
  %2083 = vrot.lane.b32.xlu0 %v112, 18
  %v2084 = vpop.permute.xlu0 %2083
  %2085 = vrot.lane.b32.xlu0 %v114, 18
  %v2086 = vpop.permute.xlu0 %2085
  %2087 = vrot.lane.b32.xlu0 %v115, 18
  %v2088 = vpop.permute.xlu0 %2087
  %2089 = vrot.lane.b32.xlu0 %v117, 18
  %v2090 = vpop.permute.xlu0 %2089
  %2091 = vrot.lane.b32.xlu0 %v118, 18
  %v2092 = vpop.permute.xlu0 %2091
  %2161 = vrot.lane.b32.xlu0 %v122, 21
  %v2162 = vpop.permute.xlu0 %2161
  %2163 = vrot.lane.b32.xlu0 %v123, 21
  %v2164 = vpop.permute.xlu0 %2163
  %2165 = vrot.lane.b32.xlu0 %v124, 21
  %v2166 = vpop.permute.xlu0 %2165
  %2167 = vrot.lane.b32.xlu0 %v125, 21
  %v2168 = vpop.permute.xlu0 %2167
  %2169 = vrot.lane.b32.xlu0 %v126, 21
  %v2170 = vpop.permute.xlu0 %2169
  %2171 = vrot.lane.b32.xlu0 %v127, 21
  %v2172 = vpop.permute.xlu0 %2171
  %2173 = vrot.lane.b32.xlu0 %v128, 21
  %v2174 = vpop.permute.xlu0 %2173
  %2175 = vrot.lane.b32.xlu0 %v129, 21
  %v2176 = vpop.permute.xlu0 %2175
  %2177 = vrot.lane.b32.xlu0 %v130, 21
  %v2178 = vpop.permute.xlu0 %2177
  %2179 = vrot.lane.b32.xlu0 %v131, 21
  %v2180 = vpop.permute.xlu0 %2179
  %2181 = vrot.lane.b32.xlu0 %v132, 21
  %v2182 = vpop.permute.xlu0 %2181
  %2183 = vrot.lane.b32.xlu0 %v133, 21
  %v2184 = vpop.permute.xlu0 %2183
  %2185 = vrot.lane.b32.xlu0 %v134, 21
  %v2186 = vpop.permute.xlu0 %2185
  %2187 = vrot.lane.b32.xlu0 %v135, 21
  %v2188 = vpop.permute.xlu0 %2187
  %2189 = vrot.lane.b32.xlu0 %v136, 21
  %v2190 = vpop.permute.xlu0 %2189
  %2191 = vrot.lane.b32.xlu0 %v137, 21
  %v2192 = vpop.permute.xlu0 %2191
  %2193 = vrot.lane.b32.xlu0 %v138, 21
  %v2194 = vpop.permute.xlu0 %2193
  %2195 = vrot.lane.b32.xlu0 %v139, 21
  %v2196 = vpop.permute.xlu0 %2195
  %2197 = vrot.lane.b32.xlu0 %v140, 21
  %v2198 = vpop.permute.xlu0 %2197
  %2199 = vrot.lane.b32.xlu0 %v141, 21
  %v2200 = vpop.permute.xlu0 %2199
  %2201 = vrot.lane.b32.xlu0 %v142, 21
  %v2202 = vpop.permute.xlu0 %2201
  %2203 = vrot.lane.b32.xlu0 %v143, 21
  %v2204 = vpop.permute.xlu0 %2203
  %2205 = vrot.lane.b32.xlu0 %v144, 21
  %v2206 = vpop.permute.xlu0 %2205
  %2207 = vrot.lane.b32.xlu0 %v145, 21
  %v2208 = vpop.permute.xlu0 %2207
  %2209 = vrot.lane.b32.xlu0 %v146, 21
  %v2210 = vpop.permute.xlu0 %2209
  %2211 = vrot.lane.b32.xlu0 %v147, 21
  %v2212 = vpop.permute.xlu0 %2211
  %2213 = vrot.lane.b32.xlu0 %v148, 21
  %v2214 = vpop.permute.xlu0 %2213
  %2215 = vrot.lane.b32.xlu0 %v149, 21
  %v2216 = vpop.permute.xlu0 %2215
  %2217 = vrot.lane.b32.xlu0 %v150, 21
  %v2218 = vpop.permute.xlu0 %2217
  %2219 = vrot.lane.b32.xlu0 %v151, 21
  %v2220 = vpop.permute.xlu0 %2219
  %2221 = vrot.lane.b32.xlu0 %v152, 21
  %v2222 = vpop.permute.xlu0 %2221
  %2223 = vrot.lane.b32.xlu0 %v153, 21
  %v2224 = vpop.permute.xlu0 %2223
  %2225 = vrot.lane.b32.xlu0 %v156, 21
  %v2226 = vpop.permute.xlu0 %2225
  %2227 = vrot.lane.b32.xlu0 %v157, 21
  %v2228 = vpop.permute.xlu0 %2227
  %2229 = vrot.lane.b32.xlu0 %v158, 21
  %v2230 = vpop.permute.xlu0 %2229
  %2231 = vrot.lane.b32.xlu0 %v159, 21
  %v2232 = vpop.permute.xlu0 %2231
  %2233 = vrot.lane.b32.xlu0 %v160, 21
  %v2234 = vpop.permute.xlu0 %2233
  %2235 = vrot.lane.b32.xlu0 %v161, 21
  %v2236 = vpop.permute.xlu0 %2235
  %2237 = vrot.lane.b32.xlu0 %v162, 21
  %v2238 = vpop.permute.xlu0 %2237
  %2239 = vrot.lane.b32.xlu0 %v163, 21
  %v2240 = vpop.permute.xlu0 %2239
  %2241 = vrot.lane.b32.xlu0 %v164, 21
  %v2242 = vpop.permute.xlu0 %2241
  %2243 = vrot.lane.b32.xlu0 %v165, 21
  %v2244 = vpop.permute.xlu0 %2243
  %2245 = vrot.lane.b32.xlu0 %v166, 21
  %v2246 = vpop.permute.xlu0 %2245
  %2247 = vrot.lane.b32.xlu0 %v167, 21
  %v2248 = vpop.permute.xlu0 %2247
  %2249 = vrot.lane.b32.xlu0 %v168, 21
  %v2250 = vpop.permute.xlu0 %2249
  %2251 = vrot.lane.b32.xlu0 %v169, 21
  %v2252 = vpop.permute.xlu0 %2251
  %2253 = vrot.lane.b32.xlu0 %v170, 21
  %v2254 = vpop.permute.xlu0 %2253
  %2255 = vrot.lane.b32.xlu0 %v171, 21
  %v2256 = vpop.permute.xlu0 %2255
  %2257 = vrot.lane.b32.xlu0 %v172, 21
  %v2258 = vpop.permute.xlu0 %2257
  %2259 = vrot.lane.b32.xlu0 %v173, 21
  %v2260 = vpop.permute.xlu0 %2259
  %2261 = vrot.lane.b32.xlu0 %v174, 21
  %v2262 = vpop.permute.xlu0 %2261
  %2263 = vrot.lane.b32.xlu0 %v175, 21
  %v2264 = vpop.permute.xlu0 %2263
  %2265 = vrot.lane.b32.xlu0 %v176, 21
  %v2266 = vpop.permute.xlu0 %2265
  %2267 = vrot.lane.b32.xlu0 %v177, 21
  %v2268 = vpop.permute.xlu0 %2267
  %2269 = vrot.lane.b32.xlu0 %v178, 21
  %v2270 = vpop.permute.xlu0 %2269
  %2271 = vrot.lane.b32.xlu0 %v179, 21
  %v2272 = vpop.permute.xlu0 %2271
  %2273 = vrot.lane.b32.xlu0 %v180, 21
  %v2274 = vpop.permute.xlu0 %2273
  %2275 = vrot.lane.b32.xlu0 %v181, 21
  %v2276 = vpop.permute.xlu0 %2275
  %2277 = vrot.lane.b32.xlu0 %v182, 21
  %v2278 = vpop.permute.xlu0 %2277
  %2279 = vrot.lane.b32.xlu0 %v183, 21
  %v2280 = vpop.permute.xlu0 %2279
  %2281 = vrot.lane.b32.xlu0 %v184, 21
  %v2282 = vpop.permute.xlu0 %2281
  %2283 = vrot.lane.b32.xlu0 %v185, 21
  %v2284 = vpop.permute.xlu0 %2283
  %2285 = vrot.lane.b32.xlu0 %v186, 21
  %v2286 = vpop.permute.xlu0 %2285
  %2287 = vrot.lane.b32.xlu0 %v187, 21
  %v2288 = vpop.permute.xlu0 %2287
  %2353 = vrot.lane.b32.xlu0 %v452, 24
  %v2354 = vpop.permute.xlu0 %2353
  %2355 = vrot.lane.b32.xlu0 %v454, 24
  %v2356 = vpop.permute.xlu0 %2355
  %2357 = vrot.lane.b32.xlu0 %v457, 24
  %v2358 = vpop.permute.xlu0 %2357
  %2359 = vrot.lane.b32.xlu0 %v459, 24
  %v2360 = vpop.permute.xlu0 %2359
  %2361 = vrot.lane.b32.xlu0 %v462, 24
  %v2362 = vpop.permute.xlu0 %2361
  %2363 = vrot.lane.b32.xlu0 %v464, 24
  %v2364 = vpop.permute.xlu0 %2363
  %2365 = vrot.lane.b32.xlu0 %v467, 24
  %v2366 = vpop.permute.xlu0 %2365
  %2367 = vrot.lane.b32.xlu0 %v469, 24
  %v2368 = vpop.permute.xlu0 %2367
  %2369 = vrot.lane.b32.xlu0 %v472, 24
  %v2370 = vpop.permute.xlu0 %2369
  %2371 = vrot.lane.b32.xlu0 %v474, 24
  %v2372 = vpop.permute.xlu0 %2371
  %2373 = vrot.lane.b32.xlu0 %v477, 24
  %v2374 = vpop.permute.xlu0 %2373
  %2375 = vrot.lane.b32.xlu0 %v479, 24
  %v2376 = vpop.permute.xlu0 %2375
  %2377 = vrot.lane.b32.xlu0 %v482, 24
  %v2378 = vpop.permute.xlu0 %2377
  %2379 = vrot.lane.b32.xlu0 %v484, 24
  %v2380 = vpop.permute.xlu0 %2379
  %2381 = vrot.lane.b32.xlu0 %v487, 24
  %v2382 = vpop.permute.xlu0 %2381
  %2383 = vrot.lane.b32.xlu0 %v489, 24
  %v2384 = vpop.permute.xlu0 %2383
  %2385 = vrot.lane.b32.xlu0 %v492, 24
  %v2386 = vpop.permute.xlu0 %2385
  %2387 = vrot.lane.b32.xlu0 %v494, 24
  %v2388 = vpop.permute.xlu0 %2387
  %2389 = vrot.lane.b32.xlu0 %v497, 24
  %v2390 = vpop.permute.xlu0 %2389
  %2391 = vrot.lane.b32.xlu0 %v499, 24
  %v2392 = vpop.permute.xlu0 %2391
  %2393 = vrot.lane.b32.xlu0 %v502, 24
  %v2394 = vpop.permute.xlu0 %2393
  %2395 = vrot.lane.b32.xlu0 %v504, 24
  %v2396 = vpop.permute.xlu0 %2395
  %2397 = vrot.lane.b32.xlu0 %v507, 24
  %v2398 = vpop.permute.xlu0 %2397
  %2399 = vrot.lane.b32.xlu0 %v509, 24
  %v2400 = vpop.permute.xlu0 %2399
  %2401 = vrot.lane.b32.xlu0 %v512, 24
  %v2402 = vpop.permute.xlu0 %2401
  %2403 = vrot.lane.b32.xlu0 %v514, 24
  %v2404 = vpop.permute.xlu0 %2403
  %2405 = vrot.lane.b32.xlu0 %v517, 24
  %v2406 = vpop.permute.xlu0 %2405
  %2407 = vrot.lane.b32.xlu0 %v519, 24
  %v2408 = vpop.permute.xlu0 %2407
  %2409 = vrot.lane.b32.xlu0 %v522, 24
  %v2410 = vpop.permute.xlu0 %2409
  %2411 = vrot.lane.b32.xlu0 %v524, 24
  %v2412 = vpop.permute.xlu0 %2411
  %2413 = vrot.lane.b32.xlu0 %v869, 24
  %v2414 = vpop.permute.xlu0 %2413
  %2415 = vrot.lane.b32.xlu0 %v871, 24
  %v2416 = vpop.permute.xlu0 %2415
  %2417 = vrot.lane.b32.xlu0 %v532, 24
  %v2418 = vpop.permute.xlu0 %2417
  %2419 = vrot.lane.b32.xlu0 %v534, 24
  %v2420 = vpop.permute.xlu0 %2419
  %2421 = vrot.lane.b32.xlu0 %v537, 24
  %v2422 = vpop.permute.xlu0 %2421
  %2423 = vrot.lane.b32.xlu0 %v539, 24
  %v2424 = vpop.permute.xlu0 %2423
  %2425 = vrot.lane.b32.xlu0 %v542, 24
  %v2426 = vpop.permute.xlu0 %2425
  %2427 = vrot.lane.b32.xlu0 %v544, 24
  %v2428 = vpop.permute.xlu0 %2427
  %2429 = vrot.lane.b32.xlu0 %v547, 24
  %v2430 = vpop.permute.xlu0 %2429
  %2431 = vrot.lane.b32.xlu0 %v549, 24
  %v2432 = vpop.permute.xlu0 %2431
  %2433 = vrot.lane.b32.xlu0 %v552, 24
  %v2434 = vpop.permute.xlu0 %2433
  %2435 = vrot.lane.b32.xlu0 %v554, 24
  %v2436 = vpop.permute.xlu0 %2435
  %2437 = vrot.lane.b32.xlu0 %v557, 24
  %v2438 = vpop.permute.xlu0 %2437
  %2439 = vrot.lane.b32.xlu0 %v559, 24
  %v2440 = vpop.permute.xlu0 %2439
  %2441 = vrot.lane.b32.xlu0 %v562, 24
  %v2442 = vpop.permute.xlu0 %2441
  %2443 = vrot.lane.b32.xlu0 %v564, 24
  %v2444 = vpop.permute.xlu0 %2443
  %2445 = vrot.lane.b32.xlu0 %v567, 24
  %v2446 = vpop.permute.xlu0 %2445
  %2447 = vrot.lane.b32.xlu0 %v569, 24
  %v2448 = vpop.permute.xlu0 %2447
  %2449 = vrot.lane.b32.xlu0 %v572, 24
  %v2450 = vpop.permute.xlu0 %2449
  %2451 = vrot.lane.b32.xlu0 %v574, 24
  %v2452 = vpop.permute.xlu0 %2451
  %2453 = vrot.lane.b32.xlu0 %v577, 24
  %v2454 = vpop.permute.xlu0 %2453
  %2455 = vrot.lane.b32.xlu0 %v579, 24
  %v2456 = vpop.permute.xlu0 %2455
  %2457 = vrot.lane.b32.xlu0 %v582, 24
  %v2458 = vpop.permute.xlu0 %2457
  %2459 = vrot.lane.b32.xlu0 %v584, 24
  %v2460 = vpop.permute.xlu0 %2459
  %2461 = vrot.lane.b32.xlu0 %v587, 24
  %v2462 = vpop.permute.xlu0 %2461
  %2463 = vrot.lane.b32.xlu0 %v589, 24
  %v2464 = vpop.permute.xlu0 %2463
  %2465 = vrot.lane.b32.xlu0 %v592, 24
  %v2466 = vpop.permute.xlu0 %2465
  %2467 = vrot.lane.b32.xlu0 %v594, 24
  %v2468 = vpop.permute.xlu0 %2467
  %2469 = vrot.lane.b32.xlu0 %v597, 24
  %v2470 = vpop.permute.xlu0 %2469
  %2471 = vrot.lane.b32.xlu0 %v599, 24
  %v2472 = vpop.permute.xlu0 %2471
  %2473 = vrot.lane.b32.xlu0 %v602, 24
  %v2474 = vpop.permute.xlu0 %2473
  %2475 = vrot.lane.b32.xlu0 %v604, 24
  %v2476 = vpop.permute.xlu0 %2475
  %2477 = vrot.lane.b32.xlu0 %v874, 24
  %v2478 = vpop.permute.xlu0 %2477
  %2479 = vrot.lane.b32.xlu0 %v876, 24
  %v2480 = vpop.permute.xlu0 %2479
  %vm2545 = vcmask 23552
  %v2546 = vsel %vm2545, %v18, %v942
  %v2547 = vsel %vm2545, %v19, %v944
  %v2548 = vsel %vm2545, %v21, %v946
  %v2549 = vsel %vm2545, %v22, %v948
  %v2550 = vsel %vm2545, %v24, %v950
  %v2551 = vsel %vm2545, %v25, %v952
  %v2552 = vsel %vm2545, %v27, %v954
  %v2553 = vsel %vm2545, %v28, %v956
  %v2554 = vsel %vm2545, %v30, %v958
  %v2555 = vsel %vm2545, %v31, %v960
  %v2556 = vsel %vm2545, %v33, %v962
  %v2557 = vsel %vm2545, %v34, %v964
  %v2558 = vsel %vm2545, %v36, %v966
  %v2559 = vsel %vm2545, %v37, %v968
  %v2560 = vsel %vm2545, %v39, %v970
  %v2561 = vsel %vm2545, %v40, %v972
  %v2562 = vsel %vm2545, %v42, %v974
  %v2563 = vsel %vm2545, %v43, %v976
  %v2564 = vsel %vm2545, %v45, %v978
  %v2565 = vsel %vm2545, %v46, %v980
  %v2566 = vsel %vm2545, %v48, %v982
  %v2567 = vsel %vm2545, %v49, %v984
  %v2568 = vsel %vm2545, %v51, %v986
  %v2569 = vsel %vm2545, %v52, %v988
  %v2570 = vsel %vm2545, %v54, %v990
  %v2571 = vsel %vm2545, %v55, %v992
  %v2572 = vsel %vm2545, %v57, %v994
  %v2573 = vsel %vm2545, %v58, %v996
  %v2574 = vsel %vm2545, %v60, %v998
  %v2575 = vsel %vm2545, %v61, %v1000
  %v2576 = vsel %vm2545, %v63, %v1002
  %v2577 = vsel %vm2545, %v64, %v1004
  %v2578 = vsel %vm2545, %v69, %v1006
  %v2579 = vsel %vm2545, %v70, %v1008
  %v2580 = vsel %vm2545, %v72, %v1010
  %v2581 = vsel %vm2545, %v73, %v1012
  %v2582 = vsel %vm2545, %v75, %v1014
  %v2583 = vsel %vm2545, %v76, %v1016
  %v2584 = vsel %vm2545, %v78, %v1018
  %v2585 = vsel %vm2545, %v79, %v1020
  %v2586 = vsel %vm2545, %v81, %v1022
  %v2587 = vsel %vm2545, %v82, %v1024
  %v2588 = vsel %vm2545, %v84, %v1026
  %v2589 = vsel %vm2545, %v85, %v1028
  %v2590 = vsel %vm2545, %v87, %v1030
  %v2591 = vsel %vm2545, %v88, %v1032
  %v2592 = vsel %vm2545, %v90, %v1034
  %v2593 = vsel %vm2545, %v91, %v1036
  %v2594 = vsel %vm2545, %v93, %v1038
  %v2595 = vsel %vm2545, %v94, %v1040
  %v2596 = vsel %vm2545, %v96, %v1042
  %v2597 = vsel %vm2545, %v97, %v1044
  %v2598 = vsel %vm2545, %v99, %v1046
  %v2599 = vsel %vm2545, %v100, %v1048
  %v2600 = vsel %vm2545, %v102, %v1050
  %v2601 = vsel %vm2545, %v103, %v1052
  %v2602 = vsel %vm2545, %v105, %v1054
  %v2603 = vsel %vm2545, %v106, %v1056
  %v2604 = vsel %vm2545, %v108, %v1058
  %v2605 = vsel %vm2545, %v109, %v1060
  %v2606 = vsel %vm2545, %v111, %v1062
  %v2607 = vsel %vm2545, %v112, %v1064
  %v2608 = vsel %vm2545, %v114, %v1066
  %v2609 = vsel %vm2545, %v115, %v1068
  %vm2610 = vcmask 48128
  %v2611 = vsel %vm2610, %v2546, %v1134
  %v2612 = vsel %vm2610, %v2547, %v1136
  %v2613 = vsel %vm2610, %v2548, %v1138
  %v2614 = vsel %vm2610, %v2549, %v1140
  %v2615 = vsel %vm2610, %v2550, %v1142
  %v2616 = vsel %vm2610, %v2551, %v1144
  %v2617 = vsel %vm2610, %v2552, %v1146
  %v2618 = vsel %vm2610, %v2553, %v1148
  %v2619 = vsel %vm2610, %v2554, %v1150
  %v2620 = vsel %vm2610, %v2555, %v1152
  %v2621 = vsel %vm2610, %v2556, %v1154
  %v2622 = vsel %vm2610, %v2557, %v1156
  %v2623 = vsel %vm2610, %v2558, %v1158
  %v2624 = vsel %vm2610, %v2559, %v1160
  %v2625 = vsel %vm2610, %v2560, %v1162
  %v2626 = vsel %vm2610, %v2561, %v1164
  %v2627 = vsel %vm2610, %v2562, %v1166
  %v2628 = vsel %vm2610, %v2563, %v1168
  %v2629 = vsel %vm2610, %v2564, %v1170
  %v2630 = vsel %vm2610, %v2565, %v1172
  %v2631 = vsel %vm2610, %v2566, %v1174
  %v2632 = vsel %vm2610, %v2567, %v1176
  %v2633 = vsel %vm2610, %v2568, %v1178
  %v2634 = vsel %vm2610, %v2569, %v1180
  %v2635 = vsel %vm2610, %v2570, %v1182
  %v2636 = vsel %vm2610, %v2571, %v1184
  %v2637 = vsel %vm2610, %v2572, %v1186
  %v2638 = vsel %vm2610, %v2573, %v1188
  %v2639 = vsel %vm2610, %v2574, %v1190
  %v2640 = vsel %vm2610, %v2575, %v1192
  %v2641 = vsel %vm2610, %v2576, %v1194
  %v2642 = vsel %vm2610, %v2577, %v1196
  %v2643 = vsel %vm2610, %v2578, %v1198
  %v2644 = vsel %vm2610, %v2579, %v1200
  %v2645 = vsel %vm2610, %v2580, %v1202
  %v2646 = vsel %vm2610, %v2581, %v1204
  %v2647 = vsel %vm2610, %v2582, %v1206
  %v2648 = vsel %vm2610, %v2583, %v1208
  %v2649 = vsel %vm2610, %v2584, %v1210
  %v2650 = vsel %vm2610, %v2585, %v1212
  %v2651 = vsel %vm2610, %v2586, %v1214
  %v2652 = vsel %vm2610, %v2587, %v1216
  %v2653 = vsel %vm2610, %v2588, %v1218
  %v2654 = vsel %vm2610, %v2589, %v1220
  %v2655 = vsel %vm2610, %v2590, %v1222
  %v2656 = vsel %vm2610, %v2591, %v1224
  %v2657 = vsel %vm2610, %v2592, %v1226
  %v2658 = vsel %vm2610, %v2593, %v1228
  %v2659 = vsel %vm2610, %v2594, %v1230
  %v2660 = vsel %vm2610, %v2595, %v1232
  %v2661 = vsel %vm2610, %v2596, %v1234
  %v2662 = vsel %vm2610, %v2597, %v1236
  %v2663 = vsel %vm2610, %v2598, %v1238
  %v2664 = vsel %vm2610, %v2599, %v1240
  %v2665 = vsel %vm2610, %v2600, %v1242
  %v2666 = vsel %vm2610, %v2601, %v1244
  %v2667 = vsel %vm2610, %v2602, %v1246
  %v2668 = vsel %vm2610, %v2603, %v1248
  %v2669 = vsel %vm2610, %v2604, %v1250
  %v2670 = vsel %vm2610, %v2605, %v1252
  %v2671 = vsel %vm2610, %v2606, %v1254
  %v2672 = vsel %vm2610, %v2607, %v1256
  %v2673 = vsel %vm2610, %v2608, %v1258
  %v2674 = vsel %vm2610, %v2609, %v1260
  %vm2675 = vcmask 72704
  %v2676 = vsel %vm2675, %v2611, %v1326
  %v2677 = vsel %vm2675, %v2612, %v1328
  %v2678 = vsel %vm2675, %v2613, %v1330
  %v2679 = vsel %vm2675, %v2614, %v1332
  %v2680 = vsel %vm2675, %v2615, %v1334
  %v2681 = vsel %vm2675, %v2616, %v1336
  %v2682 = vsel %vm2675, %v2617, %v1338
  %v2683 = vsel %vm2675, %v2618, %v1340
  %v2684 = vsel %vm2675, %v2619, %v1342
  %v2685 = vsel %vm2675, %v2620, %v1344
  %v2686 = vsel %vm2675, %v2621, %v1346
  %v2687 = vsel %vm2675, %v2622, %v1348
  %v2688 = vsel %vm2675, %v2623, %v1350
  %v2689 = vsel %vm2675, %v2624, %v1352
  %v2690 = vsel %vm2675, %v2625, %v1354
  %v2691 = vsel %vm2675, %v2626, %v1356
  %v2692 = vsel %vm2675, %v2627, %v1358
  %v2693 = vsel %vm2675, %v2628, %v1360
  %v2694 = vsel %vm2675, %v2629, %v1362
  %v2695 = vsel %vm2675, %v2630, %v1364
  %v2696 = vsel %vm2675, %v2631, %v1366
  %v2697 = vsel %vm2675, %v2632, %v1368
  %v2698 = vsel %vm2675, %v2633, %v1370
  %v2699 = vsel %vm2675, %v2634, %v1372
  %v2700 = vsel %vm2675, %v2635, %v1374
  %v2701 = vsel %vm2675, %v2636, %v1376
  %v2702 = vsel %vm2675, %v2637, %v1378
  %v2703 = vsel %vm2675, %v2638, %v1380
  %v2704 = vsel %vm2675, %v2639, %v1382
  %v2705 = vsel %vm2675, %v2640, %v1384
  %v2706 = vsel %vm2675, %v2641, %v1386
  %v2707 = vsel %vm2675, %v2642, %v1388
  %v2708 = vsel %vm2675, %v2643, %v1390
  %v2709 = vsel %vm2675, %v2644, %v1392
  %v2710 = vsel %vm2675, %v2645, %v1394
  %v2711 = vsel %vm2675, %v2646, %v1396
  %v2712 = vsel %vm2675, %v2647, %v1398
  %v2713 = vsel %vm2675, %v2648, %v1400
  %v2714 = vsel %vm2675, %v2649, %v1402
  %v2715 = vsel %vm2675, %v2650, %v1404
  %v2716 = vsel %vm2675, %v2651, %v1406
  %v2717 = vsel %vm2675, %v2652, %v1408
  %v2718 = vsel %vm2675, %v2653, %v1410
  %v2719 = vsel %vm2675, %v2654, %v1412
  %v2720 = vsel %vm2675, %v2655, %v1414
  %v2721 = vsel %vm2675, %v2656, %v1416
  %v2722 = vsel %vm2675, %v2657, %v1418
  %v2723 = vsel %vm2675, %v2658, %v1420
  %v2724 = vsel %vm2675, %v2659, %v1422
  %v2725 = vsel %vm2675, %v2660, %v1424
  %v2726 = vsel %vm2675, %v2661, %v1426
  %v2727 = vsel %vm2675, %v2662, %v1428
  %v2728 = vsel %vm2675, %v2663, %v1430
  %v2729 = vsel %vm2675, %v2664, %v1432
  %v2730 = vsel %vm2675, %v2665, %v1434
  %v2731 = vsel %vm2675, %v2666, %v1436
  %v2732 = vsel %vm2675, %v2667, %v1438
  %v2733 = vsel %vm2675, %v2668, %v1440
  %v2734 = vsel %vm2675, %v2669, %v1442
  %v2735 = vsel %vm2675, %v2670, %v1444
  %v2736 = vsel %vm2675, %v2671, %v1446
  %v2737 = vsel %vm2675, %v2672, %v1448
  %v2738 = vsel %vm2675, %v2673, %v1450
  %v2739 = vsel %vm2675, %v2674, %v1452
  %vm2740 = vcmask 97280
  %v2741 = vsel %vm2740, %v2676, %v1582
  %v2742 = vsel %vm2740, %v2677, %v1584
  %v2743 = vsel %vm2740, %v2678, %v1586
  %v2744 = vsel %vm2740, %v2679, %v1588
  %v2745 = vsel %vm2740, %v2680, %v1590
  %v2746 = vsel %vm2740, %v2681, %v1592
  %v2747 = vsel %vm2740, %v2682, %v1594
  %v2748 = vsel %vm2740, %v2683, %v1596
  %v2749 = vsel %vm2740, %v2684, %v1598
  %v2750 = vsel %vm2740, %v2685, %v1600
  %v2751 = vsel %vm2740, %v2686, %v1602
  %v2752 = vsel %vm2740, %v2687, %v1604
  %v2753 = vsel %vm2740, %v2688, %v1606
  %v2754 = vsel %vm2740, %v2689, %v1608
  %v2755 = vsel %vm2740, %v2690, %v1610
  %v2756 = vsel %vm2740, %v2691, %v1612
  %v2757 = vsel %vm2740, %v2692, %v1614
  %v2758 = vsel %vm2740, %v2693, %v1616
  %v2759 = vsel %vm2740, %v2694, %v1618
  %v2760 = vsel %vm2740, %v2695, %v1620
  %v2761 = vsel %vm2740, %v2696, %v1622
  %v2762 = vsel %vm2740, %v2697, %v1624
  %v2763 = vsel %vm2740, %v2698, %v1626
  %v2764 = vsel %vm2740, %v2699, %v1628
  %v2765 = vsel %vm2740, %v2700, %v1630
  %v2766 = vsel %vm2740, %v2701, %v1632
  %v2767 = vsel %vm2740, %v2702, %v1634
  %v2768 = vsel %vm2740, %v2703, %v1636
  %v2769 = vsel %vm2740, %v2704, %v1638
  %v2770 = vsel %vm2740, %v2705, %v1640
  %v2771 = vsel %vm2740, %v2706, %v1642
  %v2772 = vsel %vm2740, %v2707, %v1644
  %v2773 = vsel %vm2740, %v2708, %v1646
  %v2774 = vsel %vm2740, %v2709, %v1648
  %v2775 = vsel %vm2740, %v2710, %v1650
  %v2776 = vsel %vm2740, %v2711, %v1652
  %v2777 = vsel %vm2740, %v2712, %v1654
  %v2778 = vsel %vm2740, %v2713, %v1656
  %v2779 = vsel %vm2740, %v2714, %v1658
  %v2780 = vsel %vm2740, %v2715, %v1660
  %v2781 = vsel %vm2740, %v2716, %v1662
  %v2782 = vsel %vm2740, %v2717, %v1664
  %v2783 = vsel %vm2740, %v2718, %v1666
  %v2784 = vsel %vm2740, %v2719, %v1668
  %v2785 = vsel %vm2740, %v2720, %v1670
  %v2786 = vsel %vm2740, %v2721, %v1672
  %v2787 = vsel %vm2740, %v2722, %v1674
  %v2788 = vsel %vm2740, %v2723, %v1676
  %v2789 = vsel %vm2740, %v2724, %v1678
  %v2790 = vsel %vm2740, %v2725, %v1680
  %v2791 = vsel %vm2740, %v2726, %v1682
  %v2792 = vsel %vm2740, %v2727, %v1684
  %v2793 = vsel %vm2740, %v2728, %v1686
  %v2794 = vsel %vm2740, %v2729, %v1688
  %v2795 = vsel %vm2740, %v2730, %v1690
  %v2796 = vsel %vm2740, %v2731, %v1692
  %v2797 = vsel %vm2740, %v2732, %v1694
  %v2798 = vsel %vm2740, %v2733, %v1696
  %v2799 = vsel %vm2740, %v2734, %v1698
  %v2800 = vsel %vm2740, %v2735, %v1700
  %v2801 = vsel %vm2740, %v2736, %v1702
  %v2802 = vsel %vm2740, %v2737, %v1704
  %v2803 = vsel %vm2740, %v2738, %v1706
  %v2804 = vsel %vm2740, %v2739, %v1708
  %vm2805 = vcmask 121856
  %v2806 = vsel %vm2805, %v2741, %v1774
  %v2807 = vsel %vm2805, %v2742, %v1776
  %v2808 = vsel %vm2805, %v2743, %v1778
  %v2809 = vsel %vm2805, %v2744, %v1780
  %v2810 = vsel %vm2805, %v2745, %v1782
  %v2811 = vsel %vm2805, %v2746, %v1784
  %v2812 = vsel %vm2805, %v2747, %v1786
  %v2813 = vsel %vm2805, %v2748, %v1788
  %v2814 = vsel %vm2805, %v2749, %v1790
  %v2815 = vsel %vm2805, %v2750, %v1792
  %v2816 = vsel %vm2805, %v2751, %v1794
  %v2817 = vsel %vm2805, %v2752, %v1796
  %v2818 = vsel %vm2805, %v2753, %v1798
  %v2819 = vsel %vm2805, %v2754, %v1800
  %v2820 = vsel %vm2805, %v2755, %v1802
  %v2821 = vsel %vm2805, %v2756, %v1804
  %v2822 = vsel %vm2805, %v2757, %v1806
  %v2823 = vsel %vm2805, %v2758, %v1808
  %v2824 = vsel %vm2805, %v2759, %v1810
  %v2825 = vsel %vm2805, %v2760, %v1812
  %v2826 = vsel %vm2805, %v2761, %v1814
  %v2827 = vsel %vm2805, %v2762, %v1816
  %v2828 = vsel %vm2805, %v2763, %v1818
  %v2829 = vsel %vm2805, %v2764, %v1820
  %v2830 = vsel %vm2805, %v2765, %v1822
  %v2831 = vsel %vm2805, %v2766, %v1824
  %v2832 = vsel %vm2805, %v2767, %v1826
  %v2833 = vsel %vm2805, %v2768, %v1828
  %v2834 = vsel %vm2805, %v2769, %v1830
  %v2835 = vsel %vm2805, %v2770, %v1832
  %v2836 = vsel %vm2805, %v2771, %v1834
  %v2837 = vsel %vm2805, %v2772, %v1836
  %v2838 = vsel %vm2805, %v2773, %v1838
  %v2839 = vsel %vm2805, %v2774, %v1840
  %v2840 = vsel %vm2805, %v2775, %v1842
  %v2841 = vsel %vm2805, %v2776, %v1844
  %v2842 = vsel %vm2805, %v2777, %v1846
  %v2843 = vsel %vm2805, %v2778, %v1848
  %v2844 = vsel %vm2805, %v2779, %v1850
  %v2845 = vsel %vm2805, %v2780, %v1852
  %v2846 = vsel %vm2805, %v2781, %v1854
  %v2847 = vsel %vm2805, %v2782, %v1856
  %v2848 = vsel %vm2805, %v2783, %v1858
  %v2849 = vsel %vm2805, %v2784, %v1860
  %v2850 = vsel %vm2805, %v2785, %v1862
  %v2851 = vsel %vm2805, %v2786, %v1864
  %v2852 = vsel %vm2805, %v2787, %v1866
  %v2853 = vsel %vm2805, %v2788, %v1868
  %v2854 = vsel %vm2805, %v2789, %v1870
  %v2855 = vsel %vm2805, %v2790, %v1872
  %v2856 = vsel %vm2805, %v2791, %v1874
  %v2857 = vsel %vm2805, %v2792, %v1876
  %v2858 = vsel %vm2805, %v2793, %v1878
  %v2859 = vsel %vm2805, %v2794, %v1880
  %v2860 = vsel %vm2805, %v2795, %v1882
  %v2861 = vsel %vm2805, %v2796, %v1884
  %v2862 = vsel %vm2805, %v2797, %v1886
  %v2863 = vsel %vm2805, %v2798, %v1888
  %v2864 = vsel %vm2805, %v2799, %v1890
  %v2865 = vsel %vm2805, %v2800, %v1892
  %v2866 = vsel %vm2805, %v2801, %v1894
  %v2867 = vsel %vm2805, %v2802, %v1896
  %v2868 = vsel %vm2805, %v2803, %v1898
  %v2869 = vsel %vm2805, %v2804, %v1900
  %vm2870 = vcmask 146432
  %v2871 = vsel %vm2870, %v2806, %v1966
  %v2872 = vsel %vm2870, %v2807, %v1968
  %v2873 = vsel %vm2870, %v2808, %v1970
  %v2874 = vsel %vm2870, %v2809, %v1972
  %v2875 = vsel %vm2870, %v2810, %v1974
  %v2876 = vsel %vm2870, %v2811, %v1976
  %v2877 = vsel %vm2870, %v2812, %v1978
  %v2878 = vsel %vm2870, %v2813, %v1980
  %v2879 = vsel %vm2870, %v2814, %v1982
  %v2880 = vsel %vm2870, %v2815, %v1984
  %v2881 = vsel %vm2870, %v2816, %v1986
  %v2882 = vsel %vm2870, %v2817, %v1988
  %v2883 = vsel %vm2870, %v2818, %v1990
  %v2884 = vsel %vm2870, %v2819, %v1992
  %v2885 = vsel %vm2870, %v2820, %v1994
  %v2886 = vsel %vm2870, %v2821, %v1996
  %v2887 = vsel %vm2870, %v2822, %v1998
  %v2888 = vsel %vm2870, %v2823, %v2000
  %v2889 = vsel %vm2870, %v2824, %v2002
  %v2890 = vsel %vm2870, %v2825, %v2004
  %v2891 = vsel %vm2870, %v2826, %v2006
  %v2892 = vsel %vm2870, %v2827, %v2008
  %v2893 = vsel %vm2870, %v2828, %v2010
  %v2894 = vsel %vm2870, %v2829, %v2012
  %v2895 = vsel %vm2870, %v2830, %v2014
  %v2896 = vsel %vm2870, %v2831, %v2016
  %v2897 = vsel %vm2870, %v2832, %v2018
  %v2898 = vsel %vm2870, %v2833, %v2020
  %v2899 = vsel %vm2870, %v2834, %v2022
  %v2900 = vsel %vm2870, %v2835, %v2024
  %v2901 = vsel %vm2870, %v2836, %v2026
  %v2902 = vsel %vm2870, %v2837, %v2028
  %v2903 = vsel %vm2870, %v2838, %v2030
  %v2904 = vsel %vm2870, %v2839, %v2032
  %v2905 = vsel %vm2870, %v2840, %v2034
  %v2906 = vsel %vm2870, %v2841, %v2036
  %v2907 = vsel %vm2870, %v2842, %v2038
  %v2908 = vsel %vm2870, %v2843, %v2040
  %v2909 = vsel %vm2870, %v2844, %v2042
  %v2910 = vsel %vm2870, %v2845, %v2044
  %v2911 = vsel %vm2870, %v2846, %v2046
  %v2912 = vsel %vm2870, %v2847, %v2048
  %v2913 = vsel %vm2870, %v2848, %v2050
  %v2914 = vsel %vm2870, %v2849, %v2052
  %v2915 = vsel %vm2870, %v2850, %v2054
  %v2916 = vsel %vm2870, %v2851, %v2056
  %v2917 = vsel %vm2870, %v2852, %v2058
  %v2918 = vsel %vm2870, %v2853, %v2060
  %v2919 = vsel %vm2870, %v2854, %v2062
  %v2920 = vsel %vm2870, %v2855, %v2064
  %v2921 = vsel %vm2870, %v2856, %v2066
  %v2922 = vsel %vm2870, %v2857, %v2068
  %v2923 = vsel %vm2870, %v2858, %v2070
  %v2924 = vsel %vm2870, %v2859, %v2072
  %v2925 = vsel %vm2870, %v2860, %v2074
  %v2926 = vsel %vm2870, %v2861, %v2076
  %v2927 = vsel %vm2870, %v2862, %v2078
  %v2928 = vsel %vm2870, %v2863, %v2080
  %v2929 = vsel %vm2870, %v2864, %v2082
  %v2930 = vsel %vm2870, %v2865, %v2084
  %v2931 = vsel %vm2870, %v2866, %v2086
  %v2932 = vsel %vm2870, %v2867, %v2088
  %v2933 = vsel %vm2870, %v2868, %v2090
  %v2934 = vsel %vm2870, %v2869, %v2092
  %vm2935 = vcmask 171008
  %v2936 = vsel %vm2935, %v2871, %v2162
  %v2937 = vsel %vm2935, %v2872, %v2164
  %v2938 = vsel %vm2935, %v2873, %v2166
  %v2939 = vsel %vm2935, %v2874, %v2168
  %v2940 = vsel %vm2935, %v2875, %v2170
  %v2941 = vsel %vm2935, %v2876, %v2172
  %v2942 = vsel %vm2935, %v2877, %v2174
  %v2943 = vsel %vm2935, %v2878, %v2176
  %v2944 = vsel %vm2935, %v2879, %v2178
  %v2945 = vsel %vm2935, %v2880, %v2180
  %v2946 = vsel %vm2935, %v2881, %v2182
  %v2947 = vsel %vm2935, %v2882, %v2184
  %v2948 = vsel %vm2935, %v2883, %v2186
  %v2949 = vsel %vm2935, %v2884, %v2188
  %v2950 = vsel %vm2935, %v2885, %v2190
  %v2951 = vsel %vm2935, %v2886, %v2192
  %v2952 = vsel %vm2935, %v2887, %v2194
  %v2953 = vsel %vm2935, %v2888, %v2196
  %v2954 = vsel %vm2935, %v2889, %v2198
  %v2955 = vsel %vm2935, %v2890, %v2200
  %v2956 = vsel %vm2935, %v2891, %v2202
  %v2957 = vsel %vm2935, %v2892, %v2204
  %v2958 = vsel %vm2935, %v2893, %v2206
  %v2959 = vsel %vm2935, %v2894, %v2208
  %v2960 = vsel %vm2935, %v2895, %v2210
  %v2961 = vsel %vm2935, %v2896, %v2212
  %v2962 = vsel %vm2935, %v2897, %v2214
  %v2963 = vsel %vm2935, %v2898, %v2216
  %v2964 = vsel %vm2935, %v2899, %v2218
  %v2965 = vsel %vm2935, %v2900, %v2220
  %v2966 = vsel %vm2935, %v2901, %v2222
  %v2967 = vsel %vm2935, %v2902, %v2224
  %v2968 = vsel %vm2935, %v2903, %v2226
  %v2969 = vsel %vm2935, %v2904, %v2228
  %v2970 = vsel %vm2935, %v2905, %v2230
  %v2971 = vsel %vm2935, %v2906, %v2232
  %v2972 = vsel %vm2935, %v2907, %v2234
  %v2973 = vsel %vm2935, %v2908, %v2236
  %v2974 = vsel %vm2935, %v2909, %v2238
  %v2975 = vsel %vm2935, %v2910, %v2240
  %v2976 = vsel %vm2935, %v2911, %v2242
  %v2977 = vsel %vm2935, %v2912, %v2244
  %v2978 = vsel %vm2935, %v2913, %v2246
  %v2979 = vsel %vm2935, %v2914, %v2248
  %v2980 = vsel %vm2935, %v2915, %v2250
  %v2981 = vsel %vm2935, %v2916, %v2252
  %v2982 = vsel %vm2935, %v2917, %v2254
  %v2983 = vsel %vm2935, %v2918, %v2256
  %v2984 = vsel %vm2935, %v2919, %v2258
  %v2985 = vsel %vm2935, %v2920, %v2260
  %v2986 = vsel %vm2935, %v2921, %v2262
  %v2987 = vsel %vm2935, %v2922, %v2264
  %v2988 = vsel %vm2935, %v2923, %v2266
  %v2989 = vsel %vm2935, %v2924, %v2268
  %v2990 = vsel %vm2935, %v2925, %v2270
  %v2991 = vsel %vm2935, %v2926, %v2272
  %v2992 = vsel %vm2935, %v2927, %v2274
  %v2993 = vsel %vm2935, %v2928, %v2276
  %v2994 = vsel %vm2935, %v2929, %v2278
  %v2995 = vsel %vm2935, %v2930, %v2280
  %v2996 = vsel %vm2935, %v2931, %v2282
  %v2997 = vsel %vm2935, %v2932, %v2284
  %v2998 = vsel %vm2935, %v2933, %v2286
  %v2999 = vsel %vm2935, %v2934, %v2288
  %vm3000 = vcmask 195584
  %v3001 = vsel %vm3000, %v2936, %v2354
  %v3002 = vsel %vm3000, %v2937, %v2356
  %v3003 = vsel %vm3000, %v2938, %v2358
  %v3004 = vsel %vm3000, %v2939, %v2360
  %v3005 = vsel %vm3000, %v2940, %v2362
  %v3006 = vsel %vm3000, %v2941, %v2364
  %v3007 = vsel %vm3000, %v2942, %v2366
  %v3008 = vsel %vm3000, %v2943, %v2368
  %v3009 = vsel %vm3000, %v2944, %v2370
  %v3010 = vsel %vm3000, %v2945, %v2372
  %v3011 = vsel %vm3000, %v2946, %v2374
  %v3012 = vsel %vm3000, %v2947, %v2376
  %v3013 = vsel %vm3000, %v2948, %v2378
  %v3014 = vsel %vm3000, %v2949, %v2380
  %v3015 = vsel %vm3000, %v2950, %v2382
  %v3016 = vsel %vm3000, %v2951, %v2384
  %v3017 = vsel %vm3000, %v2952, %v2386
  %v3018 = vsel %vm3000, %v2953, %v2388
  %v3019 = vsel %vm3000, %v2954, %v2390
  %v3020 = vsel %vm3000, %v2955, %v2392
  %v3021 = vsel %vm3000, %v2956, %v2394
  %v3022 = vsel %vm3000, %v2957, %v2396
  %v3023 = vsel %vm3000, %v2958, %v2398
  %v3024 = vsel %vm3000, %v2959, %v2400
  %v3025 = vsel %vm3000, %v2960, %v2402
  %v3026 = vsel %vm3000, %v2961, %v2404
  %v3027 = vsel %vm3000, %v2962, %v2406
  %v3028 = vsel %vm3000, %v2963, %v2408
  %v3029 = vsel %vm3000, %v2964, %v2410
  %v3030 = vsel %vm3000, %v2965, %v2412
  %v3031 = vsel %vm3000, %v2966, %v2414
  %v3032 = vsel %vm3000, %v2967, %v2416
  %v3033 = vsel %vm3000, %v2968, %v2418
  %v3034 = vsel %vm3000, %v2969, %v2420
  %v3035 = vsel %vm3000, %v2970, %v2422
  %v3036 = vsel %vm3000, %v2971, %v2424
  %v3037 = vsel %vm3000, %v2972, %v2426
  %v3038 = vsel %vm3000, %v2973, %v2428
  %v3039 = vsel %vm3000, %v2974, %v2430
  %v3040 = vsel %vm3000, %v2975, %v2432
  %v3041 = vsel %vm3000, %v2976, %v2434
  %v3042 = vsel %vm3000, %v2977, %v2436
  %v3043 = vsel %vm3000, %v2978, %v2438
  %v3044 = vsel %vm3000, %v2979, %v2440
  %v3045 = vsel %vm3000, %v2980, %v2442
  %v3046 = vsel %vm3000, %v2981, %v2444
  %v3047 = vsel %vm3000, %v2982, %v2446
  %v3048 = vsel %vm3000, %v2983, %v2448
  %v3049 = vsel %vm3000, %v2984, %v2450
  %v3050 = vsel %vm3000, %v2985, %v2452
  %v3051 = vsel %vm3000, %v2986, %v2454
  %v3052 = vsel %vm3000, %v2987, %v2456
  %v3053 = vsel %vm3000, %v2988, %v2458
  %v3054 = vsel %vm3000, %v2989, %v2460
  %v3055 = vsel %vm3000, %v2990, %v2462
  %v3056 = vsel %vm3000, %v2991, %v2464
  %v3057 = vsel %vm3000, %v2992, %v2466
  %v3058 = vsel %vm3000, %v2993, %v2468
  %v3059 = vsel %vm3000, %v2994, %v2470
  %v3060 = vsel %vm3000, %v2995, %v2472
  %v3061 = vsel %vm3000, %v2996, %v2474
  %v3062 = vsel %vm3000, %v2997, %v2476
  %v3063 = vsel %vm3000, %v2998, %v2478
  %v3064 = vsel %vm3000, %v2999, %v2480
  %v3065 = vpack.c.bf16 %v3002, %v3001
  %v3066 = vpack.c.bf16 %v3004, %v3003
  %v3067 = vpack.c.bf16 %v3006, %v3005
  %v3068 = vpack.c.bf16 %v3008, %v3007
  %v3069 = vpack.c.bf16 %v3010, %v3009
  %v3070 = vpack.c.bf16 %v3012, %v3011
  %v3071 = vpack.c.bf16 %v3014, %v3013
  %v3072 = vpack.c.bf16 %v3016, %v3015
  %v3073 = vpack.c.bf16 %v3018, %v3017
  %v3074 = vpack.c.bf16 %v3020, %v3019
  %v3075 = vpack.c.bf16 %v3022, %v3021
  %v3076 = vpack.c.bf16 %v3024, %v3023
  %v3077 = vpack.c.bf16 %v3026, %v3025
  %v3078 = vpack.c.bf16 %v3028, %v3027
  %v3079 = vpack.c.bf16 %v3030, %v3029
  %v3080 = vpack.c.bf16 %v3032, %v3031
  %v3081 = vpack.c.bf16 %v3034, %v3033
  %v3082 = vpack.c.bf16 %v3036, %v3035
  %v3083 = vpack.c.bf16 %v3038, %v3037
  %v3084 = vpack.c.bf16 %v3040, %v3039
  %v3085 = vpack.c.bf16 %v3042, %v3041
  %v3086 = vpack.c.bf16 %v3044, %v3043
  %v3087 = vpack.c.bf16 %v3046, %v3045
  %v3088 = vpack.c.bf16 %v3048, %v3047
  %v3089 = vpack.c.bf16 %v3050, %v3049
  %v3090 = vpack.c.bf16 %v3052, %v3051
  %v3091 = vpack.c.bf16 %v3054, %v3053
  %v3092 = vpack.c.bf16 %v3056, %v3055
  %v3093 = vpack.c.bf16 %v3058, %v3057
  %v3094 = vpack.c.bf16 %v3060, %v3059
  %v3095 = vpack.c.bf16 %v3062, %v3061
  %v3096 = vpack.c.bf16 %v3064, %v3063
  %v3097 = vld [vmem:[%s1] sm:$0xf]
  %v3098 = vld [vmem:[%s1 + $0x4] sm:$0xf]
  %v3099 = vld [vmem:[%s1 + $0x8] sm:$0xf]
  %v3100 = vld [vmem:[%s1 + $0xc] sm:$0x3]
  %v3105 = vunpack.c.l.b16 %v3097
  %v3106 = vunpack.c.l.b16 %v3098
  %v3107 = vunpack.c.l.b16 %v3099
  %v3108 = vunpack.c.l.b16 %v3100
  %v3109 = vpack.c.b16 %v3106, %v3105
  %v3110 = vpack.c.b16 %v3108, %v3107
  %vm3112 = vcmask 220160
  %v3114 = vsel %vm3112, %v3065, 0
  %v3117 = vsel %vm3112, %v3066, 0
  %v3120 = vsel %vm3112, %v3067, 0
  %v3123 = vsel %vm3112, %v3068, 0
  %v3126 = vsel %vm3112, %v3069, 0
  %v3129 = vsel %vm3112, %v3070, 0
  %v3132 = vsel %vm3112, %v3071, 0
  %v3135 = vsel %vm3112, %v3072, 0
  %v3138 = vsel %vm3112, %v3073, 0
  %v3141 = vsel %vm3112, %v3074, 0
  %v3144 = vsel %vm3112, %v3075, 0
  %v3147 = vsel %vm3112, %v3076, 0
  %v3150 = vsel %vm3112, %v3077, 0
  %v3153 = vsel %vm3112, %v3078, 0
  %v3156 = vsel %vm3112, %v3079, 0
  %v3159 = vsel %vm3112, %v3080, 0
  %v3162 = vsel %vm3112, %v3081, 0
  %v3165 = vsel %vm3112, %v3082, 0
  %v3168 = vsel %vm3112, %v3083, 0
  %v3171 = vsel %vm3112, %v3084, 0
  %v3174 = vsel %vm3112, %v3085, 0
  %v3177 = vsel %vm3112, %v3086, 0
  %v3180 = vsel %vm3112, %v3087, 0
  %v3183 = vsel %vm3112, %v3088, 0
  %v3186 = vsel %vm3112, %v3089, 0
  %v3189 = vsel %vm3112, %v3090, 0
  %v3192 = vsel %vm3112, %v3091, 0
  %v3195 = vsel %vm3112, %v3092, 0
  %v3198 = vsel %vm3112, %v3093, 0
  %v3201 = vsel %vm3112, %v3094, 0
  %v3204 = vsel %vm3112, %v3095, 0
  %v3207 = vsel %vm3112, %v3096, 0
  %vm3209 = vcmask 1044480
  %vm3210 = vcmask 1045504
  %v3211 = vsel %vm3209, 4294967295, 65535
  %v3212 = vsel %vm3210, %v3211, 0
  %v3214 = vand.u32 %v3110, %v3212
  %3216 = vmatprep.subr.bf16.mxu0 0
  %3217 = vmatpush1.bf16.msra.mxu0 %v3109
  %3218 = vmatprep.subr.bf16.mxu0 0
  %3219 = vmatpush1.bf16.msra.mxu0 %v3214
  %3220 = vmatprep.subr.bf16.mxu0 0
  %3221 = vmatpush1.bf16.msra.mxu0 0
  %3222 = vmatprep.subr.bf16.mxu0 0
  %3223 = vmatpush1.bf16.msra.mxu0 0
  %3224 = vmatprep.subr.bf16.mxu0 0
  %3225 = vmatpush1.bf16.msra.mxu0 0
  %3226 = vmatprep.subr.bf16.mxu0 0
  %3227 = vmatpush1.bf16.msra.mxu0 0
  %3228 = vmatprep.subr.bf16.mxu0 0
  %3229 = vmatpush1.bf16.msra.mxu0 0
  %3230 = vmatprep.subr.bf16.mxu0 0
  %3231 = vmatpush1.bf16.msra.mxu0 0
  %3232 = vmatprep.subr.bf16.mxu0 0
  %3233 = vmatpush1.bf16.msra.mxu0 0
  %3234 = vmatprep.subr.bf16.mxu0 0
  %3235 = vmatpush1.bf16.msra.mxu0 0
  %3236 = vmatprep.subr.bf16.mxu0 0
  %3237 = vmatpush1.bf16.msra.mxu0 0
  %3238 = vmatprep.subr.bf16.mxu0 0
  %3239 = vmatpush1.bf16.msra.mxu0 0
  %3240 = vmatprep.subr.bf16.mxu0 0
  %3241 = vmatpush1.bf16.msra.mxu0 0
  %3242 = vmatprep.subr.bf16.mxu0 0
  %3243 = vmatpush1.bf16.msra.mxu0 0
  %3244 = vmatprep.subr.bf16.mxu0 0
  %3245 = vmatpush1.bf16.msra.mxu0 0
  %3246 = vmatprep.subr.bf16.mxu0 0
  %3247 = vmatpush1.bf16.msra.mxu0 0
  %3248 = vmatprep.mubr.bf16.mxu0 0
  %3249 = vmatmul.mubr.bf16.gmra.mrb[0].mxu0 %v3114
  %v3250 = vpop.f32.mrb[0].mxu0
  %v3251 = vadd.f32 0.0, %v3250
  %v3252 = vpop.f32.mrb[0].mxu0
  %v3253 = vpop.f32.mrb[0].mxu0
  %v3254 = vadd.f32 0.0, %v3253
  %v3255 = vpop.f32.mrb[0].mxu0
  %3256 = vmatprep.mubr.bf16.mxu0 0
  %3257 = vmatmul.mubr.bf16.gmra.mrb[0].mxu0 %v3117
  %v3258 = vpop.f32.mrb[0].mxu0
  %v3259 = vadd.f32 0.0, %v3258
  %v3260 = vpop.f32.mrb[0].mxu0
  %v3261 = vpop.f32.mrb[0].mxu0
  %v3262 = vadd.f32 0.0, %v3261
  %v3263 = vpop.f32.mrb[0].mxu0
  %3264 = vmatprep.mubr.bf16.mxu0 0
  %3265 = vmatmul.mubr.bf16.gmra.mrb[0].mxu0 %v3120
  %v3266 = vpop.f32.mrb[0].mxu0
  %v3267 = vadd.f32 0.0, %v3266
  %v3268 = vpop.f32.mrb[0].mxu0
  %v3269 = vpop.f32.mrb[0].mxu0
  %v3270 = vadd.f32 0.0, %v3269
  %v3271 = vpop.f32.mrb[0].mxu0
  %3272 = vmatprep.mubr.bf16.mxu0 0
  %3273 = vmatmul.mubr.bf16.gmra.mrb[0].mxu0 %v3123
  %v3274 = vpop.f32.mrb[0].mxu0
  %v3275 = vadd.f32 0.0, %v3274
  %v3276 = vpop.f32.mrb[0].mxu0
  %v3277 = vpop.f32.mrb[0].mxu0
  %v3278 = vadd.f32 0.0, %v3277
  %v3279 = vpop.f32.mrb[0].mxu0
  %3280 = vmatprep.mubr.bf16.mxu0 0
  %3281 = vmatmul.mubr.bf16.gmra.mrb[0].mxu0 %v3126
  %v3282 = vpop.f32.mrb[0].mxu0
  %v3283 = vadd.f32 0.0, %v3282
  %v3284 = vpop.f32.mrb[0].mxu0
  %v3285 = vpop.f32.mrb[0].mxu0
  %v3286 = vadd.f32 0.0, %v3285
  %v3287 = vpop.f32.mrb[0].mxu0
  %3288 = vmatprep.mubr.bf16.mxu0 0
  %3289 = vmatmul.mubr.bf16.gmra.mrb[0].mxu0 %v3129
  %v3290 = vpop.f32.mrb[0].mxu0
  %v3291 = vadd.f32 0.0, %v3290
  %v3292 = vpop.f32.mrb[0].mxu0
  %v3293 = vpop.f32.mrb[0].mxu0
  %v3294 = vadd.f32 0.0, %v3293
  %v3295 = vpop.f32.mrb[0].mxu0
  %3296 = vmatprep.mubr.bf16.mxu0 0
  %3297 = vmatmul.mubr.bf16.gmra.mrb[0].mxu0 %v3132
  %v3298 = vpop.f32.mrb[0].mxu0
  %v3299 = vadd.f32 0.0, %v3298
  %v3300 = vpop.f32.mrb[0].mxu0
  %v3301 = vpop.f32.mrb[0].mxu0
  %v3302 = vadd.f32 0.0, %v3301
  %v3303 = vpop.f32.mrb[0].mxu0
  %3304 = vmatprep.mubr.bf16.mxu0 0
  %3305 = vmatmul.mubr.bf16.gmra.mrb[0].mxu0 %v3135
  %v3306 = vpop.f32.mrb[0].mxu0
  %v3307 = vadd.f32 0.0, %v3306
  %v3308 = vpop.f32.mrb[0].mxu0
  %v3309 = vpop.f32.mrb[0].mxu0
  %v3310 = vadd.f32 0.0, %v3309
  %v3311 = vpop.f32.mrb[0].mxu0
  %3312 = vmatprep.mubr.bf16.mxu0 0
  %3313 = vmatmul.mubr.bf16.gmra.mrb[0].mxu0 %v3138
  %v3314 = vpop.f32.mrb[0].mxu0
  %v3315 = vadd.f32 0.0, %v3314
  %v3316 = vpop.f32.mrb[0].mxu0
  %v3317 = vpop.f32.mrb[0].mxu0
  %v3318 = vadd.f32 0.0, %v3317
  %v3319 = vpop.f32.mrb[0].mxu0
  %3320 = vmatprep.mubr.bf16.mxu0 0
  %3321 = vmatmul.mubr.bf16.gmra.mrb[0].mxu0 %v3141
  %v3322 = vpop.f32.mrb[0].mxu0
  %v3323 = vadd.f32 0.0, %v3322
  %v3324 = vpop.f32.mrb[0].mxu0
  %v3325 = vpop.f32.mrb[0].mxu0
  %v3326 = vadd.f32 0.0, %v3325
  %v3327 = vpop.f32.mrb[0].mxu0
  %3328 = vmatprep.mubr.bf16.mxu0 0
  %3329 = vmatmul.mubr.bf16.gmra.mrb[0].mxu0 %v3144
  %v3330 = vpop.f32.mrb[0].mxu0
  %v3331 = vadd.f32 0.0, %v3330
  %v3332 = vpop.f32.mrb[0].mxu0
  %v3333 = vpop.f32.mrb[0].mxu0
  %v3334 = vadd.f32 0.0, %v3333
  %v3335 = vpop.f32.mrb[0].mxu0
  %3336 = vmatprep.mubr.bf16.mxu0 0
  %3337 = vmatmul.mubr.bf16.gmra.mrb[0].mxu0 %v3147
  %v3338 = vpop.f32.mrb[0].mxu0
  %v3339 = vadd.f32 0.0, %v3338
  %v3340 = vpop.f32.mrb[0].mxu0
  %v3341 = vpop.f32.mrb[0].mxu0
  %v3342 = vadd.f32 0.0, %v3341
  %v3343 = vpop.f32.mrb[0].mxu0
  %3344 = vmatprep.mubr.bf16.mxu0 0
  %3345 = vmatmul.mubr.bf16.gmra.mrb[0].mxu0 %v3150
  %v3346 = vpop.f32.mrb[0].mxu0
  %v3347 = vadd.f32 0.0, %v3346
  %v3348 = vpop.f32.mrb[0].mxu0
  %v3349 = vpop.f32.mrb[0].mxu0
  %v3350 = vadd.f32 0.0, %v3349
  %v3351 = vpop.f32.mrb[0].mxu0
  %3352 = vmatprep.mubr.bf16.mxu0 0
  %3353 = vmatmul.mubr.bf16.gmra.mrb[0].mxu0 %v3153
  %v3354 = vpop.f32.mrb[0].mxu0
  %v3355 = vadd.f32 0.0, %v3354
  %v3356 = vpop.f32.mrb[0].mxu0
  %v3357 = vpop.f32.mrb[0].mxu0
  %v3358 = vadd.f32 0.0, %v3357
  %v3359 = vpop.f32.mrb[0].mxu0
  %3360 = vmatprep.mubr.bf16.mxu0 0
  %3361 = vmatmul.mubr.bf16.gmra.mrb[0].mxu0 %v3156
  %v3362 = vpop.f32.mrb[0].mxu0
  %v3363 = vadd.f32 0.0, %v3362
  %v3364 = vpop.f32.mrb[0].mxu0
  %v3365 = vpop.f32.mrb[0].mxu0
  %v3366 = vadd.f32 0.0, %v3365
  %v3367 = vpop.f32.mrb[0].mxu0
  %3368 = vmatprep.mubr.bf16.mxu0 0
  %3369 = vmatmul.mubr.bf16.gmra.mrb[0].mxu0 %v3159
  %v3370 = vpop.f32.mrb[0].mxu0
  %v3371 = vadd.f32 0.0, %v3370
  %v3372 = vpop.f32.mrb[0].mxu0
  %v3373 = vpop.f32.mrb[0].mxu0
  %v3374 = vadd.f32 0.0, %v3373
  %v3375 = vpop.f32.mrb[0].mxu0
  %3376 = vmatprep.mubr.bf16.mxu0 0
  %3377 = vmatmul.mubr.bf16.gmra.mrb[0].mxu0 %v3162
  %v3378 = vpop.f32.mrb[0].mxu0
  %v3379 = vadd.f32 0.0, %v3378
  %v3380 = vpop.f32.mrb[0].mxu0
  %v3381 = vpop.f32.mrb[0].mxu0
  %v3382 = vadd.f32 0.0, %v3381
  %v3383 = vpop.f32.mrb[0].mxu0
  %3384 = vmatprep.mubr.bf16.mxu0 0
  %3385 = vmatmul.mubr.bf16.gmra.mrb[0].mxu0 %v3165
  %v3386 = vpop.f32.mrb[0].mxu0
  %v3387 = vadd.f32 0.0, %v3386
  %v3388 = vpop.f32.mrb[0].mxu0
  %v3389 = vpop.f32.mrb[0].mxu0
  %v3390 = vadd.f32 0.0, %v3389
  %v3391 = vpop.f32.mrb[0].mxu0
  %3392 = vmatprep.mubr.bf16.mxu0 0
  %3393 = vmatmul.mubr.bf16.gmra.mrb[0].mxu0 %v3168
  %v3394 = vpop.f32.mrb[0].mxu0
  %v3395 = vadd.f32 0.0, %v3394
  %v3396 = vpop.f32.mrb[0].mxu0
  %v3397 = vpop.f32.mrb[0].mxu0
  %v3398 = vadd.f32 0.0, %v3397
  %v3399 = vpop.f32.mrb[0].mxu0
  %3400 = vmatprep.mubr.bf16.mxu0 0
  %3401 = vmatmul.mubr.bf16.gmra.mrb[0].mxu0 %v3171
  %v3402 = vpop.f32.mrb[0].mxu0
  %v3403 = vadd.f32 0.0, %v3402
  %v3404 = vpop.f32.mrb[0].mxu0
  %v3405 = vpop.f32.mrb[0].mxu0
  %v3406 = vadd.f32 0.0, %v3405
  %v3407 = vpop.f32.mrb[0].mxu0
  %3408 = vmatprep.mubr.bf16.mxu0 0
  %3409 = vmatmul.mubr.bf16.gmra.mrb[0].mxu0 %v3174
  %v3410 = vpop.f32.mrb[0].mxu0
  %v3411 = vadd.f32 0.0, %v3410
  %v3412 = vpop.f32.mrb[0].mxu0
  %v3413 = vpop.f32.mrb[0].mxu0
  %v3414 = vadd.f32 0.0, %v3413
  %v3415 = vpop.f32.mrb[0].mxu0
  %3416 = vmatprep.mubr.bf16.mxu0 0
  %3417 = vmatmul.mubr.bf16.gmra.mrb[0].mxu0 %v3177
  %v3418 = vpop.f32.mrb[0].mxu0
  %v3419 = vadd.f32 0.0, %v3418
  %v3420 = vpop.f32.mrb[0].mxu0
  %v3421 = vpop.f32.mrb[0].mxu0
  %v3422 = vadd.f32 0.0, %v3421
  %v3423 = vpop.f32.mrb[0].mxu0
  %3424 = vmatprep.mubr.bf16.mxu0 0
  %3425 = vmatmul.mubr.bf16.gmra.mrb[0].mxu0 %v3180
  %v3426 = vpop.f32.mrb[0].mxu0
  %v3427 = vadd.f32 0.0, %v3426
  %v3428 = vpop.f32.mrb[0].mxu0
  %v3429 = vpop.f32.mrb[0].mxu0
  %v3430 = vadd.f32 0.0, %v3429
  %v3431 = vpop.f32.mrb[0].mxu0
  %3432 = vmatprep.mubr.bf16.mxu0 0
  %3433 = vmatmul.mubr.bf16.gmra.mrb[0].mxu0 %v3183
  %v3434 = vpop.f32.mrb[0].mxu0
  %v3435 = vadd.f32 0.0, %v3434
  %v3436 = vpop.f32.mrb[0].mxu0
  %v3437 = vpop.f32.mrb[0].mxu0
  %v3438 = vadd.f32 0.0, %v3437
  %v3439 = vpop.f32.mrb[0].mxu0
  %3440 = vmatprep.mubr.bf16.mxu0 0
  %3441 = vmatmul.mubr.bf16.gmra.mrb[0].mxu0 %v3186
  %v3442 = vpop.f32.mrb[0].mxu0
  %v3443 = vadd.f32 0.0, %v3442
  %v3444 = vpop.f32.mrb[0].mxu0
  %v3445 = vpop.f32.mrb[0].mxu0
  %v3446 = vadd.f32 0.0, %v3445
  %v3447 = vpop.f32.mrb[0].mxu0
  %3448 = vmatprep.mubr.bf16.mxu0 0
  %3449 = vmatmul.mubr.bf16.gmra.mrb[0].mxu0 %v3189
  %v3450 = vpop.f32.mrb[0].mxu0
  %v3451 = vadd.f32 0.0, %v3450
  %v3452 = vpop.f32.mrb[0].mxu0
  %v3453 = vpop.f32.mrb[0].mxu0
  %v3454 = vadd.f32 0.0, %v3453
  %v3455 = vpop.f32.mrb[0].mxu0
  %3456 = vmatprep.mubr.bf16.mxu0 0
  %3457 = vmatmul.mubr.bf16.gmra.mrb[0].mxu0 %v3192
  %v3458 = vpop.f32.mrb[0].mxu0
  %v3459 = vadd.f32 0.0, %v3458
  %v3460 = vpop.f32.mrb[0].mxu0
  %v3461 = vpop.f32.mrb[0].mxu0
  %v3462 = vadd.f32 0.0, %v3461
  %v3463 = vpop.f32.mrb[0].mxu0
  %3464 = vmatprep.mubr.bf16.mxu0 0
  %3465 = vmatmul.mubr.bf16.gmra.mrb[0].mxu0 %v3195
  %v3466 = vpop.f32.mrb[0].mxu0
  %v3467 = vadd.f32 0.0, %v3466
  %v3468 = vpop.f32.mrb[0].mxu0
  %v3469 = vpop.f32.mrb[0].mxu0
  %v3470 = vadd.f32 0.0, %v3469
  %v3471 = vpop.f32.mrb[0].mxu0
  %3472 = vmatprep.mubr.bf16.mxu0 0
  %3473 = vmatmul.mubr.bf16.gmra.mrb[0].mxu0 %v3198
  %v3474 = vpop.f32.mrb[0].mxu0
  %v3475 = vadd.f32 0.0, %v3474
  %v3476 = vpop.f32.mrb[0].mxu0
  %v3477 = vpop.f32.mrb[0].mxu0
  %v3478 = vadd.f32 0.0, %v3477
  %v3479 = vpop.f32.mrb[0].mxu0
  %3480 = vmatprep.mubr.bf16.mxu0 0
  %3481 = vmatmul.mubr.bf16.gmra.mrb[0].mxu0 %v3201
  %v3482 = vpop.f32.mrb[0].mxu0
  %v3483 = vadd.f32 0.0, %v3482
  %v3484 = vpop.f32.mrb[0].mxu0
  %v3485 = vpop.f32.mrb[0].mxu0
  %v3486 = vadd.f32 0.0, %v3485
  %v3487 = vpop.f32.mrb[0].mxu0
  %3488 = vmatprep.mubr.bf16.mxu0 0
  %3489 = vmatmul.mubr.bf16.gmra.mrb[0].mxu0 %v3204
  %v3490 = vpop.f32.mrb[0].mxu0
  %v3491 = vadd.f32 0.0, %v3490
  %v3492 = vpop.f32.mrb[0].mxu0
  %v3493 = vpop.f32.mrb[0].mxu0
  %v3494 = vadd.f32 0.0, %v3493
  %v3495 = vpop.f32.mrb[0].mxu0
  %3496 = vmatprep.mubr.bf16.mxu0 0
  %3497 = vmatmul.mubr.bf16.gmra.mrb[0].mxu0 %v3207
  %v3498 = vpop.f32.mrb[0].mxu0
  %v3499 = vadd.f32 0.0, %v3498
  %v3500 = vpop.f32.mrb[0].mxu0
  %v3501 = vpop.f32.mrb[0].mxu0
  %v3502 = vadd.f32 0.0, %v3501
  %v3503 = vpop.f32.mrb[0].mxu0
  %3504 = vdwg.mxu0
  %v3505 = vld [vmem:[%s2] sm:$0x1]
  %v3506 = vld [vmem:[%s3] sm:$0x1]
  %vm3507 = vcmask 130048
  %v3508 = vsel %vm3507, %v3251, 0.0
  %v3509 = vsel %vm3507, %v3254, 0.0
  %v3510 = vadd.f32 %v3508, %v3509
  %v3511 = vsel %vm3507, %v3259, 0.0
  %v3512 = vadd.f32 %v3510, %v3511
  %v3513 = vsel %vm3507, %v3262, 0.0
  %v3514 = vadd.f32 %v3512, %v3513
  %v3515 = vsel %vm3507, %v3267, 0.0
  %v3516 = vadd.f32 %v3514, %v3515
  %v3517 = vsel %vm3507, %v3270, 0.0
  %v3518 = vadd.f32 %v3516, %v3517
  %v3519 = vsel %vm3507, %v3275, 0.0
  %v3520 = vadd.f32 %v3518, %v3519
  %v3521 = vsel %vm3507, %v3278, 0.0
  %v3522 = vadd.f32 %v3520, %v3521
  %v3523 = vsel %vm3507, %v3283, 0.0
  %v3524 = vadd.f32 %v3522, %v3523
  %v3525 = vsel %vm3507, %v3286, 0.0
  %v3526 = vadd.f32 %v3524, %v3525
  %v3527 = vsel %vm3507, %v3291, 0.0
  %v3528 = vadd.f32 %v3526, %v3527
  %v3529 = vsel %vm3507, %v3294, 0.0
  %v3530 = vadd.f32 %v3528, %v3529
  %v3531 = vsel %vm3507, %v3299, 0.0
  %v3532 = vadd.f32 %v3530, %v3531
  %v3533 = vsel %vm3507, %v3302, 0.0
  %v3534 = vadd.f32 %v3532, %v3533
  %v3535 = vsel %vm3507, %v3307, 0.0
  %v3536 = vadd.f32 %v3534, %v3535
  %v3537 = vsel %vm3507, %v3310, 0.0
  %v3538 = vadd.f32 %v3536, %v3537
  %v3539 = vsel %vm3507, %v3315, 0.0
  %v3540 = vadd.f32 %v3538, %v3539
  %v3541 = vsel %vm3507, %v3318, 0.0
  %v3542 = vadd.f32 %v3540, %v3541
  %v3543 = vsel %vm3507, %v3323, 0.0
  %v3544 = vadd.f32 %v3542, %v3543
  %v3545 = vsel %vm3507, %v3326, 0.0
  %v3546 = vadd.f32 %v3544, %v3545
  %v3547 = vsel %vm3507, %v3331, 0.0
  %v3548 = vadd.f32 %v3546, %v3547
  %v3549 = vsel %vm3507, %v3334, 0.0
  %v3550 = vadd.f32 %v3548, %v3549
  %v3551 = vsel %vm3507, %v3339, 0.0
  %v3552 = vadd.f32 %v3550, %v3551
  %v3553 = vsel %vm3507, %v3342, 0.0
  %v3554 = vadd.f32 %v3552, %v3553
  %v3555 = vsel %vm3507, %v3347, 0.0
  %v3556 = vadd.f32 %v3554, %v3555
  %v3557 = vsel %vm3507, %v3350, 0.0
  %v3558 = vadd.f32 %v3556, %v3557
  %v3559 = vsel %vm3507, %v3355, 0.0
  %v3560 = vadd.f32 %v3558, %v3559
  %v3561 = vsel %vm3507, %v3358, 0.0
  %v3562 = vadd.f32 %v3560, %v3561
  %v3563 = vsel %vm3507, %v3363, 0.0
  %v3564 = vadd.f32 %v3562, %v3563
  %v3565 = vsel %vm3507, %v3366, 0.0
  %v3566 = vadd.f32 %v3564, %v3565
  %v3567 = vsel %vm3507, %v3371, 0.0
  %v3568 = vadd.f32 %v3566, %v3567
  %v3569 = vsel %vm3507, %v3374, 0.0
  %v3570 = vadd.f32 %v3568, %v3569
  %v3571 = vsel %vm3507, %v3379, 0.0
  %v3572 = vadd.f32 %v3570, %v3571
  %v3573 = vsel %vm3507, %v3382, 0.0
  %v3574 = vadd.f32 %v3572, %v3573
  %v3575 = vsel %vm3507, %v3387, 0.0
  %v3576 = vadd.f32 %v3574, %v3575
  %v3577 = vsel %vm3507, %v3390, 0.0
  %v3578 = vadd.f32 %v3576, %v3577
  %v3579 = vsel %vm3507, %v3395, 0.0
  %v3580 = vadd.f32 %v3578, %v3579
  %v3581 = vsel %vm3507, %v3398, 0.0
  %v3582 = vadd.f32 %v3580, %v3581
  %v3583 = vsel %vm3507, %v3403, 0.0
  %v3584 = vadd.f32 %v3582, %v3583
  %v3585 = vsel %vm3507, %v3406, 0.0
  %v3586 = vadd.f32 %v3584, %v3585
  %v3587 = vsel %vm3507, %v3411, 0.0
  %v3588 = vadd.f32 %v3586, %v3587
  %v3589 = vsel %vm3507, %v3414, 0.0
  %v3590 = vadd.f32 %v3588, %v3589
  %v3591 = vsel %vm3507, %v3419, 0.0
  %v3592 = vadd.f32 %v3590, %v3591
  %v3593 = vsel %vm3507, %v3422, 0.0
  %v3594 = vadd.f32 %v3592, %v3593
  %v3595 = vsel %vm3507, %v3427, 0.0
  %v3596 = vadd.f32 %v3594, %v3595
  %v3597 = vsel %vm3507, %v3430, 0.0
  %v3598 = vadd.f32 %v3596, %v3597
  %v3599 = vsel %vm3507, %v3435, 0.0
  %v3600 = vadd.f32 %v3598, %v3599
  %v3601 = vsel %vm3507, %v3438, 0.0
  %v3602 = vadd.f32 %v3600, %v3601
  %v3603 = vsel %vm3507, %v3443, 0.0
  %v3604 = vadd.f32 %v3602, %v3603
  %v3605 = vsel %vm3507, %v3446, 0.0
  %v3606 = vadd.f32 %v3604, %v3605
  %v3607 = vsel %vm3507, %v3451, 0.0
  %v3608 = vadd.f32 %v3606, %v3607
  %v3609 = vsel %vm3507, %v3454, 0.0
  %v3610 = vadd.f32 %v3608, %v3609
  %v3611 = vsel %vm3507, %v3459, 0.0
  %v3612 = vadd.f32 %v3610, %v3611
  %v3613 = vsel %vm3507, %v3462, 0.0
  %v3614 = vadd.f32 %v3612, %v3613
  %v3615 = vsel %vm3507, %v3467, 0.0
  %v3616 = vadd.f32 %v3614, %v3615
  %v3617 = vsel %vm3507, %v3470, 0.0
  %v3618 = vadd.f32 %v3616, %v3617
  %v3619 = vsel %vm3507, %v3475, 0.0
  %v3620 = vadd.f32 %v3618, %v3619
  %v3621 = vsel %vm3507, %v3478, 0.0
  %v3622 = vadd.f32 %v3620, %v3621
  %v3623 = vsel %vm3507, %v3483, 0.0
  %v3624 = vadd.f32 %v3622, %v3623
  %v3625 = vsel %vm3507, %v3486, 0.0
  %v3626 = vadd.f32 %v3624, %v3625
  %v3627 = vsel %vm3507, %v3491, 0.0
  %v3628 = vadd.f32 %v3626, %v3627
  %v3629 = vsel %vm3507, %v3494, 0.0
  %v3630 = vadd.f32 %v3628, %v3629
  %v3631 = vsel %vm3507, %v3499, 0.0
  %v3632 = vadd.f32 %v3630, %v3631
  %v3633 = vsel %vm3507, %v3502, 0.0
  %v3634 = vadd.f32 %v3632, %v3633
  %v3635 = vrot.slane %v3634, 4
  %v3636 = vadd.f32 %v3634, %v3635
  %v3637 = vrot.slane %v3636, 2
  %v3638 = vadd.f32 %v3636, %v3637
  %v3639 = vrot.slane %v3638, 1
  %v3640 = vadd.f32 %v3638, %v3639
  %v3641 = vmul.f32 %v3251, %v3251
  %v3642 = vmul.f32 %v3254, %v3254
  %v3643 = vmul.f32 %v3259, %v3259
  %v3644 = vmul.f32 %v3262, %v3262
  %v3645 = vmul.f32 %v3267, %v3267
  %v3646 = vmul.f32 %v3270, %v3270
  %v3647 = vmul.f32 %v3275, %v3275
  %v3648 = vmul.f32 %v3278, %v3278
  %v3649 = vmul.f32 %v3283, %v3283
  %v3650 = vmul.f32 %v3286, %v3286
  %v3651 = vmul.f32 %v3291, %v3291
  %v3652 = vmul.f32 %v3294, %v3294
  %v3653 = vmul.f32 %v3299, %v3299
  %v3654 = vmul.f32 %v3302, %v3302
  %v3655 = vmul.f32 %v3307, %v3307
  %v3656 = vmul.f32 %v3310, %v3310
  %v3657 = vmul.f32 %v3315, %v3315
  %v3658 = vmul.f32 %v3318, %v3318
  %v3659 = vmul.f32 %v3323, %v3323
  %v3660 = vmul.f32 %v3326, %v3326
  %v3661 = vmul.f32 %v3331, %v3331
  %v3662 = vmul.f32 %v3334, %v3334
  %v3663 = vmul.f32 %v3339, %v3339
  %v3664 = vmul.f32 %v3342, %v3342
  %v3665 = vmul.f32 %v3347, %v3347
  %v3666 = vmul.f32 %v3350, %v3350
  %v3667 = vmul.f32 %v3355, %v3355
  %v3668 = vmul.f32 %v3358, %v3358
  %v3669 = vmul.f32 %v3363, %v3363
  %v3670 = vmul.f32 %v3366, %v3366
  %v3671 = vmul.f32 %v3371, %v3371
  %v3672 = vmul.f32 %v3374, %v3374
  %v3673 = vmul.f32 %v3379, %v3379
  %v3674 = vmul.f32 %v3382, %v3382
  %v3675 = vmul.f32 %v3387, %v3387
  %v3676 = vmul.f32 %v3390, %v3390
  %v3677 = vmul.f32 %v3395, %v3395
  %v3678 = vmul.f32 %v3398, %v3398
  %v3679 = vmul.f32 %v3403, %v3403
  %v3680 = vmul.f32 %v3406, %v3406
  %v3681 = vmul.f32 %v3411, %v3411
  %v3682 = vmul.f32 %v3414, %v3414
  %v3683 = vmul.f32 %v3419, %v3419
  %v3684 = vmul.f32 %v3422, %v3422
  %v3685 = vmul.f32 %v3427, %v3427
  %v3686 = vmul.f32 %v3430, %v3430
  %v3687 = vmul.f32 %v3435, %v3435
  %v3688 = vmul.f32 %v3438, %v3438
  %v3689 = vmul.f32 %v3443, %v3443
  %v3690 = vmul.f32 %v3446, %v3446
  %v3691 = vmul.f32 %v3451, %v3451
  %v3692 = vmul.f32 %v3454, %v3454
  %v3693 = vmul.f32 %v3459, %v3459
  %v3694 = vmul.f32 %v3462, %v3462
  %v3695 = vmul.f32 %v3467, %v3467
  %v3696 = vmul.f32 %v3470, %v3470
  %v3697 = vmul.f32 %v3475, %v3475
  %v3698 = vmul.f32 %v3478, %v3478
  %v3699 = vmul.f32 %v3483, %v3483
  %v3700 = vmul.f32 %v3486, %v3486
  %v3701 = vmul.f32 %v3491, %v3491
  %v3702 = vmul.f32 %v3494, %v3494
  %v3703 = vmul.f32 %v3499, %v3499
  %v3704 = vmul.f32 %v3502, %v3502
  %v3705 = vsel %vm3507, %v3641, 0.0
  %v3706 = vsel %vm3507, %v3642, 0.0
  %v3707 = vadd.f32 %v3705, %v3706
  %v3708 = vsel %vm3507, %v3643, 0.0
  %v3709 = vadd.f32 %v3707, %v3708
  %v3710 = vsel %vm3507, %v3644, 0.0
  %v3711 = vadd.f32 %v3709, %v3710
  %v3712 = vsel %vm3507, %v3645, 0.0
  %v3713 = vadd.f32 %v3711, %v3712
  %v3714 = vsel %vm3507, %v3646, 0.0
  %v3715 = vadd.f32 %v3713, %v3714
  %v3716 = vsel %vm3507, %v3647, 0.0
  %v3717 = vadd.f32 %v3715, %v3716
  %v3718 = vsel %vm3507, %v3648, 0.0
  %v3719 = vadd.f32 %v3717, %v3718
  %v3720 = vsel %vm3507, %v3649, 0.0
  %v3721 = vadd.f32 %v3719, %v3720
  %v3722 = vsel %vm3507, %v3650, 0.0
  %v3723 = vadd.f32 %v3721, %v3722
  %v3724 = vsel %vm3507, %v3651, 0.0
  %v3725 = vadd.f32 %v3723, %v3724
  %v3726 = vsel %vm3507, %v3652, 0.0
  %v3727 = vadd.f32 %v3725, %v3726
  %v3728 = vsel %vm3507, %v3653, 0.0
  %v3729 = vadd.f32 %v3727, %v3728
  %v3730 = vsel %vm3507, %v3654, 0.0
  %v3731 = vadd.f32 %v3729, %v3730
  %v3732 = vsel %vm3507, %v3655, 0.0
  %v3733 = vadd.f32 %v3731, %v3732
  %v3734 = vsel %vm3507, %v3656, 0.0
  %v3735 = vadd.f32 %v3733, %v3734
  %v3736 = vsel %vm3507, %v3657, 0.0
  %v3737 = vadd.f32 %v3735, %v3736
  %v3738 = vsel %vm3507, %v3658, 0.0
  %v3739 = vadd.f32 %v3737, %v3738
  %v3740 = vsel %vm3507, %v3659, 0.0
  %v3741 = vadd.f32 %v3739, %v3740
  %v3742 = vsel %vm3507, %v3660, 0.0
  %v3743 = vadd.f32 %v3741, %v3742
  %v3744 = vsel %vm3507, %v3661, 0.0
  %v3745 = vadd.f32 %v3743, %v3744
  %v3746 = vsel %vm3507, %v3662, 0.0
  %v3747 = vadd.f32 %v3745, %v3746
  %v3748 = vsel %vm3507, %v3663, 0.0
  %v3749 = vadd.f32 %v3747, %v3748
  %v3750 = vsel %vm3507, %v3664, 0.0
  %v3751 = vadd.f32 %v3749, %v3750
  %v3752 = vsel %vm3507, %v3665, 0.0
  %v3753 = vadd.f32 %v3751, %v3752
  %v3754 = vsel %vm3507, %v3666, 0.0
  %v3755 = vadd.f32 %v3753, %v3754
  %v3756 = vsel %vm3507, %v3667, 0.0
  %v3757 = vadd.f32 %v3755, %v3756
  %v3758 = vsel %vm3507, %v3668, 0.0
  %v3759 = vadd.f32 %v3757, %v3758
  %v3760 = vsel %vm3507, %v3669, 0.0
  %v3761 = vadd.f32 %v3759, %v3760
  %v3762 = vsel %vm3507, %v3670, 0.0
  %v3763 = vadd.f32 %v3761, %v3762
  %v3764 = vsel %vm3507, %v3671, 0.0
  %v3765 = vadd.f32 %v3763, %v3764
  %v3766 = vsel %vm3507, %v3672, 0.0
  %v3767 = vadd.f32 %v3765, %v3766
  %v3768 = vsel %vm3507, %v3673, 0.0
  %v3769 = vadd.f32 %v3767, %v3768
  %v3770 = vsel %vm3507, %v3674, 0.0
  %v3771 = vadd.f32 %v3769, %v3770
  %v3772 = vsel %vm3507, %v3675, 0.0
  %v3773 = vadd.f32 %v3771, %v3772
  %v3774 = vsel %vm3507, %v3676, 0.0
  %v3775 = vadd.f32 %v3773, %v3774
  %v3776 = vsel %vm3507, %v3677, 0.0
  %v3777 = vadd.f32 %v3775, %v3776
  %v3778 = vsel %vm3507, %v3678, 0.0
  %v3779 = vadd.f32 %v3777, %v3778
  %v3780 = vsel %vm3507, %v3679, 0.0
  %v3781 = vadd.f32 %v3779, %v3780
  %v3782 = vsel %vm3507, %v3680, 0.0
  %v3783 = vadd.f32 %v3781, %v3782
  %v3784 = vsel %vm3507, %v3681, 0.0
  %v3785 = vadd.f32 %v3783, %v3784
  %v3786 = vsel %vm3507, %v3682, 0.0
  %v3787 = vadd.f32 %v3785, %v3786
  %v3788 = vsel %vm3507, %v3683, 0.0
  %v3789 = vadd.f32 %v3787, %v3788
  %v3790 = vsel %vm3507, %v3684, 0.0
  %v3791 = vadd.f32 %v3789, %v3790
  %v3792 = vsel %vm3507, %v3685, 0.0
  %v3793 = vadd.f32 %v3791, %v3792
  %v3794 = vsel %vm3507, %v3686, 0.0
  %v3795 = vadd.f32 %v3793, %v3794
  %v3796 = vsel %vm3507, %v3687, 0.0
  %v3797 = vadd.f32 %v3795, %v3796
  %v3798 = vsel %vm3507, %v3688, 0.0
  %v3799 = vadd.f32 %v3797, %v3798
  %v3800 = vsel %vm3507, %v3689, 0.0
  %v3801 = vadd.f32 %v3799, %v3800
  %v3802 = vsel %vm3507, %v3690, 0.0
  %v3803 = vadd.f32 %v3801, %v3802
  %v3804 = vsel %vm3507, %v3691, 0.0
  %v3805 = vadd.f32 %v3803, %v3804
  %v3806 = vsel %vm3507, %v3692, 0.0
  %v3807 = vadd.f32 %v3805, %v3806
  %v3808 = vsel %vm3507, %v3693, 0.0
  %v3809 = vadd.f32 %v3807, %v3808
  %v3810 = vsel %vm3507, %v3694, 0.0
  %v3811 = vadd.f32 %v3809, %v3810
  %v3812 = vsel %vm3507, %v3695, 0.0
  %v3813 = vadd.f32 %v3811, %v3812
  %v3814 = vsel %vm3507, %v3696, 0.0
  %v3815 = vadd.f32 %v3813, %v3814
  %v3816 = vsel %vm3507, %v3697, 0.0
  %v3817 = vadd.f32 %v3815, %v3816
  %v3818 = vsel %vm3507, %v3698, 0.0
  %v3819 = vadd.f32 %v3817, %v3818
  %v3820 = vsel %vm3507, %v3699, 0.0
  %v3821 = vadd.f32 %v3819, %v3820
  %v3822 = vsel %vm3507, %v3700, 0.0
  %v3823 = vadd.f32 %v3821, %v3822
  %v3824 = vsel %vm3507, %v3701, 0.0
  %v3825 = vadd.f32 %v3823, %v3824
  %v3826 = vsel %vm3507, %v3702, 0.0
  %v3827 = vadd.f32 %v3825, %v3826
  %v3828 = vsel %vm3507, %v3703, 0.0
  %v3829 = vadd.f32 %v3827, %v3828
  %v3830 = vsel %vm3507, %v3704, 0.0
  %v3831 = vadd.f32 %v3829, %v3830
  %v3832 = vrot.slane %v3831, 4
  %v3833 = vadd.f32 %v3831, %v3832
  %v3834 = vrot.slane %v3833, 2
  %v3835 = vadd.f32 %v3833, %v3834
  %v3836 = vrot.slane %v3835, 1
  %v3837 = vadd.f32 %v3835, %v3836
  %v3838 = vmul.f32 %v3640, 0.001953125
  %v3839 = vmul.f32 %v3837, 0.001953125
  %v3840 = vmul.f32 %v3838, %v3838
  %v3841 = vsub.f32 %v3839, %v3840
  %v3842 = vmax.f32 %v3841, 0.0
  %v3843 = vsub.f32 %v3251, %v3838
  %v3844 = vsub.f32 %v3254, %v3838
  %v3845 = vsub.f32 %v3259, %v3838
  %v3846 = vsub.f32 %v3262, %v3838
  %v3847 = vsub.f32 %v3267, %v3838
  %v3848 = vsub.f32 %v3270, %v3838
  %v3849 = vsub.f32 %v3275, %v3838
  %v3850 = vsub.f32 %v3278, %v3838
  %v3851 = vsub.f32 %v3283, %v3838
  %v3852 = vsub.f32 %v3286, %v3838
  %v3853 = vsub.f32 %v3291, %v3838
  %v3854 = vsub.f32 %v3294, %v3838
  %v3855 = vsub.f32 %v3299, %v3838
  %v3856 = vsub.f32 %v3302, %v3838
  %v3857 = vsub.f32 %v3307, %v3838
  %v3858 = vsub.f32 %v3310, %v3838
  %v3859 = vsub.f32 %v3315, %v3838
  %v3860 = vsub.f32 %v3318, %v3838
  %v3861 = vsub.f32 %v3323, %v3838
  %v3862 = vsub.f32 %v3326, %v3838
  %v3863 = vsub.f32 %v3331, %v3838
  %v3864 = vsub.f32 %v3334, %v3838
  %v3865 = vsub.f32 %v3339, %v3838
  %v3866 = vsub.f32 %v3342, %v3838
  %v3867 = vsub.f32 %v3347, %v3838
  %v3868 = vsub.f32 %v3350, %v3838
  %v3869 = vsub.f32 %v3355, %v3838
  %v3870 = vsub.f32 %v3358, %v3838
  %v3871 = vsub.f32 %v3363, %v3838
  %v3872 = vsub.f32 %v3366, %v3838
  %v3873 = vsub.f32 %v3371, %v3838
  %v3874 = vsub.f32 %v3374, %v3838
  %v3875 = vsub.f32 %v3379, %v3838
  %v3876 = vsub.f32 %v3382, %v3838
  %v3877 = vsub.f32 %v3387, %v3838
  %v3878 = vsub.f32 %v3390, %v3838
  %v3879 = vsub.f32 %v3395, %v3838
  %v3880 = vsub.f32 %v3398, %v3838
  %v3881 = vsub.f32 %v3403, %v3838
  %v3882 = vsub.f32 %v3406, %v3838
  %v3883 = vsub.f32 %v3411, %v3838
  %v3884 = vsub.f32 %v3414, %v3838
  %v3885 = vsub.f32 %v3419, %v3838
  %v3886 = vsub.f32 %v3422, %v3838
  %v3887 = vsub.f32 %v3427, %v3838
  %v3888 = vsub.f32 %v3430, %v3838
  %v3889 = vsub.f32 %v3435, %v3838
  %v3890 = vsub.f32 %v3438, %v3838
  %v3891 = vsub.f32 %v3443, %v3838
  %v3892 = vsub.f32 %v3446, %v3838
  %v3893 = vsub.f32 %v3451, %v3838
  %v3894 = vsub.f32 %v3454, %v3838
  %v3895 = vsub.f32 %v3459, %v3838
  %v3896 = vsub.f32 %v3462, %v3838
  %v3897 = vsub.f32 %v3467, %v3838
  %v3898 = vsub.f32 %v3470, %v3838
  %v3899 = vsub.f32 %v3475, %v3838
  %v3900 = vsub.f32 %v3478, %v3838
  %v3901 = vsub.f32 %v3483, %v3838
  %v3902 = vsub.f32 %v3486, %v3838
  %v3903 = vsub.f32 %v3491, %v3838
  %v3904 = vsub.f32 %v3494, %v3838
  %v3905 = vsub.f32 %v3499, %v3838
  %v3906 = vsub.f32 %v3502, %v3838
  %v3907 = vadd.f32 %v3842, 0.001
  %v3908 = vrsqrt.pop %v3907
  %v3909 = vmul.f32 %v3843, %v3908
  %v3910 = vmul.f32 %v3844, %v3908
  %v3911 = vmul.f32 %v3845, %v3908
  %v3912 = vmul.f32 %v3846, %v3908
  %v3913 = vmul.f32 %v3847, %v3908
  %v3914 = vmul.f32 %v3848, %v3908
  %v3915 = vmul.f32 %v3849, %v3908
  %v3916 = vmul.f32 %v3850, %v3908
  %v3917 = vmul.f32 %v3851, %v3908
  %v3918 = vmul.f32 %v3852, %v3908
  %v3919 = vmul.f32 %v3853, %v3908
  %v3920 = vmul.f32 %v3854, %v3908
  %v3921 = vmul.f32 %v3855, %v3908
  %v3922 = vmul.f32 %v3856, %v3908
  %v3923 = vmul.f32 %v3857, %v3908
  %v3924 = vmul.f32 %v3858, %v3908
  %v3925 = vmul.f32 %v3859, %v3908
  %v3926 = vmul.f32 %v3860, %v3908
  %v3927 = vmul.f32 %v3861, %v3908
  %v3928 = vmul.f32 %v3862, %v3908
  %v3929 = vmul.f32 %v3863, %v3908
  %v3930 = vmul.f32 %v3864, %v3908
  %v3931 = vmul.f32 %v3865, %v3908
  %v3932 = vmul.f32 %v3866, %v3908
  %v3933 = vmul.f32 %v3867, %v3908
  %v3934 = vmul.f32 %v3868, %v3908
  %v3935 = vmul.f32 %v3869, %v3908
  %v3936 = vmul.f32 %v3870, %v3908
  %v3937 = vmul.f32 %v3871, %v3908
  %v3938 = vmul.f32 %v3872, %v3908
  %v3939 = vmul.f32 %v3873, %v3908
  %v3940 = vmul.f32 %v3874, %v3908
  %v3941 = vmul.f32 %v3875, %v3908
  %v3942 = vmul.f32 %v3876, %v3908
  %v3943 = vmul.f32 %v3877, %v3908
  %v3944 = vmul.f32 %v3878, %v3908
  %v3945 = vmul.f32 %v3879, %v3908
  %v3946 = vmul.f32 %v3880, %v3908
  %v3947 = vmul.f32 %v3881, %v3908
  %v3948 = vmul.f32 %v3882, %v3908
  %v3949 = vmul.f32 %v3883, %v3908
  %v3950 = vmul.f32 %v3884, %v3908
  %v3951 = vmul.f32 %v3885, %v3908
  %v3952 = vmul.f32 %v3886, %v3908
  %v3953 = vmul.f32 %v3887, %v3908
  %v3954 = vmul.f32 %v3888, %v3908
  %v3955 = vmul.f32 %v3889, %v3908
  %v3956 = vmul.f32 %v3890, %v3908
  %v3957 = vmul.f32 %v3891, %v3908
  %v3958 = vmul.f32 %v3892, %v3908
  %v3959 = vmul.f32 %v3893, %v3908
  %v3960 = vmul.f32 %v3894, %v3908
  %v3961 = vmul.f32 %v3895, %v3908
  %v3962 = vmul.f32 %v3896, %v3908
  %v3963 = vmul.f32 %v3897, %v3908
  %v3964 = vmul.f32 %v3898, %v3908
  %v3965 = vmul.f32 %v3899, %v3908
  %v3966 = vmul.f32 %v3900, %v3908
  %v3967 = vmul.f32 %v3901, %v3908
  %v3968 = vmul.f32 %v3902, %v3908
  %v3969 = vmul.f32 %v3903, %v3908
  %v3970 = vmul.f32 %v3904, %v3908
  %v3971 = vmul.f32 %v3905, %v3908
  %v3972 = vmul.f32 %v3906, %v3908
  %v3974 = vlaneseq
  %v3975 = vshrl.u32 %v3974, 7
  %v3976 = vsub.s32 0, %v3975
  %v3977 = vrot.slane %v3505, %v3976
  %v3979 = vmul.f32 %v3909, %v3977
  %v3980 = vmul.f32 %v3910, %v3977
  %v3981 = vmul.f32 %v3911, %v3977
  %v3982 = vmul.f32 %v3912, %v3977
  %v3983 = vmul.f32 %v3913, %v3977
  %v3984 = vmul.f32 %v3914, %v3977
  %v3985 = vmul.f32 %v3915, %v3977
  %v3986 = vmul.f32 %v3916, %v3977
  %v3987 = vmul.f32 %v3917, %v3977
  %v3988 = vmul.f32 %v3918, %v3977
  %v3989 = vmul.f32 %v3919, %v3977
  %v3990 = vmul.f32 %v3920, %v3977
  %v3991 = vmul.f32 %v3921, %v3977
  %v3992 = vmul.f32 %v3922, %v3977
  %v3993 = vmul.f32 %v3923, %v3977
  %v3994 = vmul.f32 %v3924, %v3977
  %v3995 = vmul.f32 %v3925, %v3977
  %v3996 = vmul.f32 %v3926, %v3977
  %v3997 = vmul.f32 %v3927, %v3977
  %v3998 = vmul.f32 %v3928, %v3977
  %v3999 = vmul.f32 %v3929, %v3977
  %v4000 = vmul.f32 %v3930, %v3977
  %v4001 = vmul.f32 %v3931, %v3977
  %v4002 = vmul.f32 %v3932, %v3977
  %v4003 = vmul.f32 %v3933, %v3977
  %v4004 = vmul.f32 %v3934, %v3977
  %v4005 = vmul.f32 %v3935, %v3977
  %v4006 = vmul.f32 %v3936, %v3977
  %v4007 = vmul.f32 %v3937, %v3977
  %v4008 = vmul.f32 %v3938, %v3977
  %v4009 = vmul.f32 %v3939, %v3977
  %v4010 = vmul.f32 %v3940, %v3977
  %v4011 = vmul.f32 %v3941, %v3977
  %v4012 = vmul.f32 %v3942, %v3977
  %v4013 = vmul.f32 %v3943, %v3977
  %v4014 = vmul.f32 %v3944, %v3977
  %v4015 = vmul.f32 %v3945, %v3977
  %v4016 = vmul.f32 %v3946, %v3977
  %v4017 = vmul.f32 %v3947, %v3977
  %v4018 = vmul.f32 %v3948, %v3977
  %v4019 = vmul.f32 %v3949, %v3977
  %v4020 = vmul.f32 %v3950, %v3977
  %v4021 = vmul.f32 %v3951, %v3977
  %v4022 = vmul.f32 %v3952, %v3977
  %v4023 = vmul.f32 %v3953, %v3977
  %v4024 = vmul.f32 %v3954, %v3977
  %v4025 = vmul.f32 %v3955, %v3977
  %v4026 = vmul.f32 %v3956, %v3977
  %v4027 = vmul.f32 %v3957, %v3977
  %v4028 = vmul.f32 %v3958, %v3977
  %v4029 = vmul.f32 %v3959, %v3977
  %v4030 = vmul.f32 %v3960, %v3977
  %v4031 = vmul.f32 %v3961, %v3977
  %v4032 = vmul.f32 %v3962, %v3977
  %v4033 = vmul.f32 %v3963, %v3977
  %v4034 = vmul.f32 %v3964, %v3977
  %v4035 = vmul.f32 %v3965, %v3977
  %v4036 = vmul.f32 %v3966, %v3977
  %v4037 = vmul.f32 %v3967, %v3977
  %v4038 = vmul.f32 %v3968, %v3977
  %v4039 = vmul.f32 %v3969, %v3977
  %v4040 = vmul.f32 %v3970, %v3977
  %v4041 = vmul.f32 %v3971, %v3977
  %v4042 = vmul.f32 %v3972, %v3977
  %v4044 = vlaneseq
  %v4045 = vshrl.u32 %v4044, 7
  %v4046 = vsub.s32 0, %v4045
  %v4047 = vrot.slane %v3506, %v4046
  %v4049 = vadd.f32 %v3979, %v4047
  %v4050 = vadd.f32 %v3980, %v4047
  %v4051 = vadd.f32 %v3981, %v4047
  %v4052 = vadd.f32 %v3982, %v4047
  %v4053 = vadd.f32 %v3983, %v4047
  %v4054 = vadd.f32 %v3984, %v4047
  %v4055 = vadd.f32 %v3985, %v4047
  %v4056 = vadd.f32 %v3986, %v4047
  %v4057 = vadd.f32 %v3987, %v4047
  %v4058 = vadd.f32 %v3988, %v4047
  %v4059 = vadd.f32 %v3989, %v4047
  %v4060 = vadd.f32 %v3990, %v4047
  %v4061 = vadd.f32 %v3991, %v4047
  %v4062 = vadd.f32 %v3992, %v4047
  %v4063 = vadd.f32 %v3993, %v4047
  %v4064 = vadd.f32 %v3994, %v4047
  %v4065 = vadd.f32 %v3995, %v4047
  %v4066 = vadd.f32 %v3996, %v4047
  %v4067 = vadd.f32 %v3997, %v4047
  %v4068 = vadd.f32 %v3998, %v4047
  %v4069 = vadd.f32 %v3999, %v4047
  %v4070 = vadd.f32 %v4000, %v4047
  %v4071 = vadd.f32 %v4001, %v4047
  %v4072 = vadd.f32 %v4002, %v4047
  %v4073 = vadd.f32 %v4003, %v4047
  %v4074 = vadd.f32 %v4004, %v4047
  %v4075 = vadd.f32 %v4005, %v4047
  %v4076 = vadd.f32 %v4006, %v4047
  %v4077 = vadd.f32 %v4007, %v4047
  %v4078 = vadd.f32 %v4008, %v4047
  %v4079 = vadd.f32 %v4009, %v4047
  %v4080 = vadd.f32 %v4010, %v4047
  %v4081 = vadd.f32 %v4011, %v4047
  %v4082 = vadd.f32 %v4012, %v4047
  %v4083 = vadd.f32 %v4013, %v4047
  %v4084 = vadd.f32 %v4014, %v4047
  %v4085 = vadd.f32 %v4015, %v4047
  %v4086 = vadd.f32 %v4016, %v4047
  %v4087 = vadd.f32 %v4017, %v4047
  %v4088 = vadd.f32 %v4018, %v4047
  %v4089 = vadd.f32 %v4019, %v4047
  %v4090 = vadd.f32 %v4020, %v4047
  %v4091 = vadd.f32 %v4021, %v4047
  %v4092 = vadd.f32 %v4022, %v4047
  %v4093 = vadd.f32 %v4023, %v4047
  %v4094 = vadd.f32 %v4024, %v4047
  %v4095 = vadd.f32 %v4025, %v4047
  %v4096 = vadd.f32 %v4026, %v4047
  %v4097 = vadd.f32 %v4027, %v4047
  %v4098 = vadd.f32 %v4028, %v4047
  %v4099 = vadd.f32 %v4029, %v4047
  %v4100 = vadd.f32 %v4030, %v4047
  %v4101 = vadd.f32 %v4031, %v4047
  %v4102 = vadd.f32 %v4032, %v4047
  %v4103 = vadd.f32 %v4033, %v4047
  %v4104 = vadd.f32 %v4034, %v4047
  %v4105 = vadd.f32 %v4035, %v4047
  %v4106 = vadd.f32 %v4036, %v4047
  %v4107 = vadd.f32 %v4037, %v4047
  %v4108 = vadd.f32 %v4038, %v4047
  %v4109 = vadd.f32 %v4039, %v4047
  %v4110 = vadd.f32 %v4040, %v4047
  %v4111 = vadd.f32 %v4041, %v4047
  %v4112 = vadd.f32 %v4042, %v4047
  %v4113 = vxor.u32 %v4049, 2147483648
  %v4114 = vxor.u32 %v4050, 2147483648
  %v4115 = vxor.u32 %v4051, 2147483648
  %v4116 = vxor.u32 %v4052, 2147483648
  %v4117 = vxor.u32 %v4053, 2147483648
  %v4118 = vxor.u32 %v4054, 2147483648
  %v4119 = vxor.u32 %v4055, 2147483648
  %v4120 = vxor.u32 %v4056, 2147483648
  %v4121 = vxor.u32 %v4057, 2147483648
  %v4122 = vxor.u32 %v4058, 2147483648
  %v4123 = vxor.u32 %v4059, 2147483648
  %v4124 = vxor.u32 %v4060, 2147483648
  %v4125 = vxor.u32 %v4061, 2147483648
  %v4126 = vxor.u32 %v4062, 2147483648
  %v4127 = vxor.u32 %v4063, 2147483648
  %v4128 = vxor.u32 %v4064, 2147483648
  %v4129 = vxor.u32 %v4065, 2147483648
  %v4130 = vxor.u32 %v4066, 2147483648
  %v4131 = vxor.u32 %v4067, 2147483648
  %v4132 = vxor.u32 %v4068, 2147483648
  %v4133 = vxor.u32 %v4069, 2147483648
  %v4134 = vxor.u32 %v4070, 2147483648
  %v4135 = vxor.u32 %v4071, 2147483648
  %v4136 = vxor.u32 %v4072, 2147483648
  %v4137 = vxor.u32 %v4073, 2147483648
  %v4138 = vxor.u32 %v4074, 2147483648
  %v4139 = vxor.u32 %v4075, 2147483648
  %v4140 = vxor.u32 %v4076, 2147483648
  %v4141 = vxor.u32 %v4077, 2147483648
  %v4142 = vxor.u32 %v4078, 2147483648
  %v4143 = vxor.u32 %v4079, 2147483648
  %v4144 = vxor.u32 %v4080, 2147483648
  %v4145 = vxor.u32 %v4081, 2147483648
  %v4146 = vxor.u32 %v4082, 2147483648
  %v4147 = vxor.u32 %v4083, 2147483648
  %v4148 = vxor.u32 %v4084, 2147483648
  %v4149 = vxor.u32 %v4085, 2147483648
  %v4150 = vxor.u32 %v4086, 2147483648
  %v4151 = vxor.u32 %v4087, 2147483648
  %v4152 = vxor.u32 %v4088, 2147483648
  %v4153 = vxor.u32 %v4089, 2147483648
  %v4154 = vxor.u32 %v4090, 2147483648
  %v4155 = vxor.u32 %v4091, 2147483648
  %v4156 = vxor.u32 %v4092, 2147483648
  %v4157 = vxor.u32 %v4093, 2147483648
  %v4158 = vxor.u32 %v4094, 2147483648
  %v4159 = vxor.u32 %v4095, 2147483648
  %v4160 = vxor.u32 %v4096, 2147483648
  %v4161 = vxor.u32 %v4097, 2147483648
  %v4162 = vxor.u32 %v4098, 2147483648
  %v4163 = vxor.u32 %v4099, 2147483648
  %v4164 = vxor.u32 %v4100, 2147483648
  %v4165 = vxor.u32 %v4101, 2147483648
  %v4166 = vxor.u32 %v4102, 2147483648
  %v4167 = vxor.u32 %v4103, 2147483648
  %v4168 = vxor.u32 %v4104, 2147483648
  %v4169 = vxor.u32 %v4105, 2147483648
  %v4170 = vxor.u32 %v4106, 2147483648
  %v4171 = vxor.u32 %v4107, 2147483648
  %v4172 = vxor.u32 %v4108, 2147483648
  %v4173 = vxor.u32 %v4109, 2147483648
  %v4174 = vxor.u32 %v4110, 2147483648
  %v4175 = vxor.u32 %v4111, 2147483648
  %v4176 = vxor.u32 %v4112, 2147483648
  %v4177 = vmul.f32 %v4113, 1.442695
  %v4178 = vpow.pop %v4177
  %v4179 = vmul.f32 %v4114, 1.442695
  %v4180 = vpow.pop %v4179
  %v4181 = vmul.f32 %v4115, 1.442695
  %v4182 = vpow.pop %v4181
  %v4183 = vmul.f32 %v4116, 1.442695
  %v4184 = vpow.pop %v4183
  %v4185 = vmul.f32 %v4117, 1.442695
  %v4186 = vpow.pop %v4185
  %v4187 = vmul.f32 %v4118, 1.442695
  %v4188 = vpow.pop %v4187
  %v4189 = vmul.f32 %v4119, 1.442695
  %v4190 = vpow.pop %v4189
  %v4191 = vmul.f32 %v4120, 1.442695
  %v4192 = vpow.pop %v4191
  %v4193 = vmul.f32 %v4121, 1.442695
  %v4194 = vpow.pop %v4193
  %v4195 = vmul.f32 %v4122, 1.442695
  %v4196 = vpow.pop %v4195
  %v4197 = vmul.f32 %v4123, 1.442695
  %v4198 = vpow.pop %v4197
  %v4199 = vmul.f32 %v4124, 1.442695
  %v4200 = vpow.pop %v4199
  %v4201 = vmul.f32 %v4125, 1.442695
  %v4202 = vpow.pop %v4201
  %v4203 = vmul.f32 %v4126, 1.442695
  %v4204 = vpow.pop %v4203
  %v4205 = vmul.f32 %v4127, 1.442695
  %v4206 = vpow.pop %v4205
  %v4207 = vmul.f32 %v4128, 1.442695
  %v4208 = vpow.pop %v4207
  %v4209 = vmul.f32 %v4129, 1.442695
  %v4210 = vpow.pop %v4209
  %v4211 = vmul.f32 %v4130, 1.442695
  %v4212 = vpow.pop %v4211
  %v4213 = vmul.f32 %v4131, 1.442695
  %v4214 = vpow.pop %v4213
  %v4215 = vmul.f32 %v4132, 1.442695
  %v4216 = vpow.pop %v4215
  %v4217 = vmul.f32 %v4133, 1.442695
  %v4218 = vpow.pop %v4217
  %v4219 = vmul.f32 %v4134, 1.442695
  %v4220 = vpow.pop %v4219
  %v4221 = vmul.f32 %v4135, 1.442695
  %v4222 = vpow.pop %v4221
  %v4223 = vmul.f32 %v4136, 1.442695
  %v4224 = vpow.pop %v4223
  %v4225 = vmul.f32 %v4137, 1.442695
  %v4226 = vpow.pop %v4225
  %v4227 = vmul.f32 %v4138, 1.442695
  %v4228 = vpow.pop %v4227
  %v4229 = vmul.f32 %v4139, 1.442695
  %v4230 = vpow.pop %v4229
  %v4231 = vmul.f32 %v4140, 1.442695
  %v4232 = vpow.pop %v4231
  %v4233 = vmul.f32 %v4141, 1.442695
  %v4234 = vpow.pop %v4233
  %v4235 = vmul.f32 %v4142, 1.442695
  %v4236 = vpow.pop %v4235
  %v4237 = vmul.f32 %v4143, 1.442695
  %v4238 = vpow.pop %v4237
  %v4239 = vmul.f32 %v4144, 1.442695
  %v4240 = vpow.pop %v4239
  %v4241 = vmul.f32 %v4145, 1.442695
  %v4242 = vpow.pop %v4241
  %v4243 = vmul.f32 %v4146, 1.442695
  %v4244 = vpow.pop %v4243
  %v4245 = vmul.f32 %v4147, 1.442695
  %v4246 = vpow.pop %v4245
  %v4247 = vmul.f32 %v4148, 1.442695
  %v4248 = vpow.pop %v4247
  %v4249 = vmul.f32 %v4149, 1.442695
  %v4250 = vpow.pop %v4249
  %v4251 = vmul.f32 %v4150, 1.442695
  %v4252 = vpow.pop %v4251
  %v4253 = vmul.f32 %v4151, 1.442695
  %v4254 = vpow.pop %v4253
  %v4255 = vmul.f32 %v4152, 1.442695
  %v4256 = vpow.pop %v4255
  %v4257 = vmul.f32 %v4153, 1.442695
  %v4258 = vpow.pop %v4257
  %v4259 = vmul.f32 %v4154, 1.442695
  %v4260 = vpow.pop %v4259
  %v4261 = vmul.f32 %v4155, 1.442695
  %v4262 = vpow.pop %v4261
  %v4263 = vmul.f32 %v4156, 1.442695
  %v4264 = vpow.pop %v4263
  %v4265 = vmul.f32 %v4157, 1.442695
  %v4266 = vpow.pop %v4265
  %v4267 = vmul.f32 %v4158, 1.442695
  %v4268 = vpow.pop %v4267
  %v4269 = vmul.f32 %v4159, 1.442695
  %v4270 = vpow.pop %v4269
  %v4271 = vmul.f32 %v4160, 1.442695
  %v4272 = vpow.pop %v4271
  %v4273 = vmul.f32 %v4161, 1.442695
  %v4274 = vpow.pop %v4273
  %v4275 = vmul.f32 %v4162, 1.442695
  %v4276 = vpow.pop %v4275
  %v4277 = vmul.f32 %v4163, 1.442695
  %v4278 = vpow.pop %v4277
  %v4279 = vmul.f32 %v4164, 1.442695
  %v4280 = vpow.pop %v4279
  %v4281 = vmul.f32 %v4165, 1.442695
  %v4282 = vpow.pop %v4281
  %v4283 = vmul.f32 %v4166, 1.442695
  %v4284 = vpow.pop %v4283
  %v4285 = vmul.f32 %v4167, 1.442695
  %v4286 = vpow.pop %v4285
  %v4287 = vmul.f32 %v4168, 1.442695
  %v4288 = vpow.pop %v4287
  %v4289 = vmul.f32 %v4169, 1.442695
  %v4290 = vpow.pop %v4289
  %v4291 = vmul.f32 %v4170, 1.442695
  %v4292 = vpow.pop %v4291
  %v4293 = vmul.f32 %v4171, 1.442695
  %v4294 = vpow.pop %v4293
  %v4295 = vmul.f32 %v4172, 1.442695
  %v4296 = vpow.pop %v4295
  %v4297 = vmul.f32 %v4173, 1.442695
  %v4298 = vpow.pop %v4297
  %v4299 = vmul.f32 %v4174, 1.442695
  %v4300 = vpow.pop %v4299
  %v4301 = vmul.f32 %v4175, 1.442695
  %v4302 = vpow.pop %v4301
  %v4303 = vmul.f32 %v4176, 1.442695
  %v4304 = vpow.pop %v4303
  %v4305 = vadd.f32 %v4178, 1.0
  %v4306 = vadd.f32 %v4180, 1.0
  %v4307 = vadd.f32 %v4182, 1.0
  %v4308 = vadd.f32 %v4184, 1.0
  %v4309 = vadd.f32 %v4186, 1.0
  %v4310 = vadd.f32 %v4188, 1.0
  %v4311 = vadd.f32 %v4190, 1.0
  %v4312 = vadd.f32 %v4192, 1.0
  %v4313 = vadd.f32 %v4194, 1.0
  %v4314 = vadd.f32 %v4196, 1.0
  %v4315 = vadd.f32 %v4198, 1.0
  %v4316 = vadd.f32 %v4200, 1.0
  %v4317 = vadd.f32 %v4202, 1.0
  %v4318 = vadd.f32 %v4204, 1.0
  %v4319 = vadd.f32 %v4206, 1.0
  %v4320 = vadd.f32 %v4208, 1.0
  %v4321 = vadd.f32 %v4210, 1.0
  %v4322 = vadd.f32 %v4212, 1.0
  %v4323 = vadd.f32 %v4214, 1.0
  %v4324 = vadd.f32 %v4216, 1.0
  %v4325 = vadd.f32 %v4218, 1.0
  %v4326 = vadd.f32 %v4220, 1.0
  %v4327 = vadd.f32 %v4222, 1.0
  %v4328 = vadd.f32 %v4224, 1.0
  %v4329 = vadd.f32 %v4226, 1.0
  %v4330 = vadd.f32 %v4228, 1.0
  %v4331 = vadd.f32 %v4230, 1.0
  %v4332 = vadd.f32 %v4232, 1.0
  %v4333 = vadd.f32 %v4234, 1.0
  %v4334 = vadd.f32 %v4236, 1.0
  %v4335 = vadd.f32 %v4238, 1.0
  %v4336 = vadd.f32 %v4240, 1.0
  %v4337 = vadd.f32 %v4242, 1.0
  %v4338 = vadd.f32 %v4244, 1.0
  %v4339 = vadd.f32 %v4246, 1.0
  %v4340 = vadd.f32 %v4248, 1.0
  %v4341 = vadd.f32 %v4250, 1.0
  %v4342 = vadd.f32 %v4252, 1.0
  %v4343 = vadd.f32 %v4254, 1.0
  %v4344 = vadd.f32 %v4256, 1.0
  %v4345 = vadd.f32 %v4258, 1.0
  %v4346 = vadd.f32 %v4260, 1.0
  %v4347 = vadd.f32 %v4262, 1.0
  %v4348 = vadd.f32 %v4264, 1.0
  %v4349 = vadd.f32 %v4266, 1.0
  %v4350 = vadd.f32 %v4268, 1.0
  %v4351 = vadd.f32 %v4270, 1.0
  %v4352 = vadd.f32 %v4272, 1.0
  %v4353 = vadd.f32 %v4274, 1.0
  %v4354 = vadd.f32 %v4276, 1.0
  %v4355 = vadd.f32 %v4278, 1.0
  %v4356 = vadd.f32 %v4280, 1.0
  %v4357 = vadd.f32 %v4282, 1.0
  %v4358 = vadd.f32 %v4284, 1.0
  %v4359 = vadd.f32 %v4286, 1.0
  %v4360 = vadd.f32 %v4288, 1.0
  %v4361 = vadd.f32 %v4290, 1.0
  %v4362 = vadd.f32 %v4292, 1.0
  %v4363 = vadd.f32 %v4294, 1.0
  %v4364 = vadd.f32 %v4296, 1.0
  %v4365 = vadd.f32 %v4298, 1.0
  %v4366 = vadd.f32 %v4300, 1.0
  %v4367 = vadd.f32 %v4302, 1.0
  %v4368 = vadd.f32 %v4304, 1.0
  %v4369 = vrcp.pop %v4305
  %v4370 = vmul.f32 1.0, %v4369
  %v4371 = vrcp.pop %v4306
  %v4372 = vmul.f32 1.0, %v4371
  %v4373 = vrcp.pop %v4307
  %v4374 = vmul.f32 1.0, %v4373
  %v4375 = vrcp.pop %v4308
  %v4376 = vmul.f32 1.0, %v4375
  %v4377 = vrcp.pop %v4309
  %v4378 = vmul.f32 1.0, %v4377
  %v4379 = vrcp.pop %v4310
  %v4380 = vmul.f32 1.0, %v4379
  %v4381 = vrcp.pop %v4311
  %v4382 = vmul.f32 1.0, %v4381
  %v4383 = vrcp.pop %v4312
  %v4384 = vmul.f32 1.0, %v4383
  %v4385 = vrcp.pop %v4313
  %v4386 = vmul.f32 1.0, %v4385
  %v4387 = vrcp.pop %v4314
  %v4388 = vmul.f32 1.0, %v4387
  %v4389 = vrcp.pop %v4315
  %v4390 = vmul.f32 1.0, %v4389
  %v4391 = vrcp.pop %v4316
  %v4392 = vmul.f32 1.0, %v4391
  %v4393 = vrcp.pop %v4317
  %v4394 = vmul.f32 1.0, %v4393
  %v4395 = vrcp.pop %v4318
  %v4396 = vmul.f32 1.0, %v4395
  %v4397 = vrcp.pop %v4319
  %v4398 = vmul.f32 1.0, %v4397
  %v4399 = vrcp.pop %v4320
  %v4400 = vmul.f32 1.0, %v4399
  %v4401 = vrcp.pop %v4321
  %v4402 = vmul.f32 1.0, %v4401
  %v4403 = vrcp.pop %v4322
  %v4404 = vmul.f32 1.0, %v4403
  %v4405 = vrcp.pop %v4323
  %v4406 = vmul.f32 1.0, %v4405
  %v4407 = vrcp.pop %v4324
  %v4408 = vmul.f32 1.0, %v4407
  %v4409 = vrcp.pop %v4325
  %v4410 = vmul.f32 1.0, %v4409
  %v4411 = vrcp.pop %v4326
  %v4412 = vmul.f32 1.0, %v4411
  %v4413 = vrcp.pop %v4327
  %v4414 = vmul.f32 1.0, %v4413
  %v4415 = vrcp.pop %v4328
  %v4416 = vmul.f32 1.0, %v4415
  %v4417 = vrcp.pop %v4329
  %v4418 = vmul.f32 1.0, %v4417
  %v4419 = vrcp.pop %v4330
  %v4420 = vmul.f32 1.0, %v4419
  %v4421 = vrcp.pop %v4331
  %v4422 = vmul.f32 1.0, %v4421
  %v4423 = vrcp.pop %v4332
  %v4424 = vmul.f32 1.0, %v4423
  %v4425 = vrcp.pop %v4333
  %v4426 = vmul.f32 1.0, %v4425
  %v4427 = vrcp.pop %v4334
  %v4428 = vmul.f32 1.0, %v4427
  %v4429 = vrcp.pop %v4335
  %v4430 = vmul.f32 1.0, %v4429
  %v4431 = vrcp.pop %v4336
  %v4432 = vmul.f32 1.0, %v4431
  %v4433 = vrcp.pop %v4337
  %v4434 = vmul.f32 1.0, %v4433
  %v4435 = vrcp.pop %v4338
  %v4436 = vmul.f32 1.0, %v4435
  %v4437 = vrcp.pop %v4339
  %v4438 = vmul.f32 1.0, %v4437
  %v4439 = vrcp.pop %v4340
  %v4440 = vmul.f32 1.0, %v4439
  %v4441 = vrcp.pop %v4341
  %v4442 = vmul.f32 1.0, %v4441
  %v4443 = vrcp.pop %v4342
  %v4444 = vmul.f32 1.0, %v4443
  %v4445 = vrcp.pop %v4343
  %v4446 = vmul.f32 1.0, %v4445
  %v4447 = vrcp.pop %v4344
  %v4448 = vmul.f32 1.0, %v4447
  %v4449 = vrcp.pop %v4345
  %v4450 = vmul.f32 1.0, %v4449
  %v4451 = vrcp.pop %v4346
  %v4452 = vmul.f32 1.0, %v4451
  %v4453 = vrcp.pop %v4347
  %v4454 = vmul.f32 1.0, %v4453
  %v4455 = vrcp.pop %v4348
  %v4456 = vmul.f32 1.0, %v4455
  %v4457 = vrcp.pop %v4349
  %v4458 = vmul.f32 1.0, %v4457
  %v4459 = vrcp.pop %v4350
  %v4460 = vmul.f32 1.0, %v4459
  %v4461 = vrcp.pop %v4351
  %v4462 = vmul.f32 1.0, %v4461
  %v4463 = vrcp.pop %v4352
  %v4464 = vmul.f32 1.0, %v4463
  %v4465 = vrcp.pop %v4353
  %v4466 = vmul.f32 1.0, %v4465
  %v4467 = vrcp.pop %v4354
  %v4468 = vmul.f32 1.0, %v4467
  %v4469 = vrcp.pop %v4355
  %v4470 = vmul.f32 1.0, %v4469
  %v4471 = vrcp.pop %v4356
  %v4472 = vmul.f32 1.0, %v4471
  %v4473 = vrcp.pop %v4357
  %v4474 = vmul.f32 1.0, %v4473
  %v4475 = vrcp.pop %v4358
  %v4476 = vmul.f32 1.0, %v4475
  %v4477 = vrcp.pop %v4359
  %v4478 = vmul.f32 1.0, %v4477
  %v4479 = vrcp.pop %v4360
  %v4480 = vmul.f32 1.0, %v4479
  %v4481 = vrcp.pop %v4361
  %v4482 = vmul.f32 1.0, %v4481
  %v4483 = vrcp.pop %v4362
  %v4484 = vmul.f32 1.0, %v4483
  %v4485 = vrcp.pop %v4363
  %v4486 = vmul.f32 1.0, %v4485
  %v4487 = vrcp.pop %v4364
  %v4488 = vmul.f32 1.0, %v4487
  %v4489 = vrcp.pop %v4365
  %v4490 = vmul.f32 1.0, %v4489
  %v4491 = vrcp.pop %v4366
  %v4492 = vmul.f32 1.0, %v4491
  %v4493 = vrcp.pop %v4367
  %v4494 = vmul.f32 1.0, %v4493
  %v4495 = vrcp.pop %v4368
  %v4496 = vmul.f32 1.0, %v4495
  %v4497 = vmul.f32 %v4049, %v4370
  %v4498 = vmul.f32 %v4050, %v4372
  %v4499 = vmul.f32 %v4051, %v4374
  %v4500 = vmul.f32 %v4052, %v4376
  %v4501 = vmul.f32 %v4053, %v4378
  %v4502 = vmul.f32 %v4054, %v4380
  %v4503 = vmul.f32 %v4055, %v4382
  %v4504 = vmul.f32 %v4056, %v4384
  %v4505 = vmul.f32 %v4057, %v4386
  %v4506 = vmul.f32 %v4058, %v4388
  %v4507 = vmul.f32 %v4059, %v4390
  %v4508 = vmul.f32 %v4060, %v4392
  %v4509 = vmul.f32 %v4061, %v4394
  %v4510 = vmul.f32 %v4062, %v4396
  %v4511 = vmul.f32 %v4063, %v4398
  %v4512 = vmul.f32 %v4064, %v4400
  %v4513 = vmul.f32 %v4065, %v4402
  %v4514 = vmul.f32 %v4066, %v4404
  %v4515 = vmul.f32 %v4067, %v4406
  %v4516 = vmul.f32 %v4068, %v4408
  %v4517 = vmul.f32 %v4069, %v4410
  %v4518 = vmul.f32 %v4070, %v4412
  %v4519 = vmul.f32 %v4071, %v4414
  %v4520 = vmul.f32 %v4072, %v4416
  %v4521 = vmul.f32 %v4073, %v4418
  %v4522 = vmul.f32 %v4074, %v4420
  %v4523 = vmul.f32 %v4075, %v4422
  %v4524 = vmul.f32 %v4076, %v4424
  %v4525 = vmul.f32 %v4077, %v4426
  %v4526 = vmul.f32 %v4078, %v4428
  %v4527 = vmul.f32 %v4079, %v4430
  %v4528 = vmul.f32 %v4080, %v4432
  %v4529 = vmul.f32 %v4081, %v4434
  %v4530 = vmul.f32 %v4082, %v4436
  %v4531 = vmul.f32 %v4083, %v4438
  %v4532 = vmul.f32 %v4084, %v4440
  %v4533 = vmul.f32 %v4085, %v4442
  %v4534 = vmul.f32 %v4086, %v4444
  %v4535 = vmul.f32 %v4087, %v4446
  %v4536 = vmul.f32 %v4088, %v4448
  %v4537 = vmul.f32 %v4089, %v4450
  %v4538 = vmul.f32 %v4090, %v4452
  %v4539 = vmul.f32 %v4091, %v4454
  %v4540 = vmul.f32 %v4092, %v4456
  %v4541 = vmul.f32 %v4093, %v4458
  %v4542 = vmul.f32 %v4094, %v4460
  %v4543 = vmul.f32 %v4095, %v4462
  %v4544 = vmul.f32 %v4096, %v4464
  %v4545 = vmul.f32 %v4097, %v4466
  %v4546 = vmul.f32 %v4098, %v4468
  %v4547 = vmul.f32 %v4099, %v4470
  %v4548 = vmul.f32 %v4100, %v4472
  %v4549 = vmul.f32 %v4101, %v4474
  %v4550 = vmul.f32 %v4102, %v4476
  %v4551 = vmul.f32 %v4103, %v4478
  %v4552 = vmul.f32 %v4104, %v4480
  %v4553 = vmul.f32 %v4105, %v4482
  %v4554 = vmul.f32 %v4106, %v4484
  %v4555 = vmul.f32 %v4107, %v4486
  %v4556 = vmul.f32 %v4108, %v4488
  %v4557 = vmul.f32 %v4109, %v4490
  %v4558 = vmul.f32 %v4110, %v4492
  %v4559 = vmul.f32 %v4111, %v4494
  %v4560 = vmul.f32 %v4112, %v4496
  %v4561 = vpack.c.bf16 %v4498, %v4497
  %v4562 = vpack.c.bf16 %v4500, %v4499
  %v4563 = vpack.c.bf16 %v4502, %v4501
  %v4564 = vpack.c.bf16 %v4504, %v4503
  %v4565 = vpack.c.bf16 %v4506, %v4505
  %v4566 = vpack.c.bf16 %v4508, %v4507
  %v4567 = vpack.c.bf16 %v4510, %v4509
  %v4568 = vpack.c.bf16 %v4512, %v4511
  %v4569 = vpack.c.bf16 %v4514, %v4513
  %v4570 = vpack.c.bf16 %v4516, %v4515
  %v4571 = vpack.c.bf16 %v4518, %v4517
  %v4572 = vpack.c.bf16 %v4520, %v4519
  %v4573 = vpack.c.bf16 %v4522, %v4521
  %v4574 = vpack.c.bf16 %v4524, %v4523
  %v4575 = vpack.c.bf16 %v4526, %v4525
  %v4576 = vpack.c.bf16 %v4528, %v4527
  %v4577 = vpack.c.bf16 %v4530, %v4529
  %v4578 = vpack.c.bf16 %v4532, %v4531
  %v4579 = vpack.c.bf16 %v4534, %v4533
  %v4580 = vpack.c.bf16 %v4536, %v4535
  %v4581 = vpack.c.bf16 %v4538, %v4537
  %v4582 = vpack.c.bf16 %v4540, %v4539
  %v4583 = vpack.c.bf16 %v4542, %v4541
  %v4584 = vpack.c.bf16 %v4544, %v4543
  %v4585 = vpack.c.bf16 %v4546, %v4545
  %v4586 = vpack.c.bf16 %v4548, %v4547
  %v4587 = vpack.c.bf16 %v4550, %v4549
  %v4588 = vpack.c.bf16 %v4552, %v4551
  %v4589 = vpack.c.bf16 %v4554, %v4553
  %v4590 = vpack.c.bf16 %v4556, %v4555
  %v4591 = vpack.c.bf16 %v4558, %v4557
  %v4592 = vpack.c.bf16 %v4560, %v4559
  %v4625 = vunpack.c.l.b16 %v4561
  %v4626 = vunpack.c.h.b16 %v4561
  %v4627 = vunpack.c.l.b16 %v4562
  %v4628 = vunpack.c.h.b16 %v4562
  %v4629 = vunpack.c.l.b16 %v4563
  %v4630 = vunpack.c.h.b16 %v4563
  %v4631 = vunpack.c.l.b16 %v4564
  %v4632 = vunpack.c.h.b16 %v4564
  %v4633 = vunpack.c.l.b16 %v4565
  %v4634 = vunpack.c.h.b16 %v4565
  %v4635 = vunpack.c.l.b16 %v4566
  %v4636 = vunpack.c.h.b16 %v4566
  %v4637 = vunpack.c.l.b16 %v4567
  %v4638 = vunpack.c.h.b16 %v4567
  %v4639 = vunpack.c.l.b16 %v4568
  %v4640 = vunpack.c.h.b16 %v4568
  %v4641 = vunpack.c.l.b16 %v4569
  %v4642 = vunpack.c.h.b16 %v4569
  %v4643 = vunpack.c.l.b16 %v4570
  %v4644 = vunpack.c.h.b16 %v4570
  %v4645 = vunpack.c.l.b16 %v4571
  %v4646 = vunpack.c.h.b16 %v4571
  %v4647 = vunpack.c.l.b16 %v4572
  %v4648 = vunpack.c.h.b16 %v4572
  %v4649 = vunpack.c.l.b16 %v4573
  %v4650 = vunpack.c.h.b16 %v4573
  %v4651 = vunpack.c.l.b16 %v4574
  %v4652 = vunpack.c.h.b16 %v4574
  %v4653 = vunpack.c.l.b16 %v4575
  %v4654 = vunpack.c.h.b16 %v4575
  %v4655 = vunpack.c.l.b16 %v4576
  %v4656 = vunpack.c.h.b16 %v4576
  %v4657 = vunpack.c.l.b16 %v4577
  %v4658 = vunpack.c.h.b16 %v4577
  %v4659 = vunpack.c.l.b16 %v4578
  %v4660 = vunpack.c.h.b16 %v4578
  %v4661 = vunpack.c.l.b16 %v4579
  %v4662 = vunpack.c.h.b16 %v4579
  %v4663 = vunpack.c.l.b16 %v4580
  %v4664 = vunpack.c.h.b16 %v4580
  %v4665 = vunpack.c.l.b16 %v4581
  %v4666 = vunpack.c.h.b16 %v4581
  %v4667 = vunpack.c.l.b16 %v4582
  %v4668 = vunpack.c.h.b16 %v4582
  %v4669 = vunpack.c.l.b16 %v4583
  %v4670 = vunpack.c.h.b16 %v4583
  %v4671 = vunpack.c.l.b16 %v4584
  %v4672 = vunpack.c.h.b16 %v4584
  %v4673 = vunpack.c.l.b16 %v4585
  %v4674 = vunpack.c.h.b16 %v4585
  %v4675 = vunpack.c.l.b16 %v4586
  %v4676 = vunpack.c.h.b16 %v4586
  %v4677 = vunpack.c.l.b16 %v4587
  %v4678 = vunpack.c.h.b16 %v4587
  %v4679 = vunpack.c.l.b16 %v4588
  %v4680 = vunpack.c.h.b16 %v4588
  %v4681 = vunpack.c.l.b16 %v4589
  %v4682 = vunpack.c.h.b16 %v4589
  %v4683 = vunpack.c.l.b16 %v4590
  %v4684 = vunpack.c.h.b16 %v4590
  %v4685 = vunpack.c.l.b16 %v4591
  %v4686 = vunpack.c.h.b16 %v4591
  %v4687 = vunpack.c.l.b16 %v4592
  %v4688 = vunpack.c.h.b16 %v4592
  %v4689 = vpack.c.b16 %v4625, %v4625
  %v4690 = vpack.c.b16 %v4626, %v4626
  %v4691 = vpack.c.b16 %v4627, %v4627
  %v4692 = vpack.c.b16 %v4628, %v4628
  %v4693 = vpack.c.b16 %v4629, %v4629
  %v4694 = vpack.c.b16 %v4630, %v4630
  %v4695 = vpack.c.b16 %v4631, %v4631
  %v4696 = vpack.c.b16 %v4632, %v4632
  %v4697 = vpack.c.b16 %v4633, %v4633
  %v4698 = vpack.c.b16 %v4634, %v4634
  %v4699 = vpack.c.b16 %v4635, %v4635
  %v4700 = vpack.c.b16 %v4636, %v4636
  %v4701 = vpack.c.b16 %v4637, %v4637
  %v4702 = vpack.c.b16 %v4638, %v4638
  %v4703 = vpack.c.b16 %v4639, %v4639
  %v4704 = vpack.c.b16 %v4640, %v4640
  %v4705 = vpack.c.b16 %v4641, %v4641
  %v4706 = vpack.c.b16 %v4642, %v4642
  %v4707 = vpack.c.b16 %v4643, %v4643
  %v4708 = vpack.c.b16 %v4644, %v4644
  %v4709 = vpack.c.b16 %v4645, %v4645
  %v4710 = vpack.c.b16 %v4646, %v4646
  %v4711 = vpack.c.b16 %v4647, %v4647
  %v4712 = vpack.c.b16 %v4648, %v4648
  %v4713 = vpack.c.b16 %v4649, %v4649
  %v4714 = vpack.c.b16 %v4650, %v4650
  %v4715 = vpack.c.b16 %v4651, %v4651
  %v4716 = vpack.c.b16 %v4652, %v4652
  %v4717 = vpack.c.b16 %v4653, %v4653
  %v4718 = vpack.c.b16 %v4654, %v4654
  %v4719 = vpack.c.b16 %v4655, %v4655
  %v4720 = vpack.c.b16 %v4656, %v4656
  %v4721 = vpack.c.b16 %v4657, %v4657
  %v4722 = vpack.c.b16 %v4658, %v4658
  %v4723 = vpack.c.b16 %v4659, %v4659
  %v4724 = vpack.c.b16 %v4660, %v4660
  %v4725 = vpack.c.b16 %v4661, %v4661
  %v4726 = vpack.c.b16 %v4662, %v4662
  %v4727 = vpack.c.b16 %v4663, %v4663
  %v4728 = vpack.c.b16 %v4664, %v4664
  %v4729 = vpack.c.b16 %v4665, %v4665
  %v4730 = vpack.c.b16 %v4666, %v4666
  %v4731 = vpack.c.b16 %v4667, %v4667
  %v4732 = vpack.c.b16 %v4668, %v4668
  %v4733 = vpack.c.b16 %v4669, %v4669
  %v4734 = vpack.c.b16 %v4670, %v4670
  %v4735 = vpack.c.b16 %v4671, %v4671
  %v4736 = vpack.c.b16 %v4672, %v4672
  %v4737 = vpack.c.b16 %v4673, %v4673
  %v4738 = vpack.c.b16 %v4674, %v4674
  %v4739 = vpack.c.b16 %v4675, %v4675
  %v4740 = vpack.c.b16 %v4676, %v4676
  %v4741 = vpack.c.b16 %v4677, %v4677
  %v4742 = vpack.c.b16 %v4678, %v4678
  %v4743 = vpack.c.b16 %v4679, %v4679
  %v4744 = vpack.c.b16 %v4680, %v4680
  %v4745 = vpack.c.b16 %v4681, %v4681
  %v4746 = vpack.c.b16 %v4682, %v4682
  %v4747 = vpack.c.b16 %v4683, %v4683
  %v4748 = vpack.c.b16 %v4684, %v4684
  %v4749 = vpack.c.b16 %v4685, %v4685
  %v4750 = vpack.c.b16 %v4686, %v4686
  %v4751 = vpack.c.b16 %v4687, %v4687
  %v4752 = vpack.c.b16 %v4688, %v4688
  %vm4817 = vcmask 125952
  %4818 = vst.msk [vmem:[%s4] sm:$0xf] %vm4817, %v4689
  %4819 = vst.msk [vmem:[%s4 + $0x4] sm:$0xf] %vm4817, %v4690
  %4820 = vst.msk [vmem:[%s4 + $0x8] sm:$0xf] %vm4817, %v4691
  %4821 = vst.msk [vmem:[%s4 + $0xc] sm:$0xf] %vm4817, %v4692
  %4822 = vst.msk [vmem:[%s4 + $0x10] sm:$0xf] %vm4817, %v4693
  %4823 = vst.msk [vmem:[%s4 + $0x14] sm:$0xf] %vm4817, %v4694
  %4824 = vst.msk [vmem:[%s4 + $0x18] sm:$0xf] %vm4817, %v4695
  %4825 = vst.msk [vmem:[%s4 + $0x1c] sm:$0xf] %vm4817, %v4696
  %4826 = vst.msk [vmem:[%s4 + $0x20] sm:$0xf] %vm4817, %v4697
  %4827 = vst.msk [vmem:[%s4 + $0x24] sm:$0xf] %vm4817, %v4698
  %4828 = vst.msk [vmem:[%s4 + $0x28] sm:$0xf] %vm4817, %v4699
  %4829 = vst.msk [vmem:[%s4 + $0x2c] sm:$0xf] %vm4817, %v4700
  %4830 = vst.msk [vmem:[%s4 + $0x30] sm:$0xf] %vm4817, %v4701
  %4831 = vst.msk [vmem:[%s4 + $0x34] sm:$0xf] %vm4817, %v4702
  %4832 = vst.msk [vmem:[%s4 + $0x38] sm:$0xf] %vm4817, %v4703
  %4833 = vst.msk [vmem:[%s4 + $0x3c] sm:$0xf] %vm4817, %v4704
  %4834 = vst.msk [vmem:[%s4 + $0x40] sm:$0xf] %vm4817, %v4705
  %4835 = vst.msk [vmem:[%s4 + $0x44] sm:$0xf] %vm4817, %v4706
  %4836 = vst.msk [vmem:[%s4 + $0x48] sm:$0xf] %vm4817, %v4707
  %4837 = vst.msk [vmem:[%s4 + $0x4c] sm:$0xf] %vm4817, %v4708
  %4838 = vst.msk [vmem:[%s4 + $0x50] sm:$0xf] %vm4817, %v4709
  %4839 = vst.msk [vmem:[%s4 + $0x54] sm:$0xf] %vm4817, %v4710
  %4840 = vst.msk [vmem:[%s4 + $0x58] sm:$0xf] %vm4817, %v4711
  %4841 = vst.msk [vmem:[%s4 + $0x5c] sm:$0xf] %vm4817, %v4712
  %4842 = vst.msk [vmem:[%s4 + $0x60] sm:$0xf] %vm4817, %v4713
  %4843 = vst.msk [vmem:[%s4 + $0x64] sm:$0xf] %vm4817, %v4714
  %4844 = vst.msk [vmem:[%s4 + $0x68] sm:$0xf] %vm4817, %v4715
  %4845 = vst.msk [vmem:[%s4 + $0x6c] sm:$0xf] %vm4817, %v4716
  %4846 = vst.msk [vmem:[%s4 + $0x70] sm:$0xf] %vm4817, %v4717
  %4847 = vst.msk [vmem:[%s4 + $0x74] sm:$0xf] %vm4817, %v4718
  %4848 = vst.msk [vmem:[%s4 + $0x78] sm:$0xf] %vm4817, %v4719
  %4849 = vst.msk [vmem:[%s4 + $0x7c] sm:$0xf] %vm4817, %v4720
  %4850 = vst.msk [vmem:[%s4 + $0x80] sm:$0xf] %vm4817, %v4721
  %4851 = vst.msk [vmem:[%s4 + $0x84] sm:$0xf] %vm4817, %v4722
  %4852 = vst.msk [vmem:[%s4 + $0x88] sm:$0xf] %vm4817, %v4723
  %4853 = vst.msk [vmem:[%s4 + $0x8c] sm:$0xf] %vm4817, %v4724
  %4854 = vst.msk [vmem:[%s4 + $0x90] sm:$0xf] %vm4817, %v4725
  %4855 = vst.msk [vmem:[%s4 + $0x94] sm:$0xf] %vm4817, %v4726
  %4856 = vst.msk [vmem:[%s4 + $0x98] sm:$0xf] %vm4817, %v4727
  %4857 = vst.msk [vmem:[%s4 + $0x9c] sm:$0xf] %vm4817, %v4728
  %4858 = vst.msk [vmem:[%s4 + $0xa0] sm:$0xf] %vm4817, %v4729
  %4859 = vst.msk [vmem:[%s4 + $0xa4] sm:$0xf] %vm4817, %v4730
  %4860 = vst.msk [vmem:[%s4 + $0xa8] sm:$0xf] %vm4817, %v4731
  %4861 = vst.msk [vmem:[%s4 + $0xac] sm:$0xf] %vm4817, %v4732
  %4862 = vst.msk [vmem:[%s4 + $0xb0] sm:$0xf] %vm4817, %v4733
  %4863 = vst.msk [vmem:[%s4 + $0xb4] sm:$0xf] %vm4817, %v4734
  %4864 = vst.msk [vmem:[%s4 + $0xb8] sm:$0xf] %vm4817, %v4735
  %4865 = vst.msk [vmem:[%s4 + $0xbc] sm:$0xf] %vm4817, %v4736
  %4866 = vst.msk [vmem:[%s4 + $0xc0] sm:$0xf] %vm4817, %v4737
  %4867 = vst.msk [vmem:[%s4 + $0xc4] sm:$0xf] %vm4817, %v4738
  %4868 = vst.msk [vmem:[%s4 + $0xc8] sm:$0xf] %vm4817, %v4739
  %4869 = vst.msk [vmem:[%s4 + $0xcc] sm:$0xf] %vm4817, %v4740
  %4870 = vst.msk [vmem:[%s4 + $0xd0] sm:$0xf] %vm4817, %v4741
  %4871 = vst.msk [vmem:[%s4 + $0xd4] sm:$0xf] %vm4817, %v4742
  %4872 = vst.msk [vmem:[%s4 + $0xd8] sm:$0xf] %vm4817, %v4743
  %4873 = vst.msk [vmem:[%s4 + $0xdc] sm:$0xf] %vm4817, %v4744
  %4874 = vst.msk [vmem:[%s4 + $0xe0] sm:$0xf] %vm4817, %v4745
  %4875 = vst.msk [vmem:[%s4 + $0xe4] sm:$0xf] %vm4817, %v4746
  %4876 = vst.msk [vmem:[%s4 + $0xe8] sm:$0xf] %vm4817, %v4747
  %4877 = vst.msk [vmem:[%s4 + $0xec] sm:$0xf] %vm4817, %v4748
  %4878 = vst.msk [vmem:[%s4 + $0xf0] sm:$0xf] %vm4817, %v4749
  %4879 = vst.msk [vmem:[%s4 + $0xf4] sm:$0xf] %vm4817, %v4750
  %4880 = vst.msk [vmem:[%s4 + $0xf8] sm:$0xf] %vm4817, %v4751
  %4881 = vst.msk [vmem:[%s4 + $0xfc] sm:$0xf] %vm4817, %v4752
  // Predicated region
  $region18: #{forward.3} parent=0 // pred_check
    _
  $region19: #{forward.3} parent=0 // pred_check_branch
    %4883 = sbr.rel (0) target = $region21
  $region20: #{forward.3} parent=0 // pred_region
    _
  $region21: #{forward.3} parent=0 // pred_fallthru
    _
  // Predicated region
  $region22: #{forward.3} parent=0 // pred_check
    _
  $region23: #{forward.3} parent=0 // pred_check_branch
    %4885 = sbr.rel (0) target = $region25
  $region24: #{forward.3} parent=0 // pred_region
    _
  $region25: #{forward.3} parent=0 // pred_fallthru
    _

// kernel: forward.5
$region0: #{forward.5}
  #allocation0 [shape = 'u32[]', space=smem, size = 0x4, offset = 0x4, fixed_abs, tag = 'smem constant byte address 0x4 - core index']
  #allocation1 [shape = 'u32[144,128]{1,0:T(1,128)}', space=vmem, size = 0x12000, scoped, tag = 'internal scratch']
  #allocation2 [shape = 'f32[2,10,10,16]{3,2,1,0:T(8,128)}', space=vmem, size = 0x28000, scoped, tag = 'scratch operand']
  #allocation3 [shape = 'f32[2,8,12,16]{3,2,1,0:T(8,128)}', space=vmem, size = 0x20000, scoped, tag = 'scratch operand']
  #allocation4 [shape = 'f32[2,12,8,16]{3,2,1,0:T(8,128)}', space=vmem, size = 0x18000, scoped, tag = 'scratch operand']
  %s0 = inlined_call_operand.vmem [shape: bf16[128,32], index: 0, kind: input, shape index: {}]
  %s1 = inlined_call_operand.vmem [shape: bf16[32,16], index: 1, kind: input, shape index: {}]
  %s2 = inlined_call_operand.vmem [shape: f32[1,16], index: 2, kind: input, shape index: {}, may-alias: {2,5,8,11,17}]
  %s3 = inlined_call_operand.vmem [shape: f32[1,16], index: 3, kind: input, shape index: {}, may-alias: {3,6,9,12,18}]
  %s4 = inlined_call_operand.vmem [shape: bf16[32,16], index: 4, kind: input, shape index: {}]
  %s5 = inlined_call_operand.vmem [shape: f32[1,16], index: 5, kind: input, shape index: {}, may-alias: {2,5,8,11,17}]
  %s6 = inlined_call_operand.vmem [shape: f32[1,16], index: 6, kind: input, shape index: {}, may-alias: {3,6,9,12,18}]
  %s7 = inlined_call_operand.vmem [shape: bf16[16,16], index: 7, kind: input, shape index: {}]
  %s8 = inlined_call_operand.vmem [shape: f32[1,16], index: 8, kind: input, shape index: {}, may-alias: {2,5,8,11,17}]
  %s9 = inlined_call_operand.vmem [shape: f32[1,16], index: 9, kind: input, shape index: {}, may-alias: {3,6,9,12,18}]
  %s10 = inlined_call_operand.vmem [shape: bf16[144,16], index: 10, kind: input, shape index: {}]
  %s11 = inlined_call_operand.vmem [shape: f32[1,16], index: 11, kind: input, shape index: {}, may-alias: {2,5,8,11,17}]
  %s12 = inlined_call_operand.vmem [shape: f32[1,16], index: 12, kind: input, shape index: {}, may-alias: {3,6,9,12,18}]
  %s13 = inlined_call_operand.vmem [shape: bf16[32,32], index: 13, kind: input, shape index: {}]
  %s14 = inlined_call_operand.vmem [shape: f32[1,32], index: 14, kind: input, shape index: {}, may-alias: {14,20,23}]
  %s15 = inlined_call_operand.vmem [shape: f32[1,32], index: 15, kind: input, shape index: {}, may-alias: {15,21,24}]
  %s16 = inlined_call_operand.vmem [shape: bf16[32,16], index: 16, kind: input, shape index: {}]
  %s17 = inlined_call_operand.vmem [shape: f32[1,16], index: 17, kind: input, shape index: {}, may-alias: {2,5,8,11,17}]
  %s18 = inlined_call_operand.vmem [shape: f32[1,16], index: 18, kind: input, shape index: {}, may-alias: {3,6,9,12,18}]
  %s19 = inlined_call_operand.vmem [shape: bf16[64,32], index: 19, kind: input, shape index: {}]
  %s20 = inlined_call_operand.vmem [shape: f32[1,32], index: 20, kind: input, shape index: {}, may-alias: {14,20,23}]
  %s21 = inlined_call_operand.vmem [shape: f32[1,32], index: 21, kind: input, shape index: {}, may-alias: {15,21,24}]
  %s22 = inlined_call_operand.vmem [shape: bf16[64,32], index: 22, kind: input, shape index: {}]
  %s23 = inlined_call_operand.vmem [shape: f32[1,32], index: 23, kind: input, shape index: {}, may-alias: {14,20,23}]
  %s24 = inlined_call_operand.vmem [shape: f32[1,32], index: 24, kind: input, shape index: {}, may-alias: {15,21,24}]
  %s25 = inlined_call_operand.vmem [shape: bf16[32,21], index: 25, kind: input, shape index: {}]
  %s26 = inlined_call_operand.vmem [shape: f32[1,21], index: 26, kind: input, shape index: {}]
  %s27 = inlined_call_operand.vmem [shape: f32[128,21], index: 27, kind: output, shape index: {}]
  %s28 = sld [smem:[#allocation0]]
  $region118: #{forward.5} parent=0
    _
  %s30 = ssub.s32 1, %s28
  %s31 = scalar_select 0, %s30, %s28
  // Predicated region
  $region2: #{forward.5} parent=0 // pred_check
    _
  $region3: #{forward.5} parent=0 // pred_check_branch
    %33 = sbr.rel (0) target = $region5
  $region4: #{forward.5} parent=0 // pred_region
    _
  $region5: #{forward.5} parent=0 // pred_fallthru
    _
  // Predicated region
  $region6: #{forward.5} parent=0 // pred_check
    _
  $region7: #{forward.5} parent=0 // pred_check_branch
    %35 = sbr.rel (0) target = $region9
  $region8: #{forward.5} parent=0 // pred_region
    _
  $region9: #{forward.5} parent=0 // pred_fallthru
    _
  // Predicated region
  $region10: #{forward.5} parent=0 // pred_check
    _
  $region11: #{forward.5} parent=0 // pred_check_branch
    %37 = sbr.rel (0) target = $region13
  $region12: #{forward.5} parent=0 // pred_region
    _
  $region13: #{forward.5} parent=0 // pred_fallthru
    _
  // Predicated region
  $region14: #{forward.5} parent=0 // pred_check
    _
  $region15: #{forward.5} parent=0 // pred_check_branch
    %39 = sbr.rel (0) target = $region17
  $region16: #{forward.5} parent=0 // pred_region
    _
  $region17: #{forward.5} parent=0 // pred_fallthru
    _
  // Predicated region
  $region18: #{forward.5} parent=0 // pred_check
    _
  $region19: #{forward.5} parent=0 // pred_check_branch
    %41 = sbr.rel (0) target = $region21
  $region20: #{forward.5} parent=0 // pred_region
    _
  $region21: #{forward.5} parent=0 // pred_fallthru
    _
  // Predicated region
  $region22: #{forward.5} parent=0 // pred_check
    _
  $region23: #{forward.5} parent=0 // pred_check_branch
    %43 = sbr.rel (0) target = $region25
  $region24: #{forward.5} parent=0 // pred_region
    _
  $region25: #{forward.5} parent=0 // pred_fallthru
    _
  // Predicated region
  $region26: #{forward.5} parent=0 // pred_check
    _
  $region27: #{forward.5} parent=0 // pred_check_branch
    %45 = sbr.rel (0) target = $region29
  $region28: #{forward.5} parent=0 // pred_region
    _
  $region29: #{forward.5} parent=0 // pred_fallthru
    _
  // Predicated region
  $region30: #{forward.5} parent=0 // pred_check
    _
  $region31: #{forward.5} parent=0 // pred_check_branch
    %47 = sbr.rel (0) target = $region33
  $region32: #{forward.5} parent=0 // pred_region
    _
  $region33: #{forward.5} parent=0 // pred_fallthru
    _
  // Predicated region
  $region34: #{forward.5} parent=0 // pred_check
    _
  $region35: #{forward.5} parent=0 // pred_check_branch
    %49 = sbr.rel (0) target = $region37
  $region36: #{forward.5} parent=0 // pred_region
    _
  $region37: #{forward.5} parent=0 // pred_fallthru
    _
  // Predicated region
  $region38: #{forward.5} parent=0 // pred_check
    _
  $region39: #{forward.5} parent=0 // pred_check_branch
    %51 = sbr.rel (0) target = $region41
  $region40: #{forward.5} parent=0 // pred_region
    _
  $region41: #{forward.5} parent=0 // pred_fallthru
    _
  // Predicated region
  $region42: #{forward.5} parent=0 // pred_check
    _
  $region43: #{forward.5} parent=0 // pred_check_branch
    %53 = sbr.rel (0) target = $region45
  $region44: #{forward.5} parent=0 // pred_region
    _
  $region45: #{forward.5} parent=0 // pred_fallthru
    _
  // Predicated region
  $region46: #{forward.5} parent=0 // pred_check
    _
  $region47: #{forward.5} parent=0 // pred_check_branch
    %55 = sbr.rel (0) target = $region49
  $region48: #{forward.5} parent=0 // pred_region
    _
  $region49: #{forward.5} parent=0 // pred_fallthru
    _
  // Predicated region
  $region50: #{forward.5} parent=0 // pred_check
    _
  $region51: #{forward.5} parent=0 // pred_check_branch
    %57 = sbr.rel (0) target = $region53
  $region52: #{forward.5} parent=0 // pred_region
    _
  $region53: #{forward.5} parent=0 // pred_fallthru
    _
  // Predicated region
  $region54: #{forward.5} parent=0 // pred_check
    _
  $region55: #{forward.5} parent=0 // pred_check_branch
    %59 = sbr.rel (0) target = $region57
  $region56: #{forward.5} parent=0 // pred_region
    _
  $region57: #{forward.5} parent=0 // pred_fallthru
    _
  // Predicated region
  $region58: #{forward.5} parent=0 // pred_check
    _
  $region59: #{forward.5} parent=0 // pred_check_branch
    %61 = sbr.rel (0) target = $region61
  $region60: #{forward.5} parent=0 // pred_region
    _
  $region61: #{forward.5} parent=0 // pred_fallthru
    _
  // Predicated region
  $region62: #{forward.5} parent=0 // pred_check
    _
  $region63: #{forward.5} parent=0 // pred_check_branch
    %63 = sbr.rel (0) target = $region65
  $region64: #{forward.5} parent=0 // pred_region
    _
  $region65: #{forward.5} parent=0 // pred_fallthru
    _
  // Predicated region
  $region66: #{forward.5} parent=0 // pred_check
    _
  $region67: #{forward.5} parent=0 // pred_check_branch
    %65 = sbr.rel (0) target = $region69
  $region68: #{forward.5} parent=0 // pred_region
    _
  $region69: #{forward.5} parent=0 // pred_fallthru
    _
  // Predicated region
  $region70: #{forward.5} parent=0 // pred_check
    _
  $region71: #{forward.5} parent=0 // pred_check_branch
    %67 = sbr.rel (0) target = $region73
  $region72: #{forward.5} parent=0 // pred_region
    _
  $region73: #{forward.5} parent=0 // pred_fallthru
    _
  // Predicated region
  $region74: #{forward.5} parent=0 // pred_check
    _
  $region75: #{forward.5} parent=0 // pred_check_branch
    %69 = sbr.rel (0) target = $region77
  $region76: #{forward.5} parent=0 // pred_region
    _
  $region77: #{forward.5} parent=0 // pred_fallthru
    _
  // Predicated region
  $region78: #{forward.5} parent=0 // pred_check
    _
  $region79: #{forward.5} parent=0 // pred_check_branch
    %71 = sbr.rel (0) target = $region81
  $region80: #{forward.5} parent=0 // pred_region
    _
  $region81: #{forward.5} parent=0 // pred_fallthru
    _
  // Predicated region
  $region82: #{forward.5} parent=0 // pred_check
    _
  $region83: #{forward.5} parent=0 // pred_check_branch
    %73 = sbr.rel (0) target = $region85
  $region84: #{forward.5} parent=0 // pred_region
    _
  $region85: #{forward.5} parent=0 // pred_fallthru
    _
  // Predicated region
  $region86: #{forward.5} parent=0 // pred_check
    _
  $region87: #{forward.5} parent=0 // pred_check_branch
    %75 = sbr.rel (0) target = $region89
  $region88: #{forward.5} parent=0 // pred_region
    _
  $region89: #{forward.5} parent=0 // pred_fallthru
    _
  // Predicated region
  $region90: #{forward.5} parent=0 // pred_check
    _
  $region91: #{forward.5} parent=0 // pred_check_branch
    %77 = sbr.rel (0) target = $region93
  $region92: #{forward.5} parent=0 // pred_region
    _
  $region93: #{forward.5} parent=0 // pred_fallthru
    _
  // Predicated region
  $region94: #{forward.5} parent=0 // pred_check
    _
  $region95: #{forward.5} parent=0 // pred_check_branch
    %79 = sbr.rel (0) target = $region97
  $region96: #{forward.5} parent=0 // pred_region
    _
  $region97: #{forward.5} parent=0 // pred_fallthru
    _
  // Predicated region
  $region98: #{forward.5} parent=0 // pred_check
    _
  $region99: #{forward.5} parent=0 // pred_check_branch
    %81 = sbr.rel (0) target = $region101
  $region100: #{forward.5} parent=0 // pred_region
    _
  $region101: #{forward.5} parent=0 // pred_fallthru
    _
  // Predicated region
  $region102: #{forward.5} parent=0 // pred_check
    _
  $region103: #{forward.5} parent=0 // pred_check_branch
    %83 = sbr.rel (0) target = $region105
  $region104: #{forward.5} parent=0 // pred_region
    _
  $region105: #{forward.5} parent=0 // pred_fallthru
    _
  // Predicated region
  $region106: #{forward.5} parent=0 // pred_check
    _
  $region107: #{forward.5} parent=0 // pred_check_branch
    %85 = sbr.rel (0) target = $region109
  $region108: #{forward.5} parent=0 // pred_region
    _
  $region109: #{forward.5} parent=0 // pred_fallthru
    _
  %v87 = vld [vmem:[%s0] sm:$0xf]
  %v88 = vld [vmem:[%s0 + $0x4] sm:$0xf]
  %v89 = vld [vmem:[%s0 + $0x8] sm:$0xf]
  %v90 = vld [vmem:[%s0 + $0xc] sm:$0xf]
  %v91 = vld [vmem:[%s0 + $0x10] sm:$0xf]
  %v92 = vld [vmem:[%s0 + $0x14] sm:$0xf]
  %v93 = vld [vmem:[%s0 + $0x18] sm:$0xf]
  %v94 = vld [vmem:[%s0 + $0x1c] sm:$0xf]
  %v95 = vld [vmem:[%s0 + $0x20] sm:$0xf]
  %v96 = vld [vmem:[%s0 + $0x24] sm:$0xf]
  %v97 = vld [vmem:[%s0 + $0x28] sm:$0xf]
  %v98 = vld [vmem:[%s0 + $0x2c] sm:$0xf]
  %v99 = vld [vmem:[%s0 + $0x30] sm:$0xf]
  %v100 = vld [vmem:[%s0 + $0x34] sm:$0xf]
  %v101 = vld [vmem:[%s0 + $0x38] sm:$0xf]
  %v102 = vld [vmem:[%s0 + $0x3c] sm:$0xf]
  %v103 = vld [vmem:[%s1] sm:$0xf]
  %v104 = vld [vmem:[%s1 + $0x4] sm:$0xf]
  %v105 = vld [vmem:[%s1 + $0x8] sm:$0xf]
  %v106 = vld [vmem:[%s1 + $0xc] sm:$0xf]
  %v123 = vunpack.c.l.b16 %v87
  %v124 = vunpack.c.l.b16 %v88
  %v125 = vunpack.c.l.b16 %v89
  %v126 = vunpack.c.l.b16 %v90
  %v127 = vunpack.c.l.b16 %v91
  %v128 = vunpack.c.l.b16 %v92
  %v129 = vunpack.c.l.b16 %v93
  %v130 = vunpack.c.l.b16 %v94
  %v131 = vunpack.c.l.b16 %v95
  %v132 = vunpack.c.l.b16 %v96
  %v133 = vunpack.c.l.b16 %v97
  %v134 = vunpack.c.l.b16 %v98
  %v135 = vunpack.c.l.b16 %v99
  %v136 = vunpack.c.l.b16 %v100
  %v137 = vunpack.c.l.b16 %v101
  %v138 = vunpack.c.l.b16 %v102
  %v139 = vpack.c.b16 %v124, %v123
  %v140 = vpack.c.b16 %v126, %v125
  %v141 = vpack.c.b16 %v128, %v127
  %v142 = vpack.c.b16 %v130, %v129
  %v143 = vpack.c.b16 %v132, %v131
  %v144 = vpack.c.b16 %v134, %v133
  %v145 = vpack.c.b16 %v136, %v135
  %v146 = vpack.c.b16 %v138, %v137
  %v151 = vunpack.c.l.b16 %v103
  %v152 = vunpack.c.l.b16 %v104
  %v153 = vunpack.c.l.b16 %v105
  %v154 = vunpack.c.l.b16 %v106
  %v155 = vpack.c.b16 %v152, %v151
  %v156 = vpack.c.b16 %v154, %v153
  %vm159 = vcmask 261120
  %v161 = vsel %vm159, %v139, 0
  %v164 = vsel %vm159, %v140, 0
  %v167 = vsel %vm159, %v141, 0
  %v170 = vsel %vm159, %v142, 0
  %v173 = vsel %vm159, %v143, 0
  %v176 = vsel %vm159, %v144, 0
  %v179 = vsel %vm159, %v145, 0
  %v182 = vsel %vm159, %v146, 0
  %184 = vmatprep.subr.bf16.mxu0 0
  %185 = vmatpush1.bf16.msra.mxu0 %v155
  %186 = vmatprep.subr.bf16.mxu0 0
  %187 = vmatpush1.bf16.msra.mxu0 %v156
  %188 = vmatprep.subr.bf16.mxu0 0
  %189 = vmatpush1.bf16.msra.mxu0 0
  %190 = vmatprep.subr.bf16.mxu0 0
  %191 = vmatpush1.bf16.msra.mxu0 0
  %192 = vmatprep.subr.bf16.mxu0 0
  %193 = vmatpush1.bf16.msra.mxu0 0
  %194 = vmatprep.subr.bf16.mxu0 0
  %195 = vmatpush1.bf16.msra.mxu0 0
  %196 = vmatprep.subr.bf16.mxu0 0
  %197 = vmatpush1.bf16.msra.mxu0 0
  %198 = vmatprep.subr.bf16.mxu0 0
  %199 = vmatpush1.bf16.msra.mxu0 0
  %200 = vmatprep.subr.bf16.mxu0 0
  %201 = vmatpush1.bf16.msra.mxu0 0
  %202 = vmatprep.subr.bf16.mxu0 0
  %203 = vmatpush1.bf16.msra.mxu0 0
  %204 = vmatprep.subr.bf16.mxu0 0
  %205 = vmatpush1.bf16.msra.mxu0 0
  %206 = vmatprep.subr.bf16.mxu0 0
  %207 = vmatpush1.bf16.msra.mxu0 0
  %208 = vmatprep.subr.bf16.mxu0 0
  %209 = vmatpush1.bf16.msra.mxu0 0
  %210 = vmatprep.subr.bf16.mxu0 0
  %211 = vmatpush1.bf16.msra.mxu0 0
  %212 = vmatprep.subr.bf16.mxu0 0
  %213 = vmatpush1.bf16.msra.mxu0 0
  %214 = vmatprep.subr.bf16.mxu0 0
  %215 = vmatpush1.bf16.msra.mxu0 0
  %216 = vmatprep.mubr.bf16.mxu0 0
  %217 = vmatmul.mubr.bf16.gmra.mrb[0].mxu0 %v161
  %v218 = vpop.f32.mrb[0].mxu0
  %v219 = vadd.f32 0.0, %v218
  %v220 = vpop.f32.mrb[0].mxu0
  %v221 = vpop.f32.mrb[0].mxu0
  %v222 = vadd.f32 0.0, %v221
  %v223 = vpop.f32.mrb[0].mxu0
  %224 = vmatprep.mubr.bf16.mxu0 0
  %225 = vmatmul.mubr.bf16.gmra.mrb[0].mxu0 %v164
  %v226 = vpop.f32.mrb[0].mxu0
  %v227 = vadd.f32 0.0, %v226
  %v228 = vpop.f32.mrb[0].mxu0
  %v229 = vpop.f32.mrb[0].mxu0
  %v230 = vadd.f32 0.0, %v229
  %v231 = vpop.f32.mrb[0].mxu0
  %232 = vmatprep.mubr.bf16.mxu0 0
  %233 = vmatmul.mubr.bf16.gmra.mrb[0].mxu0 %v167
  %v234 = vpop.f32.mrb[0].mxu0
  %v235 = vadd.f32 0.0, %v234
  %v236 = vpop.f32.mrb[0].mxu0
  %v237 = vpop.f32.mrb[0].mxu0
  %v238 = vadd.f32 0.0, %v237
  %v239 = vpop.f32.mrb[0].mxu0
  %240 = vmatprep.mubr.bf16.mxu0 0
  %241 = vmatmul.mubr.bf16.gmra.mrb[0].mxu0 %v170
  %v242 = vpop.f32.mrb[0].mxu0
  %v243 = vadd.f32 0.0, %v242
  %v244 = vpop.f32.mrb[0].mxu0
  %v245 = vpop.f32.mrb[0].mxu0
  %v246 = vadd.f32 0.0, %v245
  %v247 = vpop.f32.mrb[0].mxu0
  %248 = vmatprep.mubr.bf16.mxu0 0
  %249 = vmatmul.mubr.bf16.gmra.mrb[0].mxu0 %v173
  %v250 = vpop.f32.mrb[0].mxu0
  %v251 = vadd.f32 0.0, %v250
  %v252 = vpop.f32.mrb[0].mxu0
  %v253 = vpop.f32.mrb[0].mxu0
  %v254 = vadd.f32 0.0, %v253
  %v255 = vpop.f32.mrb[0].mxu0
  %256 = vmatprep.mubr.bf16.mxu0 0
  %257 = vmatmul.mubr.bf16.gmra.mrb[0].mxu0 %v176
  %v258 = vpop.f32.mrb[0].mxu0
  %v259 = vadd.f32 0.0, %v258
  %v260 = vpop.f32.mrb[0].mxu0
  %v261 = vpop.f32.mrb[0].mxu0
  %v262 = vadd.f32 0.0, %v261
  %v263 = vpop.f32.mrb[0].mxu0
  %264 = vmatprep.mubr.bf16.mxu0 0
  %265 = vmatmul.mubr.bf16.gmra.mrb[0].mxu0 %v179
  %v266 = vpop.f32.mrb[0].mxu0
  %v267 = vadd.f32 0.0, %v266
  %v268 = vpop.f32.mrb[0].mxu0
  %v269 = vpop.f32.mrb[0].mxu0
  %v270 = vadd.f32 0.0, %v269
  %v271 = vpop.f32.mrb[0].mxu0
  %272 = vmatprep.mubr.bf16.mxu0 0
  %273 = vmatmul.mubr.bf16.gmra.mrb[0].mxu0 %v182
  %v274 = vpop.f32.mrb[0].mxu0
  %v275 = vadd.f32 0.0, %v274
  %v276 = vpop.f32.mrb[0].mxu0
  %v277 = vpop.f32.mrb[0].mxu0
  %v278 = vadd.f32 0.0, %v277
  %v279 = vpop.f32.mrb[0].mxu0
  %280 = vdwg.mxu0
  %v281 = vld [vmem:[%s2] sm:$0x1]
  %v282 = vld [vmem:[%s3] sm:$0x1]
  %vm283 = vcmask 130048
  %v284 = vsel %vm283, %v219, 0.0
  %v285 = vsel %vm283, %v222, 0.0
  %v286 = vadd.f32 %v284, %v285
  %v287 = vsel %vm283, %v227, 0.0
  %v288 = vadd.f32 %v286, %v287
  %v289 = vsel %vm283, %v230, 0.0
  %v290 = vadd.f32 %v288, %v289
  %v291 = vsel %vm283, %v235, 0.0
  %v292 = vadd.f32 %v290, %v291
  %v293 = vsel %vm283, %v238, 0.0
  %v294 = vadd.f32 %v292, %v293
  %v295 = vsel %vm283, %v243, 0.0
  %v296 = vadd.f32 %v294, %v295
  %v297 = vsel %vm283, %v246, 0.0
  %v298 = vadd.f32 %v296, %v297
  %v299 = vsel %vm283, %v251, 0.0
  %v300 = vadd.f32 %v298, %v299
  %v301 = vsel %vm283, %v254, 0.0
  %v302 = vadd.f32 %v300, %v301
  %v303 = vsel %vm283, %v259, 0.0
  %v304 = vadd.f32 %v302, %v303
  %v305 = vsel %vm283, %v262, 0.0
  %v306 = vadd.f32 %v304, %v305
  %v307 = vsel %vm283, %v267, 0.0
  %v308 = vadd.f32 %v306, %v307
  %v309 = vsel %vm283, %v270, 0.0
  %v310 = vadd.f32 %v308, %v309
  %v311 = vsel %vm283, %v275, 0.0
  %v312 = vadd.f32 %v310, %v311
  %v313 = vsel %vm283, %v278, 0.0
  %v314 = vadd.f32 %v312, %v313
  %v315 = vrot.slane %v314, 4
  %v316 = vadd.f32 %v314, %v315
  %v317 = vrot.slane %v316, 2
  %v318 = vadd.f32 %v316, %v317
  %v319 = vrot.slane %v318, 1
  %v320 = vadd.f32 %v318, %v319
  %v321 = vmul.f32 %v219, %v219
  %v322 = vmul.f32 %v222, %v222
  %v323 = vmul.f32 %v227, %v227
  %v324 = vmul.f32 %v230, %v230
  %v325 = vmul.f32 %v235, %v235
  %v326 = vmul.f32 %v238, %v238
  %v327 = vmul.f32 %v243, %v243
  %v328 = vmul.f32 %v246, %v246
  %v329 = vmul.f32 %v251, %v251
  %v330 = vmul.f32 %v254, %v254
  %v331 = vmul.f32 %v259, %v259
  %v332 = vmul.f32 %v262, %v262
  %v333 = vmul.f32 %v267, %v267
  %v334 = vmul.f32 %v270, %v270
  %v335 = vmul.f32 %v275, %v275
  %v336 = vmul.f32 %v278, %v278
  %v337 = vsel %vm283, %v321, 0.0
  %v338 = vsel %vm283, %v322, 0.0
  %v339 = vadd.f32 %v337, %v338
  %v340 = vsel %vm283, %v323, 0.0
  %v341 = vadd.f32 %v339, %v340
  %v342 = vsel %vm283, %v324, 0.0
  %v343 = vadd.f32 %v341, %v342
  %v344 = vsel %vm283, %v325, 0.0
  %v345 = vadd.f32 %v343, %v344
  %v346 = vsel %vm283, %v326, 0.0
  %v347 = vadd.f32 %v345, %v346
  %v348 = vsel %vm283, %v327, 0.0
  %v349 = vadd.f32 %v347, %v348
  %v350 = vsel %vm283, %v328, 0.0
  %v351 = vadd.f32 %v349, %v350
  %v352 = vsel %vm283, %v329, 0.0
  %v353 = vadd.f32 %v351, %v352
  %v354 = vsel %vm283, %v330, 0.0
  %v355 = vadd.f32 %v353, %v354
  %v356 = vsel %vm283, %v331, 0.0
  %v357 = vadd.f32 %v355, %v356
  %v358 = vsel %vm283, %v332, 0.0
  %v359 = vadd.f32 %v357, %v358
  %v360 = vsel %vm283, %v333, 0.0
  %v361 = vadd.f32 %v359, %v360
  %v362 = vsel %vm283, %v334, 0.0
  %v363 = vadd.f32 %v361, %v362
  %v364 = vsel %vm283, %v335, 0.0
  %v365 = vadd.f32 %v363, %v364
  %v366 = vsel %vm283, %v336, 0.0
  %v367 = vadd.f32 %v365, %v366
  %v368 = vrot.slane %v367, 4
  %v369 = vadd.f32 %v367, %v368
  %v370 = vrot.slane %v369, 2
  %v371 = vadd.f32 %v369, %v370
  %v372 = vrot.slane %v371, 1
  %v373 = vadd.f32 %v371, %v372
  %v374 = vmul.f32 %v320, 0.0078125
  %v375 = vmul.f32 %v373, 0.0078125
  %v376 = vmul.f32 %v374, %v374
  %v377 = vsub.f32 %v375, %v376
  %v378 = vmax.f32 %v377, 0.0
  %v379 = vsub.f32 %v219, %v374
  %v380 = vsub.f32 %v222, %v374
  %v381 = vsub.f32 %v227, %v374
  %v382 = vsub.f32 %v230, %v374
  %v383 = vsub.f32 %v235, %v374
  %v384 = vsub.f32 %v238, %v374
  %v385 = vsub.f32 %v243, %v374
  %v386 = vsub.f32 %v246, %v374
  %v387 = vsub.f32 %v251, %v374
  %v388 = vsub.f32 %v254, %v374
  %v389 = vsub.f32 %v259, %v374
  %v390 = vsub.f32 %v262, %v374
  %v391 = vsub.f32 %v267, %v374
  %v392 = vsub.f32 %v270, %v374
  %v393 = vsub.f32 %v275, %v374
  %v394 = vsub.f32 %v278, %v374
  %v395 = vadd.f32 %v378, 0.001
  %v396 = vrsqrt.pop %v395
  %v397 = vmul.f32 %v379, %v396
  %v398 = vmul.f32 %v380, %v396
  %v399 = vmul.f32 %v381, %v396
  %v400 = vmul.f32 %v382, %v396
  %v401 = vmul.f32 %v383, %v396
  %v402 = vmul.f32 %v384, %v396
  %v403 = vmul.f32 %v385, %v396
  %v404 = vmul.f32 %v386, %v396
  %v405 = vmul.f32 %v387, %v396
  %v406 = vmul.f32 %v388, %v396
  %v407 = vmul.f32 %v389, %v396
  %v408 = vmul.f32 %v390, %v396
  %v409 = vmul.f32 %v391, %v396
  %v410 = vmul.f32 %v392, %v396
  %v411 = vmul.f32 %v393, %v396
  %v412 = vmul.f32 %v394, %v396
  %v414 = vlaneseq
  %v415 = vshrl.u32 %v414, 7
  %v416 = vsub.s32 0, %v415
  %v417 = vrot.slane %v281, %v416
  %v419 = vmul.f32 %v397, %v417
  %v420 = vmul.f32 %v398, %v417
  %v421 = vmul.f32 %v399, %v417
  %v422 = vmul.f32 %v400, %v417
  %v423 = vmul.f32 %v401, %v417
  %v424 = vmul.f32 %v402, %v417
  %v425 = vmul.f32 %v403, %v417
  %v426 = vmul.f32 %v404, %v417
  %v427 = vmul.f32 %v405, %v417
  %v428 = vmul.f32 %v406, %v417
  %v429 = vmul.f32 %v407, %v417
  %v430 = vmul.f32 %v408, %v417
  %v431 = vmul.f32 %v409, %v417
  %v432 = vmul.f32 %v410, %v417
  %v433 = vmul.f32 %v411, %v417
  %v434 = vmul.f32 %v412, %v417
  %v436 = vlaneseq
  %v437 = vshrl.u32 %v436, 7
  %v438 = vsub.s32 0, %v437
  %v439 = vrot.slane %v282, %v438
  %v441 = vadd.f32 %v419, %v439
  %v442 = vadd.f32 %v420, %v439
  %v443 = vadd.f32 %v421, %v439
  %v444 = vadd.f32 %v422, %v439
  %v445 = vadd.f32 %v423, %v439
  %v446 = vadd.f32 %v424, %v439
  %v447 = vadd.f32 %v425, %v439
  %v448 = vadd.f32 %v426, %v439
  %v449 = vadd.f32 %v427, %v439
  %v450 = vadd.f32 %v428, %v439
  %v451 = vadd.f32 %v429, %v439
  %v452 = vadd.f32 %v430, %v439
  %v453 = vadd.f32 %v431, %v439
  %v454 = vadd.f32 %v432, %v439
  %v455 = vadd.f32 %v433, %v439
  %v456 = vadd.f32 %v434, %v439
  %v457 = vxor.u32 %v441, 2147483648
  %v458 = vxor.u32 %v442, 2147483648
  %v459 = vxor.u32 %v443, 2147483648
  %v460 = vxor.u32 %v444, 2147483648
  %v461 = vxor.u32 %v445, 2147483648
  %v462 = vxor.u32 %v446, 2147483648
  %v463 = vxor.u32 %v447, 2147483648
  %v464 = vxor.u32 %v448, 2147483648
  %v465 = vxor.u32 %v449, 2147483648
  %v466 = vxor.u32 %v450, 2147483648
  %v467 = vxor.u32 %v451, 2147483648
  %v468 = vxor.u32 %v452, 2147483648
  %v469 = vxor.u32 %v453, 2147483648
  %v470 = vxor.u32 %v454, 2147483648
  %v471 = vxor.u32 %v455, 2147483648
  %v472 = vxor.u32 %v456, 2147483648
  %v473 = vmul.f32 %v457, 1.442695
  %v474 = vpow.pop %v473
  %v475 = vmul.f32 %v458, 1.442695
  %v476 = vpow.pop %v475
  %v477 = vmul.f32 %v459, 1.442695
  %v478 = vpow.pop %v477
  %v479 = vmul.f32 %v460, 1.442695
  %v480 = vpow.pop %v479
  %v481 = vmul.f32 %v461, 1.442695
  %v482 = vpow.pop %v481
  %v483 = vmul.f32 %v462, 1.442695
  %v484 = vpow.pop %v483
  %v485 = vmul.f32 %v463, 1.442695
  %v486 = vpow.pop %v485
  %v487 = vmul.f32 %v464, 1.442695
  %v488 = vpow.pop %v487
  %v489 = vmul.f32 %v465, 1.442695
  %v490 = vpow.pop %v489
  %v491 = vmul.f32 %v466, 1.442695
  %v492 = vpow.pop %v491
  %v493 = vmul.f32 %v467, 1.442695
  %v494 = vpow.pop %v493
  %v495 = vmul.f32 %v468, 1.442695
  %v496 = vpow.pop %v495
  %v497 = vmul.f32 %v469, 1.442695
  %v498 = vpow.pop %v497
  %v499 = vmul.f32 %v470, 1.442695
  %v500 = vpow.pop %v499
  %v501 = vmul.f32 %v471, 1.442695
  %v502 = vpow.pop %v501
  %v503 = vmul.f32 %v472, 1.442695
  %v504 = vpow.pop %v503
  %v505 = vadd.f32 %v474, 1.0
  %v506 = vadd.f32 %v476, 1.0
  %v507 = vadd.f32 %v478, 1.0
  %v508 = vadd.f32 %v480, 1.0
  %v509 = vadd.f32 %v482, 1.0
  %v510 = vadd.f32 %v484, 1.0
  %v511 = vadd.f32 %v486, 1.0
  %v512 = vadd.f32 %v488, 1.0
  %v513 = vadd.f32 %v490, 1.0
  %v514 = vadd.f32 %v492, 1.0
  %v515 = vadd.f32 %v494, 1.0
  %v516 = vadd.f32 %v496, 1.0
  %v517 = vadd.f32 %v498, 1.0
  %v518 = vadd.f32 %v500, 1.0
  %v519 = vadd.f32 %v502, 1.0
  %v520 = vadd.f32 %v504, 1.0
  %v521 = vrcp.pop %v505
  %v522 = vmul.f32 1.0, %v521
  %v523 = vrcp.pop %v506
  %v524 = vmul.f32 1.0, %v523
  %v525 = vrcp.pop %v507
  %v526 = vmul.f32 1.0, %v525
  %v527 = vrcp.pop %v508
  %v528 = vmul.f32 1.0, %v527
  %v529 = vrcp.pop %v509
  %v530 = vmul.f32 1.0, %v529
  %v531 = vrcp.pop %v510
  %v532 = vmul.f32 1.0, %v531
  %v533 = vrcp.pop %v511
  %v534 = vmul.f32 1.0, %v533
  %v535 = vrcp.pop %v512
  %v536 = vmul.f32 1.0, %v535
  %v537 = vrcp.pop %v513
  %v538 = vmul.f32 1.0, %v537
  %v539 = vrcp.pop %v514
  %v540 = vmul.f32 1.0, %v539
  %v541 = vrcp.pop %v515
  %v542 = vmul.f32 1.0, %v541
  %v543 = vrcp.pop %v516
  %v544 = vmul.f32 1.0, %v543
  %v545 = vrcp.pop %v517
  %v546 = vmul.f32 1.0, %v545
  %v547 = vrcp.pop %v518
  %v548 = vmul.f32 1.0, %v547
  %v549 = vrcp.pop %v519
  %v550 = vmul.f32 1.0, %v549
  %v551 = vrcp.pop %v520
  %v552 = vmul.f32 1.0, %v551
  %v553 = vmul.f32 %v441, %v522
  %v554 = vmul.f32 %v442, %v524
  %v555 = vmul.f32 %v443, %v526
  %v556 = vmul.f32 %v444, %v528
  %v557 = vmul.f32 %v445, %v530
  %v558 = vmul.f32 %v446, %v532
  %v559 = vmul.f32 %v447, %v534
  %v560 = vmul.f32 %v448, %v536
  %v561 = vmul.f32 %v449, %v538
  %v562 = vmul.f32 %v450, %v540
  %v563 = vmul.f32 %v451, %v542
  %v564 = vmul.f32 %v452, %v544
  %v565 = vmul.f32 %v453, %v546
  %v566 = vmul.f32 %v454, %v548
  %v567 = vmul.f32 %v455, %v550
  %v568 = vmul.f32 %v456, %v552
  %v569 = vld [vmem:[%s4] sm:$0xf]
  %v570 = vld [vmem:[%s4 + $0x4] sm:$0xf]
  %v571 = vld [vmem:[%s4 + $0x8] sm:$0xf]
  %v572 = vld [vmem:[%s4 + $0xc] sm:$0xf]
  %v577 = vunpack.c.l.b16 %v569
  %v578 = vunpack.c.l.b16 %v570
  %v579 = vunpack.c.l.b16 %v571
  %v580 = vunpack.c.l.b16 %v572
  %v581 = vpack.c.b16 %v578, %v577
  %v582 = vpack.c.b16 %v580, %v579
  %585 = vmatprep.subr.bf16.mxu0 0
  %586 = vmatpush1.bf16.msra.mxu0 %v581
  %587 = vmatprep.subr.bf16.mxu0 0
  %588 = vmatpush1.bf16.msra.mxu0 %v582
  %589 = vmatprep.subr.bf16.mxu0 0
  %590 = vmatpush1.bf16.msra.mxu0 0
  %591 = vmatprep.subr.bf16.mxu0 0
  %592 = vmatpush1.bf16.msra.mxu0 0
  %593 = vmatprep.subr.bf16.mxu0 0
  %594 = vmatpush1.bf16.msra.mxu0 0
  %595 = vmatprep.subr.bf16.mxu0 0
  %596 = vmatpush1.bf16.msra.mxu0 0
  %597 = vmatprep.subr.bf16.mxu0 0
  %598 = vmatpush1.bf16.msra.mxu0 0
  %599 = vmatprep.subr.bf16.mxu0 0
  %600 = vmatpush1.bf16.msra.mxu0 0
  %601 = vmatprep.subr.bf16.mxu0 0
  %602 = vmatpush1.bf16.msra.mxu0 0
  %603 = vmatprep.subr.bf16.mxu0 0
  %604 = vmatpush1.bf16.msra.mxu0 0
  %605 = vmatprep.subr.bf16.mxu0 0
  %606 = vmatpush1.bf16.msra.mxu0 0
  %607 = vmatprep.subr.bf16.mxu0 0
  %608 = vmatpush1.bf16.msra.mxu0 0
  %609 = vmatprep.subr.bf16.mxu0 0
  %610 = vmatpush1.bf16.msra.mxu0 0
  %611 = vmatprep.subr.bf16.mxu0 0
  %612 = vmatpush1.bf16.msra.mxu0 0
  %613 = vmatprep.subr.bf16.mxu0 0
  %614 = vmatpush1.bf16.msra.mxu0 0
  %615 = vmatprep.subr.bf16.mxu0 0
  %616 = vmatpush1.bf16.msra.mxu0 0
  %617 = vmatprep.mubr.bf16.mxu0 0
  %618 = vmatmul.mubr.bf16.gmra.mrb[0].mxu0 %v161
  %v619 = vpop.f32.mrb[0].mxu0
  %v620 = vadd.f32 0.0, %v619
  %v621 = vpop.f32.mrb[0].mxu0
  %v622 = vpop.f32.mrb[0].mxu0
  %v623 = vadd.f32 0.0, %v622
  %v624 = vpop.f32.mrb[0].mxu0
  %625 = vmatprep.mubr.bf16.mxu0 0
  %626 = vmatmul.mubr.bf16.gmra.mrb[0].mxu0 %v164
  %v627 = vpop.f32.mrb[0].mxu0
  %v628 = vadd.f32 0.0, %v627
  %v629 = vpop.f32.mrb[0].mxu0
  %v630 = vpop.f32.mrb[0].mxu0
  %v631 = vadd.f32 0.0, %v630
  %v632 = vpop.f32.mrb[0].mxu0
  %633 = vmatprep.mubr.bf16.mxu0 0
  %634 = vmatmul.mubr.bf16.gmra.mrb[0].mxu0 %v167
  %v635 = vpop.f32.mrb[0].mxu0
  %v636 = vadd.f32 0.0, %v635
  %v637 = vpop.f32.mrb[0].mxu0
  %v638 = vpop.f32.mrb[0].mxu0
  %v639 = vadd.f32 0.0, %v638
  %v640 = vpop.f32.mrb[0].mxu0
  %641 = vmatprep.mubr.bf16.mxu0 0
  %642 = vmatmul.mubr.bf16.gmra.mrb[0].mxu0 %v170
  %v643 = vpop.f32.mrb[0].mxu0
  %v644 = vadd.f32 0.0, %v643
  %v645 = vpop.f32.mrb[0].mxu0
  %v646 = vpop.f32.mrb[0].mxu0
  %v647 = vadd.f32 0.0, %v646
  %v648 = vpop.f32.mrb[0].mxu0
  %649 = vmatprep.mubr.bf16.mxu0 0
  %650 = vmatmul.mubr.bf16.gmra.mrb[0].mxu0 %v173
  %v651 = vpop.f32.mrb[0].mxu0
  %v652 = vadd.f32 0.0, %v651
  %v653 = vpop.f32.mrb[0].mxu0
  %v654 = vpop.f32.mrb[0].mxu0
  %v655 = vadd.f32 0.0, %v654
  %v656 = vpop.f32.mrb[0].mxu0
  %657 = vmatprep.mubr.bf16.mxu0 0
  %658 = vmatmul.mubr.bf16.gmra.mrb[0].mxu0 %v176
  %v659 = vpop.f32.mrb[0].mxu0
  %v660 = vadd.f32 0.0, %v659
  %v661 = vpop.f32.mrb[0].mxu0
  %v662 = vpop.f32.mrb[0].mxu0
  %v663 = vadd.f32 0.0, %v662
  %v664 = vpop.f32.mrb[0].mxu0
  %665 = vmatprep.mubr.bf16.mxu0 0
  %666 = vmatmul.mubr.bf16.gmra.mrb[0].mxu0 %v179
  %v667 = vpop.f32.mrb[0].mxu0
  %v668 = vadd.f32 0.0, %v667
  %v669 = vpop.f32.mrb[0].mxu0
  %v670 = vpop.f32.mrb[0].mxu0
  %v671 = vadd.f32 0.0, %v670
  %v672 = vpop.f32.mrb[0].mxu0
  %673 = vmatprep.mubr.bf16.mxu0 0
  %674 = vmatmul.mubr.bf16.gmra.mrb[0].mxu0 %v182
  %v675 = vpop.f32.mrb[0].mxu0
  %v676 = vadd.f32 0.0, %v675
  %v677 = vpop.f32.mrb[0].mxu0
  %v678 = vpop.f32.mrb[0].mxu0
  %v679 = vadd.f32 0.0, %v678
  %v680 = vpop.f32.mrb[0].mxu0
  %681 = vdwg.mxu0
  %v682 = vld [vmem:[%s5] sm:$0x1]
  %v683 = vld [vmem:[%s6] sm:$0x1]
  %v684 = vsel %vm283, %v620, 0.0
  %v685 = vsel %vm283, %v623, 0.0
  %v686 = vadd.f32 %v684, %v685
  %v687 = vsel %vm283, %v628, 0.0
  %v688 = vadd.f32 %v686, %v687
  %v689 = vsel %vm283, %v631, 0.0
  %v690 = vadd.f32 %v688, %v689
  %v691 = vsel %vm283, %v636, 0.0
  %v692 = vadd.f32 %v690, %v691
  %v693 = vsel %vm283, %v639, 0.0
  %v694 = vadd.f32 %v692, %v693
  %v695 = vsel %vm283, %v644, 0.0
  %v696 = vadd.f32 %v694, %v695
  %v697 = vsel %vm283, %v647, 0.0
  %v698 = vadd.f32 %v696, %v697
  %v699 = vsel %vm283, %v652, 0.0
  %v700 = vadd.f32 %v698, %v699
  %v701 = vsel %vm283, %v655, 0.0
  %v702 = vadd.f32 %v700, %v701
  %v703 = vsel %vm283, %v660, 0.0
  %v704 = vadd.f32 %v702, %v703
  %v705 = vsel %vm283, %v663, 0.0
  %v706 = vadd.f32 %v704, %v705
  %v707 = vsel %vm283, %v668, 0.0
  %v708 = vadd.f32 %v706, %v707
  %v709 = vsel %vm283, %v671, 0.0
  %v710 = vadd.f32 %v708, %v709
  %v711 = vsel %vm283, %v676, 0.0
  %v712 = vadd.f32 %v710, %v711
  %v713 = vsel %vm283, %v679, 0.0
  %v714 = vadd.f32 %v712, %v713
  %v715 = vrot.slane %v714, 4
  %v716 = vadd.f32 %v714, %v715
  %v717 = vrot.slane %v716, 2
  %v718 = vadd.f32 %v716, %v717
  %v719 = vrot.slane %v718, 1
  %v720 = vadd.f32 %v718, %v719
  %v721 = vmul.f32 %v620, %v620
  %v722 = vmul.f32 %v623, %v623
  %v723 = vmul.f32 %v628, %v628
  %v724 = vmul.f32 %v631, %v631
  %v725 = vmul.f32 %v636, %v636
  %v726 = vmul.f32 %v639, %v639
  %v727 = vmul.f32 %v644, %v644
  %v728 = vmul.f32 %v647, %v647
  %v729 = vmul.f32 %v652, %v652
  %v730 = vmul.f32 %v655, %v655
  %v731 = vmul.f32 %v660, %v660
  %v732 = vmul.f32 %v663, %v663
  %v733 = vmul.f32 %v668, %v668
  %v734 = vmul.f32 %v671, %v671
  %v735 = vmul.f32 %v676, %v676
  %v736 = vmul.f32 %v679, %v679
  %v737 = vsel %vm283, %v721, 0.0
  %v738 = vsel %vm283, %v722, 0.0
  %v739 = vadd.f32 %v737, %v738
  %v740 = vsel %vm283, %v723, 0.0
  %v741 = vadd.f32 %v739, %v740
  %v742 = vsel %vm283, %v724, 0.0
  %v743 = vadd.f32 %v741, %v742
  %v744 = vsel %vm283, %v725, 0.0
  %v745 = vadd.f32 %v743, %v744
  %v746 = vsel %vm283, %v726, 0.0
  %v747 = vadd.f32 %v745, %v746
  %v748 = vsel %vm283, %v727, 0.0
  %v749 = vadd.f32 %v747, %v748
  %v750 = vsel %vm283, %v728, 0.0
  %v751 = vadd.f32 %v749, %v750
  %v752 = vsel %vm283, %v729, 0.0
  %v753 = vadd.f32 %v751, %v752
  %v754 = vsel %vm283, %v730, 0.0
  %v755 = vadd.f32 %v753, %v754
  %v756 = vsel %vm283, %v731, 0.0
  %v757 = vadd.f32 %v755, %v756
  %v758 = vsel %vm283, %v732, 0.0
  %v759 = vadd.f32 %v757, %v758
  %v760 = vsel %vm283, %v733, 0.0
  %v761 = vadd.f32 %v759, %v760
  %v762 = vsel %vm283, %v734, 0.0
  %v763 = vadd.f32 %v761, %v762
  %v764 = vsel %vm283, %v735, 0.0
  %v765 = vadd.f32 %v763, %v764
  %v766 = vsel %vm283, %v736, 0.0
  %v767 = vadd.f32 %v765, %v766
  %v768 = vrot.slane %v767, 4
  %v769 = vadd.f32 %v767, %v768
  %v770 = vrot.slane %v769, 2
  %v771 = vadd.f32 %v769, %v770
  %v772 = vrot.slane %v771, 1
  %v773 = vadd.f32 %v771, %v772
  %v774 = vmul.f32 %v720, 0.0078125
  %v775 = vmul.f32 %v773, 0.0078125
  %v776 = vmul.f32 %v774, %v774
  %v777 = vsub.f32 %v775, %v776
  %v778 = vmax.f32 %v777, 0.0
  %v779 = vsub.f32 %v620, %v774
  %v780 = vsub.f32 %v623, %v774
  %v781 = vsub.f32 %v628, %v774
  %v782 = vsub.f32 %v631, %v774
  %v783 = vsub.f32 %v636, %v774
  %v784 = vsub.f32 %v639, %v774
  %v785 = vsub.f32 %v644, %v774
  %v786 = vsub.f32 %v647, %v774
  %v787 = vsub.f32 %v652, %v774
  %v788 = vsub.f32 %v655, %v774
  %v789 = vsub.f32 %v660, %v774
  %v790 = vsub.f32 %v663, %v774
  %v791 = vsub.f32 %v668, %v774
  %v792 = vsub.f32 %v671, %v774
  %v793 = vsub.f32 %v676, %v774
  %v794 = vsub.f32 %v679, %v774
  %v795 = vadd.f32 %v778, 0.001
  %v796 = vrsqrt.pop %v795
  %v797 = vmul.f32 %v779, %v796
  %v798 = vmul.f32 %v780, %v796
  %v799 = vmul.f32 %v781, %v796
  %v800 = vmul.f32 %v782, %v796
  %v801 = vmul.f32 %v783, %v796
  %v802 = vmul.f32 %v784, %v796
  %v803 = vmul.f32 %v785, %v796
  %v804 = vmul.f32 %v786, %v796
  %v805 = vmul.f32 %v787, %v796
  %v806 = vmul.f32 %v788, %v796
  %v807 = vmul.f32 %v789, %v796
  %v808 = vmul.f32 %v790, %v796
  %v809 = vmul.f32 %v791, %v796
  %v810 = vmul.f32 %v792, %v796
  %v811 = vmul.f32 %v793, %v796
  %v812 = vmul.f32 %v794, %v796
  %v814 = vlaneseq
  %v815 = vshrl.u32 %v814, 7
  %v816 = vsub.s32 0, %v815
  %v817 = vrot.slane %v682, %v816
  %v819 = vmul.f32 %v797, %v817
  %v820 = vmul.f32 %v798, %v817
  %v821 = vmul.f32 %v799, %v817
  %v822 = vmul.f32 %v800, %v817
  %v823 = vmul.f32 %v801, %v817
  %v824 = vmul.f32 %v802, %v817
  %v825 = vmul.f32 %v803, %v817
  %v826 = vmul.f32 %v804, %v817
  %v827 = vmul.f32 %v805, %v817
  %v828 = vmul.f32 %v806, %v817
  %v829 = vmul.f32 %v807, %v817
  %v830 = vmul.f32 %v808, %v817
  %v831 = vmul.f32 %v809, %v817
  %v832 = vmul.f32 %v810, %v817
  %v833 = vmul.f32 %v811, %v817
  %v834 = vmul.f32 %v812, %v817
  %v836 = vlaneseq
  %v837 = vshrl.u32 %v836, 7
  %v838 = vsub.s32 0, %v837
  %v839 = vrot.slane %v683, %v838
  %v841 = vadd.f32 %v819, %v839
  %v842 = vadd.f32 %v820, %v839
  %v843 = vadd.f32 %v821, %v839
  %v844 = vadd.f32 %v822, %v839
  %v845 = vadd.f32 %v823, %v839
  %v846 = vadd.f32 %v824, %v839
  %v847 = vadd.f32 %v825, %v839
  %v848 = vadd.f32 %v826, %v839
  %v849 = vadd.f32 %v827, %v839
  %v850 = vadd.f32 %v828, %v839
  %v851 = vadd.f32 %v829, %v839
  %v852 = vadd.f32 %v830, %v839
  %v853 = vadd.f32 %v831, %v839
  %v854 = vadd.f32 %v832, %v839
  %v855 = vadd.f32 %v833, %v839
  %v856 = vadd.f32 %v834, %v839
  %v857 = vxor.u32 %v841, 2147483648
  %v858 = vxor.u32 %v842, 2147483648
  %v859 = vxor.u32 %v843, 2147483648
  %v860 = vxor.u32 %v844, 2147483648
  %v861 = vxor.u32 %v845, 2147483648
  %v862 = vxor.u32 %v846, 2147483648
  %v863 = vxor.u32 %v847, 2147483648
  %v864 = vxor.u32 %v848, 2147483648
  %v865 = vxor.u32 %v849, 2147483648
  %v866 = vxor.u32 %v850, 2147483648
  %v867 = vxor.u32 %v851, 2147483648
  %v868 = vxor.u32 %v852, 2147483648
  %v869 = vxor.u32 %v853, 2147483648
  %v870 = vxor.u32 %v854, 2147483648
  %v871 = vxor.u32 %v855, 2147483648
  %v872 = vxor.u32 %v856, 2147483648
  %v873 = vmul.f32 %v857, 1.442695
  %v874 = vpow.pop %v873
  %v875 = vmul.f32 %v858, 1.442695
  %v876 = vpow.pop %v875
  %v877 = vmul.f32 %v859, 1.442695
  %v878 = vpow.pop %v877
  %v879 = vmul.f32 %v860, 1.442695
  %v880 = vpow.pop %v879
  %v881 = vmul.f32 %v861, 1.442695
  %v882 = vpow.pop %v881
  %v883 = vmul.f32 %v862, 1.442695
  %v884 = vpow.pop %v883
  %v885 = vmul.f32 %v863, 1.442695
  %v886 = vpow.pop %v885
  %v887 = vmul.f32 %v864, 1.442695
  %v888 = vpow.pop %v887
  %v889 = vmul.f32 %v865, 1.442695
  %v890 = vpow.pop %v889
  %v891 = vmul.f32 %v866, 1.442695
  %v892 = vpow.pop %v891
  %v893 = vmul.f32 %v867, 1.442695
  %v894 = vpow.pop %v893
  %v895 = vmul.f32 %v868, 1.442695
  %v896 = vpow.pop %v895
  %v897 = vmul.f32 %v869, 1.442695
  %v898 = vpow.pop %v897
  %v899 = vmul.f32 %v870, 1.442695
  %v900 = vpow.pop %v899
  %v901 = vmul.f32 %v871, 1.442695
  %v902 = vpow.pop %v901
  %v903 = vmul.f32 %v872, 1.442695
  %v904 = vpow.pop %v903
  %v905 = vadd.f32 %v874, 1.0
  %v906 = vadd.f32 %v876, 1.0
  %v907 = vadd.f32 %v878, 1.0
  %v908 = vadd.f32 %v880, 1.0
  %v909 = vadd.f32 %v882, 1.0
  %v910 = vadd.f32 %v884, 1.0
  %v911 = vadd.f32 %v886, 1.0
  %v912 = vadd.f32 %v888, 1.0
  %v913 = vadd.f32 %v890, 1.0
  %v914 = vadd.f32 %v892, 1.0
  %v915 = vadd.f32 %v894, 1.0
  %v916 = vadd.f32 %v896, 1.0
  %v917 = vadd.f32 %v898, 1.0
  %v918 = vadd.f32 %v900, 1.0
  %v919 = vadd.f32 %v902, 1.0
  %v920 = vadd.f32 %v904, 1.0
  %v921 = vrcp.pop %v905
  %v922 = vmul.f32 1.0, %v921
  %v923 = vrcp.pop %v906
  %v924 = vmul.f32 1.0, %v923
  %v925 = vrcp.pop %v907
  %v926 = vmul.f32 1.0, %v925
  %v927 = vrcp.pop %v908
  %v928 = vmul.f32 1.0, %v927
  %v929 = vrcp.pop %v909
  %v930 = vmul.f32 1.0, %v929
  %v931 = vrcp.pop %v910
  %v932 = vmul.f32 1.0, %v931
  %v933 = vrcp.pop %v911
  %v934 = vmul.f32 1.0, %v933
  %v935 = vrcp.pop %v912
  %v936 = vmul.f32 1.0, %v935
  %v937 = vrcp.pop %v913
  %v938 = vmul.f32 1.0, %v937
  %v939 = vrcp.pop %v914
  %v940 = vmul.f32 1.0, %v939
  %v941 = vrcp.pop %v915
  %v942 = vmul.f32 1.0, %v941
  %v943 = vrcp.pop %v916
  %v944 = vmul.f32 1.0, %v943
  %v945 = vrcp.pop %v917
  %v946 = vmul.f32 1.0, %v945
  %v947 = vrcp.pop %v918
  %v948 = vmul.f32 1.0, %v947
  %v949 = vrcp.pop %v919
  %v950 = vmul.f32 1.0, %v949
  %v951 = vrcp.pop %v920
  %v952 = vmul.f32 1.0, %v951
  %v953 = vmul.f32 %v841, %v922
  %v954 = vmul.f32 %v842, %v924
  %v955 = vmul.f32 %v843, %v926
  %v956 = vmul.f32 %v844, %v928
  %v957 = vmul.f32 %v845, %v930
  %v958 = vmul.f32 %v846, %v932
  %v959 = vmul.f32 %v847, %v934
  %v960 = vmul.f32 %v848, %v936
  %v961 = vmul.f32 %v849, %v938
  %v962 = vmul.f32 %v850, %v940
  %v963 = vmul.f32 %v851, %v942
  %v964 = vmul.f32 %v852, %v944
  %v965 = vmul.f32 %v853, %v946
  %v966 = vmul.f32 %v854, %v948
  %v967 = vmul.f32 %v855, %v950
  %v968 = vmul.f32 %v856, %v952
  %969 = vst.msk [vmem:[#allocation2] sm:$0xff] %vm283, 0.0
  %vm970 = vcmask 123904
  %971 = vst.msk [vmem:[#allocation2 + $0x8] sm:$0x3] %vm970, 0.0
  %972 = vst.msk [vmem:[#allocation2 + $0x10] sm:$0xff] %vm283, 0.0
  %973 = vst.msk [vmem:[#allocation2 + $0x18] sm:$0x3] %vm970, 0.0
  %974 = vst.msk [vmem:[#allocation2 + $0x20] sm:$0xff] %vm283, 0.0
  %975 = vst.msk [vmem:[#allocation2 + $0x28] sm:$0x3] %vm970, 0.0
  %976 = vst.msk [vmem:[#allocation2 + $0x30] sm:$0xff] %vm283, 0.0
  %977 = vst.msk [vmem:[#allocation2 + $0x38] sm:$0x3] %vm970, 0.0
  %978 = vst.msk [vmem:[#allocation2 + $0x40] sm:$0xff] %vm283, 0.0
  %979 = vst.msk [vmem:[#allocation2 + $0x48] sm:$0x3] %vm970, 0.0
  %980 = vst.msk [vmem:[#allocation2 + $0x50] sm:$0xff] %vm283, 0.0
  %981 = vst.msk [vmem:[#allocation2 + $0x58] sm:$0x3] %vm970, 0.0
  %982 = vst.msk [vmem:[#allocation2 + $0x60] sm:$0xff] %vm283, 0.0
  %983 = vst.msk [vmem:[#allocation2 + $0x68] sm:$0x3] %vm970, 0.0
  %984 = vst.msk [vmem:[#allocation2 + $0x70] sm:$0xff] %vm283, 0.0
  %985 = vst.msk [vmem:[#allocation2 + $0x78] sm:$0x3] %vm970, 0.0
  %986 = vst.msk [vmem:[#allocation2 + $0x80] sm:$0xff] %vm283, 0.0
  %987 = vst.msk [vmem:[#allocation2 + $0x88] sm:$0x3] %vm970, 0.0
  %988 = vst.msk [vmem:[#allocation2 + $0x90] sm:$0xff] %vm283, 0.0
  %989 = vst.msk [vmem:[#allocation2 + $0x98] sm:$0x3] %vm970, 0.0
  %990 = vst.msk [vmem:[#allocation2 + $0xa0] sm:$0xff] %vm283, 0.0
  %991 = vst.msk [vmem:[#allocation2 + $0xa8] sm:$0x3] %vm970, 0.0
  %992 = vst.msk [vmem:[#allocation2 + $0xb0] sm:$0xff] %vm283, 0.0
  %993 = vst.msk [vmem:[#allocation2 + $0xb8] sm:$0x3] %vm970, 0.0
  %994 = vst.msk [vmem:[#allocation2 + $0xc0] sm:$0xff] %vm283, 0.0
  %995 = vst.msk [vmem:[#allocation2 + $0xc8] sm:$0x3] %vm970, 0.0
  %996 = vst.msk [vmem:[#allocation2 + $0xd0] sm:$0xff] %vm283, 0.0
  %997 = vst.msk [vmem:[#allocation2 + $0xd8] sm:$0x3] %vm970, 0.0
  %998 = vst.msk [vmem:[#allocation2 + $0xe0] sm:$0xff] %vm283, 0.0
  %999 = vst.msk [vmem:[#allocation2 + $0xe8] sm:$0x3] %vm970, 0.0
  %1000 = vst.msk [vmem:[#allocation2 + $0xf0] sm:$0xff] %vm283, 0.0
  %1001 = vst.msk [vmem:[#allocation2 + $0xf8] sm:$0x3] %vm970, 0.0
  %1002 = vst.msk [vmem:[#allocation2 + $0x100] sm:$0xff] %vm283, 0.0
  %1003 = vst.msk [vmem:[#allocation2 + $0x108] sm:$0x3] %vm970, 0.0
  %1004 = vst.msk [vmem:[#allocation2 + $0x110] sm:$0xff] %vm283, 0.0
  %1005 = vst.msk [vmem:[#allocation2 + $0x118] sm:$0x3] %vm970, 0.0
  %1006 = vst.msk [vmem:[#allocation2 + $0x120] sm:$0xff] %vm283, 0.0
  %1007 = vst.msk [vmem:[#allocation2 + $0x128] sm:$0x3] %vm970, 0.0
  %1008 = vst.msk [vmem:[#allocation2 + $0x130] sm:$0xff] %vm283, 0.0
  %1009 = vst.msk [vmem:[#allocation2 + $0x138] sm:$0x3] %vm970, 0.0
  %v1010 = vpack.c.bf16 %v554, %v553
  %v1011 = vpack.c.bf16 %v556, %v555
  %v1012 = vpack.c.bf16 %v558, %v557
  %v1013 = vpack.c.bf16 %v560, %v559
  %v1014 = vpack.c.bf16 %v562, %v561
  %v1015 = vpack.c.bf16 %v564, %v563
  %v1016 = vpack.c.bf16 %v566, %v565
  %v1017 = vpack.c.bf16 %v568, %v567
  %v1018 = vld [vmem:[%s7] sm:$0xf]
  %v1019 = vld [vmem:[%s7 + $0x4] sm:$0xf]
  %v1022 = vunpack.c.l.b16 %v1018
  %v1023 = vunpack.c.l.b16 %v1019
  %v1024 = vpack.c.b16 %v1023, %v1022
  %v1027 = vsel %vm283, %v1010, 0
  %v1030 = vsel %vm283, %v1011, 0
  %v1033 = vsel %vm283, %v1012, 0
  %v1036 = vsel %vm283, %v1013, 0
  %v1039 = vsel %vm283, %v1014, 0
  %v1042 = vsel %vm283, %v1015, 0
  %v1045 = vsel %vm283, %v1016, 0
  %v1048 = vsel %vm283, %v1017, 0
  %1050 = vmatprep.subr.bf16.mxu0 0
  %1051 = vmatpush1.bf16.msra.mxu0 %v1024
  %1052 = vmatprep.subr.bf16.mxu0 0
  %1053 = vmatpush1.bf16.msra.mxu0 0
  %1054 = vmatprep.subr.bf16.mxu0 0
  %1055 = vmatpush1.bf16.msra.mxu0 0
  %1056 = vmatprep.subr.bf16.mxu0 0
  %1057 = vmatpush1.bf16.msra.mxu0 0
  %1058 = vmatprep.subr.bf16.mxu0 0
  %1059 = vmatpush1.bf16.msra.mxu0 0
  %1060 = vmatprep.subr.bf16.mxu0 0
  %1061 = vmatpush1.bf16.msra.mxu0 0
  %1062 = vmatprep.subr.bf16.mxu0 0
  %1063 = vmatpush1.bf16.msra.mxu0 0
  %1064 = vmatprep.subr.bf16.mxu0 0
  %1065 = vmatpush1.bf16.msra.mxu0 0
  %1066 = vmatprep.subr.bf16.mxu0 0
  %1067 = vmatpush1.bf16.msra.mxu0 0
  %1068 = vmatprep.subr.bf16.mxu0 0
  %1069 = vmatpush1.bf16.msra.mxu0 0
  %1070 = vmatprep.subr.bf16.mxu0 0
  %1071 = vmatpush1.bf16.msra.mxu0 0
  %1072 = vmatprep.subr.bf16.mxu0 0
  %1073 = vmatpush1.bf16.msra.mxu0 0
  %1074 = vmatprep.subr.bf16.mxu0 0
  %1075 = vmatpush1.bf16.msra.mxu0 0
  %1076 = vmatprep.subr.bf16.mxu0 0
  %1077 = vmatpush1.bf16.msra.mxu0 0
  %1078 = vmatprep.subr.bf16.mxu0 0
  %1079 = vmatpush1.bf16.msra.mxu0 0
  %1080 = vmatprep.subr.bf16.mxu0 0
  %1081 = vmatpush1.bf16.msra.mxu0 0
  %1082 = vmatprep.mubr.bf16.mxu0 0
  %1083 = vmatmul.mubr.bf16.gmra.mrb[0].mxu0 %v1027
  %v1084 = vpop.f32.mrb[0].mxu0
  %v1085 = vadd.f32 0.0, %v1084
  %v1086 = vpop.f32.mrb[0].mxu0
  %v1087 = vpop.f32.mrb[0].mxu0
  %v1088 = vadd.f32 0.0, %v1087
  %v1089 = vpop.f32.mrb[0].mxu0
  %1090 = vmatprep.mubr.bf16.mxu0 0
  %1091 = vmatmul.mubr.bf16.gmra.mrb[0].mxu0 %v1030
  %v1092 = vpop.f32.mrb[0].mxu0
  %v1093 = vadd.f32 0.0, %v1092
  %v1094 = vpop.f32.mrb[0].mxu0
  %v1095 = vpop.f32.mrb[0].mxu0
  %v1096 = vadd.f32 0.0, %v1095
  %v1097 = vpop.f32.mrb[0].mxu0
  %1098 = vmatprep.mubr.bf16.mxu0 0
  %1099 = vmatmul.mubr.bf16.gmra.mrb[0].mxu0 %v1033
  %v1100 = vpop.f32.mrb[0].mxu0
  %v1101 = vadd.f32 0.0, %v1100
  %v1102 = vpop.f32.mrb[0].mxu0
  %v1103 = vpop.f32.mrb[0].mxu0
  %v1104 = vadd.f32 0.0, %v1103
  %v1105 = vpop.f32.mrb[0].mxu0
  %1106 = vmatprep.mubr.bf16.mxu0 0
  %1107 = vmatmul.mubr.bf16.gmra.mrb[0].mxu0 %v1036
  %v1108 = vpop.f32.mrb[0].mxu0
  %v1109 = vadd.f32 0.0, %v1108
  %v1110 = vpop.f32.mrb[0].mxu0
  %v1111 = vpop.f32.mrb[0].mxu0
  %v1112 = vadd.f32 0.0, %v1111
  %v1113 = vpop.f32.mrb[0].mxu0
  %1114 = vmatprep.mubr.bf16.mxu0 0
  %1115 = vmatmul.mubr.bf16.gmra.mrb[0].mxu0 %v1039
  %v1116 = vpop.f32.mrb[0].mxu0
  %v1117 = vadd.f32 0.0, %v1116
  %v1118 = vpop.f32.mrb[0].mxu0
  %v1119 = vpop.f32.mrb[0].mxu0
  %v1120 = vadd.f32 0.0, %v1119
  %v1121 = vpop.f32.mrb[0].mxu0
  %1122 = vmatprep.mubr.bf16.mxu0 0
  %1123 = vmatmul.mubr.bf16.gmra.mrb[0].mxu0 %v1042
  %v1124 = vpop.f32.mrb[0].mxu0
  %v1125 = vadd.f32 0.0, %v1124
  %v1126 = vpop.f32.mrb[0].mxu0
  %v1127 = vpop.f32.mrb[0].mxu0
  %v1128 = vadd.f32 0.0, %v1127
  %v1129 = vpop.f32.mrb[0].mxu0
  %1130 = vmatprep.mubr.bf16.mxu0 0
  %1131 = vmatmul.mubr.bf16.gmra.mrb[0].mxu0 %v1045
  %v1132 = vpop.f32.mrb[0].mxu0
  %v1133 = vadd.f32 0.0, %v1132
  %v1134 = vpop.f32.mrb[0].mxu0
  %v1135 = vpop.f32.mrb[0].mxu0
  %v1136 = vadd.f32 0.0, %v1135
  %v1137 = vpop.f32.mrb[0].mxu0
  %1138 = vmatprep.mubr.bf16.mxu0 0
  %1139 = vmatmul.mubr.bf16.gmra.mrb[0].mxu0 %v1048
  %v1140 = vpop.f32.mrb[0].mxu0
  %v1141 = vadd.f32 0.0, %v1140
  %v1142 = vpop.f32.mrb[0].mxu0
  %v1143 = vpop.f32.mrb[0].mxu0
  %v1144 = vadd.f32 0.0, %v1143
  %v1145 = vpop.f32.mrb[0].mxu0
  %1146 = vdwg.mxu0
  %v1147 = vld [vmem:[%s8] sm:$0x1]
  %v1148 = vld [vmem:[%s9] sm:$0x1]
  %v1149 = vsel %vm283, %v1085, 0.0
  %v1150 = vsel %vm283, %v1088, 0.0
  %v1151 = vadd.f32 %v1149, %v1150
  %v1152 = vsel %vm283, %v1093, 0.0
  %v1153 = vadd.f32 %v1151, %v1152
  %v1154 = vsel %vm283, %v1096, 0.0
  %v1155 = vadd.f32 %v1153, %v1154
  %v1156 = vsel %vm283, %v1101, 0.0
  %v1157 = vadd.f32 %v1155, %v1156
  %v1158 = vsel %vm283, %v1104, 0.0
  %v1159 = vadd.f32 %v1157, %v1158
  %v1160 = vsel %vm283, %v1109, 0.0
  %v1161 = vadd.f32 %v1159, %v1160
  %v1162 = vsel %vm283, %v1112, 0.0
  %v1163 = vadd.f32 %v1161, %v1162
  %v1164 = vsel %vm283, %v1117, 0.0
  %v1165 = vadd.f32 %v1163, %v1164
  %v1166 = vsel %vm283, %v1120, 0.0
  %v1167 = vadd.f32 %v1165, %v1166
  %v1168 = vsel %vm283, %v1125, 0.0
  %v1169 = vadd.f32 %v1167, %v1168
  %v1170 = vsel %vm283, %v1128, 0.0
  %v1171 = vadd.f32 %v1169, %v1170
  %v1172 = vsel %vm283, %v1133, 0.0
  %v1173 = vadd.f32 %v1171, %v1172
  %v1174 = vsel %vm283, %v1136, 0.0
  %v1175 = vadd.f32 %v1173, %v1174
  %v1176 = vsel %vm283, %v1141, 0.0
  %v1177 = vadd.f32 %v1175, %v1176
  %v1178 = vsel %vm283, %v1144, 0.0
  %v1179 = vadd.f32 %v1177, %v1178
  %v1180 = vrot.slane %v1179, 4
  %v1181 = vadd.f32 %v1179, %v1180
  %v1182 = vrot.slane %v1181, 2
  %v1183 = vadd.f32 %v1181, %v1182
  %v1184 = vrot.slane %v1183, 1
  %v1185 = vadd.f32 %v1183, %v1184
  %v1186 = vmul.f32 %v1085, %v1085
  %v1187 = vmul.f32 %v1088, %v1088
  %v1188 = vmul.f32 %v1093, %v1093
  %v1189 = vmul.f32 %v1096, %v1096
  %v1190 = vmul.f32 %v1101, %v1101
  %v1191 = vmul.f32 %v1104, %v1104
  %v1192 = vmul.f32 %v1109, %v1109
  %v1193 = vmul.f32 %v1112, %v1112
  %v1194 = vmul.f32 %v1117, %v1117
  %v1195 = vmul.f32 %v1120, %v1120
  %v1196 = vmul.f32 %v1125, %v1125
  %v1197 = vmul.f32 %v1128, %v1128
  %v1198 = vmul.f32 %v1133, %v1133
  %v1199 = vmul.f32 %v1136, %v1136
  %v1200 = vmul.f32 %v1141, %v1141
  %v1201 = vmul.f32 %v1144, %v1144
  %v1202 = vsel %vm283, %v1186, 0.0
  %v1203 = vsel %vm283, %v1187, 0.0
  %v1204 = vadd.f32 %v1202, %v1203
  %v1205 = vsel %vm283, %v1188, 0.0
  %v1206 = vadd.f32 %v1204, %v1205
  %v1207 = vsel %vm283, %v1189, 0.0
  %v1208 = vadd.f32 %v1206, %v1207
  %v1209 = vsel %vm283, %v1190, 0.0
  %v1210 = vadd.f32 %v1208, %v1209
  %v1211 = vsel %vm283, %v1191, 0.0
  %v1212 = vadd.f32 %v1210, %v1211
  %v1213 = vsel %vm283, %v1192, 0.0
  %v1214 = vadd.f32 %v1212, %v1213
  %v1215 = vsel %vm283, %v1193, 0.0
  %v1216 = vadd.f32 %v1214, %v1215
  %v1217 = vsel %vm283, %v1194, 0.0
  %v1218 = vadd.f32 %v1216, %v1217
  %v1219 = vsel %vm283, %v1195, 0.0
  %v1220 = vadd.f32 %v1218, %v1219
  %v1221 = vsel %vm283, %v1196, 0.0
  %v1222 = vadd.f32 %v1220, %v1221
  %v1223 = vsel %vm283, %v1197, 0.0
  %v1224 = vadd.f32 %v1222, %v1223
  %v1225 = vsel %vm283, %v1198, 0.0
  %v1226 = vadd.f32 %v1224, %v1225
  %v1227 = vsel %vm283, %v1199, 0.0
  %v1228 = vadd.f32 %v1226, %v1227
  %v1229 = vsel %vm283, %v1200, 0.0
  %v1230 = vadd.f32 %v1228, %v1229
  %v1231 = vsel %vm283, %v1201, 0.0
  %v1232 = vadd.f32 %v1230, %v1231
  %v1233 = vrot.slane %v1232, 4
  %v1234 = vadd.f32 %v1232, %v1233
  %v1235 = vrot.slane %v1234, 2
  %v1236 = vadd.f32 %v1234, %v1235
  %v1237 = vrot.slane %v1236, 1
  %v1238 = vadd.f32 %v1236, %v1237
  %v1239 = vmul.f32 %v1185, 0.0078125
  %v1240 = vmul.f32 %v1238, 0.0078125
  %v1241 = vmul.f32 %v1239, %v1239
  %v1242 = vsub.f32 %v1240, %v1241
  %v1243 = vmax.f32 %v1242, 0.0
  %v1244 = vsub.f32 %v1085, %v1239
  %v1245 = vsub.f32 %v1088, %v1239
  %v1246 = vsub.f32 %v1093, %v1239
  %v1247 = vsub.f32 %v1096, %v1239
  %v1248 = vsub.f32 %v1101, %v1239
  %v1249 = vsub.f32 %v1104, %v1239
  %v1250 = vsub.f32 %v1109, %v1239
  %v1251 = vsub.f32 %v1112, %v1239
  %v1252 = vsub.f32 %v1117, %v1239
  %v1253 = vsub.f32 %v1120, %v1239
  %v1254 = vsub.f32 %v1125, %v1239
  %v1255 = vsub.f32 %v1128, %v1239
  %v1256 = vsub.f32 %v1133, %v1239
  %v1257 = vsub.f32 %v1136, %v1239
  %v1258 = vsub.f32 %v1141, %v1239
  %v1259 = vsub.f32 %v1144, %v1239
  %v1260 = vadd.f32 %v1243, 0.001
  %v1261 = vrsqrt.pop %v1260
  %v1262 = vmul.f32 %v1244, %v1261
  %v1263 = vmul.f32 %v1245, %v1261
  %v1264 = vmul.f32 %v1246, %v1261
  %v1265 = vmul.f32 %v1247, %v1261
  %v1266 = vmul.f32 %v1248, %v1261
  %v1267 = vmul.f32 %v1249, %v1261
  %v1268 = vmul.f32 %v1250, %v1261
  %v1269 = vmul.f32 %v1251, %v1261
  %v1270 = vmul.f32 %v1252, %v1261
  %v1271 = vmul.f32 %v1253, %v1261
  %v1272 = vmul.f32 %v1254, %v1261
  %v1273 = vmul.f32 %v1255, %v1261
  %v1274 = vmul.f32 %v1256, %v1261
  %v1275 = vmul.f32 %v1257, %v1261
  %v1276 = vmul.f32 %v1258, %v1261
  %v1277 = vmul.f32 %v1259, %v1261
  %v1279 = vlaneseq
  %v1280 = vshrl.u32 %v1279, 7
  %v1281 = vsub.s32 0, %v1280
  %v1282 = vrot.slane %v1147, %v1281
  %v1284 = vmul.f32 %v1262, %v1282
  %v1285 = vmul.f32 %v1263, %v1282
  %v1286 = vmul.f32 %v1264, %v1282
  %v1287 = vmul.f32 %v1265, %v1282
  %v1288 = vmul.f32 %v1266, %v1282
  %v1289 = vmul.f32 %v1267, %v1282
  %v1290 = vmul.f32 %v1268, %v1282
  %v1291 = vmul.f32 %v1269, %v1282
  %v1292 = vmul.f32 %v1270, %v1282
  %v1293 = vmul.f32 %v1271, %v1282
  %v1294 = vmul.f32 %v1272, %v1282
  %v1295 = vmul.f32 %v1273, %v1282
  %v1296 = vmul.f32 %v1274, %v1282
  %v1297 = vmul.f32 %v1275, %v1282
  %v1298 = vmul.f32 %v1276, %v1282
  %v1299 = vmul.f32 %v1277, %v1282
  %v1301 = vlaneseq
  %v1302 = vshrl.u32 %v1301, 7
  %v1303 = vsub.s32 0, %v1302
  %v1304 = vrot.slane %v1148, %v1303
  %v1306 = vadd.f32 %v1284, %v1304
  %v1307 = vadd.f32 %v1285, %v1304
  %v1308 = vadd.f32 %v1286, %v1304
  %v1309 = vadd.f32 %v1287, %v1304
  %v1310 = vadd.f32 %v1288, %v1304
  %v1311 = vadd.f32 %v1289, %v1304
  %v1312 = vadd.f32 %v1290, %v1304
  %v1313 = vadd.f32 %v1291, %v1304
  %v1314 = vadd.f32 %v1292, %v1304
  %v1315 = vadd.f32 %v1293, %v1304
  %v1316 = vadd.f32 %v1294, %v1304
  %v1317 = vadd.f32 %v1295, %v1304
  %v1318 = vadd.f32 %v1296, %v1304
  %v1319 = vadd.f32 %v1297, %v1304
  %v1320 = vadd.f32 %v1298, %v1304
  %v1321 = vadd.f32 %v1299, %v1304
  %v1322 = vxor.u32 %v1306, 2147483648
  %v1323 = vxor.u32 %v1307, 2147483648
  %v1324 = vxor.u32 %v1308, 2147483648
  %v1325 = vxor.u32 %v1309, 2147483648
  %v1326 = vxor.u32 %v1310, 2147483648
  %v1327 = vxor.u32 %v1311, 2147483648
  %v1328 = vxor.u32 %v1312, 2147483648
  %v1329 = vxor.u32 %v1313, 2147483648
  %v1330 = vxor.u32 %v1314, 2147483648
  %v1331 = vxor.u32 %v1315, 2147483648
  %v1332 = vxor.u32 %v1316, 2147483648
  %v1333 = vxor.u32 %v1317, 2147483648
  %v1334 = vxor.u32 %v1318, 2147483648
  %v1335 = vxor.u32 %v1319, 2147483648
  %v1336 = vxor.u32 %v1320, 2147483648
  %v1337 = vxor.u32 %v1321, 2147483648
  %v1338 = vmul.f32 %v1322, 1.442695
  %v1339 = vpow.pop %v1338
  %v1340 = vmul.f32 %v1323, 1.442695
  %v1341 = vpow.pop %v1340
  %v1342 = vmul.f32 %v1324, 1.442695
  %v1343 = vpow.pop %v1342
  %v1344 = vmul.f32 %v1325, 1.442695
  %v1345 = vpow.pop %v1344
  %v1346 = vmul.f32 %v1326, 1.442695
  %v1347 = vpow.pop %v1346
  %v1348 = vmul.f32 %v1327, 1.442695
  %v1349 = vpow.pop %v1348
  %v1350 = vmul.f32 %v1328, 1.442695
  %v1351 = vpow.pop %v1350
  %v1352 = vmul.f32 %v1329, 1.442695
  %v1353 = vpow.pop %v1352
  %v1354 = vmul.f32 %v1330, 1.442695
  %v1355 = vpow.pop %v1354
  %v1356 = vmul.f32 %v1331, 1.442695
  %v1357 = vpow.pop %v1356
  %v1358 = vmul.f32 %v1332, 1.442695
  %v1359 = vpow.pop %v1358
  %v1360 = vmul.f32 %v1333, 1.442695
  %v1361 = vpow.pop %v1360
  %v1362 = vmul.f32 %v1334, 1.442695
  %v1363 = vpow.pop %v1362
  %v1364 = vmul.f32 %v1335, 1.442695
  %v1365 = vpow.pop %v1364
  %v1366 = vmul.f32 %v1336, 1.442695
  %v1367 = vpow.pop %v1366
  %v1368 = vmul.f32 %v1337, 1.442695
  %v1369 = vpow.pop %v1368
  %v1370 = vadd.f32 %v1339, 1.0
  %v1371 = vadd.f32 %v1341, 1.0
  %v1372 = vadd.f32 %v1343, 1.0
  %v1373 = vadd.f32 %v1345, 1.0
  %v1374 = vadd.f32 %v1347, 1.0
  %v1375 = vadd.f32 %v1349, 1.0
  %v1376 = vadd.f32 %v1351, 1.0
  %v1377 = vadd.f32 %v1353, 1.0
  %v1378 = vadd.f32 %v1355, 1.0
  %v1379 = vadd.f32 %v1357, 1.0
  %v1380 = vadd.f32 %v1359, 1.0
  %v1381 = vadd.f32 %v1361, 1.0
  %v1382 = vadd.f32 %v1363, 1.0
  %v1383 = vadd.f32 %v1365, 1.0
  %v1384 = vadd.f32 %v1367, 1.0
  %v1385 = vadd.f32 %v1369, 1.0
  %v1386 = vrcp.pop %v1370
  %v1387 = vmul.f32 1.0, %v1386
  %v1388 = vrcp.pop %v1371
  %v1389 = vmul.f32 1.0, %v1388
  %v1390 = vrcp.pop %v1372
  %v1391 = vmul.f32 1.0, %v1390
  %v1392 = vrcp.pop %v1373
  %v1393 = vmul.f32 1.0, %v1392
  %v1394 = vrcp.pop %v1374
  %v1395 = vmul.f32 1.0, %v1394
  %v1396 = vrcp.pop %v1375
  %v1397 = vmul.f32 1.0, %v1396
  %v1398 = vrcp.pop %v1376
  %v1399 = vmul.f32 1.0, %v1398
  %v1400 = vrcp.pop %v1377
  %v1401 = vmul.f32 1.0, %v1400
  %v1402 = vrcp.pop %v1378
  %v1403 = vmul.f32 1.0, %v1402
  %v1404 = vrcp.pop %v1379
  %v1405 = vmul.f32 1.0, %v1404
  %v1406 = vrcp.pop %v1380
  %v1407 = vmul.f32 1.0, %v1406
  %v1408 = vrcp.pop %v1381
  %v1409 = vmul.f32 1.0, %v1408
  %v1410 = vrcp.pop %v1382
  %v1411 = vmul.f32 1.0, %v1410
  %v1412 = vrcp.pop %v1383
  %v1413 = vmul.f32 1.0, %v1412
  %v1414 = vrcp.pop %v1384
  %v1415 = vmul.f32 1.0, %v1414
  %v1416 = vrcp.pop %v1385
  %v1417 = vmul.f32 1.0, %v1416
  %v1418 = vmul.f32 %v1306, %v1387
  %v1419 = vmul.f32 %v1307, %v1389
  %v1420 = vmul.f32 %v1308, %v1391
  %v1421 = vmul.f32 %v1309, %v1393
  %v1422 = vmul.f32 %v1310, %v1395
  %v1423 = vmul.f32 %v1311, %v1397
  %v1424 = vmul.f32 %v1312, %v1399
  %v1425 = vmul.f32 %v1313, %v1401
  %v1426 = vmul.f32 %v1314, %v1403
  %v1427 = vmul.f32 %v1315, %v1405
  %v1428 = vmul.f32 %v1316, %v1407
  %v1429 = vmul.f32 %v1317, %v1409
  %v1430 = vmul.f32 %v1318, %v1411
  %v1431 = vmul.f32 %v1319, %v1413
  %v1432 = vmul.f32 %v1320, %v1415
  %v1433 = vmul.f32 %v1321, %v1417
  %s1434 = scalar_lea.vmem [#allocation2], 16
  %1435 = vst.msk [vmem:[%s1434 + $0x1] sm:$0xff] %vm283, %v1418
  %1436 = vst.msk [vmem:[%s1434 + $0x11] sm:$0xff] %vm283, %v1419
  %1437 = vst.msk [vmem:[%s1434 + $0x21] sm:$0xff] %vm283, %v1420
  %1438 = vst.msk [vmem:[%s1434 + $0x31] sm:$0xff] %vm283, %v1421
  %1439 = vst.msk [vmem:[%s1434 + $0x41] sm:$0xff] %vm283, %v1422
  %1440 = vst.msk [vmem:[%s1434 + $0x51] sm:$0xff] %vm283, %v1423
  %1441 = vst.msk [vmem:[%s1434 + $0x61] sm:$0xff] %vm283, %v1424
  %1442 = vst.msk [vmem:[%s1434 + $0x71] sm:$0xff] %vm283, %v1425
  %1443 = vst.msk [vmem:[%s1434 + $0xa1] sm:$0xff] %vm283, %v1426
  %1444 = vst.msk [vmem:[%s1434 + $0xb1] sm:$0xff] %vm283, %v1427
  %1445 = vst.msk [vmem:[%s1434 + $0xc1] sm:$0xff] %vm283, %v1428
  %1446 = vst.msk [vmem:[%s1434 + $0xd1] sm:$0xff] %vm283, %v1429
  %1447 = vst.msk [vmem:[%s1434 + $0xe1] sm:$0xff] %vm283, %v1430
  %1448 = vst.msk [vmem:[%s1434 + $0xf1] sm:$0xff] %vm283, %v1431
  %1449 = vst.msk [vmem:[%s1434 + $0x101] sm:$0xff] %vm283, %v1432
  %1450 = vst.msk [vmem:[%s1434 + $0x111] sm:$0xff] %vm283, %v1433
  %v1451 = vld [vmem:[#allocation2] sm:$0xff]
  %v1452 = vld [vmem:[#allocation2 + $0x10] sm:$0xff]
  %v1453 = vld [vmem:[#allocation2 + $0x20] sm:$0xff]
  %v1454 = vld [vmem:[#allocation2 + $0x30] sm:$0xff]
  %v1455 = vld [vmem:[#allocation2 + $0x40] sm:$0xff]
  %v1456 = vld [vmem:[#allocation2 + $0x50] sm:$0xff]
  %v1457 = vld [vmem:[#allocation2 + $0x60] sm:$0xff]
  %v1458 = vld [vmem:[#allocation2 + $0x70] sm:$0xff]
  %v1459 = vld [vmem:[#allocation2 + $0xa0] sm:$0xff]
  %v1460 = vld [vmem:[#allocation2 + $0xb0] sm:$0xff]
  %v1461 = vld [vmem:[#allocation2 + $0xc0] sm:$0xff]
  %v1462 = vld [vmem:[#allocation2 + $0xd0] sm:$0xff]
  %v1463 = vld [vmem:[#allocation2 + $0xe0] sm:$0xff]
  %v1464 = vld [vmem:[#allocation2 + $0xf0] sm:$0xff]
  %v1465 = vld [vmem:[#allocation2 + $0x100] sm:$0xff]
  %v1466 = vld [vmem:[#allocation2 + $0x110] sm:$0xff]
  %v1467 = vld [vmem:[#allocation2 + $0x1] sm:$0xff]
  %v1468 = vld [vmem:[#allocation2 + $0x11] sm:$0xff]
  %v1469 = vld [vmem:[#allocation2 + $0x21] sm:$0xff]
  %v1470 = vld [vmem:[#allocation2 + $0x31] sm:$0xff]
  %v1471 = vld [vmem:[#allocation2 + $0x41] sm:$0xff]
  %v1472 = vld [vmem:[#allocation2 + $0x51] sm:$0xff]
  %v1473 = vld [vmem:[#allocation2 + $0x61] sm:$0xff]
  %v1474 = vld [vmem:[#allocation2 + $0x71] sm:$0xff]
  %v1475 = vld [vmem:[#allocation2 + $0xa1] sm:$0xff]
  %v1476 = vld [vmem:[#allocation2 + $0xb1] sm:$0xff]
  %v1477 = vld [vmem:[#allocation2 + $0xc1] sm:$0xff]
  %v1478 = vld [vmem:[#allocation2 + $0xd1] sm:$0xff]
  %v1479 = vld [vmem:[#allocation2 + $0xe1] sm:$0xff]
  %v1480 = vld [vmem:[#allocation2 + $0xf1] sm:$0xff]
  %v1481 = vld [vmem:[#allocation2 + $0x101] sm:$0xff]
  %v1482 = vld [vmem:[#allocation2 + $0x111] sm:$0xff]
  %v1483 = vld [vmem:[#allocation2 + $0x2] sm:$0xff]
  %v1484 = vld [vmem:[#allocation2 + $0x12] sm:$0xff]
  %v1485 = vld [vmem:[#allocation2 + $0x22] sm:$0xff]
  %v1486 = vld [vmem:[#allocation2 + $0x32] sm:$0xff]
  %v1487 = vld [vmem:[#allocation2 + $0x42] sm:$0xff]
  %v1488 = vld [vmem:[#allocation2 + $0x52] sm:$0xff]
  %v1489 = vld [vmem:[#allocation2 + $0x62] sm:$0xff]
  %v1490 = vld [vmem:[#allocation2 + $0x72] sm:$0xff]
  %v1491 = vld [vmem:[#allocation2 + $0xa2] sm:$0xff]
  %v1492 = vld [vmem:[#allocation2 + $0xb2] sm:$0xff]
  %v1493 = vld [vmem:[#allocation2 + $0xc2] sm:$0xff]
  %v1494 = vld [vmem:[#allocation2 + $0xd2] sm:$0xff]
  %v1495 = vld [vmem:[#allocation2 + $0xe2] sm:$0xff]
  %v1496 = vld [vmem:[#allocation2 + $0xf2] sm:$0xff]
  %v1497 = vld [vmem:[#allocation2 + $0x102] sm:$0xff]
  %v1498 = vld [vmem:[#allocation2 + $0x112] sm:$0xff]
  %v1499 = vld [vmem:[%s1434] sm:$0xff]
  %v1500 = vld [vmem:[%s1434 + $0x10] sm:$0xff]
  %v1501 = vld [vmem:[%s1434 + $0x20] sm:$0xff]
  %v1502 = vld [vmem:[%s1434 + $0x30] sm:$0xff]
  %v1503 = vld [vmem:[%s1434 + $0x40] sm:$0xff]
  %v1504 = vld [vmem:[%s1434 + $0x50] sm:$0xff]
  %v1505 = vld [vmem:[%s1434 + $0x60] sm:$0xff]
  %v1506 = vld [vmem:[%s1434 + $0x70] sm:$0xff]
  %v1507 = vld [vmem:[%s1434 + $0xa0] sm:$0xff]
  %v1508 = vld [vmem:[%s1434 + $0xb0] sm:$0xff]
  %v1509 = vld [vmem:[%s1434 + $0xc0] sm:$0xff]
  %v1510 = vld [vmem:[%s1434 + $0xd0] sm:$0xff]
  %v1511 = vld [vmem:[%s1434 + $0xe0] sm:$0xff]
  %v1512 = vld [vmem:[%s1434 + $0xf0] sm:$0xff]
  %v1513 = vld [vmem:[%s1434 + $0x100] sm:$0xff]
  %v1514 = vld [vmem:[%s1434 + $0x110] sm:$0xff]
  %v1515 = vld [vmem:[%s1434 + $0x1] sm:$0xff]
  %v1516 = vld [vmem:[%s1434 + $0x11] sm:$0xff]
  %v1517 = vld [vmem:[%s1434 + $0x21] sm:$0xff]
  %v1518 = vld [vmem:[%s1434 + $0x31] sm:$0xff]
  %v1519 = vld [vmem:[%s1434 + $0x41] sm:$0xff]
  %v1520 = vld [vmem:[%s1434 + $0x51] sm:$0xff]
  %v1521 = vld [vmem:[%s1434 + $0x61] sm:$0xff]
  %v1522 = vld [vmem:[%s1434 + $0x71] sm:$0xff]
  %v1523 = vld [vmem:[%s1434 + $0xa1] sm:$0xff]
  %v1524 = vld [vmem:[%s1434 + $0xb1] sm:$0xff]
  %v1525 = vld [vmem:[%s1434 + $0xc1] sm:$0xff]
  %v1526 = vld [vmem:[%s1434 + $0xd1] sm:$0xff]
  %v1527 = vld [vmem:[%s1434 + $0xe1] sm:$0xff]
  %v1528 = vld [vmem:[%s1434 + $0xf1] sm:$0xff]
  %v1529 = vld [vmem:[%s1434 + $0x101] sm:$0xff]
  %v1530 = vld [vmem:[%s1434 + $0x111] sm:$0xff]
  %v1531 = vld [vmem:[%s1434 + $0x2] sm:$0xff]
  %v1532 = vld [vmem:[%s1434 + $0x12] sm:$0xff]
  %v1533 = vld [vmem:[%s1434 + $0x22] sm:$0xff]
  %v1534 = vld [vmem:[%s1434 + $0x32] sm:$0xff]
  %v1535 = vld [vmem:[%s1434 + $0x42] sm:$0xff]
  %v1536 = vld [vmem:[%s1434 + $0x52] sm:$0xff]
  %v1537 = vld [vmem:[%s1434 + $0x62] sm:$0xff]
  %v1538 = vld [vmem:[%s1434 + $0x72] sm:$0xff]
  %v1539 = vld [vmem:[%s1434 + $0xa2] sm:$0xff]
  %v1540 = vld [vmem:[%s1434 + $0xb2] sm:$0xff]
  %v1541 = vld [vmem:[%s1434 + $0xc2] sm:$0xff]
  %v1542 = vld [vmem:[%s1434 + $0xd2] sm:$0xff]
  %v1543 = vld [vmem:[%s1434 + $0xe2] sm:$0xff]
  %v1544 = vld [vmem:[%s1434 + $0xf2] sm:$0xff]
  %v1545 = vld [vmem:[%s1434 + $0x102] sm:$0xff]
  %v1546 = vld [vmem:[%s1434 + $0x112] sm:$0xff]
  %s1547 = scalar_lea.vmem [#allocation2], 32
  %v1548 = vld [vmem:[%s1547] sm:$0xff]
  %v1549 = vld [vmem:[%s1547 + $0x10] sm:$0xff]
  %v1550 = vld [vmem:[%s1547 + $0x20] sm:$0xff]
  %v1551 = vld [vmem:[%s1547 + $0x30] sm:$0xff]
  %v1552 = vld [vmem:[%s1547 + $0x40] sm:$0xff]
  %v1553 = vld [vmem:[%s1547 + $0x50] sm:$0xff]
  %v1554 = vld [vmem:[%s1547 + $0x60] sm:$0xff]
  %v1555 = vld [vmem:[%s1547 + $0x70] sm:$0xff]
  %v1556 = vld [vmem:[%s1547 + $0xa0] sm:$0xff]
  %v1557 = vld [vmem:[%s1547 + $0xb0] sm:$0xff]
  %v1558 = vld [vmem:[%s1547 + $0xc0] sm:$0xff]
  %v1559 = vld [vmem:[%s1547 + $0xd0] sm:$0xff]
  %v1560 = vld [vmem:[%s1547 + $0xe0] sm:$0xff]
  %v1561 = vld [vmem:[%s1547 + $0xf0] sm:$0xff]
  %v1562 = vld [vmem:[%s1547 + $0x100] sm:$0xff]
  %v1563 = vld [vmem:[%s1547 + $0x110] sm:$0xff]
  %v1564 = vld [vmem:[%s1547 + $0x1] sm:$0xff]
  %v1565 = vld [vmem:[%s1547 + $0x11] sm:$0xff]
  %v1566 = vld [vmem:[%s1547 + $0x21] sm:$0xff]
  %v1567 = vld [vmem:[%s1547 + $0x31] sm:$0xff]
  %v1568 = vld [vmem:[%s1547 + $0x41] sm:$0xff]
  %v1569 = vld [vmem:[%s1547 + $0x51] sm:$0xff]
  %v1570 = vld [vmem:[%s1547 + $0x61] sm:$0xff]
  %v1571 = vld [vmem:[%s1547 + $0x71] sm:$0xff]
  %v1572 = vld [vmem:[%s1547 + $0xa1] sm:$0xff]
  %v1573 = vld [vmem:[%s1547 + $0xb1] sm:$0xff]
  %v1574 = vld [vmem:[%s1547 + $0xc1] sm:$0xff]
  %v1575 = vld [vmem:[%s1547 + $0xd1] sm:$0xff]
  %v1576 = vld [vmem:[%s1547 + $0xe1] sm:$0xff]
  %v1577 = vld [vmem:[%s1547 + $0xf1] sm:$0xff]
  %v1578 = vld [vmem:[%s1547 + $0x101] sm:$0xff]
  %v1579 = vld [vmem:[%s1547 + $0x111] sm:$0xff]
  %v1580 = vld [vmem:[%s1547 + $0x2] sm:$0xff]
  %v1581 = vld [vmem:[%s1547 + $0x12] sm:$0xff]
  %v1582 = vld [vmem:[%s1547 + $0x22] sm:$0xff]
  %v1583 = vld [vmem:[%s1547 + $0x32] sm:$0xff]
  %v1584 = vld [vmem:[%s1547 + $0x42] sm:$0xff]
  %v1585 = vld [vmem:[%s1547 + $0x52] sm:$0xff]
  %v1586 = vld [vmem:[%s1547 + $0x62] sm:$0xff]
  %v1587 = vld [vmem:[%s1547 + $0x72] sm:$0xff]
  %v1588 = vld [vmem:[%s1547 + $0xa2] sm:$0xff]
  %v1589 = vld [vmem:[%s1547 + $0xb2] sm:$0xff]
  %v1590 = vld [vmem:[%s1547 + $0xc2] sm:$0xff]
  %v1591 = vld [vmem:[%s1547 + $0xd2] sm:$0xff]
  %v1592 = vld [vmem:[%s1547 + $0xe2] sm:$0xff]
  %v1593 = vld [vmem:[%s1547 + $0xf2] sm:$0xff]
  %v1594 = vld [vmem:[%s1547 + $0x102] sm:$0xff]
  %v1595 = vld [vmem:[%s1547 + $0x112] sm:$0xff]
  %1612 = vrot.lane.b32.xlu0 %v1467, 16
  %v1613 = vpop.permute.xlu0 %1612
  %1614 = vrot.lane.b32.xlu0 %v1468, 16
  %v1615 = vpop.permute.xlu0 %1614
  %1616 = vrot.lane.b32.xlu0 %v1469, 16
  %v1617 = vpop.permute.xlu0 %1616
  %1618 = vrot.lane.b32.xlu0 %v1470, 16
  %v1619 = vpop.permute.xlu0 %1618
  %1620 = vrot.lane.b32.xlu0 %v1471, 16
  %v1621 = vpop.permute.xlu0 %1620
  %1622 = vrot.lane.b32.xlu0 %v1472, 16
  %v1623 = vpop.permute.xlu0 %1622
  %1624 = vrot.lane.b32.xlu0 %v1473, 16
  %v1625 = vpop.permute.xlu0 %1624
  %1626 = vrot.lane.b32.xlu0 %v1474, 16
  %v1627 = vpop.permute.xlu0 %1626
  %1628 = vrot.lane.b32.xlu0 %v1475, 16
  %v1629 = vpop.permute.xlu0 %1628
  %1630 = vrot.lane.b32.xlu0 %v1476, 16
  %v1631 = vpop.permute.xlu0 %1630
  %1632 = vrot.lane.b32.xlu0 %v1477, 16
  %v1633 = vpop.permute.xlu0 %1632
  %1634 = vrot.lane.b32.xlu0 %v1478, 16
  %v1635 = vpop.permute.xlu0 %1634
  %1636 = vrot.lane.b32.xlu0 %v1479, 16
  %v1637 = vpop.permute.xlu0 %1636
  %1638 = vrot.lane.b32.xlu0 %v1480, 16
  %v1639 = vpop.permute.xlu0 %1638
  %1640 = vrot.lane.b32.xlu0 %v1481, 16
  %v1641 = vpop.permute.xlu0 %1640
  %1642 = vrot.lane.b32.xlu0 %v1482, 16
  %v1643 = vpop.permute.xlu0 %1642
  %1676 = vrot.lane.b32.xlu0 %v1483, 32
  %v1677 = vpop.permute.xlu0 %1676
  %1678 = vrot.lane.b32.xlu0 %v1484, 32
  %v1679 = vpop.permute.xlu0 %1678
  %1680 = vrot.lane.b32.xlu0 %v1485, 32
  %v1681 = vpop.permute.xlu0 %1680
  %1682 = vrot.lane.b32.xlu0 %v1486, 32
  %v1683 = vpop.permute.xlu0 %1682
  %1684 = vrot.lane.b32.xlu0 %v1487, 32
  %v1685 = vpop.permute.xlu0 %1684
  %1686 = vrot.lane.b32.xlu0 %v1488, 32
  %v1687 = vpop.permute.xlu0 %1686
  %1688 = vrot.lane.b32.xlu0 %v1489, 32
  %v1689 = vpop.permute.xlu0 %1688
  %1690 = vrot.lane.b32.xlu0 %v1490, 32
  %v1691 = vpop.permute.xlu0 %1690
  %1692 = vrot.lane.b32.xlu0 %v1491, 32
  %v1693 = vpop.permute.xlu0 %1692
  %1694 = vrot.lane.b32.xlu0 %v1492, 32
  %v1695 = vpop.permute.xlu0 %1694
  %1696 = vrot.lane.b32.xlu0 %v1493, 32
  %v1697 = vpop.permute.xlu0 %1696
  %1698 = vrot.lane.b32.xlu0 %v1494, 32
  %v1699 = vpop.permute.xlu0 %1698
  %1700 = vrot.lane.b32.xlu0 %v1495, 32
  %v1701 = vpop.permute.xlu0 %1700
  %1702 = vrot.lane.b32.xlu0 %v1496, 32
  %v1703 = vpop.permute.xlu0 %1702
  %1704 = vrot.lane.b32.xlu0 %v1497, 32
  %v1705 = vpop.permute.xlu0 %1704
  %1706 = vrot.lane.b32.xlu0 %v1498, 32
  %v1707 = vpop.permute.xlu0 %1706
  %1740 = vrot.lane.b32.xlu0 %v1499, 48
  %v1741 = vpop.permute.xlu0 %1740
  %1742 = vrot.lane.b32.xlu0 %v1500, 48
  %v1743 = vpop.permute.xlu0 %1742
  %1744 = vrot.lane.b32.xlu0 %v1501, 48
  %v1745 = vpop.permute.xlu0 %1744
  %1746 = vrot.lane.b32.xlu0 %v1502, 48
  %v1747 = vpop.permute.xlu0 %1746
  %1748 = vrot.lane.b32.xlu0 %v1503, 48
  %v1749 = vpop.permute.xlu0 %1748
  %1750 = vrot.lane.b32.xlu0 %v1504, 48
  %v1751 = vpop.permute.xlu0 %1750
  %1752 = vrot.lane.b32.xlu0 %v1505, 48
  %v1753 = vpop.permute.xlu0 %1752
  %1754 = vrot.lane.b32.xlu0 %v1506, 48
  %v1755 = vpop.permute.xlu0 %1754
  %1756 = vrot.lane.b32.xlu0 %v1507, 48
  %v1757 = vpop.permute.xlu0 %1756
  %1758 = vrot.lane.b32.xlu0 %v1508, 48
  %v1759 = vpop.permute.xlu0 %1758
  %1760 = vrot.lane.b32.xlu0 %v1509, 48
  %v1761 = vpop.permute.xlu0 %1760
  %1762 = vrot.lane.b32.xlu0 %v1510, 48
  %v1763 = vpop.permute.xlu0 %1762
  %1764 = vrot.lane.b32.xlu0 %v1511, 48
  %v1765 = vpop.permute.xlu0 %1764
  %1766 = vrot.lane.b32.xlu0 %v1512, 48
  %v1767 = vpop.permute.xlu0 %1766
  %1768 = vrot.lane.b32.xlu0 %v1513, 48
  %v1769 = vpop.permute.xlu0 %1768
  %1770 = vrot.lane.b32.xlu0 %v1514, 48
  %v1771 = vpop.permute.xlu0 %1770
  %1804 = vrot.lane.b32.xlu0 %v1515, 64
  %v1805 = vpop.permute.xlu0 %1804
  %1806 = vrot.lane.b32.xlu0 %v1516, 64
  %v1807 = vpop.permute.xlu0 %1806
  %1808 = vrot.lane.b32.xlu0 %v1517, 64
  %v1809 = vpop.permute.xlu0 %1808
  %1810 = vrot.lane.b32.xlu0 %v1518, 64
  %v1811 = vpop.permute.xlu0 %1810
  %1812 = vrot.lane.b32.xlu0 %v1519, 64
  %v1813 = vpop.permute.xlu0 %1812
  %1814 = vrot.lane.b32.xlu0 %v1520, 64
  %v1815 = vpop.permute.xlu0 %1814
  %1816 = vrot.lane.b32.xlu0 %v1521, 64
  %v1817 = vpop.permute.xlu0 %1816
  %1818 = vrot.lane.b32.xlu0 %v1522, 64
  %v1819 = vpop.permute.xlu0 %1818
  %1820 = vrot.lane.b32.xlu0 %v1523, 64
  %v1821 = vpop.permute.xlu0 %1820
  %1822 = vrot.lane.b32.xlu0 %v1524, 64
  %v1823 = vpop.permute.xlu0 %1822
  %1824 = vrot.lane.b32.xlu0 %v1525, 64
  %v1825 = vpop.permute.xlu0 %1824
  %1826 = vrot.lane.b32.xlu0 %v1526, 64
  %v1827 = vpop.permute.xlu0 %1826
  %1828 = vrot.lane.b32.xlu0 %v1527, 64
  %v1829 = vpop.permute.xlu0 %1828
  %1830 = vrot.lane.b32.xlu0 %v1528, 64
  %v1831 = vpop.permute.xlu0 %1830
  %1832 = vrot.lane.b32.xlu0 %v1529, 64
  %v1833 = vpop.permute.xlu0 %1832
  %1834 = vrot.lane.b32.xlu0 %v1530, 64
  %v1835 = vpop.permute.xlu0 %1834
  %1868 = vrot.lane.b32.xlu0 %v1531, 80
  %v1869 = vpop.permute.xlu0 %1868
  %1870 = vrot.lane.b32.xlu0 %v1532, 80
  %v1871 = vpop.permute.xlu0 %1870
  %1872 = vrot.lane.b32.xlu0 %v1533, 80
  %v1873 = vpop.permute.xlu0 %1872
  %1874 = vrot.lane.b32.xlu0 %v1534, 80
  %v1875 = vpop.permute.xlu0 %1874
  %1876 = vrot.lane.b32.xlu0 %v1535, 80
  %v1877 = vpop.permute.xlu0 %1876
  %1878 = vrot.lane.b32.xlu0 %v1536, 80
  %v1879 = vpop.permute.xlu0 %1878
  %1880 = vrot.lane.b32.xlu0 %v1537, 80
  %v1881 = vpop.permute.xlu0 %1880
  %1882 = vrot.lane.b32.xlu0 %v1538, 80
  %v1883 = vpop.permute.xlu0 %1882
  %1884 = vrot.lane.b32.xlu0 %v1539, 80
  %v1885 = vpop.permute.xlu0 %1884
  %1886 = vrot.lane.b32.xlu0 %v1540, 80
  %v1887 = vpop.permute.xlu0 %1886
  %1888 = vrot.lane.b32.xlu0 %v1541, 80
  %v1889 = vpop.permute.xlu0 %1888
  %1890 = vrot.lane.b32.xlu0 %v1542, 80
  %v1891 = vpop.permute.xlu0 %1890
  %1892 = vrot.lane.b32.xlu0 %v1543, 80
  %v1893 = vpop.permute.xlu0 %1892
  %1894 = vrot.lane.b32.xlu0 %v1544, 80
  %v1895 = vpop.permute.xlu0 %1894
  %1896 = vrot.lane.b32.xlu0 %v1545, 80
  %v1897 = vpop.permute.xlu0 %1896
  %1898 = vrot.lane.b32.xlu0 %v1546, 80
  %v1899 = vpop.permute.xlu0 %1898
  %1932 = vrot.lane.b32.xlu0 %v1548, 96
  %v1933 = vpop.permute.xlu0 %1932
  %1934 = vrot.lane.b32.xlu0 %v1549, 96
  %v1935 = vpop.permute.xlu0 %1934
  %1936 = vrot.lane.b32.xlu0 %v1550, 96
  %v1937 = vpop.permute.xlu0 %1936
  %1938 = vrot.lane.b32.xlu0 %v1551, 96
  %v1939 = vpop.permute.xlu0 %1938
  %1940 = vrot.lane.b32.xlu0 %v1552, 96
  %v1941 = vpop.permute.xlu0 %1940
  %1942 = vrot.lane.b32.xlu0 %v1553, 96
  %v1943 = vpop.permute.xlu0 %1942
  %1944 = vrot.lane.b32.xlu0 %v1554, 96
  %v1945 = vpop.permute.xlu0 %1944
  %1946 = vrot.lane.b32.xlu0 %v1555, 96
  %v1947 = vpop.permute.xlu0 %1946
  %1948 = vrot.lane.b32.xlu0 %v1556, 96
  %v1949 = vpop.permute.xlu0 %1948
  %1950 = vrot.lane.b32.xlu0 %v1557, 96
  %v1951 = vpop.permute.xlu0 %1950
  %1952 = vrot.lane.b32.xlu0 %v1558, 96
  %v1953 = vpop.permute.xlu0 %1952
  %1954 = vrot.lane.b32.xlu0 %v1559, 96
  %v1955 = vpop.permute.xlu0 %1954
  %1956 = vrot.lane.b32.xlu0 %v1560, 96
  %v1957 = vpop.permute.xlu0 %1956
  %1958 = vrot.lane.b32.xlu0 %v1561, 96
  %v1959 = vpop.permute.xlu0 %1958
  %1960 = vrot.lane.b32.xlu0 %v1562, 96
  %v1961 = vpop.permute.xlu0 %1960
  %1962 = vrot.lane.b32.xlu0 %v1563, 96
  %v1963 = vpop.permute.xlu0 %1962
  %1996 = vrot.lane.b32.xlu0 %v1564, 112
  %v1997 = vpop.permute.xlu0 %1996
  %1998 = vrot.lane.b32.xlu0 %v1565, 112
  %v1999 = vpop.permute.xlu0 %1998
  %2000 = vrot.lane.b32.xlu0 %v1566, 112
  %v2001 = vpop.permute.xlu0 %2000
  %2002 = vrot.lane.b32.xlu0 %v1567, 112
  %v2003 = vpop.permute.xlu0 %2002
  %2004 = vrot.lane.b32.xlu0 %v1568, 112
  %v2005 = vpop.permute.xlu0 %2004
  %2006 = vrot.lane.b32.xlu0 %v1569, 112
  %v2007 = vpop.permute.xlu0 %2006
  %2008 = vrot.lane.b32.xlu0 %v1570, 112
  %v2009 = vpop.permute.xlu0 %2008
  %2010 = vrot.lane.b32.xlu0 %v1571, 112
  %v2011 = vpop.permute.xlu0 %2010
  %2012 = vrot.lane.b32.xlu0 %v1572, 112
  %v2013 = vpop.permute.xlu0 %2012
  %2014 = vrot.lane.b32.xlu0 %v1573, 112
  %v2015 = vpop.permute.xlu0 %2014
  %2016 = vrot.lane.b32.xlu0 %v1574, 112
  %v2017 = vpop.permute.xlu0 %2016
  %2018 = vrot.lane.b32.xlu0 %v1575, 112
  %v2019 = vpop.permute.xlu0 %2018
  %2020 = vrot.lane.b32.xlu0 %v1576, 112
  %v2021 = vpop.permute.xlu0 %2020
  %2022 = vrot.lane.b32.xlu0 %v1577, 112
  %v2023 = vpop.permute.xlu0 %2022
  %2024 = vrot.lane.b32.xlu0 %v1578, 112
  %v2025 = vpop.permute.xlu0 %2024
  %2026 = vrot.lane.b32.xlu0 %v1579, 112
  %v2027 = vpop.permute.xlu0 %2026
  %v2044 = vsel %vm283, %v1451, %v1613
  %v2045 = vsel %vm283, %v1452, %v1615
  %v2046 = vsel %vm283, %v1453, %v1617
  %v2047 = vsel %vm283, %v1454, %v1619
  %v2048 = vsel %vm283, %v1455, %v1621
  %v2049 = vsel %vm283, %v1456, %v1623
  %v2050 = vsel %vm283, %v1457, %v1625
  %v2051 = vsel %vm283, %v1458, %v1627
  %v2052 = vsel %vm283, %v1459, %v1629
  %v2053 = vsel %vm283, %v1460, %v1631
  %v2054 = vsel %vm283, %v1461, %v1633
  %v2055 = vsel %vm283, %v1462, %v1635
  %v2056 = vsel %vm283, %v1463, %v1637
  %v2057 = vsel %vm283, %v1464, %v1639
  %v2058 = vsel %vm283, %v1465, %v1641
  %v2059 = vsel %vm283, %v1466, %v1643
  %v2060 = vsel %vm159, %v2044, %v1677
  %v2061 = vsel %vm159, %v2045, %v1679
  %v2062 = vsel %vm159, %v2046, %v1681
  %v2063 = vsel %vm159, %v2047, %v1683
  %v2064 = vsel %vm159, %v2048, %v1685
  %v2065 = vsel %vm159, %v2049, %v1687
  %v2066 = vsel %vm159, %v2050, %v1689
  %v2067 = vsel %vm159, %v2051, %v1691
  %v2068 = vsel %vm159, %v2052, %v1693
  %v2069 = vsel %vm159, %v2053, %v1695
  %v2070 = vsel %vm159, %v2054, %v1697
  %v2071 = vsel %vm159, %v2055, %v1699
  %v2072 = vsel %vm159, %v2056, %v1701
  %v2073 = vsel %vm159, %v2057, %v1703
  %v2074 = vsel %vm159, %v2058, %v1705
  %v2075 = vsel %vm159, %v2059, %v1707
  %vm2076 = vcmask 392192
  %v2077 = vsel %vm2076, %v2060, %v1741
  %v2078 = vsel %vm2076, %v2061, %v1743
  %v2079 = vsel %vm2076, %v2062, %v1745
  %v2080 = vsel %vm2076, %v2063, %v1747
  %v2081 = vsel %vm2076, %v2064, %v1749
  %v2082 = vsel %vm2076, %v2065, %v1751
  %v2083 = vsel %vm2076, %v2066, %v1753
  %v2084 = vsel %vm2076, %v2067, %v1755
  %v2085 = vsel %vm2076, %v2068, %v1757
  %v2086 = vsel %vm2076, %v2069, %v1759
  %v2087 = vsel %vm2076, %v2070, %v1761
  %v2088 = vsel %vm2076, %v2071, %v1763
  %v2089 = vsel %vm2076, %v2072, %v1765
  %v2090 = vsel %vm2076, %v2073, %v1767
  %v2091 = vsel %vm2076, %v2074, %v1769
  %v2092 = vsel %vm2076, %v2075, %v1771
  %vm2093 = vcmask 523264
  %v2094 = vsel %vm2093, %v2077, %v1805
  %v2095 = vsel %vm2093, %v2078, %v1807
  %v2096 = vsel %vm2093, %v2079, %v1809
  %v2097 = vsel %vm2093, %v2080, %v1811
  %v2098 = vsel %vm2093, %v2081, %v1813
  %v2099 = vsel %vm2093, %v2082, %v1815
  %v2100 = vsel %vm2093, %v2083, %v1817
  %v2101 = vsel %vm2093, %v2084, %v1819
  %v2102 = vsel %vm2093, %v2085, %v1821
  %v2103 = vsel %vm2093, %v2086, %v1823
  %v2104 = vsel %vm2093, %v2087, %v1825
  %v2105 = vsel %vm2093, %v2088, %v1827
  %v2106 = vsel %vm2093, %v2089, %v1829
  %v2107 = vsel %vm2093, %v2090, %v1831
  %v2108 = vsel %vm2093, %v2091, %v1833
  %v2109 = vsel %vm2093, %v2092, %v1835
  %vm2110 = vcmask 654336
  %v2111 = vsel %vm2110, %v2094, %v1869
  %v2112 = vsel %vm2110, %v2095, %v1871
  %v2113 = vsel %vm2110, %v2096, %v1873
  %v2114 = vsel %vm2110, %v2097, %v1875
  %v2115 = vsel %vm2110, %v2098, %v1877
  %v2116 = vsel %vm2110, %v2099, %v1879
  %v2117 = vsel %vm2110, %v2100, %v1881
  %v2118 = vsel %vm2110, %v2101, %v1883
  %v2119 = vsel %vm2110, %v2102, %v1885
  %v2120 = vsel %vm2110, %v2103, %v1887
  %v2121 = vsel %vm2110, %v2104, %v1889
  %v2122 = vsel %vm2110, %v2105, %v1891
  %v2123 = vsel %vm2110, %v2106, %v1893
  %v2124 = vsel %vm2110, %v2107, %v1895
  %v2125 = vsel %vm2110, %v2108, %v1897
  %v2126 = vsel %vm2110, %v2109, %v1899
  %vm2127 = vcmask 785408
  %v2128 = vsel %vm2127, %v2111, %v1933
  %v2129 = vsel %vm2127, %v2112, %v1935
  %v2130 = vsel %vm2127, %v2113, %v1937
  %v2131 = vsel %vm2127, %v2114, %v1939
  %v2132 = vsel %vm2127, %v2115, %v1941
  %v2133 = vsel %vm2127, %v2116, %v1943
  %v2134 = vsel %vm2127, %v2117, %v1945
  %v2135 = vsel %vm2127, %v2118, %v1947
  %v2136 = vsel %vm2127, %v2119, %v1949
  %v2137 = vsel %vm2127, %v2120, %v1951
  %v2138 = vsel %vm2127, %v2121, %v1953
  %v2139 = vsel %vm2127, %v2122, %v1955
  %v2140 = vsel %vm2127, %v2123, %v1957
  %v2141 = vsel %vm2127, %v2124, %v1959
  %v2142 = vsel %vm2127, %v2125, %v1961
  %v2143 = vsel %vm2127, %v2126, %v1963
  %vm2144 = vcmask 916480
  %v2145 = vsel %vm2144, %v2128, %v1997
  %v2146 = vsel %vm2144, %v2129, %v1999
  %v2147 = vsel %vm2144, %v2130, %v2001
  %v2148 = vsel %vm2144, %v2131, %v2003
  %v2149 = vsel %vm2144, %v2132, %v2005
  %v2150 = vsel %vm2144, %v2133, %v2007
  %v2151 = vsel %vm2144, %v2134, %v2009
  %v2152 = vsel %vm2144, %v2135, %v2011
  %v2153 = vsel %vm2144, %v2136, %v2013
  %v2154 = vsel %vm2144, %v2137, %v2015
  %v2155 = vsel %vm2144, %v2138, %v2017
  %v2156 = vsel %vm2144, %v2139, %v2019
  %v2157 = vsel %vm2144, %v2140, %v2021
  %v2158 = vsel %vm2144, %v2141, %v2023
  %v2159 = vsel %vm2144, %v2142, %v2025
  %v2160 = vsel %vm2144, %v2143, %v2027
  %v2161 = vpack.c.bf16 %v2146, %v2145
  %v2162 = vpack.c.bf16 %v1581, %v1580
  %v2163 = vpack.c.bf16 %v2148, %v2147
  %v2164 = vpack.c.bf16 %v1583, %v1582
  %v2165 = vpack.c.bf16 %v2150, %v2149
  %v2166 = vpack.c.bf16 %v1585, %v1584
  %v2167 = vpack.c.bf16 %v2152, %v2151
  %v2168 = vpack.c.bf16 %v1587, %v1586
  %v2169 = vpack.c.bf16 %v2154, %v2153
  %v2170 = vpack.c.bf16 %v1589, %v1588
  %v2171 = vpack.c.bf16 %v2156, %v2155
  %v2172 = vpack.c.bf16 %v1591, %v1590
  %v2173 = vpack.c.bf16 %v2158, %v2157
  %v2174 = vpack.c.bf16 %v1593, %v1592
  %v2175 = vpack.c.bf16 %v2160, %v2159
  %v2176 = vpack.c.bf16 %v1595, %v1594
  %v2177 = vld [vmem:[%s10] sm:$0xf]
  %v2178 = vld [vmem:[%s10 + $0x4] sm:$0xf]
  %v2179 = vld [vmem:[%s10 + $0x8] sm:$0xf]
  %v2180 = vld [vmem:[%s10 + $0xc] sm:$0xf]
  %v2181 = vld [vmem:[%s10 + $0x10] sm:$0xf]
  %v2182 = vld [vmem:[%s10 + $0x14] sm:$0xf]
  %v2183 = vld [vmem:[%s10 + $0x18] sm:$0xf]
  %v2184 = vld [vmem:[%s10 + $0x1c] sm:$0xf]
  %v2185 = vld [vmem:[%s10 + $0x20] sm:$0xf]
  %v2186 = vld [vmem:[%s10 + $0x24] sm:$0xf]
  %v2187 = vld [vmem:[%s10 + $0x28] sm:$0xf]
  %v2188 = vld [vmem:[%s10 + $0x2c] sm:$0xf]
  %v2189 = vld [vmem:[%s10 + $0x30] sm:$0xf]
  %v2190 = vld [vmem:[%s10 + $0x34] sm:$0xf]
  %v2191 = vld [vmem:[%s10 + $0x38] sm:$0xf]
  %v2192 = vld [vmem:[%s10 + $0x3c] sm:$0xf]
  %v2193 = vld [vmem:[%s10 + $0x40] sm:$0xf]
  %v2194 = vld [vmem:[%s10 + $0x44] sm:$0xf]
  %v2213 = vunpack.c.l.b16 %v2177
  %v2214 = vunpack.c.l.b16 %v2178
  %v2215 = vunpack.c.l.b16 %v2179
  %v2216 = vunpack.c.l.b16 %v2180
  %v2217 = vunpack.c.l.b16 %v2181
  %v2218 = vunpack.c.l.b16 %v2182
  %v2219 = vunpack.c.l.b16 %v2183
  %v2220 = vunpack.c.l.b16 %v2184
  %v2221 = vunpack.c.l.b16 %v2185
  %v2222 = vunpack.c.l.b16 %v2186
  %v2223 = vunpack.c.l.b16 %v2187
  %v2224 = vunpack.c.l.b16 %v2188
  %v2225 = vunpack.c.l.b16 %v2189
  %v2226 = vunpack.c.l.b16 %v2190
  %v2227 = vunpack.c.l.b16 %v2191
  %v2228 = vunpack.c.l.b16 %v2192
  %v2229 = vunpack.c.l.b16 %v2193
  %v2230 = vunpack.c.l.b16 %v2194
  %v2231 = vpack.c.b16 %v2214, %v2213
  %v2232 = vpack.c.b16 %v2216, %v2215
  %v2233 = vpack.c.b16 %v2218, %v2217
  %v2234 = vpack.c.b16 %v2220, %v2219
  %v2235 = vpack.c.b16 %v2222, %v2221
  %v2236 = vpack.c.b16 %v2224, %v2223
  %v2237 = vpack.c.b16 %v2226, %v2225
  %v2238 = vpack.c.b16 %v2228, %v2227
  %v2239 = vpack.c.b16 %v2230, %v2229
  %v2250 = vsel %vm283, %v2162, 0
  %v2253 = vsel %vm283, %v2164, 0
  %v2256 = vsel %vm283, %v2166, 0
  %v2259 = vsel %vm283, %v2168, 0
  %v2262 = vsel %vm283, %v2170, 0
  %v2265 = vsel %vm283, %v2172, 0
  %v2268 = vsel %vm283, %v2174, 0
  %v2271 = vsel %vm283, %v2176, 0
  %2273 = vmatprep.subr.bf16.mxu0 0
  %2274 = vmatpush1.bf16.msra.mxu0 %v2231
  %2275 = vmatprep.subr.bf16.mxu0 0
  %2276 = vmatpush1.bf16.msra.mxu0 %v2232
  %2277 = vmatprep.subr.bf16.mxu0 0
  %2278 = vmatpush1.bf16.msra.mxu0 %v2233
  %2279 = vmatprep.subr.bf16.mxu0 0
  %2280 = vmatpush1.bf16.msra.mxu0 %v2234
  %2281 = vmatprep.subr.bf16.mxu0 0
  %2282 = vmatpush1.bf16.msra.mxu0 %v2235
  %2283 = vmatprep.subr.bf16.mxu0 0
  %2284 = vmatpush1.bf16.msra.mxu0 %v2236
  %2285 = vmatprep.subr.bf16.mxu0 0
  %2286 = vmatpush1.bf16.msra.mxu0 %v2237
  %2287 = vmatprep.subr.bf16.mxu0 0
  %2288 = vmatpush1.bf16.msra.mxu0 %v2238
  %2289 = vmatprep.subr.bf16.mxu0 0
  %2290 = vmatpush1.bf16.msra.mxu0 %v2239
  %2291 = vmatprep.subr.bf16.mxu0 0
  %2292 = vmatpush1.bf16.msra.mxu0 0
  %2293 = vmatprep.subr.bf16.mxu0 0
  %2294 = vmatpush1.bf16.msra.mxu0 0
  %2295 = vmatprep.subr.bf16.mxu0 0
  %2296 = vmatpush1.bf16.msra.mxu0 0
  %2297 = vmatprep.subr.bf16.mxu0 0
  %2298 = vmatpush1.bf16.msra.mxu0 0
  %2299 = vmatprep.subr.bf16.mxu0 0
  %2300 = vmatpush1.bf16.msra.mxu0 0
  %2301 = vmatprep.subr.bf16.mxu0 0
  %2302 = vmatpush1.bf16.msra.mxu0 0
  %2303 = vmatprep.subr.bf16.mxu0 0
  %2304 = vmatpush1.bf16.msra.mxu0 0
  %2305 = vmatprep.mubr.bf16.mxu0 %v2250
  %2306 = vmatmul.mubr.bf16.gmra.mrb[0].mxu0 %v2161
  %v2307 = vpop.f32.mrb[0].mxu0
  %v2308 = vadd.f32 0.0, %v2307
  %v2309 = vpop.f32.mrb[0].mxu0
  %v2310 = vpop.f32.mrb[0].mxu0
  %v2311 = vadd.f32 0.0, %v2310
  %v2312 = vpop.f32.mrb[0].mxu0
  %2313 = vmatprep.mubr.bf16.mxu0 %v2253
  %2314 = vmatmul.mubr.bf16.gmra.mrb[0].mxu0 %v2163
  %v2315 = vpop.f32.mrb[0].mxu0
  %v2316 = vadd.f32 0.0, %v2315
  %v2317 = vpop.f32.mrb[0].mxu0
  %v2318 = vpop.f32.mrb[0].mxu0
  %v2319 = vadd.f32 0.0, %v2318
  %v2320 = vpop.f32.mrb[0].mxu0
  %2321 = vmatprep.mubr.bf16.mxu0 %v2256
  %2322 = vmatmul.mubr.bf16.gmra.mrb[0].mxu0 %v2165
  %v2323 = vpop.f32.mrb[0].mxu0
  %v2324 = vadd.f32 0.0, %v2323
  %v2325 = vpop.f32.mrb[0].mxu0
  %v2326 = vpop.f32.mrb[0].mxu0
  %v2327 = vadd.f32 0.0, %v2326
  %v2328 = vpop.f32.mrb[0].mxu0
  %2329 = vmatprep.mubr.bf16.mxu0 %v2259
  %2330 = vmatmul.mubr.bf16.gmra.mrb[0].mxu0 %v2167
  %v2331 = vpop.f32.mrb[0].mxu0
  %v2332 = vadd.f32 0.0, %v2331
  %v2333 = vpop.f32.mrb[0].mxu0
  %v2334 = vpop.f32.mrb[0].mxu0
  %v2335 = vadd.f32 0.0, %v2334
  %v2336 = vpop.f32.mrb[0].mxu0
  %2337 = vmatprep.mubr.bf16.mxu0 %v2262
  %2338 = vmatmul.mubr.bf16.gmra.mrb[0].mxu0 %v2169
  %v2339 = vpop.f32.mrb[0].mxu0
  %v2340 = vadd.f32 0.0, %v2339
  %v2341 = vpop.f32.mrb[0].mxu0
  %v2342 = vpop.f32.mrb[0].mxu0
  %v2343 = vadd.f32 0.0, %v2342
  %v2344 = vpop.f32.mrb[0].mxu0
  %2345 = vmatprep.mubr.bf16.mxu0 %v2265
  %2346 = vmatmul.mubr.bf16.gmra.mrb[0].mxu0 %v2171
  %v2347 = vpop.f32.mrb[0].mxu0
  %v2348 = vadd.f32 0.0, %v2347
  %v2349 = vpop.f32.mrb[0].mxu0
  %v2350 = vpop.f32.mrb[0].mxu0
  %v2351 = vadd.f32 0.0, %v2350
  %v2352 = vpop.f32.mrb[0].mxu0
  %2353 = vmatprep.mubr.bf16.mxu0 %v2268
  %2354 = vmatmul.mubr.bf16.gmra.mrb[0].mxu0 %v2173
  %v2355 = vpop.f32.mrb[0].mxu0
  %v2356 = vadd.f32 0.0, %v2355
  %v2357 = vpop.f32.mrb[0].mxu0
  %v2358 = vpop.f32.mrb[0].mxu0
  %v2359 = vadd.f32 0.0, %v2358
  %v2360 = vpop.f32.mrb[0].mxu0
  %2361 = vmatprep.mubr.bf16.mxu0 %v2271
  %2362 = vmatmul.mubr.bf16.gmra.mrb[0].mxu0 %v2175
  %v2363 = vpop.f32.mrb[0].mxu0
  %v2364 = vadd.f32 0.0, %v2363
  %v2365 = vpop.f32.mrb[0].mxu0
  %v2366 = vpop.f32.mrb[0].mxu0
  %v2367 = vadd.f32 0.0, %v2366
  %v2368 = vpop.f32.mrb[0].mxu0
  %2369 = vdwg.mxu0
  %v2370 = vld [vmem:[%s11] sm:$0x1]
  %v2371 = vld [vmem:[%s12] sm:$0x1]
  %v2372 = vsel %vm283, %v2308, 0.0
  %v2373 = vsel %vm283, %v2311, 0.0
  %v2374 = vadd.f32 %v2372, %v2373
  %v2375 = vsel %vm283, %v2316, 0.0
  %v2376 = vadd.f32 %v2374, %v2375
  %v2377 = vsel %vm283, %v2319, 0.0
  %v2378 = vadd.f32 %v2376, %v2377
  %v2379 = vsel %vm283, %v2324, 0.0
  %v2380 = vadd.f32 %v2378, %v2379
  %v2381 = vsel %vm283, %v2327, 0.0
  %v2382 = vadd.f32 %v2380, %v2381
  %v2383 = vsel %vm283, %v2332, 0.0
  %v2384 = vadd.f32 %v2382, %v2383
  %v2385 = vsel %vm283, %v2335, 0.0
  %v2386 = vadd.f32 %v2384, %v2385
  %v2387 = vsel %vm283, %v2340, 0.0
  %v2388 = vadd.f32 %v2386, %v2387
  %v2389 = vsel %vm283, %v2343, 0.0
  %v2390 = vadd.f32 %v2388, %v2389
  %v2391 = vsel %vm283, %v2348, 0.0
  %v2392 = vadd.f32 %v2390, %v2391
  %v2393 = vsel %vm283, %v2351, 0.0
  %v2394 = vadd.f32 %v2392, %v2393
  %v2395 = vsel %vm283, %v2356, 0.0
  %v2396 = vadd.f32 %v2394, %v2395
  %v2397 = vsel %vm283, %v2359, 0.0
  %v2398 = vadd.f32 %v2396, %v2397
  %v2399 = vsel %vm283, %v2364, 0.0
  %v2400 = vadd.f32 %v2398, %v2399
  %v2401 = vsel %vm283, %v2367, 0.0
  %v2402 = vadd.f32 %v2400, %v2401
  %v2403 = vrot.slane %v2402, 4
  %v2404 = vadd.f32 %v2402, %v2403
  %v2405 = vrot.slane %v2404, 2
  %v2406 = vadd.f32 %v2404, %v2405
  %v2407 = vrot.slane %v2406, 1
  %v2408 = vadd.f32 %v2406, %v2407
  %v2409 = vmul.f32 %v2308, %v2308
  %v2410 = vmul.f32 %v2311, %v2311
  %v2411 = vmul.f32 %v2316, %v2316
  %v2412 = vmul.f32 %v2319, %v2319
  %v2413 = vmul.f32 %v2324, %v2324
  %v2414 = vmul.f32 %v2327, %v2327
  %v2415 = vmul.f32 %v2332, %v2332
  %v2416 = vmul.f32 %v2335, %v2335
  %v2417 = vmul.f32 %v2340, %v2340
  %v2418 = vmul.f32 %v2343, %v2343
  %v2419 = vmul.f32 %v2348, %v2348
  %v2420 = vmul.f32 %v2351, %v2351
  %v2421 = vmul.f32 %v2356, %v2356
  %v2422 = vmul.f32 %v2359, %v2359
  %v2423 = vmul.f32 %v2364, %v2364
  %v2424 = vmul.f32 %v2367, %v2367
  %v2425 = vsel %vm283, %v2409, 0.0
  %v2426 = vsel %vm283, %v2410, 0.0
  %v2427 = vadd.f32 %v2425, %v2426
  %v2428 = vsel %vm283, %v2411, 0.0
  %v2429 = vadd.f32 %v2427, %v2428
  %v2430 = vsel %vm283, %v2412, 0.0
  %v2431 = vadd.f32 %v2429, %v2430
  %v2432 = vsel %vm283, %v2413, 0.0
  %v2433 = vadd.f32 %v2431, %v2432
  %v2434 = vsel %vm283, %v2414, 0.0
  %v2435 = vadd.f32 %v2433, %v2434
  %v2436 = vsel %vm283, %v2415, 0.0
  %v2437 = vadd.f32 %v2435, %v2436
  %v2438 = vsel %vm283, %v2416, 0.0
  %v2439 = vadd.f32 %v2437, %v2438
  %v2440 = vsel %vm283, %v2417, 0.0
  %v2441 = vadd.f32 %v2439, %v2440
  %v2442 = vsel %vm283, %v2418, 0.0
  %v2443 = vadd.f32 %v2441, %v2442
  %v2444 = vsel %vm283, %v2419, 0.0
  %v2445 = vadd.f32 %v2443, %v2444
  %v2446 = vsel %vm283, %v2420, 0.0
  %v2447 = vadd.f32 %v2445, %v2446
  %v2448 = vsel %vm283, %v2421, 0.0
  %v2449 = vadd.f32 %v2447, %v2448
  %v2450 = vsel %vm283, %v2422, 0.0
  %v2451 = vadd.f32 %v2449, %v2450
  %v2452 = vsel %vm283, %v2423, 0.0
  %v2453 = vadd.f32 %v2451, %v2452
  %v2454 = vsel %vm283, %v2424, 0.0
  %v2455 = vadd.f32 %v2453, %v2454
  %v2456 = vrot.slane %v2455, 4
  %v2457 = vadd.f32 %v2455, %v2456
  %v2458 = vrot.slane %v2457, 2
  %v2459 = vadd.f32 %v2457, %v2458
  %v2460 = vrot.slane %v2459, 1
  %v2461 = vadd.f32 %v2459, %v2460
  %v2462 = vmul.f32 %v2408, 0.0078125
  %v2463 = vmul.f32 %v2461, 0.0078125
  %v2464 = vmul.f32 %v2462, %v2462
  %v2465 = vsub.f32 %v2463, %v2464
  %v2466 = vmax.f32 %v2465, 0.0
  %v2467 = vsub.f32 %v2308, %v2462
  %v2468 = vsub.f32 %v2311, %v2462
  %v2469 = vsub.f32 %v2316, %v2462
  %v2470 = vsub.f32 %v2319, %v2462
  %v2471 = vsub.f32 %v2324, %v2462
  %v2472 = vsub.f32 %v2327, %v2462
  %v2473 = vsub.f32 %v2332, %v2462
  %v2474 = vsub.f32 %v2335, %v2462
  %v2475 = vsub.f32 %v2340, %v2462
  %v2476 = vsub.f32 %v2343, %v2462
  %v2477 = vsub.f32 %v2348, %v2462
  %v2478 = vsub.f32 %v2351, %v2462
  %v2479 = vsub.f32 %v2356, %v2462
  %v2480 = vsub.f32 %v2359, %v2462
  %v2481 = vsub.f32 %v2364, %v2462
  %v2482 = vsub.f32 %v2367, %v2462
  %v2483 = vadd.f32 %v2466, 0.001
  %v2484 = vrsqrt.pop %v2483
  %v2485 = vmul.f32 %v2467, %v2484
  %v2486 = vmul.f32 %v2468, %v2484
  %v2487 = vmul.f32 %v2469, %v2484
  %v2488 = vmul.f32 %v2470, %v2484
  %v2489 = vmul.f32 %v2471, %v2484
  %v2490 = vmul.f32 %v2472, %v2484
  %v2491 = vmul.f32 %v2473, %v2484
  %v2492 = vmul.f32 %v2474, %v2484
  %v2493 = vmul.f32 %v2475, %v2484
  %v2494 = vmul.f32 %v2476, %v2484
  %v2495 = vmul.f32 %v2477, %v2484
  %v2496 = vmul.f32 %v2478, %v2484
  %v2497 = vmul.f32 %v2479, %v2484
  %v2498 = vmul.f32 %v2480, %v2484
  %v2499 = vmul.f32 %v2481, %v2484
  %v2500 = vmul.f32 %v2482, %v2484
  %v2502 = vlaneseq
  %v2503 = vshrl.u32 %v2502, 7
  %v2504 = vsub.s32 0, %v2503
  %v2505 = vrot.slane %v2370, %v2504
  %v2507 = vmul.f32 %v2485, %v2505
  %v2508 = vmul.f32 %v2486, %v2505
  %v2509 = vmul.f32 %v2487, %v2505
  %v2510 = vmul.f32 %v2488, %v2505
  %v2511 = vmul.f32 %v2489, %v2505
  %v2512 = vmul.f32 %v2490, %v2505
  %v2513 = vmul.f32 %v2491, %v2505
  %v2514 = vmul.f32 %v2492, %v2505
  %v2515 = vmul.f32 %v2493, %v2505
  %v2516 = vmul.f32 %v2494, %v2505
  %v2517 = vmul.f32 %v2495, %v2505
  %v2518 = vmul.f32 %v2496, %v2505
  %v2519 = vmul.f32 %v2497, %v2505
  %v2520 = vmul.f32 %v2498, %v2505
  %v2521 = vmul.f32 %v2499, %v2505
  %v2522 = vmul.f32 %v2500, %v2505
  %v2524 = vlaneseq
  %v2525 = vshrl.u32 %v2524, 7
  %v2526 = vsub.s32 0, %v2525
  %v2527 = vrot.slane %v2371, %v2526
  %v2529 = vadd.f32 %v2507, %v2527
  %v2530 = vadd.f32 %v2508, %v2527
  %v2531 = vadd.f32 %v2509, %v2527
  %v2532 = vadd.f32 %v2510, %v2527
  %v2533 = vadd.f32 %v2511, %v2527
  %v2534 = vadd.f32 %v2512, %v2527
  %v2535 = vadd.f32 %v2513, %v2527
  %v2536 = vadd.f32 %v2514, %v2527
  %v2537 = vadd.f32 %v2515, %v2527
  %v2538 = vadd.f32 %v2516, %v2527
  %v2539 = vadd.f32 %v2517, %v2527
  %v2540 = vadd.f32 %v2518, %v2527
  %v2541 = vadd.f32 %v2519, %v2527
  %v2542 = vadd.f32 %v2520, %v2527
  %v2543 = vadd.f32 %v2521, %v2527
  %v2544 = vadd.f32 %v2522, %v2527
  %v2545 = vxor.u32 %v2529, 2147483648
  %v2546 = vxor.u32 %v2530, 2147483648
  %v2547 = vxor.u32 %v2531, 2147483648
  %v2548 = vxor.u32 %v2532, 2147483648
  %v2549 = vxor.u32 %v2533, 2147483648
  %v2550 = vxor.u32 %v2534, 2147483648
  %v2551 = vxor.u32 %v2535, 2147483648
  %v2552 = vxor.u32 %v2536, 2147483648
  %v2553 = vxor.u32 %v2537, 2147483648
  %v2554 = vxor.u32 %v2538, 2147483648
  %v2555 = vxor.u32 %v2539, 2147483648
  %v2556 = vxor.u32 %v2540, 2147483648
  %v2557 = vxor.u32 %v2541, 2147483648
  %v2558 = vxor.u32 %v2542, 2147483648
  %v2559 = vxor.u32 %v2543, 2147483648
  %v2560 = vxor.u32 %v2544, 2147483648
  %v2561 = vmul.f32 %v2545, 1.442695
  %v2562 = vpow.pop %v2561
  %v2563 = vmul.f32 %v2546, 1.442695
  %v2564 = vpow.pop %v2563
  %v2565 = vmul.f32 %v2547, 1.442695
  %v2566 = vpow.pop %v2565
  %v2567 = vmul.f32 %v2548, 1.442695
  %v2568 = vpow.pop %v2567
  %v2569 = vmul.f32 %v2549, 1.442695
  %v2570 = vpow.pop %v2569
  %v2571 = vmul.f32 %v2550, 1.442695
  %v2572 = vpow.pop %v2571
  %v2573 = vmul.f32 %v2551, 1.442695
  %v2574 = vpow.pop %v2573
  %v2575 = vmul.f32 %v2552, 1.442695
  %v2576 = vpow.pop %v2575
  %v2577 = vmul.f32 %v2553, 1.442695
  %v2578 = vpow.pop %v2577
  %v2579 = vmul.f32 %v2554, 1.442695
  %v2580 = vpow.pop %v2579
  %v2581 = vmul.f32 %v2555, 1.442695
  %v2582 = vpow.pop %v2581
  %v2583 = vmul.f32 %v2556, 1.442695
  %v2584 = vpow.pop %v2583
  %v2585 = vmul.f32 %v2557, 1.442695
  %v2586 = vpow.pop %v2585
  %v2587 = vmul.f32 %v2558, 1.442695
  %v2588 = vpow.pop %v2587
  %v2589 = vmul.f32 %v2559, 1.442695
  %v2590 = vpow.pop %v2589
  %v2591 = vmul.f32 %v2560, 1.442695
  %v2592 = vpow.pop %v2591
  %v2593 = vadd.f32 %v2562, 1.0
  %v2594 = vadd.f32 %v2564, 1.0
  %v2595 = vadd.f32 %v2566, 1.0
  %v2596 = vadd.f32 %v2568, 1.0
  %v2597 = vadd.f32 %v2570, 1.0
  %v2598 = vadd.f32 %v2572, 1.0
  %v2599 = vadd.f32 %v2574, 1.0
  %v2600 = vadd.f32 %v2576, 1.0
  %v2601 = vadd.f32 %v2578, 1.0
  %v2602 = vadd.f32 %v2580, 1.0
  %v2603 = vadd.f32 %v2582, 1.0
  %v2604 = vadd.f32 %v2584, 1.0
  %v2605 = vadd.f32 %v2586, 1.0
  %v2606 = vadd.f32 %v2588, 1.0
  %v2607 = vadd.f32 %v2590, 1.0
  %v2608 = vadd.f32 %v2592, 1.0
  %v2609 = vrcp.pop %v2593
  %v2610 = vmul.f32 1.0, %v2609
  %v2611 = vrcp.pop %v2594
  %v2612 = vmul.f32 1.0, %v2611
  %v2613 = vrcp.pop %v2595
  %v2614 = vmul.f32 1.0, %v2613
  %v2615 = vrcp.pop %v2596
  %v2616 = vmul.f32 1.0, %v2615
  %v2617 = vrcp.pop %v2597
  %v2618 = vmul.f32 1.0, %v2617
  %v2619 = vrcp.pop %v2598
  %v2620 = vmul.f32 1.0, %v2619
  %v2621 = vrcp.pop %v2599
  %v2622 = vmul.f32 1.0, %v2621
  %v2623 = vrcp.pop %v2600
  %v2624 = vmul.f32 1.0, %v2623
  %v2625 = vrcp.pop %v2601
  %v2626 = vmul.f32 1.0, %v2625
  %v2627 = vrcp.pop %v2602
  %v2628 = vmul.f32 1.0, %v2627
  %v2629 = vrcp.pop %v2603
  %v2630 = vmul.f32 1.0, %v2629
  %v2631 = vrcp.pop %v2604
  %v2632 = vmul.f32 1.0, %v2631
  %v2633 = vrcp.pop %v2605
  %v2634 = vmul.f32 1.0, %v2633
  %v2635 = vrcp.pop %v2606
  %v2636 = vmul.f32 1.0, %v2635
  %v2637 = vrcp.pop %v2607
  %v2638 = vmul.f32 1.0, %v2637
  %v2639 = vrcp.pop %v2608
  %v2640 = vmul.f32 1.0, %v2639
  %v2641 = vmul.f32 %v2529, %v2610
  %v2642 = vmul.f32 %v2530, %v2612
  %v2643 = vmul.f32 %v2531, %v2614
  %v2644 = vmul.f32 %v2532, %v2616
  %v2645 = vmul.f32 %v2533, %v2618
  %v2646 = vmul.f32 %v2534, %v2620
  %v2647 = vmul.f32 %v2535, %v2622
  %v2648 = vmul.f32 %v2536, %v2624
  %v2649 = vmul.f32 %v2537, %v2626
  %v2650 = vmul.f32 %v2538, %v2628
  %v2651 = vmul.f32 %v2539, %v2630
  %v2652 = vmul.f32 %v2540, %v2632
  %v2653 = vmul.f32 %v2541, %v2634
  %v2654 = vmul.f32 %v2542, %v2636
  %v2655 = vmul.f32 %v2543, %v2638
  %v2656 = vmul.f32 %v2544, %v2640
  %v2657 = vadd.f32 %v553, %v2641
  %v2658 = vadd.f32 %v554, %v2642
  %v2659 = vadd.f32 %v555, %v2643
  %v2660 = vadd.f32 %v556, %v2644
  %v2661 = vadd.f32 %v557, %v2645
  %v2662 = vadd.f32 %v558, %v2646
  %v2663 = vadd.f32 %v559, %v2647
  %v2664 = vadd.f32 %v560, %v2648
  %v2665 = vadd.f32 %v561, %v2649
  %v2666 = vadd.f32 %v562, %v2650
  %v2667 = vadd.f32 %v563, %v2651
  %v2668 = vadd.f32 %v564, %v2652
  %v2669 = vadd.f32 %v565, %v2653
  %v2670 = vadd.f32 %v566, %v2654
  %v2671 = vadd.f32 %v567, %v2655
  %v2672 = vadd.f32 %v568, %v2656
  %2689 = vrot.lane.b32.xlu0 %v953, 16
  %v2690 = vpop.permute.xlu0 %2689
  %2691 = vrot.lane.b32.xlu0 %v954, 16
  %v2692 = vpop.permute.xlu0 %2691
  %2693 = vrot.lane.b32.xlu0 %v955, 16
  %v2694 = vpop.permute.xlu0 %2693
  %2695 = vrot.lane.b32.xlu0 %v956, 16
  %v2696 = vpop.permute.xlu0 %2695
  %2697 = vrot.lane.b32.xlu0 %v957, 16
  %v2698 = vpop.permute.xlu0 %2697
  %2699 = vrot.lane.b32.xlu0 %v958, 16
  %v2700 = vpop.permute.xlu0 %2699
  %2701 = vrot.lane.b32.xlu0 %v959, 16
  %v2702 = vpop.permute.xlu0 %2701
  %2703 = vrot.lane.b32.xlu0 %v960, 16
  %v2704 = vpop.permute.xlu0 %2703
  %2705 = vrot.lane.b32.xlu0 %v961, 16
  %v2706 = vpop.permute.xlu0 %2705
  %2707 = vrot.lane.b32.xlu0 %v962, 16
  %v2708 = vpop.permute.xlu0 %2707
  %2709 = vrot.lane.b32.xlu0 %v963, 16
  %v2710 = vpop.permute.xlu0 %2709
  %2711 = vrot.lane.b32.xlu0 %v964, 16
  %v2712 = vpop.permute.xlu0 %2711
  %2713 = vrot.lane.b32.xlu0 %v965, 16
  %v2714 = vpop.permute.xlu0 %2713
  %2715 = vrot.lane.b32.xlu0 %v966, 16
  %v2716 = vpop.permute.xlu0 %2715
  %2717 = vrot.lane.b32.xlu0 %v967, 16
  %v2718 = vpop.permute.xlu0 %2717
  %2719 = vrot.lane.b32.xlu0 %v968, 16
  %v2720 = vpop.permute.xlu0 %2719
  %v2737 = vsel %vm283, %v2657, %v2690
  %v2738 = vsel %vm283, %v2658, %v2692
  %v2739 = vsel %vm283, %v2659, %v2694
  %v2740 = vsel %vm283, %v2660, %v2696
  %v2741 = vsel %vm283, %v2661, %v2698
  %v2742 = vsel %vm283, %v2662, %v2700
  %v2743 = vsel %vm283, %v2663, %v2702
  %v2744 = vsel %vm283, %v2664, %v2704
  %v2745 = vsel %vm283, %v2665, %v2706
  %v2746 = vsel %vm283, %v2666, %v2708
  %v2747 = vsel %vm283, %v2667, %v2710
  %v2748 = vsel %vm283, %v2668, %v2712
  %v2749 = vsel %vm283, %v2669, %v2714
  %v2750 = vsel %vm283, %v2670, %v2716
  %v2751 = vsel %vm283, %v2671, %v2718
  %v2752 = vsel %vm283, %v2672, %v2720
  %v2753 = vpack.c.bf16 %v2738, %v2737
  %v2754 = vpack.c.bf16 %v2740, %v2739
  %v2755 = vpack.c.bf16 %v2742, %v2741
  %v2756 = vpack.c.bf16 %v2744, %v2743
  %v2757 = vpack.c.bf16 %v2746, %v2745
  %v2758 = vpack.c.bf16 %v2748, %v2747
  %v2759 = vpack.c.bf16 %v2750, %v2749
  %v2760 = vpack.c.bf16 %v2752, %v2751
  %v2761 = vld [vmem:[%s13] sm:$0xf]
  %v2762 = vld [vmem:[%s13 + $0x4] sm:$0xf]
  %v2763 = vld [vmem:[%s13 + $0x8] sm:$0xf]
  %v2764 = vld [vmem:[%s13 + $0xc] sm:$0xf]
  %v2769 = vunpack.c.l.b16 %v2761
  %v2770 = vunpack.c.l.b16 %v2762
  %v2771 = vunpack.c.l.b16 %v2763
  %v2772 = vunpack.c.l.b16 %v2764
  %v2773 = vpack.c.b16 %v2770, %v2769
  %v2774 = vpack.c.b16 %v2772, %v2771
  %v2778 = vsel %vm159, %v2753, 0
  %v2781 = vsel %vm159, %v2754, 0
  %v2784 = vsel %vm159, %v2755, 0
  %v2787 = vsel %vm159, %v2756, 0
  %v2790 = vsel %vm159, %v2757, 0
  %v2793 = vsel %vm159, %v2758, 0
  %v2796 = vsel %vm159, %v2759, 0
  %v2799 = vsel %vm159, %v2760, 0
  %2801 = vmatprep.subr.bf16.mxu0 0
  %2802 = vmatpush1.bf16.msra.mxu0 %v2773
  %2803 = vmatprep.subr.bf16.mxu0 0
  %2804 = vmatpush1.bf16.msra.mxu0 %v2774
  %2805 = vmatprep.subr.bf16.mxu0 0
  %2806 = vmatpush1.bf16.msra.mxu0 0
  %2807 = vmatprep.subr.bf16.mxu0 0
  %2808 = vmatpush1.bf16.msra.mxu0 0
  %2809 = vmatprep.subr.bf16.mxu0 0
  %2810 = vmatpush1.bf16.msra.mxu0 0
  %2811 = vmatprep.subr.bf16.mxu0 0
  %2812 = vmatpush1.bf16.msra.mxu0 0
  %2813 = vmatprep.subr.bf16.mxu0 0
  %2814 = vmatpush1.bf16.msra.mxu0 0
  %2815 = vmatprep.subr.bf16.mxu0 0
  %2816 = vmatpush1.bf16.msra.mxu0 0
  %2817 = vmatprep.subr.bf16.mxu0 0
  %2818 = vmatpush1.bf16.msra.mxu0 0
  %2819 = vmatprep.subr.bf16.mxu0 0
  %2820 = vmatpush1.bf16.msra.mxu0 0
  %2821 = vmatprep.subr.bf16.mxu0 0
  %2822 = vmatpush1.bf16.msra.mxu0 0
  %2823 = vmatprep.subr.bf16.mxu0 0
  %2824 = vmatpush1.bf16.msra.mxu0 0
  %2825 = vmatprep.subr.bf16.mxu0 0
  %2826 = vmatpush1.bf16.msra.mxu0 0
  %2827 = vmatprep.subr.bf16.mxu0 0
  %2828 = vmatpush1.bf16.msra.mxu0 0
  %2829 = vmatprep.subr.bf16.mxu0 0
  %2830 = vmatpush1.bf16.msra.mxu0 0
  %2831 = vmatprep.subr.bf16.mxu0 0
  %2832 = vmatpush1.bf16.msra.mxu0 0
  %2833 = vmatprep.mubr.bf16.mxu0 0
  %2834 = vmatmul.mubr.bf16.gmra.mrb[0].mxu0 %v2778
  %v2835 = vpop.f32.mrb[0].mxu0
  %v2836 = vadd.f32 0.0, %v2835
  %v2837 = vpop.f32.mrb[0].mxu0
  %v2838 = vpop.f32.mrb[0].mxu0
  %v2839 = vadd.f32 0.0, %v2838
  %v2840 = vpop.f32.mrb[0].mxu0
  %2841 = vmatprep.mubr.bf16.mxu0 0
  %2842 = vmatmul.mubr.bf16.gmra.mrb[0].mxu0 %v2781
  %v2843 = vpop.f32.mrb[0].mxu0
  %v2844 = vadd.f32 0.0, %v2843
  %v2845 = vpop.f32.mrb[0].mxu0
  %v2846 = vpop.f32.mrb[0].mxu0
  %v2847 = vadd.f32 0.0, %v2846
  %v2848 = vpop.f32.mrb[0].mxu0
  %2849 = vmatprep.mubr.bf16.mxu0 0
  %2850 = vmatmul.mubr.bf16.gmra.mrb[0].mxu0 %v2784
  %v2851 = vpop.f32.mrb[0].mxu0
  %v2852 = vadd.f32 0.0, %v2851
  %v2853 = vpop.f32.mrb[0].mxu0
  %v2854 = vpop.f32.mrb[0].mxu0
  %v2855 = vadd.f32 0.0, %v2854
  %v2856 = vpop.f32.mrb[0].mxu0
  %2857 = vmatprep.mubr.bf16.mxu0 0
  %2858 = vmatmul.mubr.bf16.gmra.mrb[0].mxu0 %v2787
  %v2859 = vpop.f32.mrb[0].mxu0
  %v2860 = vadd.f32 0.0, %v2859
  %v2861 = vpop.f32.mrb[0].mxu0
  %v2862 = vpop.f32.mrb[0].mxu0
  %v2863 = vadd.f32 0.0, %v2862
  %v2864 = vpop.f32.mrb[0].mxu0
  %2865 = vmatprep.mubr.bf16.mxu0 0
  %2866 = vmatmul.mubr.bf16.gmra.mrb[0].mxu0 %v2790
  %v2867 = vpop.f32.mrb[0].mxu0
  %v2868 = vadd.f32 0.0, %v2867
  %v2869 = vpop.f32.mrb[0].mxu0
  %v2870 = vpop.f32.mrb[0].mxu0
  %v2871 = vadd.f32 0.0, %v2870
  %v2872 = vpop.f32.mrb[0].mxu0
  %2873 = vmatprep.mubr.bf16.mxu0 0
  %2874 = vmatmul.mubr.bf16.gmra.mrb[0].mxu0 %v2793
  %v2875 = vpop.f32.mrb[0].mxu0
  %v2876 = vadd.f32 0.0, %v2875
  %v2877 = vpop.f32.mrb[0].mxu0
  %v2878 = vpop.f32.mrb[0].mxu0
  %v2879 = vadd.f32 0.0, %v2878
  %v2880 = vpop.f32.mrb[0].mxu0
  %2881 = vmatprep.mubr.bf16.mxu0 0
  %2882 = vmatmul.mubr.bf16.gmra.mrb[0].mxu0 %v2796
  %v2883 = vpop.f32.mrb[0].mxu0
  %v2884 = vadd.f32 0.0, %v2883
  %v2885 = vpop.f32.mrb[0].mxu0
  %v2886 = vpop.f32.mrb[0].mxu0
  %v2887 = vadd.f32 0.0, %v2886
  %v2888 = vpop.f32.mrb[0].mxu0
  %2889 = vmatprep.mubr.bf16.mxu0 0
  %2890 = vmatmul.mubr.bf16.gmra.mrb[0].mxu0 %v2799
  %v2891 = vpop.f32.mrb[0].mxu0
  %v2892 = vadd.f32 0.0, %v2891
  %v2893 = vpop.f32.mrb[0].mxu0
  %v2894 = vpop.f32.mrb[0].mxu0
  %v2895 = vadd.f32 0.0, %v2894
  %v2896 = vpop.f32.mrb[0].mxu0
  %2897 = vdwg.mxu0
  %v2898 = vld [vmem:[%s14] sm:$0x1]
  %v2899 = vld [vmem:[%s15] sm:$0x1]
  %v2900 = vsel %vm159, %v2836, 0.0
  %v2901 = vsel %vm159, %v2839, 0.0
  %v2902 = vadd.f32 %v2900, %v2901
  %v2903 = vsel %vm159, %v2844, 0.0
  %v2904 = vadd.f32 %v2902, %v2903
  %v2905 = vsel %vm159, %v2847, 0.0
  %v2906 = vadd.f32 %v2904, %v2905
  %v2907 = vsel %vm159, %v2852, 0.0
  %v2908 = vadd.f32 %v2906, %v2907
  %v2909 = vsel %vm159, %v2855, 0.0
  %v2910 = vadd.f32 %v2908, %v2909
  %v2911 = vsel %vm159, %v2860, 0.0
  %v2912 = vadd.f32 %v2910, %v2911
  %v2913 = vsel %vm159, %v2863, 0.0
  %v2914 = vadd.f32 %v2912, %v2913
  %v2915 = vsel %vm159, %v2868, 0.0
  %v2916 = vadd.f32 %v2914, %v2915
  %v2917 = vsel %vm159, %v2871, 0.0
  %v2918 = vadd.f32 %v2916, %v2917
  %v2919 = vsel %vm159, %v2876, 0.0
  %v2920 = vadd.f32 %v2918, %v2919
  %v2921 = vsel %vm159, %v2879, 0.0
  %v2922 = vadd.f32 %v2920, %v2921
  %v2923 = vsel %vm159, %v2884, 0.0
  %v2924 = vadd.f32 %v2922, %v2923
  %v2925 = vsel %vm159, %v2887, 0.0
  %v2926 = vadd.f32 %v2924, %v2925
  %v2927 = vsel %vm159, %v2892, 0.0
  %v2928 = vadd.f32 %v2926, %v2927
  %v2929 = vsel %vm159, %v2895, 0.0
  %v2930 = vadd.f32 %v2928, %v2929
  %v2931 = vrot.slane %v2930, 4
  %v2932 = vadd.f32 %v2930, %v2931
  %v2933 = vrot.slane %v2932, 2
  %v2934 = vadd.f32 %v2932, %v2933
  %v2935 = vrot.slane %v2934, 1
  %v2936 = vadd.f32 %v2934, %v2935
  %v2937 = vmul.f32 %v2836, %v2836
  %v2938 = vmul.f32 %v2839, %v2839
  %v2939 = vmul.f32 %v2844, %v2844
  %v2940 = vmul.f32 %v2847, %v2847
  %v2941 = vmul.f32 %v2852, %v2852
  %v2942 = vmul.f32 %v2855, %v2855
  %v2943 = vmul.f32 %v2860, %v2860
  %v2944 = vmul.f32 %v2863, %v2863
  %v2945 = vmul.f32 %v2868, %v2868
  %v2946 = vmul.f32 %v2871, %v2871
  %v2947 = vmul.f32 %v2876, %v2876
  %v2948 = vmul.f32 %v2879, %v2879
  %v2949 = vmul.f32 %v2884, %v2884
  %v2950 = vmul.f32 %v2887, %v2887
  %v2951 = vmul.f32 %v2892, %v2892
  %v2952 = vmul.f32 %v2895, %v2895
  %v2953 = vsel %vm159, %v2937, 0.0
  %v2954 = vsel %vm159, %v2938, 0.0
  %v2955 = vadd.f32 %v2953, %v2954
  %v2956 = vsel %vm159, %v2939, 0.0
  %v2957 = vadd.f32 %v2955, %v2956
  %v2958 = vsel %vm159, %v2940, 0.0
  %v2959 = vadd.f32 %v2957, %v2958
  %v2960 = vsel %vm159, %v2941, 0.0
  %v2961 = vadd.f32 %v2959, %v2960
  %v2962 = vsel %vm159, %v2942, 0.0
  %v2963 = vadd.f32 %v2961, %v2962
  %v2964 = vsel %vm159, %v2943, 0.0
  %v2965 = vadd.f32 %v2963, %v2964
  %v2966 = vsel %vm159, %v2944, 0.0
  %v2967 = vadd.f32 %v2965, %v2966
  %v2968 = vsel %vm159, %v2945, 0.0
  %v2969 = vadd.f32 %v2967, %v2968
  %v2970 = vsel %vm159, %v2946, 0.0
  %v2971 = vadd.f32 %v2969, %v2970
  %v2972 = vsel %vm159, %v2947, 0.0
  %v2973 = vadd.f32 %v2971, %v2972
  %v2974 = vsel %vm159, %v2948, 0.0
  %v2975 = vadd.f32 %v2973, %v2974
  %v2976 = vsel %vm159, %v2949, 0.0
  %v2977 = vadd.f32 %v2975, %v2976
  %v2978 = vsel %vm159, %v2950, 0.0
  %v2979 = vadd.f32 %v2977, %v2978
  %v2980 = vsel %vm159, %v2951, 0.0
  %v2981 = vadd.f32 %v2979, %v2980
  %v2982 = vsel %vm159, %v2952, 0.0
  %v2983 = vadd.f32 %v2981, %v2982
  %v2984 = vrot.slane %v2983, 4
  %v2985 = vadd.f32 %v2983, %v2984
  %v2986 = vrot.slane %v2985, 2
  %v2987 = vadd.f32 %v2985, %v2986
  %v2988 = vrot.slane %v2987, 1
  %v2989 = vadd.f32 %v2987, %v2988
  %v2990 = vmul.f32 %v2936, 0.0078125
  %v2991 = vmul.f32 %v2989, 0.0078125
  %v2992 = vmul.f32 %v2990, %v2990
  %v2993 = vsub.f32 %v2991, %v2992
  %v2994 = vmax.f32 %v2993, 0.0
  %v2995 = vsub.f32 %v2836, %v2990
  %v2996 = vsub.f32 %v2839, %v2990
  %v2997 = vsub.f32 %v2844, %v2990
  %v2998 = vsub.f32 %v2847, %v2990
  %v2999 = vsub.f32 %v2852, %v2990
  %v3000 = vsub.f32 %v2855, %v2990
  %v3001 = vsub.f32 %v2860, %v2990
  %v3002 = vsub.f32 %v2863, %v2990
  %v3003 = vsub.f32 %v2868, %v2990
  %v3004 = vsub.f32 %v2871, %v2990
  %v3005 = vsub.f32 %v2876, %v2990
  %v3006 = vsub.f32 %v2879, %v2990
  %v3007 = vsub.f32 %v2884, %v2990
  %v3008 = vsub.f32 %v2887, %v2990
  %v3009 = vsub.f32 %v2892, %v2990
  %v3010 = vsub.f32 %v2895, %v2990
  %v3011 = vadd.f32 %v2994, 0.001
  %v3012 = vrsqrt.pop %v3011
  %v3013 = vmul.f32 %v2995, %v3012
  %v3014 = vmul.f32 %v2996, %v3012
  %v3015 = vmul.f32 %v2997, %v3012
  %v3016 = vmul.f32 %v2998, %v3012
  %v3017 = vmul.f32 %v2999, %v3012
  %v3018 = vmul.f32 %v3000, %v3012
  %v3019 = vmul.f32 %v3001, %v3012
  %v3020 = vmul.f32 %v3002, %v3012
  %v3021 = vmul.f32 %v3003, %v3012
  %v3022 = vmul.f32 %v3004, %v3012
  %v3023 = vmul.f32 %v3005, %v3012
  %v3024 = vmul.f32 %v3006, %v3012
  %v3025 = vmul.f32 %v3007, %v3012
  %v3026 = vmul.f32 %v3008, %v3012
  %v3027 = vmul.f32 %v3009, %v3012
  %v3028 = vmul.f32 %v3010, %v3012
  %v3030 = vlaneseq
  %v3031 = vshrl.u32 %v3030, 7
  %v3032 = vsub.s32 0, %v3031
  %v3033 = vrot.slane %v2898, %v3032
  %v3035 = vmul.f32 %v3013, %v3033
  %v3036 = vmul.f32 %v3014, %v3033
  %v3037 = vmul.f32 %v3015, %v3033
  %v3038 = vmul.f32 %v3016, %v3033
  %v3039 = vmul.f32 %v3017, %v3033
  %v3040 = vmul.f32 %v3018, %v3033
  %v3041 = vmul.f32 %v3019, %v3033
  %v3042 = vmul.f32 %v3020, %v3033
  %v3043 = vmul.f32 %v3021, %v3033
  %v3044 = vmul.f32 %v3022, %v3033
  %v3045 = vmul.f32 %v3023, %v3033
  %v3046 = vmul.f32 %v3024, %v3033
  %v3047 = vmul.f32 %v3025, %v3033
  %v3048 = vmul.f32 %v3026, %v3033
  %v3049 = vmul.f32 %v3027, %v3033
  %v3050 = vmul.f32 %v3028, %v3033
  %v3052 = vlaneseq
  %v3053 = vshrl.u32 %v3052, 7
  %v3054 = vsub.s32 0, %v3053
  %v3055 = vrot.slane %v2899, %v3054
  %v3057 = vadd.f32 %v3035, %v3055
  %v3058 = vadd.f32 %v3036, %v3055
  %v3059 = vadd.f32 %v3037, %v3055
  %v3060 = vadd.f32 %v3038, %v3055
  %v3061 = vadd.f32 %v3039, %v3055
  %v3062 = vadd.f32 %v3040, %v3055
  %v3063 = vadd.f32 %v3041, %v3055
  %v3064 = vadd.f32 %v3042, %v3055
  %v3065 = vadd.f32 %v3043, %v3055
  %v3066 = vadd.f32 %v3044, %v3055
  %v3067 = vadd.f32 %v3045, %v3055
  %v3068 = vadd.f32 %v3046, %v3055
  %v3069 = vadd.f32 %v3047, %v3055
  %v3070 = vadd.f32 %v3048, %v3055
  %v3071 = vadd.f32 %v3049, %v3055
  %v3072 = vadd.f32 %v3050, %v3055
  %v3073 = vxor.u32 %v3057, 2147483648
  %v3074 = vxor.u32 %v3058, 2147483648
  %v3075 = vxor.u32 %v3059, 2147483648
  %v3076 = vxor.u32 %v3060, 2147483648
  %v3077 = vxor.u32 %v3061, 2147483648
  %v3078 = vxor.u32 %v3062, 2147483648
  %v3079 = vxor.u32 %v3063, 2147483648
  %v3080 = vxor.u32 %v3064, 2147483648
  %v3081 = vxor.u32 %v3065, 2147483648
  %v3082 = vxor.u32 %v3066, 2147483648
  %v3083 = vxor.u32 %v3067, 2147483648
  %v3084 = vxor.u32 %v3068, 2147483648
  %v3085 = vxor.u32 %v3069, 2147483648
  %v3086 = vxor.u32 %v3070, 2147483648
  %v3087 = vxor.u32 %v3071, 2147483648
  %v3088 = vxor.u32 %v3072, 2147483648
  %v3089 = vmul.f32 %v3073, 1.442695
  %v3090 = vpow.pop %v3089
  %v3091 = vmul.f32 %v3074, 1.442695
  %v3092 = vpow.pop %v3091
  %v3093 = vmul.f32 %v3075, 1.442695
  %v3094 = vpow.pop %v3093
  %v3095 = vmul.f32 %v3076, 1.442695
  %v3096 = vpow.pop %v3095
  %v3097 = vmul.f32 %v3077, 1.442695
  %v3098 = vpow.pop %v3097
  %v3099 = vmul.f32 %v3078, 1.442695
  %v3100 = vpow.pop %v3099
  %v3101 = vmul.f32 %v3079, 1.442695
  %v3102 = vpow.pop %v3101
  %v3103 = vmul.f32 %v3080, 1.442695
  %v3104 = vpow.pop %v3103
  %v3105 = vmul.f32 %v3081, 1.442695
  %v3106 = vpow.pop %v3105
  %v3107 = vmul.f32 %v3082, 1.442695
  %v3108 = vpow.pop %v3107
  %v3109 = vmul.f32 %v3083, 1.442695
  %v3110 = vpow.pop %v3109
  %v3111 = vmul.f32 %v3084, 1.442695
  %v3112 = vpow.pop %v3111
  %v3113 = vmul.f32 %v3085, 1.442695
  %v3114 = vpow.pop %v3113
  %v3115 = vmul.f32 %v3086, 1.442695
  %v3116 = vpow.pop %v3115
  %v3117 = vmul.f32 %v3087, 1.442695
  %v3118 = vpow.pop %v3117
  %v3119 = vmul.f32 %v3088, 1.442695
  %v3120 = vpow.pop %v3119
  %v3121 = vadd.f32 %v3090, 1.0
  %v3122 = vadd.f32 %v3092, 1.0
  %v3123 = vadd.f32 %v3094, 1.0
  %v3124 = vadd.f32 %v3096, 1.0
  %v3125 = vadd.f32 %v3098, 1.0
  %v3126 = vadd.f32 %v3100, 1.0
  %v3127 = vadd.f32 %v3102, 1.0
  %v3128 = vadd.f32 %v3104, 1.0
  %v3129 = vadd.f32 %v3106, 1.0
  %v3130 = vadd.f32 %v3108, 1.0
  %v3131 = vadd.f32 %v3110, 1.0
  %v3132 = vadd.f32 %v3112, 1.0
  %v3133 = vadd.f32 %v3114, 1.0
  %v3134 = vadd.f32 %v3116, 1.0
  %v3135 = vadd.f32 %v3118, 1.0
  %v3136 = vadd.f32 %v3120, 1.0
  %v3137 = vrcp.pop %v3121
  %v3138 = vmul.f32 1.0, %v3137
  %v3139 = vrcp.pop %v3122
  %v3140 = vmul.f32 1.0, %v3139
  %v3141 = vrcp.pop %v3123
  %v3142 = vmul.f32 1.0, %v3141
  %v3143 = vrcp.pop %v3124
  %v3144 = vmul.f32 1.0, %v3143
  %v3145 = vrcp.pop %v3125
  %v3146 = vmul.f32 1.0, %v3145
  %v3147 = vrcp.pop %v3126
  %v3148 = vmul.f32 1.0, %v3147
  %v3149 = vrcp.pop %v3127
  %v3150 = vmul.f32 1.0, %v3149
  %v3151 = vrcp.pop %v3128
  %v3152 = vmul.f32 1.0, %v3151
  %v3153 = vrcp.pop %v3129
  %v3154 = vmul.f32 1.0, %v3153
  %v3155 = vrcp.pop %v3130
  %v3156 = vmul.f32 1.0, %v3155
  %v3157 = vrcp.pop %v3131
  %v3158 = vmul.f32 1.0, %v3157
  %v3159 = vrcp.pop %v3132
  %v3160 = vmul.f32 1.0, %v3159
  %v3161 = vrcp.pop %v3133
  %v3162 = vmul.f32 1.0, %v3161
  %v3163 = vrcp.pop %v3134
  %v3164 = vmul.f32 1.0, %v3163
  %v3165 = vrcp.pop %v3135
  %v3166 = vmul.f32 1.0, %v3165
  %v3167 = vrcp.pop %v3136
  %v3168 = vmul.f32 1.0, %v3167
  %v3169 = vmul.f32 %v3057, %v3138
  %v3170 = vmul.f32 %v3058, %v3140
  %v3171 = vmul.f32 %v3059, %v3142
  %v3172 = vmul.f32 %v3060, %v3144
  %v3173 = vmul.f32 %v3061, %v3146
  %v3174 = vmul.f32 %v3062, %v3148
  %v3175 = vmul.f32 %v3063, %v3150
  %v3176 = vmul.f32 %v3064, %v3152
  %v3177 = vmul.f32 %v3065, %v3154
  %v3178 = vmul.f32 %v3066, %v3156
  %v3179 = vmul.f32 %v3067, %v3158
  %v3180 = vmul.f32 %v3068, %v3160
  %v3181 = vmul.f32 %v3069, %v3162
  %v3182 = vmul.f32 %v3070, %v3164
  %v3183 = vmul.f32 %v3071, %v3166
  %v3184 = vmul.f32 %v3072, %v3168
  %v3185 = vpack.c.bf16 %v3170, %v3169
  %v3186 = vpack.c.bf16 %v3172, %v3171
  %v3187 = vpack.c.bf16 %v3174, %v3173
  %v3188 = vpack.c.bf16 %v3176, %v3175
  %v3189 = vpack.c.bf16 %v3178, %v3177
  %v3190 = vpack.c.bf16 %v3180, %v3179
  %v3191 = vpack.c.bf16 %v3182, %v3181
  %v3192 = vpack.c.bf16 %v3184, %v3183
  %v3193 = vld [vmem:[%s16] sm:$0xf]
  %v3194 = vld [vmem:[%s16 + $0x4] sm:$0xf]
  %v3195 = vld [vmem:[%s16 + $0x8] sm:$0xf]
  %v3196 = vld [vmem:[%s16 + $0xc] sm:$0xf]
  %v3201 = vunpack.c.l.b16 %v3193
  %v3202 = vunpack.c.l.b16 %v3194
  %v3203 = vunpack.c.l.b16 %v3195
  %v3204 = vunpack.c.l.b16 %v3196
  %v3205 = vpack.c.b16 %v3202, %v3201
  %v3206 = vpack.c.b16 %v3204, %v3203
  %v3210 = vsel %vm159, %v3185, 0
  %v3213 = vsel %vm159, %v3186, 0
  %v3216 = vsel %vm159, %v3187, 0
  %v3219 = vsel %vm159, %v3188, 0
  %v3222 = vsel %vm159, %v3189, 0
  %v3225 = vsel %vm159, %v3190, 0
  %v3228 = vsel %vm159, %v3191, 0
  %v3231 = vsel %vm159, %v3192, 0
  %3233 = vmatprep.subr.bf16.mxu0 0
  %3234 = vmatpush1.bf16.msra.mxu0 %v3205
  %3235 = vmatprep.subr.bf16.mxu0 0
  %3236 = vmatpush1.bf16.msra.mxu0 %v3206
  %3237 = vmatprep.subr.bf16.mxu0 0
  %3238 = vmatpush1.bf16.msra.mxu0 0
  %3239 = vmatprep.subr.bf16.mxu0 0
  %3240 = vmatpush1.bf16.msra.mxu0 0
  %3241 = vmatprep.subr.bf16.mxu0 0
  %3242 = vmatpush1.bf16.msra.mxu0 0
  %3243 = vmatprep.subr.bf16.mxu0 0
  %3244 = vmatpush1.bf16.msra.mxu0 0
  %3245 = vmatprep.subr.bf16.mxu0 0
  %3246 = vmatpush1.bf16.msra.mxu0 0
  %3247 = vmatprep.subr.bf16.mxu0 0
  %3248 = vmatpush1.bf16.msra.mxu0 0
  %3249 = vmatprep.subr.bf16.mxu0 0
  %3250 = vmatpush1.bf16.msra.mxu0 0
  %3251 = vmatprep.subr.bf16.mxu0 0
  %3252 = vmatpush1.bf16.msra.mxu0 0
  %3253 = vmatprep.subr.bf16.mxu0 0
  %3254 = vmatpush1.bf16.msra.mxu0 0
  %3255 = vmatprep.subr.bf16.mxu0 0
  %3256 = vmatpush1.bf16.msra.mxu0 0
  %3257 = vmatprep.subr.bf16.mxu0 0
  %3258 = vmatpush1.bf16.msra.mxu0 0
  %3259 = vmatprep.subr.bf16.mxu0 0
  %3260 = vmatpush1.bf16.msra.mxu0 0
  %3261 = vmatprep.subr.bf16.mxu0 0
  %3262 = vmatpush1.bf16.msra.mxu0 0
  %3263 = vmatprep.subr.bf16.mxu0 0
  %3264 = vmatpush1.bf16.msra.mxu0 0
  %3265 = vmatprep.mubr.bf16.mxu0 0
  %3266 = vmatmul.mubr.bf16.gmra.mrb[0].mxu0 %v3210
  %v3267 = vpop.f32.mrb[0].mxu0
  %v3268 = vadd.f32 0.0, %v3267
  %v3269 = vpop.f32.mrb[0].mxu0
  %v3270 = vpop.f32.mrb[0].mxu0
  %v3271 = vadd.f32 0.0, %v3270
  %v3272 = vpop.f32.mrb[0].mxu0
  %3273 = vmatprep.mubr.bf16.mxu0 0
  %3274 = vmatmul.mubr.bf16.gmra.mrb[0].mxu0 %v3213
  %v3275 = vpop.f32.mrb[0].mxu0
  %v3276 = vadd.f32 0.0, %v3275
  %v3277 = vpop.f32.mrb[0].mxu0
  %v3278 = vpop.f32.mrb[0].mxu0
  %v3279 = vadd.f32 0.0, %v3278
  %v3280 = vpop.f32.mrb[0].mxu0
  %3281 = vmatprep.mubr.bf16.mxu0 0
  %3282 = vmatmul.mubr.bf16.gmra.mrb[0].mxu0 %v3216
  %v3283 = vpop.f32.mrb[0].mxu0
  %v3284 = vadd.f32 0.0, %v3283
  %v3285 = vpop.f32.mrb[0].mxu0
  %v3286 = vpop.f32.mrb[0].mxu0
  %v3287 = vadd.f32 0.0, %v3286
  %v3288 = vpop.f32.mrb[0].mxu0
  %3289 = vmatprep.mubr.bf16.mxu0 0
  %3290 = vmatmul.mubr.bf16.gmra.mrb[0].mxu0 %v3219
  %v3291 = vpop.f32.mrb[0].mxu0
  %v3292 = vadd.f32 0.0, %v3291
  %v3293 = vpop.f32.mrb[0].mxu0
  %v3294 = vpop.f32.mrb[0].mxu0
  %v3295 = vadd.f32 0.0, %v3294
  %v3296 = vpop.f32.mrb[0].mxu0
  %3297 = vmatprep.mubr.bf16.mxu0 0
  %3298 = vmatmul.mubr.bf16.gmra.mrb[0].mxu0 %v3222
  %v3299 = vpop.f32.mrb[0].mxu0
  %v3300 = vadd.f32 0.0, %v3299
  %v3301 = vpop.f32.mrb[0].mxu0
  %v3302 = vpop.f32.mrb[0].mxu0
  %v3303 = vadd.f32 0.0, %v3302
  %v3304 = vpop.f32.mrb[0].mxu0
  %3305 = vmatprep.mubr.bf16.mxu0 0
  %3306 = vmatmul.mubr.bf16.gmra.mrb[0].mxu0 %v3225
  %v3307 = vpop.f32.mrb[0].mxu0
  %v3308 = vadd.f32 0.0, %v3307
  %v3309 = vpop.f32.mrb[0].mxu0
  %v3310 = vpop.f32.mrb[0].mxu0
  %v3311 = vadd.f32 0.0, %v3310
  %v3312 = vpop.f32.mrb[0].mxu0
  %3313 = vmatprep.mubr.bf16.mxu0 0
  %3314 = vmatmul.mubr.bf16.gmra.mrb[0].mxu0 %v3228
  %v3315 = vpop.f32.mrb[0].mxu0
  %v3316 = vadd.f32 0.0, %v3315
  %v3317 = vpop.f32.mrb[0].mxu0
  %v3318 = vpop.f32.mrb[0].mxu0
  %v3319 = vadd.f32 0.0, %v3318
  %v3320 = vpop.f32.mrb[0].mxu0
  %3321 = vmatprep.mubr.bf16.mxu0 0
  %3322 = vmatmul.mubr.bf16.gmra.mrb[0].mxu0 %v3231
  %v3323 = vpop.f32.mrb[0].mxu0
  %v3324 = vadd.f32 0.0, %v3323
  %v3325 = vpop.f32.mrb[0].mxu0
  %v3326 = vpop.f32.mrb[0].mxu0
  %v3327 = vadd.f32 0.0, %v3326
  %v3328 = vpop.f32.mrb[0].mxu0
  %3329 = vdwg.mxu0
  %v3330 = vld [vmem:[%s17] sm:$0x1]
  %v3331 = vld [vmem:[%s18] sm:$0x1]
  %v3332 = vsel %vm283, %v3268, 0.0
  %v3333 = vsel %vm283, %v3271, 0.0
  %v3334 = vadd.f32 %v3332, %v3333
  %v3335 = vsel %vm283, %v3276, 0.0
  %v3336 = vadd.f32 %v3334, %v3335
  %v3337 = vsel %vm283, %v3279, 0.0
  %v3338 = vadd.f32 %v3336, %v3337
  %v3339 = vsel %vm283, %v3284, 0.0
  %v3340 = vadd.f32 %v3338, %v3339
  %v3341 = vsel %vm283, %v3287, 0.0
  %v3342 = vadd.f32 %v3340, %v3341
  %v3343 = vsel %vm283, %v3292, 0.0
  %v3344 = vadd.f32 %v3342, %v3343
  %v3345 = vsel %vm283, %v3295, 0.0
  %v3346 = vadd.f32 %v3344, %v3345
  %v3347 = vsel %vm283, %v3300, 0.0
  %v3348 = vadd.f32 %v3346, %v3347
  %v3349 = vsel %vm283, %v3303, 0.0
  %v3350 = vadd.f32 %v3348, %v3349
  %v3351 = vsel %vm283, %v3308, 0.0
  %v3352 = vadd.f32 %v3350, %v3351
  %v3353 = vsel %vm283, %v3311, 0.0
  %v3354 = vadd.f32 %v3352, %v3353
  %v3355 = vsel %vm283, %v3316, 0.0
  %v3356 = vadd.f32 %v3354, %v3355
  %v3357 = vsel %vm283, %v3319, 0.0
  %v3358 = vadd.f32 %v3356, %v3357
  %v3359 = vsel %vm283, %v3324, 0.0
  %v3360 = vadd.f32 %v3358, %v3359
  %v3361 = vsel %vm283, %v3327, 0.0
  %v3362 = vadd.f32 %v3360, %v3361
  %v3363 = vrot.slane %v3362, 4
  %v3364 = vadd.f32 %v3362, %v3363
  %v3365 = vrot.slane %v3364, 2
  %v3366 = vadd.f32 %v3364, %v3365
  %v3367 = vrot.slane %v3366, 1
  %v3368 = vadd.f32 %v3366, %v3367
  %v3369 = vmul.f32 %v3268, %v3268
  %v3370 = vmul.f32 %v3271, %v3271
  %v3371 = vmul.f32 %v3276, %v3276
  %v3372 = vmul.f32 %v3279, %v3279
  %v3373 = vmul.f32 %v3284, %v3284
  %v3374 = vmul.f32 %v3287, %v3287
  %v3375 = vmul.f32 %v3292, %v3292
  %v3376 = vmul.f32 %v3295, %v3295
  %v3377 = vmul.f32 %v3300, %v3300
  %v3378 = vmul.f32 %v3303, %v3303
  %v3379 = vmul.f32 %v3308, %v3308
  %v3380 = vmul.f32 %v3311, %v3311
  %v3381 = vmul.f32 %v3316, %v3316
  %v3382 = vmul.f32 %v3319, %v3319
  %v3383 = vmul.f32 %v3324, %v3324
  %v3384 = vmul.f32 %v3327, %v3327
  %v3385 = vsel %vm283, %v3369, 0.0
  %v3386 = vsel %vm283, %v3370, 0.0
  %v3387 = vadd.f32 %v3385, %v3386
  %v3388 = vsel %vm283, %v3371, 0.0
  %v3389 = vadd.f32 %v3387, %v3388
  %v3390 = vsel %vm283, %v3372, 0.0
  %v3391 = vadd.f32 %v3389, %v3390
  %v3392 = vsel %vm283, %v3373, 0.0
  %v3393 = vadd.f32 %v3391, %v3392
  %v3394 = vsel %vm283, %v3374, 0.0
  %v3395 = vadd.f32 %v3393, %v3394
  %v3396 = vsel %vm283, %v3375, 0.0
  %v3397 = vadd.f32 %v3395, %v3396
  %v3398 = vsel %vm283, %v3376, 0.0
  %v3399 = vadd.f32 %v3397, %v3398
  %v3400 = vsel %vm283, %v3377, 0.0
  %v3401 = vadd.f32 %v3399, %v3400
  %v3402 = vsel %vm283, %v3378, 0.0
  %v3403 = vadd.f32 %v3401, %v3402
  %v3404 = vsel %vm283, %v3379, 0.0
  %v3405 = vadd.f32 %v3403, %v3404
  %v3406 = vsel %vm283, %v3380, 0.0
  %v3407 = vadd.f32 %v3405, %v3406
  %v3408 = vsel %vm283, %v3381, 0.0
  %v3409 = vadd.f32 %v3407, %v3408
  %v3410 = vsel %vm283, %v3382, 0.0
  %v3411 = vadd.f32 %v3409, %v3410
  %v3412 = vsel %vm283, %v3383, 0.0
  %v3413 = vadd.f32 %v3411, %v3412
  %v3414 = vsel %vm283, %v3384, 0.0
  %v3415 = vadd.f32 %v3413, %v3414
  %v3416 = vrot.slane %v3415, 4
  %v3417 = vadd.f32 %v3415, %v3416
  %v3418 = vrot.slane %v3417, 2
  %v3419 = vadd.f32 %v3417, %v3418
  %v3420 = vrot.slane %v3419, 1
  %v3421 = vadd.f32 %v3419, %v3420
  %v3422 = vmul.f32 %v3368, 0.0078125
  %v3423 = vmul.f32 %v3421, 0.0078125
  %v3424 = vmul.f32 %v3422, %v3422
  %v3425 = vsub.f32 %v3423, %v3424
  %v3426 = vmax.f32 %v3425, 0.0
  %v3427 = vsub.f32 %v3268, %v3422
  %v3428 = vsub.f32 %v3271, %v3422
  %v3429 = vsub.f32 %v3276, %v3422
  %v3430 = vsub.f32 %v3279, %v3422
  %v3431 = vsub.f32 %v3284, %v3422
  %v3432 = vsub.f32 %v3287, %v3422
  %v3433 = vsub.f32 %v3292, %v3422
  %v3434 = vsub.f32 %v3295, %v3422
  %v3435 = vsub.f32 %v3300, %v3422
  %v3436 = vsub.f32 %v3303, %v3422
  %v3437 = vsub.f32 %v3308, %v3422
  %v3438 = vsub.f32 %v3311, %v3422
  %v3439 = vsub.f32 %v3316, %v3422
  %v3440 = vsub.f32 %v3319, %v3422
  %v3441 = vsub.f32 %v3324, %v3422
  %v3442 = vsub.f32 %v3327, %v3422
  %v3443 = vadd.f32 %v3426, 0.001
  %v3444 = vrsqrt.pop %v3443
  %v3445 = vmul.f32 %v3427, %v3444
  %v3446 = vmul.f32 %v3428, %v3444
  %v3447 = vmul.f32 %v3429, %v3444
  %v3448 = vmul.f32 %v3430, %v3444
  %v3449 = vmul.f32 %v3431, %v3444
  %v3450 = vmul.f32 %v3432, %v3444
  %v3451 = vmul.f32 %v3433, %v3444
  %v3452 = vmul.f32 %v3434, %v3444
  %v3453 = vmul.f32 %v3435, %v3444
  %v3454 = vmul.f32 %v3436, %v3444
  %v3455 = vmul.f32 %v3437, %v3444
  %v3456 = vmul.f32 %v3438, %v3444
  %v3457 = vmul.f32 %v3439, %v3444
  %v3458 = vmul.f32 %v3440, %v3444
  %v3459 = vmul.f32 %v3441, %v3444
  %v3460 = vmul.f32 %v3442, %v3444
  %v3462 = vlaneseq
  %v3463 = vshrl.u32 %v3462, 7
  %v3464 = vsub.s32 0, %v3463
  %v3465 = vrot.slane %v3330, %v3464
  %v3467 = vmul.f32 %v3445, %v3465
  %v3468 = vmul.f32 %v3446, %v3465
  %v3469 = vmul.f32 %v3447, %v3465
  %v3470 = vmul.f32 %v3448, %v3465
  %v3471 = vmul.f32 %v3449, %v3465
  %v3472 = vmul.f32 %v3450, %v3465
  %v3473 = vmul.f32 %v3451, %v3465
  %v3474 = vmul.f32 %v3452, %v3465
  %v3475 = vmul.f32 %v3453, %v3465
  %v3476 = vmul.f32 %v3454, %v3465
  %v3477 = vmul.f32 %v3455, %v3465
  %v3478 = vmul.f32 %v3456, %v3465
  %v3479 = vmul.f32 %v3457, %v3465
  %v3480 = vmul.f32 %v3458, %v3465
  %v3481 = vmul.f32 %v3459, %v3465
  %v3482 = vmul.f32 %v3460, %v3465
  %v3484 = vlaneseq
  %v3485 = vshrl.u32 %v3484, 7
  %v3486 = vsub.s32 0, %v3485
  %v3487 = vrot.slane %v3331, %v3486
  %v3489 = vadd.f32 %v3467, %v3487
  %v3490 = vadd.f32 %v3468, %v3487
  %v3491 = vadd.f32 %v3469, %v3487
  %v3492 = vadd.f32 %v3470, %v3487
  %v3493 = vadd.f32 %v3471, %v3487
  %v3494 = vadd.f32 %v3472, %v3487
  %v3495 = vadd.f32 %v3473, %v3487
  %v3496 = vadd.f32 %v3474, %v3487
  %v3497 = vadd.f32 %v3475, %v3487
  %v3498 = vadd.f32 %v3476, %v3487
  %v3499 = vadd.f32 %v3477, %v3487
  %v3500 = vadd.f32 %v3478, %v3487
  %v3501 = vadd.f32 %v3479, %v3487
  %v3502 = vadd.f32 %v3480, %v3487
  %v3503 = vadd.f32 %v3481, %v3487
  %v3504 = vadd.f32 %v3482, %v3487
  %v3505 = vxor.u32 %v3489, 2147483648
  %v3506 = vxor.u32 %v3490, 2147483648
  %v3507 = vxor.u32 %v3491, 2147483648
  %v3508 = vxor.u32 %v3492, 2147483648
  %v3509 = vxor.u32 %v3493, 2147483648
  %v3510 = vxor.u32 %v3494, 2147483648
  %v3511 = vxor.u32 %v3495, 2147483648
  %v3512 = vxor.u32 %v3496, 2147483648
  %v3513 = vxor.u32 %v3497, 2147483648
  %v3514 = vxor.u32 %v3498, 2147483648
  %v3515 = vxor.u32 %v3499, 2147483648
  %v3516 = vxor.u32 %v3500, 2147483648
  %v3517 = vxor.u32 %v3501, 2147483648
  %v3518 = vxor.u32 %v3502, 2147483648
  %v3519 = vxor.u32 %v3503, 2147483648
  %v3520 = vxor.u32 %v3504, 2147483648
  %v3521 = vmul.f32 %v3505, 1.442695
  %v3522 = vpow.pop %v3521
  %v3523 = vmul.f32 %v3506, 1.442695
  %v3524 = vpow.pop %v3523
  %v3525 = vmul.f32 %v3507, 1.442695
  %v3526 = vpow.pop %v3525
  %v3527 = vmul.f32 %v3508, 1.442695
  %v3528 = vpow.pop %v3527
  %v3529 = vmul.f32 %v3509, 1.442695
  %v3530 = vpow.pop %v3529
  %v3531 = vmul.f32 %v3510, 1.442695
  %v3532 = vpow.pop %v3531
  %v3533 = vmul.f32 %v3511, 1.442695
  %v3534 = vpow.pop %v3533
  %v3535 = vmul.f32 %v3512, 1.442695
  %v3536 = vpow.pop %v3535
  %v3537 = vmul.f32 %v3513, 1.442695
  %v3538 = vpow.pop %v3537
  %v3539 = vmul.f32 %v3514, 1.442695
  %v3540 = vpow.pop %v3539
  %v3541 = vmul.f32 %v3515, 1.442695
  %v3542 = vpow.pop %v3541
  %v3543 = vmul.f32 %v3516, 1.442695
  %v3544 = vpow.pop %v3543
  %v3545 = vmul.f32 %v3517, 1.442695
  %v3546 = vpow.pop %v3545
  %v3547 = vmul.f32 %v3518, 1.442695
  %v3548 = vpow.pop %v3547
  %v3549 = vmul.f32 %v3519, 1.442695
  %v3550 = vpow.pop %v3549
  %v3551 = vmul.f32 %v3520, 1.442695
  %v3552 = vpow.pop %v3551
  %v3553 = vadd.f32 %v3522, 1.0
  %v3554 = vadd.f32 %v3524, 1.0
  %v3555 = vadd.f32 %v3526, 1.0
  %v3556 = vadd.f32 %v3528, 1.0
  %v3557 = vadd.f32 %v3530, 1.0
  %v3558 = vadd.f32 %v3532, 1.0
  %v3559 = vadd.f32 %v3534, 1.0
  %v3560 = vadd.f32 %v3536, 1.0
  %v3561 = vadd.f32 %v3538, 1.0
  %v3562 = vadd.f32 %v3540, 1.0
  %v3563 = vadd.f32 %v3542, 1.0
  %v3564 = vadd.f32 %v3544, 1.0
  %v3565 = vadd.f32 %v3546, 1.0
  %v3566 = vadd.f32 %v3548, 1.0
  %v3567 = vadd.f32 %v3550, 1.0
  %v3568 = vadd.f32 %v3552, 1.0
  %v3569 = vrcp.pop %v3553
  %v3570 = vmul.f32 1.0, %v3569
  %v3571 = vrcp.pop %v3554
  %v3572 = vmul.f32 1.0, %v3571
  %v3573 = vrcp.pop %v3555
  %v3574 = vmul.f32 1.0, %v3573
  %v3575 = vrcp.pop %v3556
  %v3576 = vmul.f32 1.0, %v3575
  %v3577 = vrcp.pop %v3557
  %v3578 = vmul.f32 1.0, %v3577
  %v3579 = vrcp.pop %v3558
  %v3580 = vmul.f32 1.0, %v3579
  %v3581 = vrcp.pop %v3559
  %v3582 = vmul.f32 1.0, %v3581
  %v3583 = vrcp.pop %v3560
  %v3584 = vmul.f32 1.0, %v3583
  %v3585 = vrcp.pop %v3561
  %v3586 = vmul.f32 1.0, %v3585
  %v3587 = vrcp.pop %v3562
  %v3588 = vmul.f32 1.0, %v3587
  %v3589 = vrcp.pop %v3563
  %v3590 = vmul.f32 1.0, %v3589
  %v3591 = vrcp.pop %v3564
  %v3592 = vmul.f32 1.0, %v3591
  %v3593 = vrcp.pop %v3565
  %v3594 = vmul.f32 1.0, %v3593
  %v3595 = vrcp.pop %v3566
  %v3596 = vmul.f32 1.0, %v3595
  %v3597 = vrcp.pop %v3567
  %v3598 = vmul.f32 1.0, %v3597
  %v3599 = vrcp.pop %v3568
  %v3600 = vmul.f32 1.0, %v3599
  %v3601 = vmul.f32 %v3489, %v3570
  %v3602 = vmul.f32 %v3490, %v3572
  %v3603 = vmul.f32 %v3491, %v3574
  %v3604 = vmul.f32 %v3492, %v3576
  %v3605 = vmul.f32 %v3493, %v3578
  %v3606 = vmul.f32 %v3494, %v3580
  %v3607 = vmul.f32 %v3495, %v3582
  %v3608 = vmul.f32 %v3496, %v3584
  %v3609 = vmul.f32 %v3497, %v3586
  %v3610 = vmul.f32 %v3498, %v3588
  %v3611 = vmul.f32 %v3499, %v3590
  %v3612 = vmul.f32 %v3500, %v3592
  %v3613 = vmul.f32 %v3501, %v3594
  %v3614 = vmul.f32 %v3502, %v3596
  %v3615 = vmul.f32 %v3503, %v3598
  %v3616 = vmul.f32 %v3504, %v3600
  %3617 = vst.msk [vmem:[#allocation3] sm:$0xff] %vm283, -inf
  %vm3618 = vcmask 125952
  %3619 = vst.msk [vmem:[#allocation3 + $0x8] sm:$0xf] %vm3618, -inf
  %3620 = vst.msk [vmem:[#allocation3 + $0x10] sm:$0xff] %vm283, -inf
  %3621 = vst.msk [vmem:[#allocation3 + $0x18] sm:$0xf] %vm3618, -inf
  %3622 = vst.msk [vmem:[#allocation3 + $0x20] sm:$0xff] %vm283, -inf
  %3623 = vst.msk [vmem:[#allocation3 + $0x28] sm:$0xf] %vm3618, -inf
  %3624 = vst.msk [vmem:[#allocation3 + $0x30] sm:$0xff] %vm283, -inf
  %3625 = vst.msk [vmem:[#allocation3 + $0x38] sm:$0xf] %vm3618, -inf
  %3626 = vst.msk [vmem:[#allocation3 + $0x40] sm:$0xff] %vm283, -inf
  %3627 = vst.msk [vmem:[#allocation3 + $0x48] sm:$0xf] %vm3618, -inf
  %3628 = vst.msk [vmem:[#allocation3 + $0x50] sm:$0xff] %vm283, -inf
  %3629 = vst.msk [vmem:[#allocation3 + $0x58] sm:$0xf] %vm3618, -inf
  %3630 = vst.msk [vmem:[#allocation3 + $0x60] sm:$0xff] %vm283, -inf
  %3631 = vst.msk [vmem:[#allocation3 + $0x68] sm:$0xf] %vm3618, -inf
  %3632 = vst.msk [vmem:[#allocation3 + $0x70] sm:$0xff] %vm283, -inf
  %3633 = vst.msk [vmem:[#allocation3 + $0x78] sm:$0xf] %vm3618, -inf
  %3634 = vst.msk [vmem:[#allocation3 + $0x80] sm:$0xff] %vm283, -inf
  %3635 = vst.msk [vmem:[#allocation3 + $0x88] sm:$0xf] %vm3618, -inf
  %3636 = vst.msk [vmem:[#allocation3 + $0x90] sm:$0xff] %vm283, -inf
  %3637 = vst.msk [vmem:[#allocation3 + $0x98] sm:$0xf] %vm3618, -inf
  %3638 = vst.msk [vmem:[#allocation3 + $0xa0] sm:$0xff] %vm283, -inf
  %3639 = vst.msk [vmem:[#allocation3 + $0xa8] sm:$0xf] %vm3618, -inf
  %3640 = vst.msk [vmem:[#allocation3 + $0xb0] sm:$0xff] %vm283, -inf
  %3641 = vst.msk [vmem:[#allocation3 + $0xb8] sm:$0xf] %vm3618, -inf
  %3642 = vst.msk [vmem:[#allocation3 + $0xc0] sm:$0xff] %vm283, -inf
  %3643 = vst.msk [vmem:[#allocation3 + $0xc8] sm:$0xf] %vm3618, -inf
  %3644 = vst.msk [vmem:[#allocation3 + $0xd0] sm:$0xff] %vm283, -inf
  %3645 = vst.msk [vmem:[#allocation3 + $0xd8] sm:$0xf] %vm3618, -inf
  %3646 = vst.msk [vmem:[#allocation3 + $0xe0] sm:$0xff] %vm283, -inf
  %3647 = vst.msk [vmem:[#allocation3 + $0xe8] sm:$0xf] %vm3618, -inf
  %3648 = vst.msk [vmem:[#allocation3 + $0xf0] sm:$0xff] %vm283, -inf
  %3649 = vst.msk [vmem:[#allocation3 + $0xf8] sm:$0xf] %vm3618, -inf
  %3650 = vst.msk [vmem:[#allocation4] sm:$0xff] %vm283, -inf
  %3651 = vst.msk [vmem:[#allocation4 + $0x8] sm:$0xff] %vm283, -inf
  %3652 = vst.msk [vmem:[#allocation4 + $0x10] sm:$0xff] %vm283, -inf
  %3653 = vst.msk [vmem:[#allocation4 + $0x18] sm:$0xff] %vm283, -inf
  %3654 = vst.msk [vmem:[#allocation4 + $0x20] sm:$0xff] %vm283, -inf
  %3655 = vst.msk [vmem:[#allocation4 + $0x28] sm:$0xff] %vm283, -inf
  %3656 = vst.msk [vmem:[#allocation4 + $0x30] sm:$0xff] %vm283, -inf
  %3657 = vst.msk [vmem:[#allocation4 + $0x38] sm:$0xff] %vm283, -inf
  %3658 = vst.msk [vmem:[#allocation4 + $0x40] sm:$0xff] %vm283, -inf
  %3659 = vst.msk [vmem:[#allocation4 + $0x48] sm:$0xff] %vm283, -inf
  %3660 = vst.msk [vmem:[#allocation4 + $0x50] sm:$0xff] %vm283, -inf
  %3661 = vst.msk [vmem:[#allocation4 + $0x58] sm:$0xff] %vm283, -inf
  %3662 = vst.msk [vmem:[#allocation4 + $0x60] sm:$0xff] %vm283, -inf
  %3663 = vst.msk [vmem:[#allocation4 + $0x68] sm:$0xff] %vm283, -inf
  %3664 = vst.msk [vmem:[#allocation4 + $0x70] sm:$0xff] %vm283, -inf
  %3665 = vst.msk [vmem:[#allocation4 + $0x78] sm:$0xff] %vm283, -inf
  %3666 = vst.msk [vmem:[#allocation4 + $0x80] sm:$0xff] %vm283, -inf
  %3667 = vst.msk [vmem:[#allocation4 + $0x88] sm:$0xff] %vm283, -inf
  %3668 = vst.msk [vmem:[#allocation4 + $0x90] sm:$0xff] %vm283, -inf
  %3669 = vst.msk [vmem:[#allocation4 + $0x98] sm:$0xff] %vm283, -inf
  %3670 = vst.msk [vmem:[#allocation4 + $0xa0] sm:$0xff] %vm283, -inf
  %3671 = vst.msk [vmem:[#allocation4 + $0xa8] sm:$0xff] %vm283, -inf
  %3672 = vst.msk [vmem:[#allocation4 + $0xb0] sm:$0xff] %vm283, -inf
  %3673 = vst.msk [vmem:[#allocation4 + $0xb8] sm:$0xff] %vm283, -inf
  %3674 = vst.msk [vmem:[#allocation3 + $0x2] sm:$0xff] %vm283, %v3601
  %3675 = vst.msk [vmem:[#allocation3 + $0x12] sm:$0xff] %vm283, %v3602
  %3676 = vst.msk [vmem:[#allocation3 + $0x22] sm:$0xff] %vm283, %v3603
  %3677 = vst.msk [vmem:[#allocation3 + $0x32] sm:$0xff] %vm283, %v3604
  %3678 = vst.msk [vmem:[#allocation3 + $0x42] sm:$0xff] %vm283, %v3605
  %3679 = vst.msk [vmem:[#allocation3 + $0x52] sm:$0xff] %vm283, %v3606
  %3680 = vst.msk [vmem:[#allocation3 + $0x62] sm:$0xff] %vm283, %v3607
  %3681 = vst.msk [vmem:[#allocation3 + $0x72] sm:$0xff] %vm283, %v3608
  %3682 = vst.msk [vmem:[#allocation3 + $0x82] sm:$0xff] %vm283, %v3609
  %3683 = vst.msk [vmem:[#allocation3 + $0x92] sm:$0xff] %vm283, %v3610
  %3684 = vst.msk [vmem:[#allocation3 + $0xa2] sm:$0xff] %vm283, %v3611
  %3685 = vst.msk [vmem:[#allocation3 + $0xb2] sm:$0xff] %vm283, %v3612
  %3686 = vst.msk [vmem:[#allocation3 + $0xc2] sm:$0xff] %vm283, %v3613
  %3687 = vst.msk [vmem:[#allocation3 + $0xd2] sm:$0xff] %vm283, %v3614
  %3688 = vst.msk [vmem:[#allocation3 + $0xe2] sm:$0xff] %vm283, %v3615
  %3689 = vst.msk [vmem:[#allocation3 + $0xf2] sm:$0xff] %vm283, %v3616
  %v3690 = vld [vmem:[#allocation3] sm:$0xff]
  %v3691 = vld [vmem:[#allocation3 + $0x10] sm:$0xff]
  %v3692 = vld [vmem:[#allocation3 + $0x20] sm:$0xff]
  %v3693 = vld [vmem:[#allocation3 + $0x30] sm:$0xff]
  %v3694 = vld [vmem:[#allocation3 + $0x40] sm:$0xff]
  %v3695 = vld [vmem:[#allocation3 + $0x50] sm:$0xff]
  %v3696 = vld [vmem:[#allocation3 + $0x60] sm:$0xff]
  %v3697 = vld [vmem:[#allocation3 + $0x70] sm:$0xff]
  %v3698 = vld [vmem:[#allocation3 + $0x80] sm:$0xff]
  %v3699 = vld [vmem:[#allocation3 + $0x90] sm:$0xff]
  %v3700 = vld [vmem:[#allocation3 + $0xa0] sm:$0xff]
  %v3701 = vld [vmem:[#allocation3 + $0xb0] sm:$0xff]
  %v3702 = vld [vmem:[#allocation3 + $0xc0] sm:$0xff]
  %v3703 = vld [vmem:[#allocation3 + $0xd0] sm:$0xff]
  %v3704 = vld [vmem:[#allocation3 + $0xe0] sm:$0xff]
  %v3705 = vld [vmem:[#allocation3 + $0xf0] sm:$0xff]
  %v3706 = vld [vmem:[#allocation3 + $0x1] sm:$0xff]
  %v3707 = vld [vmem:[#allocation3 + $0x11] sm:$0xff]
  %v3708 = vld [vmem:[#allocation3 + $0x21] sm:$0xff]
  %v3709 = vld [vmem:[#allocation3 + $0x31] sm:$0xff]
  %v3710 = vld [vmem:[#allocation3 + $0x41] sm:$0xff]
  %v3711 = vld [vmem:[#allocation3 + $0x51] sm:$0xff]
  %v3712 = vld [vmem:[#allocation3 + $0x61] sm:$0xff]
  %v3713 = vld [vmem:[#allocation3 + $0x71] sm:$0xff]
  %v3714 = vld [vmem:[#allocation3 + $0x81] sm:$0xff]
  %v3715 = vld [vmem:[#allocation3 + $0x91] sm:$0xff]
  %v3716 = vld [vmem:[#allocation3 + $0xa1] sm:$0xff]
  %v3717 = vld [vmem:[#allocation3 + $0xb1] sm:$0xff]
  %v3718 = vld [vmem:[#allocation3 + $0xc1] sm:$0xff]
  %v3719 = vld [vmem:[#allocation3 + $0xd1] sm:$0xff]
  %v3720 = vld [vmem:[#allocation3 + $0xe1] sm:$0xff]
  %v3721 = vld [vmem:[#allocation3 + $0xf1] sm:$0xff]
  %v3722 = vmax.f32 %v3690, %v3706
  %v3723 = vmax.f32 %v3691, %v3707
  %v3724 = vmax.f32 %v3692, %v3708
  %v3725 = vmax.f32 %v3693, %v3709
  %v3726 = vmax.f32 %v3694, %v3710
  %v3727 = vmax.f32 %v3695, %v3711
  %v3728 = vmax.f32 %v3696, %v3712
  %v3729 = vmax.f32 %v3697, %v3713
  %v3730 = vmax.f32 %v3698, %v3714
  %v3731 = vmax.f32 %v3699, %v3715
  %v3732 = vmax.f32 %v3700, %v3716
  %v3733 = vmax.f32 %v3701, %v3717
  %v3734 = vmax.f32 %v3702, %v3718
  %v3735 = vmax.f32 %v3703, %v3719
  %v3736 = vmax.f32 %v3704, %v3720
  %v3737 = vmax.f32 %v3705, %v3721
  %v3738 = vld [vmem:[#allocation3 + $0x2] sm:$0xff]
  %v3739 = vld [vmem:[#allocation3 + $0x12] sm:$0xff]
  %v3740 = vld [vmem:[#allocation3 + $0x22] sm:$0xff]
  %v3741 = vld [vmem:[#allocation3 + $0x32] sm:$0xff]
  %v3742 = vld [vmem:[#allocation3 + $0x42] sm:$0xff]
  %v3743 = vld [vmem:[#allocation3 + $0x52] sm:$0xff]
  %v3744 = vld [vmem:[#allocation3 + $0x62] sm:$0xff]
  %v3745 = vld [vmem:[#allocation3 + $0x72] sm:$0xff]
  %v3746 = vld [vmem:[#allocation3 + $0x82] sm:$0xff]
  %v3747 = vld [vmem:[#allocation3 + $0x92] sm:$0xff]
  %v3748 = vld [vmem:[#allocation3 + $0xa2] sm:$0xff]
  %v3749 = vld [vmem:[#allocation3 + $0xb2] sm:$0xff]
  %v3750 = vld [vmem:[#allocation3 + $0xc2] sm:$0xff]
  %v3751 = vld [vmem:[#allocation3 + $0xd2] sm:$0xff]
  %v3752 = vld [vmem:[#allocation3 + $0xe2] sm:$0xff]
  %v3753 = vld [vmem:[#allocation3 + $0xf2] sm:$0xff]
  %v3754 = vmax.f32 %v3722, %v3738
  %v3755 = vmax.f32 %v3723, %v3739
  %v3756 = vmax.f32 %v3724, %v3740
  %v3757 = vmax.f32 %v3725, %v3741
  %v3758 = vmax.f32 %v3726, %v3742
  %v3759 = vmax.f32 %v3727, %v3743
  %v3760 = vmax.f32 %v3728, %v3744
  %v3761 = vmax.f32 %v3729, %v3745
  %v3762 = vmax.f32 %v3730, %v3746
  %v3763 = vmax.f32 %v3731, %v3747
  %v3764 = vmax.f32 %v3732, %v3748
  %v3765 = vmax.f32 %v3733, %v3749
  %v3766 = vmax.f32 %v3734, %v3750
  %v3767 = vmax.f32 %v3735, %v3751
  %v3768 = vmax.f32 %v3736, %v3752
  %v3769 = vmax.f32 %v3737, %v3753
  %v3770 = vld [vmem:[#allocation3 + $0x3] sm:$0xff]
  %v3771 = vld [vmem:[#allocation3 + $0x13] sm:$0xff]
  %v3772 = vld [vmem:[#allocation3 + $0x23] sm:$0xff]
  %v3773 = vld [vmem:[#allocation3 + $0x33] sm:$0xff]
  %v3774 = vld [vmem:[#allocation3 + $0x43] sm:$0xff]
  %v3775 = vld [vmem:[#allocation3 + $0x53] sm:$0xff]
  %v3776 = vld [vmem:[#allocation3 + $0x63] sm:$0xff]
  %v3777 = vld [vmem:[#allocation3 + $0x73] sm:$0xff]
  %v3778 = vld [vmem:[#allocation3 + $0x83] sm:$0xff]
  %v3779 = vld [vmem:[#allocation3 + $0x93] sm:$0xff]
  %v3780 = vld [vmem:[#allocation3 + $0xa3] sm:$0xff]
  %v3781 = vld [vmem:[#allocation3 + $0xb3] sm:$0xff]
  %v3782 = vld [vmem:[#allocation3 + $0xc3] sm:$0xff]
  %v3783 = vld [vmem:[#allocation3 + $0xd3] sm:$0xff]
  %v3784 = vld [vmem:[#allocation3 + $0xe3] sm:$0xff]
  %v3785 = vld [vmem:[#allocation3 + $0xf3] sm:$0xff]
  %v3786 = vmax.f32 %v3754, %v3770
  %v3787 = vmax.f32 %v3755, %v3771
  %v3788 = vmax.f32 %v3756, %v3772
  %v3789 = vmax.f32 %v3757, %v3773
  %v3790 = vmax.f32 %v3758, %v3774
  %v3791 = vmax.f32 %v3759, %v3775
  %v3792 = vmax.f32 %v3760, %v3776
  %v3793 = vmax.f32 %v3761, %v3777
  %v3794 = vmax.f32 %v3762, %v3778
  %v3795 = vmax.f32 %v3763, %v3779
  %v3796 = vmax.f32 %v3764, %v3780
  %v3797 = vmax.f32 %v3765, %v3781
  %v3798 = vmax.f32 %v3766, %v3782
  %v3799 = vmax.f32 %v3767, %v3783
  %v3800 = vmax.f32 %v3768, %v3784
  %v3801 = vmax.f32 %v3769, %v3785
  %v3802 = vld [vmem:[#allocation3 + $0x4] sm:$0xff]
  %v3803 = vld [vmem:[#allocation3 + $0x14] sm:$0xff]
  %v3804 = vld [vmem:[#allocation3 + $0x24] sm:$0xff]
  %v3805 = vld [vmem:[#allocation3 + $0x34] sm:$0xff]
  %v3806 = vld [vmem:[#allocation3 + $0x44] sm:$0xff]
  %v3807 = vld [vmem:[#allocation3 + $0x54] sm:$0xff]
  %v3808 = vld [vmem:[#allocation3 + $0x64] sm:$0xff]
  %v3809 = vld [vmem:[#allocation3 + $0x74] sm:$0xff]
  %v3810 = vld [vmem:[#allocation3 + $0x84] sm:$0xff]
  %v3811 = vld [vmem:[#allocation3 + $0x94] sm:$0xff]
  %v3812 = vld [vmem:[#allocation3 + $0xa4] sm:$0xff]
  %v3813 = vld [vmem:[#allocation3 + $0xb4] sm:$0xff]
  %v3814 = vld [vmem:[#allocation3 + $0xc4] sm:$0xff]
  %v3815 = vld [vmem:[#allocation3 + $0xd4] sm:$0xff]
  %v3816 = vld [vmem:[#allocation3 + $0xe4] sm:$0xff]
  %v3817 = vld [vmem:[#allocation3 + $0xf4] sm:$0xff]
  %v3818 = vmax.f32 %v3786, %v3802
  %v3819 = vmax.f32 %v3787, %v3803
  %v3820 = vmax.f32 %v3788, %v3804
  %v3821 = vmax.f32 %v3789, %v3805
  %v3822 = vmax.f32 %v3790, %v3806
  %v3823 = vmax.f32 %v3791, %v3807
  %v3824 = vmax.f32 %v3792, %v3808
  %v3825 = vmax.f32 %v3793, %v3809
  %v3826 = vmax.f32 %v3794, %v3810
  %v3827 = vmax.f32 %v3795, %v3811
  %v3828 = vmax.f32 %v3796, %v3812
  %v3829 = vmax.f32 %v3797, %v3813
  %v3830 = vmax.f32 %v3798, %v3814
  %v3831 = vmax.f32 %v3799, %v3815
  %v3832 = vmax.f32 %v3800, %v3816
  %v3833 = vmax.f32 %v3801, %v3817
  %s3834 = scalar_lea.vmem [#allocation4], 16
  %3835 = vst.msk [vmem:[%s3834] sm:$0xff] %vm283, %v3818
  %3836 = vst.msk [vmem:[%s3834 + $0x8] sm:$0xff] %vm283, %v3819
  %3837 = vst.msk [vmem:[%s3834 + $0x10] sm:$0xff] %vm283, %v3820
  %3838 = vst.msk [vmem:[%s3834 + $0x18] sm:$0xff] %vm283, %v3821
  %3839 = vst.msk [vmem:[%s3834 + $0x20] sm:$0xff] %vm283, %v3822
  %3840 = vst.msk [vmem:[%s3834 + $0x28] sm:$0xff] %vm283, %v3823
  %3841 = vst.msk [vmem:[%s3834 + $0x30] sm:$0xff] %vm283, %v3824
  %3842 = vst.msk [vmem:[%s3834 + $0x38] sm:$0xff] %vm283, %v3825
  %3843 = vst.msk [vmem:[%s3834 + $0x60] sm:$0xff] %vm283, %v3826
  %3844 = vst.msk [vmem:[%s3834 + $0x68] sm:$0xff] %vm283, %v3827
  %3845 = vst.msk [vmem:[%s3834 + $0x70] sm:$0xff] %vm283, %v3828
  %3846 = vst.msk [vmem:[%s3834 + $0x78] sm:$0xff] %vm283, %v3829
  %3847 = vst.msk [vmem:[%s3834 + $0x80] sm:$0xff] %vm283, %v3830
  %3848 = vst.msk [vmem:[%s3834 + $0x88] sm:$0xff] %vm283, %v3831
  %3849 = vst.msk [vmem:[%s3834 + $0x90] sm:$0xff] %vm283, %v3832
  %3850 = vst.msk [vmem:[%s3834 + $0x98] sm:$0xff] %vm283, %v3833
  %v3851 = vld [vmem:[#allocation4] sm:$0xff]
  %v3852 = vld [vmem:[#allocation4 + $0x8] sm:$0xff]
  %v3853 = vld [vmem:[#allocation4 + $0x10] sm:$0xff]
  %v3854 = vld [vmem:[#allocation4 + $0x18] sm:$0xff]
  %v3855 = vld [vmem:[#allocation4 + $0x20] sm:$0xff]
  %v3856 = vld [vmem:[#allocation4 + $0x28] sm:$0xff]
  %v3857 = vld [vmem:[#allocation4 + $0x30] sm:$0xff]
  %v3858 = vld [vmem:[#allocation4 + $0x38] sm:$0xff]
  %v3859 = vld [vmem:[#allocation4 + $0x60] sm:$0xff]
  %v3860 = vld [vmem:[#allocation4 + $0x68] sm:$0xff]
  %v3861 = vld [vmem:[#allocation4 + $0x70] sm:$0xff]
  %v3862 = vld [vmem:[#allocation4 + $0x78] sm:$0xff]
  %v3863 = vld [vmem:[#allocation4 + $0x80] sm:$0xff]
  %v3864 = vld [vmem:[#allocation4 + $0x88] sm:$0xff]
  %v3865 = vld [vmem:[#allocation4 + $0x90] sm:$0xff]
  %v3866 = vld [vmem:[#allocation4 + $0x98] sm:$0xff]
  %s3867 = scalar_lea.vmem [#allocation4], 8
  %v3868 = vld [vmem:[%s3867] sm:$0xff]
  %v3869 = vld [vmem:[%s3867 + $0x8] sm:$0xff]
  %v3870 = vld [vmem:[%s3867 + $0x10] sm:$0xff]
  %v3871 = vld [vmem:[%s3867 + $0x18] sm:$0xff]
  %v3872 = vld [vmem:[%s3867 + $0x20] sm:$0xff]
  %v3873 = vld [vmem:[%s3867 + $0x28] sm:$0xff]
  %v3874 = vld [vmem:[%s3867 + $0x30] sm:$0xff]
  %v3875 = vld [vmem:[%s3867 + $0x38] sm:$0xff]
  %v3876 = vld [vmem:[%s3867 + $0x60] sm:$0xff]
  %v3877 = vld [vmem:[%s3867 + $0x68] sm:$0xff]
  %v3878 = vld [vmem:[%s3867 + $0x70] sm:$0xff]
  %v3879 = vld [vmem:[%s3867 + $0x78] sm:$0xff]
  %v3880 = vld [vmem:[%s3867 + $0x80] sm:$0xff]
  %v3881 = vld [vmem:[%s3867 + $0x88] sm:$0xff]
  %v3882 = vld [vmem:[%s3867 + $0x90] sm:$0xff]
  %v3883 = vld [vmem:[%s3867 + $0x98] sm:$0xff]
  %v3884 = vmax.f32 %v3851, %v3868
  %v3885 = vmax.f32 %v3852, %v3869
  %v3886 = vmax.f32 %v3853, %v3870
  %v3887 = vmax.f32 %v3854, %v3871
  %v3888 = vmax.f32 %v3855, %v3872
  %v3889 = vmax.f32 %v3856, %v3873
  %v3890 = vmax.f32 %v3857, %v3874
  %v3891 = vmax.f32 %v3858, %v3875
  %v3892 = vmax.f32 %v3859, %v3876
  %v3893 = vmax.f32 %v3860, %v3877
  %v3894 = vmax.f32 %v3861, %v3878
  %v3895 = vmax.f32 %v3862, %v3879
  %v3896 = vmax.f32 %v3863, %v3880
  %v3897 = vmax.f32 %v3864, %v3881
  %v3898 = vmax.f32 %v3865, %v3882
  %v3899 = vmax.f32 %v3866, %v3883
  %v3900 = vld [vmem:[%s3834] sm:$0xff]
  %v3901 = vld [vmem:[%s3834 + $0x8] sm:$0xff]
  %v3902 = vld [vmem:[%s3834 + $0x10] sm:$0xff]
  %v3903 = vld [vmem:[%s3834 + $0x18] sm:$0xff]
  %v3904 = vld [vmem:[%s3834 + $0x20] sm:$0xff]
  %v3905 = vld [vmem:[%s3834 + $0x28] sm:$0xff]
  %v3906 = vld [vmem:[%s3834 + $0x30] sm:$0xff]
  %v3907 = vld [vmem:[%s3834 + $0x38] sm:$0xff]
  %v3908 = vld [vmem:[%s3834 + $0x60] sm:$0xff]
  %v3909 = vld [vmem:[%s3834 + $0x68] sm:$0xff]
  %v3910 = vld [vmem:[%s3834 + $0x70] sm:$0xff]
  %v3911 = vld [vmem:[%s3834 + $0x78] sm:$0xff]
  %v3912 = vld [vmem:[%s3834 + $0x80] sm:$0xff]
  %v3913 = vld [vmem:[%s3834 + $0x88] sm:$0xff]
  %v3914 = vld [vmem:[%s3834 + $0x90] sm:$0xff]
  %v3915 = vld [vmem:[%s3834 + $0x98] sm:$0xff]
  %v3916 = vmax.f32 %v3884, %v3900
  %v3917 = vmax.f32 %v3885, %v3901
  %v3918 = vmax.f32 %v3886, %v3902
  %v3919 = vmax.f32 %v3887, %v3903
  %v3920 = vmax.f32 %v3888, %v3904
  %v3921 = vmax.f32 %v3889, %v3905
  %v3922 = vmax.f32 %v3890, %v3906
  %v3923 = vmax.f32 %v3891, %v3907
  %v3924 = vmax.f32 %v3892, %v3908
  %v3925 = vmax.f32 %v3893, %v3909
  %v3926 = vmax.f32 %v3894, %v3910
  %v3927 = vmax.f32 %v3895, %v3911
  %v3928 = vmax.f32 %v3896, %v3912
  %v3929 = vmax.f32 %v3897, %v3913
  %v3930 = vmax.f32 %v3898, %v3914
  %v3931 = vmax.f32 %v3899, %v3915
  %s3932 = scalar_lea.vmem [#allocation4], 24
  %v3933 = vld [vmem:[%s3932] sm:$0xff]
  %v3934 = vld [vmem:[%s3932 + $0x8] sm:$0xff]
  %v3935 = vld [vmem:[%s3932 + $0x10] sm:$0xff]
  %v3936 = vld [vmem:[%s3932 + $0x18] sm:$0xff]
  %v3937 = vld [vmem:[%s3932 + $0x20] sm:$0xff]
  %v3938 = vld [vmem:[%s3932 + $0x28] sm:$0xff]
  %v3939 = vld [vmem:[%s3932 + $0x30] sm:$0xff]
  %v3940 = vld [vmem:[%s3932 + $0x38] sm:$0xff]
  %v3941 = vld [vmem:[%s3932 + $0x60] sm:$0xff]
  %v3942 = vld [vmem:[%s3932 + $0x68] sm:$0xff]
  %v3943 = vld [vmem:[%s3932 + $0x70] sm:$0xff]
  %v3944 = vld [vmem:[%s3932 + $0x78] sm:$0xff]
  %v3945 = vld [vmem:[%s3932 + $0x80] sm:$0xff]
  %v3946 = vld [vmem:[%s3932 + $0x88] sm:$0xff]
  %v3947 = vld [vmem:[%s3932 + $0x90] sm:$0xff]
  %v3948 = vld [vmem:[%s3932 + $0x98] sm:$0xff]
  %v3949 = vmax.f32 %v3916, %v3933
  %v3950 = vmax.f32 %v3917, %v3934
  %v3951 = vmax.f32 %v3918, %v3935
  %v3952 = vmax.f32 %v3919, %v3936
  %v3953 = vmax.f32 %v3920, %v3937
  %v3954 = vmax.f32 %v3921, %v3938
  %v3955 = vmax.f32 %v3922, %v3939
  %v3956 = vmax.f32 %v3923, %v3940
  %v3957 = vmax.f32 %v3924, %v3941
  %v3958 = vmax.f32 %v3925, %v3942
  %v3959 = vmax.f32 %v3926, %v3943
  %v3960 = vmax.f32 %v3927, %v3944
  %v3961 = vmax.f32 %v3928, %v3945
  %v3962 = vmax.f32 %v3929, %v3946
  %v3963 = vmax.f32 %v3930, %v3947
  %v3964 = vmax.f32 %v3931, %v3948
  %s3965 = scalar_lea.vmem [#allocation4], 32
  %v3966 = vld [vmem:[%s3965] sm:$0xff]
  %v3967 = vld [vmem:[%s3965 + $0x8] sm:$0xff]
  %v3968 = vld [vmem:[%s3965 + $0x10] sm:$0xff]
  %v3969 = vld [vmem:[%s3965 + $0x18] sm:$0xff]
  %v3970 = vld [vmem:[%s3965 + $0x20] sm:$0xff]
  %v3971 = vld [vmem:[%s3965 + $0x28] sm:$0xff]
  %v3972 = vld [vmem:[%s3965 + $0x30] sm:$0xff]
  %v3973 = vld [vmem:[%s3965 + $0x38] sm:$0xff]
  %v3974 = vld [vmem:[%s3965 + $0x60] sm:$0xff]
  %v3975 = vld [vmem:[%s3965 + $0x68] sm:$0xff]
  %v3976 = vld [vmem:[%s3965 + $0x70] sm:$0xff]
  %v3977 = vld [vmem:[%s3965 + $0x78] sm:$0xff]
  %v3978 = vld [vmem:[%s3965 + $0x80] sm:$0xff]
  %v3979 = vld [vmem:[%s3965 + $0x88] sm:$0xff]
  %v3980 = vld [vmem:[%s3965 + $0x90] sm:$0xff]
  %v3981 = vld [vmem:[%s3965 + $0x98] sm:$0xff]
  %v3982 = vmax.f32 %v3949, %v3966
  %v3983 = vmax.f32 %v3950, %v3967
  %v3984 = vmax.f32 %v3951, %v3968
  %v3985 = vmax.f32 %v3952, %v3969
  %v3986 = vmax.f32 %v3953, %v3970
  %v3987 = vmax.f32 %v3954, %v3971
  %v3988 = vmax.f32 %v3955, %v3972
  %v3989 = vmax.f32 %v3956, %v3973
  %v3990 = vmax.f32 %v3957, %v3974
  %v3991 = vmax.f32 %v3958, %v3975
  %v3992 = vmax.f32 %v3959, %v3976
  %v3993 = vmax.f32 %v3960, %v3977
  %v3994 = vmax.f32 %v3961, %v3978
  %v3995 = vmax.f32 %v3962, %v3979
  %v3996 = vmax.f32 %v3963, %v3980
  %v3997 = vmax.f32 %v3964, %v3981
  %3998 = vst.msk [vmem:[#allocation3 + $0x2] sm:$0xff] %vm283, %v3982
  %3999 = vst.msk [vmem:[#allocation3 + $0x12] sm:$0xff] %vm283, %v3983
  %4000 = vst.msk [vmem:[#allocation3 + $0x22] sm:$0xff] %vm283, %v3984
  %4001 = vst.msk [vmem:[#allocation3 + $0x32] sm:$0xff] %vm283, %v3985
  %4002 = vst.msk [vmem:[#allocation3 + $0x42] sm:$0xff] %vm283, %v3986
  %4003 = vst.msk [vmem:[#allocation3 + $0x52] sm:$0xff] %vm283, %v3987
  %4004 = vst.msk [vmem:[#allocation3 + $0x62] sm:$0xff] %vm283, %v3988
  %4005 = vst.msk [vmem:[#allocation3 + $0x72] sm:$0xff] %vm283, %v3989
  %4006 = vst.msk [vmem:[#allocation3 + $0x82] sm:$0xff] %vm283, %v3990
  %4007 = vst.msk [vmem:[#allocation3 + $0x92] sm:$0xff] %vm283, %v3991
  %4008 = vst.msk [vmem:[#allocation3 + $0xa2] sm:$0xff] %vm283, %v3992
  %4009 = vst.msk [vmem:[#allocation3 + $0xb2] sm:$0xff] %vm283, %v3993
  %4010 = vst.msk [vmem:[#allocation3 + $0xc2] sm:$0xff] %vm283, %v3994
  %4011 = vst.msk [vmem:[#allocation3 + $0xd2] sm:$0xff] %vm283, %v3995
  %4012 = vst.msk [vmem:[#allocation3 + $0xe2] sm:$0xff] %vm283, %v3996
  %4013 = vst.msk [vmem:[#allocation3 + $0xf2] sm:$0xff] %vm283, %v3997
  %v4014 = vld [vmem:[#allocation3] sm:$0xff]
  %v4015 = vld [vmem:[#allocation3 + $0x10] sm:$0xff]
  %v4016 = vld [vmem:[#allocation3 + $0x20] sm:$0xff]
  %v4017 = vld [vmem:[#allocation3 + $0x30] sm:$0xff]
  %v4018 = vld [vmem:[#allocation3 + $0x40] sm:$0xff]
  %v4019 = vld [vmem:[#allocation3 + $0x50] sm:$0xff]
  %v4020 = vld [vmem:[#allocation3 + $0x60] sm:$0xff]
  %v4021 = vld [vmem:[#allocation3 + $0x70] sm:$0xff]
  %v4022 = vld [vmem:[#allocation3 + $0x80] sm:$0xff]
  %v4023 = vld [vmem:[#allocation3 + $0x90] sm:$0xff]
  %v4024 = vld [vmem:[#allocation3 + $0xa0] sm:$0xff]
  %v4025 = vld [vmem:[#allocation3 + $0xb0] sm:$0xff]
  %v4026 = vld [vmem:[#allocation3 + $0xc0] sm:$0xff]
  %v4027 = vld [vmem:[#allocation3 + $0xd0] sm:$0xff]
  %v4028 = vld [vmem:[#allocation3 + $0xe0] sm:$0xff]
  %v4029 = vld [vmem:[#allocation3 + $0xf0] sm:$0xff]
  %v4030 = vld [vmem:[#allocation3 + $0x1] sm:$0xff]
  %v4031 = vld [vmem:[#allocation3 + $0x11] sm:$0xff]
  %v4032 = vld [vmem:[#allocation3 + $0x21] sm:$0xff]
  %v4033 = vld [vmem:[#allocation3 + $0x31] sm:$0xff]
  %v4034 = vld [vmem:[#allocation3 + $0x41] sm:$0xff]
  %v4035 = vld [vmem:[#allocation3 + $0x51] sm:$0xff]
  %v4036 = vld [vmem:[#allocation3 + $0x61] sm:$0xff]
  %v4037 = vld [vmem:[#allocation3 + $0x71] sm:$0xff]
  %v4038 = vld [vmem:[#allocation3 + $0x81] sm:$0xff]
  %v4039 = vld [vmem:[#allocation3 + $0x91] sm:$0xff]
  %v4040 = vld [vmem:[#allocation3 + $0xa1] sm:$0xff]
  %v4041 = vld [vmem:[#allocation3 + $0xb1] sm:$0xff]
  %v4042 = vld [vmem:[#allocation3 + $0xc1] sm:$0xff]
  %v4043 = vld [vmem:[#allocation3 + $0xd1] sm:$0xff]
  %v4044 = vld [vmem:[#allocation3 + $0xe1] sm:$0xff]
  %v4045 = vld [vmem:[#allocation3 + $0xf1] sm:$0xff]
  %v4046 = vmax.f32 %v4014, %v4030
  %v4047 = vmax.f32 %v4015, %v4031
  %v4048 = vmax.f32 %v4016, %v4032
  %v4049 = vmax.f32 %v4017, %v4033
  %v4050 = vmax.f32 %v4018, %v4034
  %v4051 = vmax.f32 %v4019, %v4035
  %v4052 = vmax.f32 %v4020, %v4036
  %v4053 = vmax.f32 %v4021, %v4037
  %v4054 = vmax.f32 %v4022, %v4038
  %v4055 = vmax.f32 %v4023, %v4039
  %v4056 = vmax.f32 %v4024, %v4040
  %v4057 = vmax.f32 %v4025, %v4041
  %v4058 = vmax.f32 %v4026, %v4042
  %v4059 = vmax.f32 %v4027, %v4043
  %v4060 = vmax.f32 %v4028, %v4044
  %v4061 = vmax.f32 %v4029, %v4045
  %v4062 = vld [vmem:[#allocation3 + $0x2] sm:$0xff]
  %v4063 = vld [vmem:[#allocation3 + $0x12] sm:$0xff]
  %v4064 = vld [vmem:[#allocation3 + $0x22] sm:$0xff]
  %v4065 = vld [vmem:[#allocation3 + $0x32] sm:$0xff]
  %v4066 = vld [vmem:[#allocation3 + $0x42] sm:$0xff]
  %v4067 = vld [vmem:[#allocation3 + $0x52] sm:$0xff]
  %v4068 = vld [vmem:[#allocation3 + $0x62] sm:$0xff]
  %v4069 = vld [vmem:[#allocation3 + $0x72] sm:$0xff]
  %v4070 = vld [vmem:[#allocation3 + $0x82] sm:$0xff]
  %v4071 = vld [vmem:[#allocation3 + $0x92] sm:$0xff]
  %v4072 = vld [vmem:[#allocation3 + $0xa2] sm:$0xff]
  %v4073 = vld [vmem:[#allocation3 + $0xb2] sm:$0xff]
  %v4074 = vld [vmem:[#allocation3 + $0xc2] sm:$0xff]
  %v4075 = vld [vmem:[#allocation3 + $0xd2] sm:$0xff]
  %v4076 = vld [vmem:[#allocation3 + $0xe2] sm:$0xff]
  %v4077 = vld [vmem:[#allocation3 + $0xf2] sm:$0xff]
  %v4078 = vmax.f32 %v4046, %v4062
  %v4079 = vmax.f32 %v4047, %v4063
  %v4080 = vmax.f32 %v4048, %v4064
  %v4081 = vmax.f32 %v4049, %v4065
  %v4082 = vmax.f32 %v4050, %v4066
  %v4083 = vmax.f32 %v4051, %v4067
  %v4084 = vmax.f32 %v4052, %v4068
  %v4085 = vmax.f32 %v4053, %v4069
  %v4086 = vmax.f32 %v4054, %v4070
  %v4087 = vmax.f32 %v4055, %v4071
  %v4088 = vmax.f32 %v4056, %v4072
  %v4089 = vmax.f32 %v4057, %v4073
  %v4090 = vmax.f32 %v4058, %v4074
  %v4091 = vmax.f32 %v4059, %v4075
  %v4092 = vmax.f32 %v4060, %v4076
  %v4093 = vmax.f32 %v4061, %v4077
  %v4094 = vld [vmem:[#allocation3 + $0x3] sm:$0xff]
  %v4095 = vld [vmem:[#allocation3 + $0x13] sm:$0xff]
  %v4096 = vld [vmem:[#allocation3 + $0x23] sm:$0xff]
  %v4097 = vld [vmem:[#allocation3 + $0x33] sm:$0xff]
  %v4098 = vld [vmem:[#allocation3 + $0x43] sm:$0xff]
  %v4099 = vld [vmem:[#allocation3 + $0x53] sm:$0xff]
  %v4100 = vld [vmem:[#allocation3 + $0x63] sm:$0xff]
  %v4101 = vld [vmem:[#allocation3 + $0x73] sm:$0xff]
  %v4102 = vld [vmem:[#allocation3 + $0x83] sm:$0xff]
  %v4103 = vld [vmem:[#allocation3 + $0x93] sm:$0xff]
  %v4104 = vld [vmem:[#allocation3 + $0xa3] sm:$0xff]
  %v4105 = vld [vmem:[#allocation3 + $0xb3] sm:$0xff]
  %v4106 = vld [vmem:[#allocation3 + $0xc3] sm:$0xff]
  %v4107 = vld [vmem:[#allocation3 + $0xd3] sm:$0xff]
  %v4108 = vld [vmem:[#allocation3 + $0xe3] sm:$0xff]
  %v4109 = vld [vmem:[#allocation3 + $0xf3] sm:$0xff]
  %v4110 = vmax.f32 %v4078, %v4094
  %v4111 = vmax.f32 %v4079, %v4095
  %v4112 = vmax.f32 %v4080, %v4096
  %v4113 = vmax.f32 %v4081, %v4097
  %v4114 = vmax.f32 %v4082, %v4098
  %v4115 = vmax.f32 %v4083, %v4099
  %v4116 = vmax.f32 %v4084, %v4100
  %v4117 = vmax.f32 %v4085, %v4101
  %v4118 = vmax.f32 %v4086, %v4102
  %v4119 = vmax.f32 %v4087, %v4103
  %v4120 = vmax.f32 %v4088, %v4104
  %v4121 = vmax.f32 %v4089, %v4105
  %v4122 = vmax.f32 %v4090, %v4106
  %v4123 = vmax.f32 %v4091, %v4107
  %v4124 = vmax.f32 %v4092, %v4108
  %v4125 = vmax.f32 %v4093, %v4109
  %v4126 = vld [vmem:[#allocation3 + $0x4] sm:$0xff]
  %v4127 = vld [vmem:[#allocation3 + $0x14] sm:$0xff]
  %v4128 = vld [vmem:[#allocation3 + $0x24] sm:$0xff]
  %v4129 = vld [vmem:[#allocation3 + $0x34] sm:$0xff]
  %v4130 = vld [vmem:[#allocation3 + $0x44] sm:$0xff]
  %v4131 = vld [vmem:[#allocation3 + $0x54] sm:$0xff]
  %v4132 = vld [vmem:[#allocation3 + $0x64] sm:$0xff]
  %v4133 = vld [vmem:[#allocation3 + $0x74] sm:$0xff]
  %v4134 = vld [vmem:[#allocation3 + $0x84] sm:$0xff]
  %v4135 = vld [vmem:[#allocation3 + $0x94] sm:$0xff]
  %v4136 = vld [vmem:[#allocation3 + $0xa4] sm:$0xff]
  %v4137 = vld [vmem:[#allocation3 + $0xb4] sm:$0xff]
  %v4138 = vld [vmem:[#allocation3 + $0xc4] sm:$0xff]
  %v4139 = vld [vmem:[#allocation3 + $0xd4] sm:$0xff]
  %v4140 = vld [vmem:[#allocation3 + $0xe4] sm:$0xff]
  %v4141 = vld [vmem:[#allocation3 + $0xf4] sm:$0xff]
  %v4142 = vmax.f32 %v4110, %v4126
  %v4143 = vmax.f32 %v4111, %v4127
  %v4144 = vmax.f32 %v4112, %v4128
  %v4145 = vmax.f32 %v4113, %v4129
  %v4146 = vmax.f32 %v4114, %v4130
  %v4147 = vmax.f32 %v4115, %v4131
  %v4148 = vmax.f32 %v4116, %v4132
  %v4149 = vmax.f32 %v4117, %v4133
  %v4150 = vmax.f32 %v4118, %v4134
  %v4151 = vmax.f32 %v4119, %v4135
  %v4152 = vmax.f32 %v4120, %v4136
  %v4153 = vmax.f32 %v4121, %v4137
  %v4154 = vmax.f32 %v4122, %v4138
  %v4155 = vmax.f32 %v4123, %v4139
  %v4156 = vmax.f32 %v4124, %v4140
  %v4157 = vmax.f32 %v4125, %v4141
  %4158 = vst.msk [vmem:[%s3834] sm:$0xff] %vm283, %v4142
  %4159 = vst.msk [vmem:[%s3834 + $0x8] sm:$0xff] %vm283, %v4143
  %4160 = vst.msk [vmem:[%s3834 + $0x10] sm:$0xff] %vm283, %v4144
  %4161 = vst.msk [vmem:[%s3834 + $0x18] sm:$0xff] %vm283, %v4145
  %4162 = vst.msk [vmem:[%s3834 + $0x20] sm:$0xff] %vm283, %v4146
  %4163 = vst.msk [vmem:[%s3834 + $0x28] sm:$0xff] %vm283, %v4147
  %4164 = vst.msk [vmem:[%s3834 + $0x30] sm:$0xff] %vm283, %v4148
  %4165 = vst.msk [vmem:[%s3834 + $0x38] sm:$0xff] %vm283, %v4149
  %4166 = vst.msk [vmem:[%s3834 + $0x60] sm:$0xff] %vm283, %v4150
  %4167 = vst.msk [vmem:[%s3834 + $0x68] sm:$0xff] %vm283, %v4151
  %4168 = vst.msk [vmem:[%s3834 + $0x70] sm:$0xff] %vm283, %v4152
  %4169 = vst.msk [vmem:[%s3834 + $0x78] sm:$0xff] %vm283, %v4153
  %4170 = vst.msk [vmem:[%s3834 + $0x80] sm:$0xff] %vm283, %v4154
  %4171 = vst.msk [vmem:[%s3834 + $0x88] sm:$0xff] %vm283, %v4155
  %4172 = vst.msk [vmem:[%s3834 + $0x90] sm:$0xff] %vm283, %v4156
  %4173 = vst.msk [vmem:[%s3834 + $0x98] sm:$0xff] %vm283, %v4157
  %v4174 = vld [vmem:[#allocation4] sm:$0xff]
  %v4175 = vld [vmem:[#allocation4 + $0x8] sm:$0xff]
  %v4176 = vld [vmem:[#allocation4 + $0x10] sm:$0xff]
  %v4177 = vld [vmem:[#allocation4 + $0x18] sm:$0xff]
  %v4178 = vld [vmem:[#allocation4 + $0x20] sm:$0xff]
  %v4179 = vld [vmem:[#allocation4 + $0x28] sm:$0xff]
  %v4180 = vld [vmem:[#allocation4 + $0x30] sm:$0xff]
  %v4181 = vld [vmem:[#allocation4 + $0x38] sm:$0xff]
  %v4182 = vld [vmem:[#allocation4 + $0x60] sm:$0xff]
  %v4183 = vld [vmem:[#allocation4 + $0x68] sm:$0xff]
  %v4184 = vld [vmem:[#allocation4 + $0x70] sm:$0xff]
  %v4185 = vld [vmem:[#allocation4 + $0x78] sm:$0xff]
  %v4186 = vld [vmem:[#allocation4 + $0x80] sm:$0xff]
  %v4187 = vld [vmem:[#allocation4 + $0x88] sm:$0xff]
  %v4188 = vld [vmem:[#allocation4 + $0x90] sm:$0xff]
  %v4189 = vld [vmem:[#allocation4 + $0x98] sm:$0xff]
  %v4190 = vld [vmem:[%s3867] sm:$0xff]
  %v4191 = vld [vmem:[%s3867 + $0x8] sm:$0xff]
  %v4192 = vld [vmem:[%s3867 + $0x10] sm:$0xff]
  %v4193 = vld [vmem:[%s3867 + $0x18] sm:$0xff]
  %v4194 = vld [vmem:[%s3867 + $0x20] sm:$0xff]
  %v4195 = vld [vmem:[%s3867 + $0x28] sm:$0xff]
  %v4196 = vld [vmem:[%s3867 + $0x30] sm:$0xff]
  %v4197 = vld [vmem:[%s3867 + $0x38] sm:$0xff]
  %v4198 = vld [vmem:[%s3867 + $0x60] sm:$0xff]
  %v4199 = vld [vmem:[%s3867 + $0x68] sm:$0xff]
  %v4200 = vld [vmem:[%s3867 + $0x70] sm:$0xff]
  %v4201 = vld [vmem:[%s3867 + $0x78] sm:$0xff]
  %v4202 = vld [vmem:[%s3867 + $0x80] sm:$0xff]
  %v4203 = vld [vmem:[%s3867 + $0x88] sm:$0xff]
  %v4204 = vld [vmem:[%s3867 + $0x90] sm:$0xff]
  %v4205 = vld [vmem:[%s3867 + $0x98] sm:$0xff]
  %v4206 = vmax.f32 %v4174, %v4190
  %v4207 = vmax.f32 %v4175, %v4191
  %v4208 = vmax.f32 %v4176, %v4192
  %v4209 = vmax.f32 %v4177, %v4193
  %v4210 = vmax.f32 %v4178, %v4194
  %v4211 = vmax.f32 %v4179, %v4195
  %v4212 = vmax.f32 %v4180, %v4196
  %v4213 = vmax.f32 %v4181, %v4197
  %v4214 = vmax.f32 %v4182, %v4198
  %v4215 = vmax.f32 %v4183, %v4199
  %v4216 = vmax.f32 %v4184, %v4200
  %v4217 = vmax.f32 %v4185, %v4201
  %v4218 = vmax.f32 %v4186, %v4202
  %v4219 = vmax.f32 %v4187, %v4203
  %v4220 = vmax.f32 %v4188, %v4204
  %v4221 = vmax.f32 %v4189, %v4205
  %v4222 = vld [vmem:[%s3834] sm:$0xff]
  %v4223 = vld [vmem:[%s3834 + $0x8] sm:$0xff]
  %v4224 = vld [vmem:[%s3834 + $0x10] sm:$0xff]
  %v4225 = vld [vmem:[%s3834 + $0x18] sm:$0xff]
  %v4226 = vld [vmem:[%s3834 + $0x20] sm:$0xff]
  %v4227 = vld [vmem:[%s3834 + $0x28] sm:$0xff]
  %v4228 = vld [vmem:[%s3834 + $0x30] sm:$0xff]
  %v4229 = vld [vmem:[%s3834 + $0x38] sm:$0xff]
  %v4230 = vld [vmem:[%s3834 + $0x60] sm:$0xff]
  %v4231 = vld [vmem:[%s3834 + $0x68] sm:$0xff]
  %v4232 = vld [vmem:[%s3834 + $0x70] sm:$0xff]
  %v4233 = vld [vmem:[%s3834 + $0x78] sm:$0xff]
  %v4234 = vld [vmem:[%s3834 + $0x80] sm:$0xff]
  %v4235 = vld [vmem:[%s3834 + $0x88] sm:$0xff]
  %v4236 = vld [vmem:[%s3834 + $0x90] sm:$0xff]
  %v4237 = vld [vmem:[%s3834 + $0x98] sm:$0xff]
  %v4238 = vmax.f32 %v4206, %v4222
  %v4239 = vmax.f32 %v4207, %v4223
  %v4240 = vmax.f32 %v4208, %v4224
  %v4241 = vmax.f32 %v4209, %v4225
  %v4242 = vmax.f32 %v4210, %v4226
  %v4243 = vmax.f32 %v4211, %v4227
  %v4244 = vmax.f32 %v4212, %v4228
  %v4245 = vmax.f32 %v4213, %v4229
  %v4246 = vmax.f32 %v4214, %v4230
  %v4247 = vmax.f32 %v4215, %v4231
  %v4248 = vmax.f32 %v4216, %v4232
  %v4249 = vmax.f32 %v4217, %v4233
  %v4250 = vmax.f32 %v4218, %v4234
  %v4251 = vmax.f32 %v4219, %v4235
  %v4252 = vmax.f32 %v4220, %v4236
  %v4253 = vmax.f32 %v4221, %v4237
  %v4254 = vld [vmem:[%s3932] sm:$0xff]
  %v4255 = vld [vmem:[%s3932 + $0x8] sm:$0xff]
  %v4256 = vld [vmem:[%s3932 + $0x10] sm:$0xff]
  %v4257 = vld [vmem:[%s3932 + $0x18] sm:$0xff]
  %v4258 = vld [vmem:[%s3932 + $0x20] sm:$0xff]
  %v4259 = vld [vmem:[%s3932 + $0x28] sm:$0xff]
  %v4260 = vld [vmem:[%s3932 + $0x30] sm:$0xff]
  %v4261 = vld [vmem:[%s3932 + $0x38] sm:$0xff]
  %v4262 = vld [vmem:[%s3932 + $0x60] sm:$0xff]
  %v4263 = vld [vmem:[%s3932 + $0x68] sm:$0xff]
  %v4264 = vld [vmem:[%s3932 + $0x70] sm:$0xff]
  %v4265 = vld [vmem:[%s3932 + $0x78] sm:$0xff]
  %v4266 = vld [vmem:[%s3932 + $0x80] sm:$0xff]
  %v4267 = vld [vmem:[%s3932 + $0x88] sm:$0xff]
  %v4268 = vld [vmem:[%s3932 + $0x90] sm:$0xff]
  %v4269 = vld [vmem:[%s3932 + $0x98] sm:$0xff]
  %v4270 = vmax.f32 %v4238, %v4254
  %v4271 = vmax.f32 %v4239, %v4255
  %v4272 = vmax.f32 %v4240, %v4256
  %v4273 = vmax.f32 %v4241, %v4257
  %v4274 = vmax.f32 %v4242, %v4258
  %v4275 = vmax.f32 %v4243, %v4259
  %v4276 = vmax.f32 %v4244, %v4260
  %v4277 = vmax.f32 %v4245, %v4261
  %v4278 = vmax.f32 %v4246, %v4262
  %v4279 = vmax.f32 %v4247, %v4263
  %v4280 = vmax.f32 %v4248, %v4264
  %v4281 = vmax.f32 %v4249, %v4265
  %v4282 = vmax.f32 %v4250, %v4266
  %v4283 = vmax.f32 %v4251, %v4267
  %v4284 = vmax.f32 %v4252, %v4268
  %v4285 = vmax.f32 %v4253, %v4269
  %v4286 = vld [vmem:[%s3965] sm:$0xff]
  %v4287 = vld [vmem:[%s3965 + $0x8] sm:$0xff]
  %v4288 = vld [vmem:[%s3965 + $0x10] sm:$0xff]
  %v4289 = vld [vmem:[%s3965 + $0x18] sm:$0xff]
  %v4290 = vld [vmem:[%s3965 + $0x20] sm:$0xff]
  %v4291 = vld [vmem:[%s3965 + $0x28] sm:$0xff]
  %v4292 = vld [vmem:[%s3965 + $0x30] sm:$0xff]
  %v4293 = vld [vmem:[%s3965 + $0x38] sm:$0xff]
  %v4294 = vld [vmem:[%s3965 + $0x60] sm:$0xff]
  %v4295 = vld [vmem:[%s3965 + $0x68] sm:$0xff]
  %v4296 = vld [vmem:[%s3965 + $0x70] sm:$0xff]
  %v4297 = vld [vmem:[%s3965 + $0x78] sm:$0xff]
  %v4298 = vld [vmem:[%s3965 + $0x80] sm:$0xff]
  %v4299 = vld [vmem:[%s3965 + $0x88] sm:$0xff]
  %v4300 = vld [vmem:[%s3965 + $0x90] sm:$0xff]
  %v4301 = vld [vmem:[%s3965 + $0x98] sm:$0xff]
  %v4302 = vmax.f32 %v4270, %v4286
  %v4303 = vmax.f32 %v4271, %v4287
  %v4304 = vmax.f32 %v4272, %v4288
  %v4305 = vmax.f32 %v4273, %v4289
  %v4306 = vmax.f32 %v4274, %v4290
  %v4307 = vmax.f32 %v4275, %v4291
  %v4308 = vmax.f32 %v4276, %v4292
  %v4309 = vmax.f32 %v4277, %v4293
  %v4310 = vmax.f32 %v4278, %v4294
  %v4311 = vmax.f32 %v4279, %v4295
  %v4312 = vmax.f32 %v4280, %v4296
  %v4313 = vmax.f32 %v4281, %v4297
  %v4314 = vmax.f32 %v4282, %v4298
  %v4315 = vmax.f32 %v4283, %v4299
  %v4316 = vmax.f32 %v4284, %v4300
  %v4317 = vmax.f32 %v4285, %v4301
  %4318 = vst.msk [vmem:[#allocation3 + $0x2] sm:$0xff] %vm283, %v4302
  %4319 = vst.msk [vmem:[#allocation3 + $0x12] sm:$0xff] %vm283, %v4303
  %4320 = vst.msk [vmem:[#allocation3 + $0x22] sm:$0xff] %vm283, %v4304
  %4321 = vst.msk [vmem:[#allocation3 + $0x32] sm:$0xff] %vm283, %v4305
  %4322 = vst.msk [vmem:[#allocation3 + $0x42] sm:$0xff] %vm283, %v4306
  %4323 = vst.msk [vmem:[#allocation3 + $0x52] sm:$0xff] %vm283, %v4307
  %4324 = vst.msk [vmem:[#allocation3 + $0x62] sm:$0xff] %vm283, %v4308
  %4325 = vst.msk [vmem:[#allocation3 + $0x72] sm:$0xff] %vm283, %v4309
  %4326 = vst.msk [vmem:[#allocation3 + $0x82] sm:$0xff] %vm283, %v4310
  %4327 = vst.msk [vmem:[#allocation3 + $0x92] sm:$0xff] %vm283, %v4311
  %4328 = vst.msk [vmem:[#allocation3 + $0xa2] sm:$0xff] %vm283, %v4312
  %4329 = vst.msk [vmem:[#allocation3 + $0xb2] sm:$0xff] %vm283, %v4313
  %4330 = vst.msk [vmem:[#allocation3 + $0xc2] sm:$0xff] %vm283, %v4314
  %4331 = vst.msk [vmem:[#allocation3 + $0xd2] sm:$0xff] %vm283, %v4315
  %4332 = vst.msk [vmem:[#allocation3 + $0xe2] sm:$0xff] %vm283, %v4316
  %4333 = vst.msk [vmem:[#allocation3 + $0xf2] sm:$0xff] %vm283, %v4317
  %v4334 = vld [vmem:[#allocation3] sm:$0xff]
  %v4335 = vld [vmem:[#allocation3 + $0x10] sm:$0xff]
  %v4336 = vld [vmem:[#allocation3 + $0x20] sm:$0xff]
  %v4337 = vld [vmem:[#allocation3 + $0x30] sm:$0xff]
  %v4338 = vld [vmem:[#allocation3 + $0x40] sm:$0xff]
  %v4339 = vld [vmem:[#allocation3 + $0x50] sm:$0xff]
  %v4340 = vld [vmem:[#allocation3 + $0x60] sm:$0xff]
  %v4341 = vld [vmem:[#allocation3 + $0x70] sm:$0xff]
  %v4342 = vld [vmem:[#allocation3 + $0x80] sm:$0xff]
  %v4343 = vld [vmem:[#allocation3 + $0x90] sm:$0xff]
  %v4344 = vld [vmem:[#allocation3 + $0xa0] sm:$0xff]
  %v4345 = vld [vmem:[#allocation3 + $0xb0] sm:$0xff]
  %v4346 = vld [vmem:[#allocation3 + $0xc0] sm:$0xff]
  %v4347 = vld [vmem:[#allocation3 + $0xd0] sm:$0xff]
  %v4348 = vld [vmem:[#allocation3 + $0xe0] sm:$0xff]
  %v4349 = vld [vmem:[#allocation3 + $0xf0] sm:$0xff]
  %v4350 = vld [vmem:[#allocation3 + $0x1] sm:$0xff]
  %v4351 = vld [vmem:[#allocation3 + $0x11] sm:$0xff]
  %v4352 = vld [vmem:[#allocation3 + $0x21] sm:$0xff]
  %v4353 = vld [vmem:[#allocation3 + $0x31] sm:$0xff]
  %v4354 = vld [vmem:[#allocation3 + $0x41] sm:$0xff]
  %v4355 = vld [vmem:[#allocation3 + $0x51] sm:$0xff]
  %v4356 = vld [vmem:[#allocation3 + $0x61] sm:$0xff]
  %v4357 = vld [vmem:[#allocation3 + $0x71] sm:$0xff]
  %v4358 = vld [vmem:[#allocation3 + $0x81] sm:$0xff]
  %v4359 = vld [vmem:[#allocation3 + $0x91] sm:$0xff]
  %v4360 = vld [vmem:[#allocation3 + $0xa1] sm:$0xff]
  %v4361 = vld [vmem:[#allocation3 + $0xb1] sm:$0xff]
  %v4362 = vld [vmem:[#allocation3 + $0xc1] sm:$0xff]
  %v4363 = vld [vmem:[#allocation3 + $0xd1] sm:$0xff]
  %v4364 = vld [vmem:[#allocation3 + $0xe1] sm:$0xff]
  %v4365 = vld [vmem:[#allocation3 + $0xf1] sm:$0xff]
  %v4366 = vmax.f32 %v4334, %v4350
  %v4367 = vmax.f32 %v4335, %v4351
  %v4368 = vmax.f32 %v4336, %v4352
  %v4369 = vmax.f32 %v4337, %v4353
  %v4370 = vmax.f32 %v4338, %v4354
  %v4371 = vmax.f32 %v4339, %v4355
  %v4372 = vmax.f32 %v4340, %v4356
  %v4373 = vmax.f32 %v4341, %v4357
  %v4374 = vmax.f32 %v4342, %v4358
  %v4375 = vmax.f32 %v4343, %v4359
  %v4376 = vmax.f32 %v4344, %v4360
  %v4377 = vmax.f32 %v4345, %v4361
  %v4378 = vmax.f32 %v4346, %v4362
  %v4379 = vmax.f32 %v4347, %v4363
  %v4380 = vmax.f32 %v4348, %v4364
  %v4381 = vmax.f32 %v4349, %v4365
  %v4382 = vld [vmem:[#allocation3 + $0x2] sm:$0xff]
  %v4383 = vld [vmem:[#allocation3 + $0x12] sm:$0xff]
  %v4384 = vld [vmem:[#allocation3 + $0x22] sm:$0xff]
  %v4385 = vld [vmem:[#allocation3 + $0x32] sm:$0xff]
  %v4386 = vld [vmem:[#allocation3 + $0x42] sm:$0xff]
  %v4387 = vld [vmem:[#allocation3 + $0x52] sm:$0xff]
  %v4388 = vld [vmem:[#allocation3 + $0x62] sm:$0xff]
  %v4389 = vld [vmem:[#allocation3 + $0x72] sm:$0xff]
  %v4390 = vld [vmem:[#allocation3 + $0x82] sm:$0xff]
  %v4391 = vld [vmem:[#allocation3 + $0x92] sm:$0xff]
  %v4392 = vld [vmem:[#allocation3 + $0xa2] sm:$0xff]
  %v4393 = vld [vmem:[#allocation3 + $0xb2] sm:$0xff]
  %v4394 = vld [vmem:[#allocation3 + $0xc2] sm:$0xff]
  %v4395 = vld [vmem:[#allocation3 + $0xd2] sm:$0xff]
  %v4396 = vld [vmem:[#allocation3 + $0xe2] sm:$0xff]
  %v4397 = vld [vmem:[#allocation3 + $0xf2] sm:$0xff]
  %v4398 = vmax.f32 %v4366, %v4382
  %v4399 = vmax.f32 %v4367, %v4383
  %v4400 = vmax.f32 %v4368, %v4384
  %v4401 = vmax.f32 %v4369, %v4385
  %v4402 = vmax.f32 %v4370, %v4386
  %v4403 = vmax.f32 %v4371, %v4387
  %v4404 = vmax.f32 %v4372, %v4388
  %v4405 = vmax.f32 %v4373, %v4389
  %v4406 = vmax.f32 %v4374, %v4390
  %v4407 = vmax.f32 %v4375, %v4391
  %v4408 = vmax.f32 %v4376, %v4392
  %v4409 = vmax.f32 %v4377, %v4393
  %v4410 = vmax.f32 %v4378, %v4394
  %v4411 = vmax.f32 %v4379, %v4395
  %v4412 = vmax.f32 %v4380, %v4396
  %v4413 = vmax.f32 %v4381, %v4397
  %v4414 = vld [vmem:[#allocation3 + $0x3] sm:$0xff]
  %v4415 = vld [vmem:[#allocation3 + $0x13] sm:$0xff]
  %v4416 = vld [vmem:[#allocation3 + $0x23] sm:$0xff]
  %v4417 = vld [vmem:[#allocation3 + $0x33] sm:$0xff]
  %v4418 = vld [vmem:[#allocation3 + $0x43] sm:$0xff]
  %v4419 = vld [vmem:[#allocation3 + $0x53] sm:$0xff]
  %v4420 = vld [vmem:[#allocation3 + $0x63] sm:$0xff]
  %v4421 = vld [vmem:[#allocation3 + $0x73] sm:$0xff]
  %v4422 = vld [vmem:[#allocation3 + $0x83] sm:$0xff]
  %v4423 = vld [vmem:[#allocation3 + $0x93] sm:$0xff]
  %v4424 = vld [vmem:[#allocation3 + $0xa3] sm:$0xff]
  %v4425 = vld [vmem:[#allocation3 + $0xb3] sm:$0xff]
  %v4426 = vld [vmem:[#allocation3 + $0xc3] sm:$0xff]
  %v4427 = vld [vmem:[#allocation3 + $0xd3] sm:$0xff]
  %v4428 = vld [vmem:[#allocation3 + $0xe3] sm:$0xff]
  %v4429 = vld [vmem:[#allocation3 + $0xf3] sm:$0xff]
  %v4430 = vmax.f32 %v4398, %v4414
  %v4431 = vmax.f32 %v4399, %v4415
  %v4432 = vmax.f32 %v4400, %v4416
  %v4433 = vmax.f32 %v4401, %v4417
  %v4434 = vmax.f32 %v4402, %v4418
  %v4435 = vmax.f32 %v4403, %v4419
  %v4436 = vmax.f32 %v4404, %v4420
  %v4437 = vmax.f32 %v4405, %v4421
  %v4438 = vmax.f32 %v4406, %v4422
  %v4439 = vmax.f32 %v4407, %v4423
  %v4440 = vmax.f32 %v4408, %v4424
  %v4441 = vmax.f32 %v4409, %v4425
  %v4442 = vmax.f32 %v4410, %v4426
  %v4443 = vmax.f32 %v4411, %v4427
  %v4444 = vmax.f32 %v4412, %v4428
  %v4445 = vmax.f32 %v4413, %v4429
  %v4446 = vld [vmem:[#allocation3 + $0x4] sm:$0xff]
  %v4447 = vld [vmem:[#allocation3 + $0x14] sm:$0xff]
  %v4448 = vld [vmem:[#allocation3 + $0x24] sm:$0xff]
  %v4449 = vld [vmem:[#allocation3 + $0x34] sm:$0xff]
  %v4450 = vld [vmem:[#allocation3 + $0x44] sm:$0xff]
  %v4451 = vld [vmem:[#allocation3 + $0x54] sm:$0xff]
  %v4452 = vld [vmem:[#allocation3 + $0x64] sm:$0xff]
  %v4453 = vld [vmem:[#allocation3 + $0x74] sm:$0xff]
  %v4454 = vld [vmem:[#allocation3 + $0x84] sm:$0xff]
  %v4455 = vld [vmem:[#allocation3 + $0x94] sm:$0xff]
  %v4456 = vld [vmem:[#allocation3 + $0xa4] sm:$0xff]
  %v4457 = vld [vmem:[#allocation3 + $0xb4] sm:$0xff]
  %v4458 = vld [vmem:[#allocation3 + $0xc4] sm:$0xff]
  %v4459 = vld [vmem:[#allocation3 + $0xd4] sm:$0xff]
  %v4460 = vld [vmem:[#allocation3 + $0xe4] sm:$0xff]
  %v4461 = vld [vmem:[#allocation3 + $0xf4] sm:$0xff]
  %v4462 = vmax.f32 %v4430, %v4446
  %v4463 = vmax.f32 %v4431, %v4447
  %v4464 = vmax.f32 %v4432, %v4448
  %v4465 = vmax.f32 %v4433, %v4449
  %v4466 = vmax.f32 %v4434, %v4450
  %v4467 = vmax.f32 %v4435, %v4451
  %v4468 = vmax.f32 %v4436, %v4452
  %v4469 = vmax.f32 %v4437, %v4453
  %v4470 = vmax.f32 %v4438, %v4454
  %v4471 = vmax.f32 %v4439, %v4455
  %v4472 = vmax.f32 %v4440, %v4456
  %v4473 = vmax.f32 %v4441, %v4457
  %v4474 = vmax.f32 %v4442, %v4458
  %v4475 = vmax.f32 %v4443, %v4459
  %v4476 = vmax.f32 %v4444, %v4460
  %v4477 = vmax.f32 %v4445, %v4461
  %4478 = vst.msk [vmem:[%s3834] sm:$0xff] %vm283, %v4462
  %4479 = vst.msk [vmem:[%s3834 + $0x8] sm:$0xff] %vm283, %v4463
  %4480 = vst.msk [vmem:[%s3834 + $0x10] sm:$0xff] %vm283, %v4464
  %4481 = vst.msk [vmem:[%s3834 + $0x18] sm:$0xff] %vm283, %v4465
  %4482 = vst.msk [vmem:[%s3834 + $0x20] sm:$0xff] %vm283, %v4466
  %4483 = vst.msk [vmem:[%s3834 + $0x28] sm:$0xff] %vm283, %v4467
  %4484 = vst.msk [vmem:[%s3834 + $0x30] sm:$0xff] %vm283, %v4468
  %4485 = vst.msk [vmem:[%s3834 + $0x38] sm:$0xff] %vm283, %v4469
  %4486 = vst.msk [vmem:[%s3834 + $0x60] sm:$0xff] %vm283, %v4470
  %4487 = vst.msk [vmem:[%s3834 + $0x68] sm:$0xff] %vm283, %v4471
  %4488 = vst.msk [vmem:[%s3834 + $0x70] sm:$0xff] %vm283, %v4472
  %4489 = vst.msk [vmem:[%s3834 + $0x78] sm:$0xff] %vm283, %v4473
  %4490 = vst.msk [vmem:[%s3834 + $0x80] sm:$0xff] %vm283, %v4474
  %4491 = vst.msk [vmem:[%s3834 + $0x88] sm:$0xff] %vm283, %v4475
  %4492 = vst.msk [vmem:[%s3834 + $0x90] sm:$0xff] %vm283, %v4476
  %4493 = vst.msk [vmem:[%s3834 + $0x98] sm:$0xff] %vm283, %v4477
  %v4494 = vld [vmem:[#allocation4] sm:$0xff]
  %v4495 = vld [vmem:[#allocation4 + $0x8] sm:$0xff]
  %v4496 = vld [vmem:[#allocation4 + $0x10] sm:$0xff]
  %v4497 = vld [vmem:[#allocation4 + $0x18] sm:$0xff]
  %v4498 = vld [vmem:[#allocation4 + $0x20] sm:$0xff]
  %v4499 = vld [vmem:[#allocation4 + $0x28] sm:$0xff]
  %v4500 = vld [vmem:[#allocation4 + $0x30] sm:$0xff]
  %v4501 = vld [vmem:[#allocation4 + $0x38] sm:$0xff]
  %v4502 = vld [vmem:[#allocation4 + $0x60] sm:$0xff]
  %v4503 = vld [vmem:[#allocation4 + $0x68] sm:$0xff]
  %v4504 = vld [vmem:[#allocation4 + $0x70] sm:$0xff]
  %v4505 = vld [vmem:[#allocation4 + $0x78] sm:$0xff]
  %v4506 = vld [vmem:[#allocation4 + $0x80] sm:$0xff]
  %v4507 = vld [vmem:[#allocation4 + $0x88] sm:$0xff]
  %v4508 = vld [vmem:[#allocation4 + $0x90] sm:$0xff]
  %v4509 = vld [vmem:[#allocation4 + $0x98] sm:$0xff]
  %v4510 = vld [vmem:[%s3867] sm:$0xff]
  %v4511 = vld [vmem:[%s3867 + $0x8] sm:$0xff]
  %v4512 = vld [vmem:[%s3867 + $0x10] sm:$0xff]
  %v4513 = vld [vmem:[%s3867 + $0x18] sm:$0xff]
  %v4514 = vld [vmem:[%s3867 + $0x20] sm:$0xff]
  %v4515 = vld [vmem:[%s3867 + $0x28] sm:$0xff]
  %v4516 = vld [vmem:[%s3867 + $0x30] sm:$0xff]
  %v4517 = vld [vmem:[%s3867 + $0x38] sm:$0xff]
  %v4518 = vld [vmem:[%s3867 + $0x60] sm:$0xff]
  %v4519 = vld [vmem:[%s3867 + $0x68] sm:$0xff]
  %v4520 = vld [vmem:[%s3867 + $0x70] sm:$0xff]
  %v4521 = vld [vmem:[%s3867 + $0x78] sm:$0xff]
  %v4522 = vld [vmem:[%s3867 + $0x80] sm:$0xff]
  %v4523 = vld [vmem:[%s3867 + $0x88] sm:$0xff]
  %v4524 = vld [vmem:[%s3867 + $0x90] sm:$0xff]
  %v4525 = vld [vmem:[%s3867 + $0x98] sm:$0xff]
  %v4526 = vmax.f32 %v4494, %v4510
  %v4527 = vmax.f32 %v4495, %v4511
  %v4528 = vmax.f32 %v4496, %v4512
  %v4529 = vmax.f32 %v4497, %v4513
  %v4530 = vmax.f32 %v4498, %v4514
  %v4531 = vmax.f32 %v4499, %v4515
  %v4532 = vmax.f32 %v4500, %v4516
  %v4533 = vmax.f32 %v4501, %v4517
  %v4534 = vmax.f32 %v4502, %v4518
  %v4535 = vmax.f32 %v4503, %v4519
  %v4536 = vmax.f32 %v4504, %v4520
  %v4537 = vmax.f32 %v4505, %v4521
  %v4538 = vmax.f32 %v4506, %v4522
  %v4539 = vmax.f32 %v4507, %v4523
  %v4540 = vmax.f32 %v4508, %v4524
  %v4541 = vmax.f32 %v4509, %v4525
  %v4542 = vld [vmem:[%s3834] sm:$0xff]
  %v4543 = vld [vmem:[%s3834 + $0x8] sm:$0xff]
  %v4544 = vld [vmem:[%s3834 + $0x10] sm:$0xff]
  %v4545 = vld [vmem:[%s3834 + $0x18] sm:$0xff]
  %v4546 = vld [vmem:[%s3834 + $0x20] sm:$0xff]
  %v4547 = vld [vmem:[%s3834 + $0x28] sm:$0xff]
  %v4548 = vld [vmem:[%s3834 + $0x30] sm:$0xff]
  %v4549 = vld [vmem:[%s3834 + $0x38] sm:$0xff]
  %v4550 = vld [vmem:[%s3834 + $0x60] sm:$0xff]
  %v4551 = vld [vmem:[%s3834 + $0x68] sm:$0xff]
  %v4552 = vld [vmem:[%s3834 + $0x70] sm:$0xff]
  %v4553 = vld [vmem:[%s3834 + $0x78] sm:$0xff]
  %v4554 = vld [vmem:[%s3834 + $0x80] sm:$0xff]
  %v4555 = vld [vmem:[%s3834 + $0x88] sm:$0xff]
  %v4556 = vld [vmem:[%s3834 + $0x90] sm:$0xff]
  %v4557 = vld [vmem:[%s3834 + $0x98] sm:$0xff]
  %v4558 = vmax.f32 %v4526, %v4542
  %v4559 = vmax.f32 %v4527, %v4543
  %v4560 = vmax.f32 %v4528, %v4544
  %v4561 = vmax.f32 %v4529, %v4545
  %v4562 = vmax.f32 %v4530, %v4546
  %v4563 = vmax.f32 %v4531, %v4547
  %v4564 = vmax.f32 %v4532, %v4548
  %v4565 = vmax.f32 %v4533, %v4549
  %v4566 = vmax.f32 %v4534, %v4550
  %v4567 = vmax.f32 %v4535, %v4551
  %v4568 = vmax.f32 %v4536, %v4552
  %v4569 = vmax.f32 %v4537, %v4553
  %v4570 = vmax.f32 %v4538, %v4554
  %v4571 = vmax.f32 %v4539, %v4555
  %v4572 = vmax.f32 %v4540, %v4556
  %v4573 = vmax.f32 %v4541, %v4557
  %v4574 = vld [vmem:[%s3932] sm:$0xff]
  %v4575 = vld [vmem:[%s3932 + $0x8] sm:$0xff]
  %v4576 = vld [vmem:[%s3932 + $0x10] sm:$0xff]
  %v4577 = vld [vmem:[%s3932 + $0x18] sm:$0xff]
  %v4578 = vld [vmem:[%s3932 + $0x20] sm:$0xff]
  %v4579 = vld [vmem:[%s3932 + $0x28] sm:$0xff]
  %v4580 = vld [vmem:[%s3932 + $0x30] sm:$0xff]
  %v4581 = vld [vmem:[%s3932 + $0x38] sm:$0xff]
  %v4582 = vld [vmem:[%s3932 + $0x60] sm:$0xff]
  %v4583 = vld [vmem:[%s3932 + $0x68] sm:$0xff]
  %v4584 = vld [vmem:[%s3932 + $0x70] sm:$0xff]
  %v4585 = vld [vmem:[%s3932 + $0x78] sm:$0xff]
  %v4586 = vld [vmem:[%s3932 + $0x80] sm:$0xff]
  %v4587 = vld [vmem:[%s3932 + $0x88] sm:$0xff]
  %v4588 = vld [vmem:[%s3932 + $0x90] sm:$0xff]
  %v4589 = vld [vmem:[%s3932 + $0x98] sm:$0xff]
  %v4590 = vmax.f32 %v4558, %v4574
  %v4591 = vmax.f32 %v4559, %v4575
  %v4592 = vmax.f32 %v4560, %v4576
  %v4593 = vmax.f32 %v4561, %v4577
  %v4594 = vmax.f32 %v4562, %v4578
  %v4595 = vmax.f32 %v4563, %v4579
  %v4596 = vmax.f32 %v4564, %v4580
  %v4597 = vmax.f32 %v4565, %v4581
  %v4598 = vmax.f32 %v4566, %v4582
  %v4599 = vmax.f32 %v4567, %v4583
  %v4600 = vmax.f32 %v4568, %v4584
  %v4601 = vmax.f32 %v4569, %v4585
  %v4602 = vmax.f32 %v4570, %v4586
  %v4603 = vmax.f32 %v4571, %v4587
  %v4604 = vmax.f32 %v4572, %v4588
  %v4605 = vmax.f32 %v4573, %v4589
  %v4606 = vld [vmem:[%s3965] sm:$0xff]
  %v4607 = vld [vmem:[%s3965 + $0x8] sm:$0xff]
  %v4608 = vld [vmem:[%s3965 + $0x10] sm:$0xff]
  %v4609 = vld [vmem:[%s3965 + $0x18] sm:$0xff]
  %v4610 = vld [vmem:[%s3965 + $0x20] sm:$0xff]
  %v4611 = vld [vmem:[%s3965 + $0x28] sm:$0xff]
  %v4612 = vld [vmem:[%s3965 + $0x30] sm:$0xff]
  %v4613 = vld [vmem:[%s3965 + $0x38] sm:$0xff]
  %v4614 = vld [vmem:[%s3965 + $0x60] sm:$0xff]
  %v4615 = vld [vmem:[%s3965 + $0x68] sm:$0xff]
  %v4616 = vld [vmem:[%s3965 + $0x70] sm:$0xff]
  %v4617 = vld [vmem:[%s3965 + $0x78] sm:$0xff]
  %v4618 = vld [vmem:[%s3965 + $0x80] sm:$0xff]
  %v4619 = vld [vmem:[%s3965 + $0x88] sm:$0xff]
  %v4620 = vld [vmem:[%s3965 + $0x90] sm:$0xff]
  %v4621 = vld [vmem:[%s3965 + $0x98] sm:$0xff]
  %v4622 = vmax.f32 %v4590, %v4606
  %v4623 = vmax.f32 %v4591, %v4607
  %v4624 = vmax.f32 %v4592, %v4608
  %v4625 = vmax.f32 %v4593, %v4609
  %v4626 = vmax.f32 %v4594, %v4610
  %v4627 = vmax.f32 %v4595, %v4611
  %v4628 = vmax.f32 %v4596, %v4612
  %v4629 = vmax.f32 %v4597, %v4613
  %v4630 = vmax.f32 %v4598, %v4614
  %v4631 = vmax.f32 %v4599, %v4615
  %v4632 = vmax.f32 %v4600, %v4616
  %v4633 = vmax.f32 %v4601, %v4617
  %v4634 = vmax.f32 %v4602, %v4618
  %v4635 = vmax.f32 %v4603, %v4619
  %v4636 = vmax.f32 %v4604, %v4620
  %v4637 = vmax.f32 %v4605, %v4621
  %4654 = vrot.lane.b32.xlu0 %v3982, 16
  %v4655 = vpop.permute.xlu0 %4654
  %4656 = vrot.lane.b32.xlu0 %v3983, 16
  %v4657 = vpop.permute.xlu0 %4656
  %4658 = vrot.lane.b32.xlu0 %v3984, 16
  %v4659 = vpop.permute.xlu0 %4658
  %4660 = vrot.lane.b32.xlu0 %v3985, 16
  %v4661 = vpop.permute.xlu0 %4660
  %4662 = vrot.lane.b32.xlu0 %v3986, 16
  %v4663 = vpop.permute.xlu0 %4662
  %4664 = vrot.lane.b32.xlu0 %v3987, 16
  %v4665 = vpop.permute.xlu0 %4664
  %4666 = vrot.lane.b32.xlu0 %v3988, 16
  %v4667 = vpop.permute.xlu0 %4666
  %4668 = vrot.lane.b32.xlu0 %v3989, 16
  %v4669 = vpop.permute.xlu0 %4668
  %4670 = vrot.lane.b32.xlu0 %v3990, 16
  %v4671 = vpop.permute.xlu0 %4670
  %4672 = vrot.lane.b32.xlu0 %v3991, 16
  %v4673 = vpop.permute.xlu0 %4672
  %4674 = vrot.lane.b32.xlu0 %v3992, 16
  %v4675 = vpop.permute.xlu0 %4674
  %4676 = vrot.lane.b32.xlu0 %v3993, 16
  %v4677 = vpop.permute.xlu0 %4676
  %4678 = vrot.lane.b32.xlu0 %v3994, 16
  %v4679 = vpop.permute.xlu0 %4678
  %4680 = vrot.lane.b32.xlu0 %v3995, 16
  %v4681 = vpop.permute.xlu0 %4680
  %4682 = vrot.lane.b32.xlu0 %v3996, 16
  %v4683 = vpop.permute.xlu0 %4682
  %4684 = vrot.lane.b32.xlu0 %v3997, 16
  %v4685 = vpop.permute.xlu0 %4684
  %4718 = vrot.lane.b32.xlu0 %v4302, 32
  %v4719 = vpop.permute.xlu0 %4718
  %4720 = vrot.lane.b32.xlu0 %v4303, 32
  %v4721 = vpop.permute.xlu0 %4720
  %4722 = vrot.lane.b32.xlu0 %v4304, 32
  %v4723 = vpop.permute.xlu0 %4722
  %4724 = vrot.lane.b32.xlu0 %v4305, 32
  %v4725 = vpop.permute.xlu0 %4724
  %4726 = vrot.lane.b32.xlu0 %v4306, 32
  %v4727 = vpop.permute.xlu0 %4726
  %4728 = vrot.lane.b32.xlu0 %v4307, 32
  %v4729 = vpop.permute.xlu0 %4728
  %4730 = vrot.lane.b32.xlu0 %v4308, 32
  %v4731 = vpop.permute.xlu0 %4730
  %4732 = vrot.lane.b32.xlu0 %v4309, 32
  %v4733 = vpop.permute.xlu0 %4732
  %4734 = vrot.lane.b32.xlu0 %v4310, 32
  %v4735 = vpop.permute.xlu0 %4734
  %4736 = vrot.lane.b32.xlu0 %v4311, 32
  %v4737 = vpop.permute.xlu0 %4736
  %4738 = vrot.lane.b32.xlu0 %v4312, 32
  %v4739 = vpop.permute.xlu0 %4738
  %4740 = vrot.lane.b32.xlu0 %v4313, 32
  %v4741 = vpop.permute.xlu0 %4740
  %4742 = vrot.lane.b32.xlu0 %v4314, 32
  %v4743 = vpop.permute.xlu0 %4742
  %4744 = vrot.lane.b32.xlu0 %v4315, 32
  %v4745 = vpop.permute.xlu0 %4744
  %4746 = vrot.lane.b32.xlu0 %v4316, 32
  %v4747 = vpop.permute.xlu0 %4746
  %4748 = vrot.lane.b32.xlu0 %v4317, 32
  %v4749 = vpop.permute.xlu0 %4748
  %4782 = vrot.lane.b32.xlu0 %v4622, 48
  %v4783 = vpop.permute.xlu0 %4782
  %4784 = vrot.lane.b32.xlu0 %v4623, 48
  %v4785 = vpop.permute.xlu0 %4784
  %4786 = vrot.lane.b32.xlu0 %v4624, 48
  %v4787 = vpop.permute.xlu0 %4786
  %4788 = vrot.lane.b32.xlu0 %v4625, 48
  %v4789 = vpop.permute.xlu0 %4788
  %4790 = vrot.lane.b32.xlu0 %v4626, 48
  %v4791 = vpop.permute.xlu0 %4790
  %4792 = vrot.lane.b32.xlu0 %v4627, 48
  %v4793 = vpop.permute.xlu0 %4792
  %4794 = vrot.lane.b32.xlu0 %v4628, 48
  %v4795 = vpop.permute.xlu0 %4794
  %4796 = vrot.lane.b32.xlu0 %v4629, 48
  %v4797 = vpop.permute.xlu0 %4796
  %4798 = vrot.lane.b32.xlu0 %v4630, 48
  %v4799 = vpop.permute.xlu0 %4798
  %4800 = vrot.lane.b32.xlu0 %v4631, 48
  %v4801 = vpop.permute.xlu0 %4800
  %4802 = vrot.lane.b32.xlu0 %v4632, 48
  %v4803 = vpop.permute.xlu0 %4802
  %4804 = vrot.lane.b32.xlu0 %v4633, 48
  %v4805 = vpop.permute.xlu0 %4804
  %4806 = vrot.lane.b32.xlu0 %v4634, 48
  %v4807 = vpop.permute.xlu0 %4806
  %4808 = vrot.lane.b32.xlu0 %v4635, 48
  %v4809 = vpop.permute.xlu0 %4808
  %4810 = vrot.lane.b32.xlu0 %v4636, 48
  %v4811 = vpop.permute.xlu0 %4810
  %4812 = vrot.lane.b32.xlu0 %v4637, 48
  %v4813 = vpop.permute.xlu0 %4812
  %v4830 = vsel %vm283, %v3601, %v4655
  %v4831 = vsel %vm283, %v3602, %v4657
  %v4832 = vsel %vm283, %v3603, %v4659
  %v4833 = vsel %vm283, %v3604, %v4661
  %v4834 = vsel %vm283, %v3605, %v4663
  %v4835 = vsel %vm283, %v3606, %v4665
  %v4836 = vsel %vm283, %v3607, %v4667
  %v4837 = vsel %vm283, %v3608, %v4669
  %v4838 = vsel %vm283, %v3609, %v4671
  %v4839 = vsel %vm283, %v3610, %v4673
  %v4840 = vsel %vm283, %v3611, %v4675
  %v4841 = vsel %vm283, %v3612, %v4677
  %v4842 = vsel %vm283, %v3613, %v4679
  %v4843 = vsel %vm283, %v3614, %v4681
  %v4844 = vsel %vm283, %v3615, %v4683
  %v4845 = vsel %vm283, %v3616, %v4685
  %v4846 = vsel %vm159, %v4830, %v4719
  %v4847 = vsel %vm159, %v4831, %v4721
  %v4848 = vsel %vm159, %v4832, %v4723
  %v4849 = vsel %vm159, %v4833, %v4725
  %v4850 = vsel %vm159, %v4834, %v4727
  %v4851 = vsel %vm159, %v4835, %v4729
  %v4852 = vsel %vm159, %v4836, %v4731
  %v4853 = vsel %vm159, %v4837, %v4733
  %v4854 = vsel %vm159, %v4838, %v4735
  %v4855 = vsel %vm159, %v4839, %v4737
  %v4856 = vsel %vm159, %v4840, %v4739
  %v4857 = vsel %vm159, %v4841, %v4741
  %v4858 = vsel %vm159, %v4842, %v4743
  %v4859 = vsel %vm159, %v4843, %v4745
  %v4860 = vsel %vm159, %v4844, %v4747
  %v4861 = vsel %vm159, %v4845, %v4749
  %v4862 = vsel %vm2076, %v4846, %v4783
  %v4863 = vsel %vm2076, %v4847, %v4785
  %v4864 = vsel %vm2076, %v4848, %v4787
  %v4865 = vsel %vm2076, %v4849, %v4789
  %v4866 = vsel %vm2076, %v4850, %v4791
  %v4867 = vsel %vm2076, %v4851, %v4793
  %v4868 = vsel %vm2076, %v4852, %v4795
  %v4869 = vsel %vm2076, %v4853, %v4797
  %v4870 = vsel %vm2076, %v4854, %v4799
  %v4871 = vsel %vm2076, %v4855, %v4801
  %v4872 = vsel %vm2076, %v4856, %v4803
  %v4873 = vsel %vm2076, %v4857, %v4805
  %v4874 = vsel %vm2076, %v4858, %v4807
  %v4875 = vsel %vm2076, %v4859, %v4809
  %v4876 = vsel %vm2076, %v4860, %v4811
  %v4877 = vsel %vm2076, %v4861, %v4813
  %v4878 = vpack.c.bf16 %v4863, %v4862
  %v4879 = vpack.c.bf16 %v4865, %v4864
  %v4880 = vpack.c.bf16 %v4867, %v4866
  %v4881 = vpack.c.bf16 %v4869, %v4868
  %v4882 = vpack.c.bf16 %v4871, %v4870
  %v4883 = vpack.c.bf16 %v4873, %v4872
  %v4884 = vpack.c.bf16 %v4875, %v4874
  %v4885 = vpack.c.bf16 %v4877, %v4876
  %v4886 = vld [vmem:[%s19] sm:$0xf]
  %v4887 = vld [vmem:[%s19 + $0x4] sm:$0xf]
  %v4888 = vld [vmem:[%s19 + $0x8] sm:$0xf]
  %v4889 = vld [vmem:[%s19 + $0xc] sm:$0xf]
  %v4890 = vld [vmem:[%s19 + $0x10] sm:$0xf]
  %v4891 = vld [vmem:[%s19 + $0x14] sm:$0xf]
  %v4892 = vld [vmem:[%s19 + $0x18] sm:$0xf]
  %v4893 = vld [vmem:[%s19 + $0x1c] sm:$0xf]
  %v4902 = vunpack.c.l.b16 %v4886
  %v4903 = vunpack.c.l.b16 %v4887
  %v4904 = vunpack.c.l.b16 %v4888
  %v4905 = vunpack.c.l.b16 %v4889
  %v4906 = vunpack.c.l.b16 %v4890
  %v4907 = vunpack.c.l.b16 %v4891
  %v4908 = vunpack.c.l.b16 %v4892
  %v4909 = vunpack.c.l.b16 %v4893
  %v4910 = vpack.c.b16 %v4903, %v4902
  %v4911 = vpack.c.b16 %v4905, %v4904
  %v4912 = vpack.c.b16 %v4907, %v4906
  %v4913 = vpack.c.b16 %v4909, %v4908
  %v4919 = vsel %vm2093, %v4878, 0
  %v4922 = vsel %vm2093, %v4879, 0
  %v4925 = vsel %vm2093, %v4880, 0
  %v4928 = vsel %vm2093, %v4881, 0
  %v4931 = vsel %vm2093, %v4882, 0
  %v4934 = vsel %vm2093, %v4883, 0
  %v4937 = vsel %vm2093, %v4884, 0
  %v4940 = vsel %vm2093, %v4885, 0
  %4942 = vmatprep.subr.bf16.mxu0 0
  %4943 = vmatpush1.bf16.msra.mxu0 %v4910
  %4944 = vmatprep.subr.bf16.mxu0 0
  %4945 = vmatpush1.bf16.msra.mxu0 %v4911
  %4946 = vmatprep.subr.bf16.mxu0 0
  %4947 = vmatpush1.bf16.msra.mxu0 %v4912
  %4948 = vmatprep.subr.bf16.mxu0 0
  %4949 = vmatpush1.bf16.msra.mxu0 %v4913
  %4950 = vmatprep.subr.bf16.mxu0 0
  %4951 = vmatpush1.bf16.msra.mxu0 0
  %4952 = vmatprep.subr.bf16.mxu0 0
  %4953 = vmatpush1.bf16.msra.mxu0 0
  %4954 = vmatprep.subr.bf16.mxu0 0
  %4955 = vmatpush1.bf16.msra.mxu0 0
  %4956 = vmatprep.subr.bf16.mxu0 0
  %4957 = vmatpush1.bf16.msra.mxu0 0
  %4958 = vmatprep.subr.bf16.mxu0 0
  %4959 = vmatpush1.bf16.msra.mxu0 0
  %4960 = vmatprep.subr.bf16.mxu0 0
  %4961 = vmatpush1.bf16.msra.mxu0 0
  %4962 = vmatprep.subr.bf16.mxu0 0
  %4963 = vmatpush1.bf16.msra.mxu0 0
  %4964 = vmatprep.subr.bf16.mxu0 0
  %4965 = vmatpush1.bf16.msra.mxu0 0
  %4966 = vmatprep.subr.bf16.mxu0 0
  %4967 = vmatpush1.bf16.msra.mxu0 0
  %4968 = vmatprep.subr.bf16.mxu0 0
  %4969 = vmatpush1.bf16.msra.mxu0 0
  %4970 = vmatprep.subr.bf16.mxu0 0
  %4971 = vmatpush1.bf16.msra.mxu0 0
  %4972 = vmatprep.subr.bf16.mxu0 0
  %4973 = vmatpush1.bf16.msra.mxu0 0
  %4974 = vmatprep.mubr.bf16.mxu0 0
  %4975 = vmatmul.mubr.bf16.gmra.mrb[0].mxu0 %v4919
  %v4976 = vpop.f32.mrb[0].mxu0
  %v4977 = vadd.f32 0.0, %v4976
  %v4978 = vpop.f32.mrb[0].mxu0
  %v4979 = vpop.f32.mrb[0].mxu0
  %v4980 = vadd.f32 0.0, %v4979
  %v4981 = vpop.f32.mrb[0].mxu0
  %4982 = vmatprep.mubr.bf16.mxu0 0
  %4983 = vmatmul.mubr.bf16.gmra.mrb[0].mxu0 %v4922
  %v4984 = vpop.f32.mrb[0].mxu0
  %v4985 = vadd.f32 0.0, %v4984
  %v4986 = vpop.f32.mrb[0].mxu0
  %v4987 = vpop.f32.mrb[0].mxu0
  %v4988 = vadd.f32 0.0, %v4987
  %v4989 = vpop.f32.mrb[0].mxu0
  %4990 = vmatprep.mubr.bf16.mxu0 0
  %4991 = vmatmul.mubr.bf16.gmra.mrb[0].mxu0 %v4925
  %v4992 = vpop.f32.mrb[0].mxu0
  %v4993 = vadd.f32 0.0, %v4992
  %v4994 = vpop.f32.mrb[0].mxu0
  %v4995 = vpop.f32.mrb[0].mxu0
  %v4996 = vadd.f32 0.0, %v4995
  %v4997 = vpop.f32.mrb[0].mxu0
  %4998 = vmatprep.mubr.bf16.mxu0 0
  %4999 = vmatmul.mubr.bf16.gmra.mrb[0].mxu0 %v4928
  %v5000 = vpop.f32.mrb[0].mxu0
  %v5001 = vadd.f32 0.0, %v5000
  %v5002 = vpop.f32.mrb[0].mxu0
  %v5003 = vpop.f32.mrb[0].mxu0
  %v5004 = vadd.f32 0.0, %v5003
  %v5005 = vpop.f32.mrb[0].mxu0
  %5006 = vmatprep.mubr.bf16.mxu0 0
  %5007 = vmatmul.mubr.bf16.gmra.mrb[0].mxu0 %v4931
  %v5008 = vpop.f32.mrb[0].mxu0
  %v5009 = vadd.f32 0.0, %v5008
  %v5010 = vpop.f32.mrb[0].mxu0
  %v5011 = vpop.f32.mrb[0].mxu0
  %v5012 = vadd.f32 0.0, %v5011
  %v5013 = vpop.f32.mrb[0].mxu0
  %5014 = vmatprep.mubr.bf16.mxu0 0
  %5015 = vmatmul.mubr.bf16.gmra.mrb[0].mxu0 %v4934
  %v5016 = vpop.f32.mrb[0].mxu0
  %v5017 = vadd.f32 0.0, %v5016
  %v5018 = vpop.f32.mrb[0].mxu0
  %v5019 = vpop.f32.mrb[0].mxu0
  %v5020 = vadd.f32 0.0, %v5019
  %v5021 = vpop.f32.mrb[0].mxu0
  %5022 = vmatprep.mubr.bf16.mxu0 0
  %5023 = vmatmul.mubr.bf16.gmra.mrb[0].mxu0 %v4937
  %v5024 = vpop.f32.mrb[0].mxu0
  %v5025 = vadd.f32 0.0, %v5024
  %v5026 = vpop.f32.mrb[0].mxu0
  %v5027 = vpop.f32.mrb[0].mxu0
  %v5028 = vadd.f32 0.0, %v5027
  %v5029 = vpop.f32.mrb[0].mxu0
  %5030 = vmatprep.mubr.bf16.mxu0 0
  %5031 = vmatmul.mubr.bf16.gmra.mrb[0].mxu0 %v4940
  %v5032 = vpop.f32.mrb[0].mxu0
  %v5033 = vadd.f32 0.0, %v5032
  %v5034 = vpop.f32.mrb[0].mxu0
  %v5035 = vpop.f32.mrb[0].mxu0
  %v5036 = vadd.f32 0.0, %v5035
  %v5037 = vpop.f32.mrb[0].mxu0
  %5038 = vdwg.mxu0
  %v5039 = vld [vmem:[%s20] sm:$0x1]
  %v5040 = vld [vmem:[%s21] sm:$0x1]
  %v5041 = vsel %vm159, %v4977, 0.0
  %v5042 = vsel %vm159, %v4980, 0.0
  %v5043 = vadd.f32 %v5041, %v5042
  %v5044 = vsel %vm159, %v4985, 0.0
  %v5045 = vadd.f32 %v5043, %v5044
  %v5046 = vsel %vm159, %v4988, 0.0
  %v5047 = vadd.f32 %v5045, %v5046
  %v5048 = vsel %vm159, %v4993, 0.0
  %v5049 = vadd.f32 %v5047, %v5048
  %v5050 = vsel %vm159, %v4996, 0.0
  %v5051 = vadd.f32 %v5049, %v5050
  %v5052 = vsel %vm159, %v5001, 0.0
  %v5053 = vadd.f32 %v5051, %v5052
  %v5054 = vsel %vm159, %v5004, 0.0
  %v5055 = vadd.f32 %v5053, %v5054
  %v5056 = vsel %vm159, %v5009, 0.0
  %v5057 = vadd.f32 %v5055, %v5056
  %v5058 = vsel %vm159, %v5012, 0.0
  %v5059 = vadd.f32 %v5057, %v5058
  %v5060 = vsel %vm159, %v5017, 0.0
  %v5061 = vadd.f32 %v5059, %v5060
  %v5062 = vsel %vm159, %v5020, 0.0
  %v5063 = vadd.f32 %v5061, %v5062
  %v5064 = vsel %vm159, %v5025, 0.0
  %v5065 = vadd.f32 %v5063, %v5064
  %v5066 = vsel %vm159, %v5028, 0.0
  %v5067 = vadd.f32 %v5065, %v5066
  %v5068 = vsel %vm159, %v5033, 0.0
  %v5069 = vadd.f32 %v5067, %v5068
  %v5070 = vsel %vm159, %v5036, 0.0
  %v5071 = vadd.f32 %v5069, %v5070
  %v5072 = vrot.slane %v5071, 4
  %v5073 = vadd.f32 %v5071, %v5072
  %v5074 = vrot.slane %v5073, 2
  %v5075 = vadd.f32 %v5073, %v5074
  %v5076 = vrot.slane %v5075, 1
  %v5077 = vadd.f32 %v5075, %v5076
  %v5078 = vmul.f32 %v4977, %v4977
  %v5079 = vmul.f32 %v4980, %v4980
  %v5080 = vmul.f32 %v4985, %v4985
  %v5081 = vmul.f32 %v4988, %v4988
  %v5082 = vmul.f32 %v4993, %v4993
  %v5083 = vmul.f32 %v4996, %v4996
  %v5084 = vmul.f32 %v5001, %v5001
  %v5085 = vmul.f32 %v5004, %v5004
  %v5086 = vmul.f32 %v5009, %v5009
  %v5087 = vmul.f32 %v5012, %v5012
  %v5088 = vmul.f32 %v5017, %v5017
  %v5089 = vmul.f32 %v5020, %v5020
  %v5090 = vmul.f32 %v5025, %v5025
  %v5091 = vmul.f32 %v5028, %v5028
  %v5092 = vmul.f32 %v5033, %v5033
  %v5093 = vmul.f32 %v5036, %v5036
  %v5094 = vsel %vm159, %v5078, 0.0
  %v5095 = vsel %vm159, %v5079, 0.0
  %v5096 = vadd.f32 %v5094, %v5095
  %v5097 = vsel %vm159, %v5080, 0.0
  %v5098 = vadd.f32 %v5096, %v5097
  %v5099 = vsel %vm159, %v5081, 0.0
  %v5100 = vadd.f32 %v5098, %v5099
  %v5101 = vsel %vm159, %v5082, 0.0
  %v5102 = vadd.f32 %v5100, %v5101
  %v5103 = vsel %vm159, %v5083, 0.0
  %v5104 = vadd.f32 %v5102, %v5103
  %v5105 = vsel %vm159, %v5084, 0.0
  %v5106 = vadd.f32 %v5104, %v5105
  %v5107 = vsel %vm159, %v5085, 0.0
  %v5108 = vadd.f32 %v5106, %v5107
  %v5109 = vsel %vm159, %v5086, 0.0
  %v5110 = vadd.f32 %v5108, %v5109
  %v5111 = vsel %vm159, %v5087, 0.0
  %v5112 = vadd.f32 %v5110, %v5111
  %v5113 = vsel %vm159, %v5088, 0.0
  %v5114 = vadd.f32 %v5112, %v5113
  %v5115 = vsel %vm159, %v5089, 0.0
  %v5116 = vadd.f32 %v5114, %v5115
  %v5117 = vsel %vm159, %v5090, 0.0
  %v5118 = vadd.f32 %v5116, %v5117
  %v5119 = vsel %vm159, %v5091, 0.0
  %v5120 = vadd.f32 %v5118, %v5119
  %v5121 = vsel %vm159, %v5092, 0.0
  %v5122 = vadd.f32 %v5120, %v5121
  %v5123 = vsel %vm159, %v5093, 0.0
  %v5124 = vadd.f32 %v5122, %v5123
  %v5125 = vrot.slane %v5124, 4
  %v5126 = vadd.f32 %v5124, %v5125
  %v5127 = vrot.slane %v5126, 2
  %v5128 = vadd.f32 %v5126, %v5127
  %v5129 = vrot.slane %v5128, 1
  %v5130 = vadd.f32 %v5128, %v5129
  %v5131 = vmul.f32 %v5077, 0.0078125
  %v5132 = vmul.f32 %v5130, 0.0078125
  %v5133 = vmul.f32 %v5131, %v5131
  %v5134 = vsub.f32 %v5132, %v5133
  %v5135 = vmax.f32 %v5134, 0.0
  %v5136 = vsub.f32 %v4977, %v5131
  %v5137 = vsub.f32 %v4980, %v5131
  %v5138 = vsub.f32 %v4985, %v5131
  %v5139 = vsub.f32 %v4988, %v5131
  %v5140 = vsub.f32 %v4993, %v5131
  %v5141 = vsub.f32 %v4996, %v5131
  %v5142 = vsub.f32 %v5001, %v5131
  %v5143 = vsub.f32 %v5004, %v5131
  %v5144 = vsub.f32 %v5009, %v5131
  %v5145 = vsub.f32 %v5012, %v5131
  %v5146 = vsub.f32 %v5017, %v5131
  %v5147 = vsub.f32 %v5020, %v5131
  %v5148 = vsub.f32 %v5025, %v5131
  %v5149 = vsub.f32 %v5028, %v5131
  %v5150 = vsub.f32 %v5033, %v5131
  %v5151 = vsub.f32 %v5036, %v5131
  %v5152 = vadd.f32 %v5135, 0.001
  %v5153 = vrsqrt.pop %v5152
  %v5154 = vmul.f32 %v5136, %v5153
  %v5155 = vmul.f32 %v5137, %v5153
  %v5156 = vmul.f32 %v5138, %v5153
  %v5157 = vmul.f32 %v5139, %v5153
  %v5158 = vmul.f32 %v5140, %v5153
  %v5159 = vmul.f32 %v5141, %v5153
  %v5160 = vmul.f32 %v5142, %v5153
  %v5161 = vmul.f32 %v5143, %v5153
  %v5162 = vmul.f32 %v5144, %v5153
  %v5163 = vmul.f32 %v5145, %v5153
  %v5164 = vmul.f32 %v5146, %v5153
  %v5165 = vmul.f32 %v5147, %v5153
  %v5166 = vmul.f32 %v5148, %v5153
  %v5167 = vmul.f32 %v5149, %v5153
  %v5168 = vmul.f32 %v5150, %v5153
  %v5169 = vmul.f32 %v5151, %v5153
  %v5171 = vlaneseq
  %v5172 = vshrl.u32 %v5171, 7
  %v5173 = vsub.s32 0, %v5172
  %v5174 = vrot.slane %v5039, %v5173
  %v5176 = vmul.f32 %v5154, %v5174
  %v5177 = vmul.f32 %v5155, %v5174
  %v5178 = vmul.f32 %v5156, %v5174
  %v5179 = vmul.f32 %v5157, %v5174
  %v5180 = vmul.f32 %v5158, %v5174
  %v5181 = vmul.f32 %v5159, %v5174
  %v5182 = vmul.f32 %v5160, %v5174
  %v5183 = vmul.f32 %v5161, %v5174
  %v5184 = vmul.f32 %v5162, %v5174
  %v5185 = vmul.f32 %v5163, %v5174
  %v5186 = vmul.f32 %v5164, %v5174
  %v5187 = vmul.f32 %v5165, %v5174
  %v5188 = vmul.f32 %v5166, %v5174
  %v5189 = vmul.f32 %v5167, %v5174
  %v5190 = vmul.f32 %v5168, %v5174
  %v5191 = vmul.f32 %v5169, %v5174
  %v5193 = vlaneseq
  %v5194 = vshrl.u32 %v5193, 7
  %v5195 = vsub.s32 0, %v5194
  %v5196 = vrot.slane %v5040, %v5195
  %v5198 = vadd.f32 %v5176, %v5196
  %v5199 = vadd.f32 %v5177, %v5196
  %v5200 = vadd.f32 %v5178, %v5196
  %v5201 = vadd.f32 %v5179, %v5196
  %v5202 = vadd.f32 %v5180, %v5196
  %v5203 = vadd.f32 %v5181, %v5196
  %v5204 = vadd.f32 %v5182, %v5196
  %v5205 = vadd.f32 %v5183, %v5196
  %v5206 = vadd.f32 %v5184, %v5196
  %v5207 = vadd.f32 %v5185, %v5196
  %v5208 = vadd.f32 %v5186, %v5196
  %v5209 = vadd.f32 %v5187, %v5196
  %v5210 = vadd.f32 %v5188, %v5196
  %v5211 = vadd.f32 %v5189, %v5196
  %v5212 = vadd.f32 %v5190, %v5196
  %v5213 = vadd.f32 %v5191, %v5196
  %v5214 = vxor.u32 %v5198, 2147483648
  %v5215 = vxor.u32 %v5199, 2147483648
  %v5216 = vxor.u32 %v5200, 2147483648
  %v5217 = vxor.u32 %v5201, 2147483648
  %v5218 = vxor.u32 %v5202, 2147483648
  %v5219 = vxor.u32 %v5203, 2147483648
  %v5220 = vxor.u32 %v5204, 2147483648
  %v5221 = vxor.u32 %v5205, 2147483648
  %v5222 = vxor.u32 %v5206, 2147483648
  %v5223 = vxor.u32 %v5207, 2147483648
  %v5224 = vxor.u32 %v5208, 2147483648
  %v5225 = vxor.u32 %v5209, 2147483648
  %v5226 = vxor.u32 %v5210, 2147483648
  %v5227 = vxor.u32 %v5211, 2147483648
  %v5228 = vxor.u32 %v5212, 2147483648
  %v5229 = vxor.u32 %v5213, 2147483648
  %v5230 = vmul.f32 %v5214, 1.442695
  %v5231 = vpow.pop %v5230
  %v5232 = vmul.f32 %v5215, 1.442695
  %v5233 = vpow.pop %v5232
  %v5234 = vmul.f32 %v5216, 1.442695
  %v5235 = vpow.pop %v5234
  %v5236 = vmul.f32 %v5217, 1.442695
  %v5237 = vpow.pop %v5236
  %v5238 = vmul.f32 %v5218, 1.442695
  %v5239 = vpow.pop %v5238
  %v5240 = vmul.f32 %v5219, 1.442695
  %v5241 = vpow.pop %v5240
  %v5242 = vmul.f32 %v5220, 1.442695
  %v5243 = vpow.pop %v5242
  %v5244 = vmul.f32 %v5221, 1.442695
  %v5245 = vpow.pop %v5244
  %v5246 = vmul.f32 %v5222, 1.442695
  %v5247 = vpow.pop %v5246
  %v5248 = vmul.f32 %v5223, 1.442695
  %v5249 = vpow.pop %v5248
  %v5250 = vmul.f32 %v5224, 1.442695
  %v5251 = vpow.pop %v5250
  %v5252 = vmul.f32 %v5225, 1.442695
  %v5253 = vpow.pop %v5252
  %v5254 = vmul.f32 %v5226, 1.442695
  %v5255 = vpow.pop %v5254
  %v5256 = vmul.f32 %v5227, 1.442695
  %v5257 = vpow.pop %v5256
  %v5258 = vmul.f32 %v5228, 1.442695
  %v5259 = vpow.pop %v5258
  %v5260 = vmul.f32 %v5229, 1.442695
  %v5261 = vpow.pop %v5260
  %v5262 = vadd.f32 %v5231, 1.0
  %v5263 = vadd.f32 %v5233, 1.0
  %v5264 = vadd.f32 %v5235, 1.0
  %v5265 = vadd.f32 %v5237, 1.0
  %v5266 = vadd.f32 %v5239, 1.0
  %v5267 = vadd.f32 %v5241, 1.0
  %v5268 = vadd.f32 %v5243, 1.0
  %v5269 = vadd.f32 %v5245, 1.0
  %v5270 = vadd.f32 %v5247, 1.0
  %v5271 = vadd.f32 %v5249, 1.0
  %v5272 = vadd.f32 %v5251, 1.0
  %v5273 = vadd.f32 %v5253, 1.0
  %v5274 = vadd.f32 %v5255, 1.0
  %v5275 = vadd.f32 %v5257, 1.0
  %v5276 = vadd.f32 %v5259, 1.0
  %v5277 = vadd.f32 %v5261, 1.0
  %v5278 = vrcp.pop %v5262
  %v5279 = vmul.f32 1.0, %v5278
  %v5280 = vrcp.pop %v5263
  %v5281 = vmul.f32 1.0, %v5280
  %v5282 = vrcp.pop %v5264
  %v5283 = vmul.f32 1.0, %v5282
  %v5284 = vrcp.pop %v5265
  %v5285 = vmul.f32 1.0, %v5284
  %v5286 = vrcp.pop %v5266
  %v5287 = vmul.f32 1.0, %v5286
  %v5288 = vrcp.pop %v5267
  %v5289 = vmul.f32 1.0, %v5288
  %v5290 = vrcp.pop %v5268
  %v5291 = vmul.f32 1.0, %v5290
  %v5292 = vrcp.pop %v5269
  %v5293 = vmul.f32 1.0, %v5292
  %v5294 = vrcp.pop %v5270
  %v5295 = vmul.f32 1.0, %v5294
  %v5296 = vrcp.pop %v5271
  %v5297 = vmul.f32 1.0, %v5296
  %v5298 = vrcp.pop %v5272
  %v5299 = vmul.f32 1.0, %v5298
  %v5300 = vrcp.pop %v5273
  %v5301 = vmul.f32 1.0, %v5300
  %v5302 = vrcp.pop %v5274
  %v5303 = vmul.f32 1.0, %v5302
  %v5304 = vrcp.pop %v5275
  %v5305 = vmul.f32 1.0, %v5304
  %v5306 = vrcp.pop %v5276
  %v5307 = vmul.f32 1.0, %v5306
  %v5308 = vrcp.pop %v5277
  %v5309 = vmul.f32 1.0, %v5308
  %v5310 = vmul.f32 %v5198, %v5279
  %v5311 = vmul.f32 %v5199, %v5281
  %v5312 = vmul.f32 %v5200, %v5283
  %v5313 = vmul.f32 %v5201, %v5285
  %v5314 = vmul.f32 %v5202, %v5287
  %v5315 = vmul.f32 %v5203, %v5289
  %v5316 = vmul.f32 %v5204, %v5291
  %v5317 = vmul.f32 %v5205, %v5293
  %v5318 = vmul.f32 %v5206, %v5295
  %v5319 = vmul.f32 %v5207, %v5297
  %v5320 = vmul.f32 %v5208, %v5299
  %v5321 = vmul.f32 %v5209, %v5301
  %v5322 = vmul.f32 %v5210, %v5303
  %v5323 = vmul.f32 %v5211, %v5305
  %v5324 = vmul.f32 %v5212, %v5307
  %v5325 = vmul.f32 %v5213, %v5309
  %v5326 = vpack.c.bf16 %v5311, %v5310
  %v5327 = vpack.c.bf16 %v5313, %v5312
  %v5328 = vpack.c.bf16 %v5315, %v5314
  %v5329 = vpack.c.bf16 %v5317, %v5316
  %v5330 = vpack.c.bf16 %v5319, %v5318
  %v5331 = vpack.c.bf16 %v5321, %v5320
  %v5332 = vpack.c.bf16 %v5323, %v5322
  %v5333 = vpack.c.bf16 %v5325, %v5324
  %5334 = vrot.lane.b32.xlu0 %v139, 32
  %v5335 = vpop.permute.xlu0 %5334
  %5336 = vrot.lane.b32.xlu0 %v140, 32
  %v5337 = vpop.permute.xlu0 %5336
  %5338 = vrot.lane.b32.xlu0 %v141, 32
  %v5339 = vpop.permute.xlu0 %5338
  %5340 = vrot.lane.b32.xlu0 %v142, 32
  %v5341 = vpop.permute.xlu0 %5340
  %5342 = vrot.lane.b32.xlu0 %v143, 32
  %v5343 = vpop.permute.xlu0 %5342
  %5344 = vrot.lane.b32.xlu0 %v144, 32
  %v5345 = vpop.permute.xlu0 %5344
  %5346 = vrot.lane.b32.xlu0 %v145, 32
  %v5347 = vpop.permute.xlu0 %5346
  %5348 = vrot.lane.b32.xlu0 %v146, 32
  %v5349 = vpop.permute.xlu0 %5348
  %v5352 = vsel %vm159, %v5326, %v5335
  %v5355 = vsel %vm159, %v5327, %v5337
  %v5358 = vsel %vm159, %v5328, %v5339
  %v5361 = vsel %vm159, %v5329, %v5341
  %v5364 = vsel %vm159, %v5330, %v5343
  %v5367 = vsel %vm159, %v5331, %v5345
  %v5370 = vsel %vm159, %v5332, %v5347
  %v5373 = vsel %vm159, %v5333, %v5349
  %v5374 = vld [vmem:[%s22] sm:$0xf]
  %v5375 = vld [vmem:[%s22 + $0x4] sm:$0xf]
  %v5376 = vld [vmem:[%s22 + $0x8] sm:$0xf]
  %v5377 = vld [vmem:[%s22 + $0xc] sm:$0xf]
  %v5378 = vld [vmem:[%s22 + $0x10] sm:$0xf]
  %v5379 = vld [vmem:[%s22 + $0x14] sm:$0xf]
  %v5380 = vld [vmem:[%s22 + $0x18] sm:$0xf]
  %v5381 = vld [vmem:[%s22 + $0x1c] sm:$0xf]
  %v5390 = vunpack.c.l.b16 %v5374
  %v5391 = vunpack.c.l.b16 %v5375
  %v5392 = vunpack.c.l.b16 %v5376
  %v5393 = vunpack.c.l.b16 %v5377
  %v5394 = vunpack.c.l.b16 %v5378
  %v5395 = vunpack.c.l.b16 %v5379
  %v5396 = vunpack.c.l.b16 %v5380
  %v5397 = vunpack.c.l.b16 %v5381
  %v5398 = vpack.c.b16 %v5391, %v5390
  %v5399 = vpack.c.b16 %v5393, %v5392
  %v5400 = vpack.c.b16 %v5395, %v5394
  %v5401 = vpack.c.b16 %v5397, %v5396
  %v5406 = vsel %vm2093, %v5352, 0
  %v5408 = vsel %vm2093, %v5355, 0
  %v5410 = vsel %vm2093, %v5358, 0
  %v5412 = vsel %vm2093, %v5361, 0
  %v5414 = vsel %vm2093, %v5364, 0
  %v5416 = vsel %vm2093, %v5367, 0
  %v5418 = vsel %vm2093, %v5370, 0
  %v5420 = vsel %vm2093, %v5373, 0
  %5422 = vmatprep.subr.bf16.mxu0 0
  %5423 = vmatpush1.bf16.msra.mxu0 %v5398
  %5424 = vmatprep.subr.bf16.mxu0 0
  %5425 = vmatpush1.bf16.msra.mxu0 %v5399
  %5426 = vmatprep.subr.bf16.mxu0 0
  %5427 = vmatpush1.bf16.msra.mxu0 %v5400
  %5428 = vmatprep.subr.bf16.mxu0 0
  %5429 = vmatpush1.bf16.msra.mxu0 %v5401
  %5430 = vmatprep.subr.bf16.mxu0 0
  %5431 = vmatpush1.bf16.msra.mxu0 0
  %5432 = vmatprep.subr.bf16.mxu0 0
  %5433 = vmatpush1.bf16.msra.mxu0 0
  %5434 = vmatprep.subr.bf16.mxu0 0
  %5435 = vmatpush1.bf16.msra.mxu0 0
  %5436 = vmatprep.subr.bf16.mxu0 0
  %5437 = vmatpush1.bf16.msra.mxu0 0
  %5438 = vmatprep.subr.bf16.mxu0 0
  %5439 = vmatpush1.bf16.msra.mxu0 0
  %5440 = vmatprep.subr.bf16.mxu0 0
  %5441 = vmatpush1.bf16.msra.mxu0 0
  %5442 = vmatprep.subr.bf16.mxu0 0
  %5443 = vmatpush1.bf16.msra.mxu0 0
  %5444 = vmatprep.subr.bf16.mxu0 0
  %5445 = vmatpush1.bf16.msra.mxu0 0
  %5446 = vmatprep.subr.bf16.mxu0 0
  %5447 = vmatpush1.bf16.msra.mxu0 0
  %5448 = vmatprep.subr.bf16.mxu0 0
  %5449 = vmatpush1.bf16.msra.mxu0 0
  %5450 = vmatprep.subr.bf16.mxu0 0
  %5451 = vmatpush1.bf16.msra.mxu0 0
  %5452 = vmatprep.subr.bf16.mxu0 0
  %5453 = vmatpush1.bf16.msra.mxu0 0
  %5454 = vmatprep.mubr.bf16.mxu0 0
  %5455 = vmatmul.mubr.bf16.gmra.mrb[0].mxu0 %v5406
  %v5456 = vpop.f32.mrb[0].mxu0
  %v5457 = vadd.f32 0.0, %v5456
  %v5458 = vpop.f32.mrb[0].mxu0
  %v5459 = vpop.f32.mrb[0].mxu0
  %v5460 = vadd.f32 0.0, %v5459
  %v5461 = vpop.f32.mrb[0].mxu0
  %5462 = vmatprep.mubr.bf16.mxu0 0
  %5463 = vmatmul.mubr.bf16.gmra.mrb[0].mxu0 %v5408
  %v5464 = vpop.f32.mrb[0].mxu0
  %v5465 = vadd.f32 0.0, %v5464
  %v5466 = vpop.f32.mrb[0].mxu0
  %v5467 = vpop.f32.mrb[0].mxu0
  %v5468 = vadd.f32 0.0, %v5467
  %v5469 = vpop.f32.mrb[0].mxu0
  %5470 = vmatprep.mubr.bf16.mxu0 0
  %5471 = vmatmul.mubr.bf16.gmra.mrb[0].mxu0 %v5410
  %v5472 = vpop.f32.mrb[0].mxu0
  %v5473 = vadd.f32 0.0, %v5472
  %v5474 = vpop.f32.mrb[0].mxu0
  %v5475 = vpop.f32.mrb[0].mxu0
  %v5476 = vadd.f32 0.0, %v5475
  %v5477 = vpop.f32.mrb[0].mxu0
  %5478 = vmatprep.mubr.bf16.mxu0 0
  %5479 = vmatmul.mubr.bf16.gmra.mrb[0].mxu0 %v5412
  %v5480 = vpop.f32.mrb[0].mxu0
  %v5481 = vadd.f32 0.0, %v5480
  %v5482 = vpop.f32.mrb[0].mxu0
  %v5483 = vpop.f32.mrb[0].mxu0
  %v5484 = vadd.f32 0.0, %v5483
  %v5485 = vpop.f32.mrb[0].mxu0
  %5486 = vmatprep.mubr.bf16.mxu0 0
  %5487 = vmatmul.mubr.bf16.gmra.mrb[0].mxu0 %v5414
  %v5488 = vpop.f32.mrb[0].mxu0
  %v5489 = vadd.f32 0.0, %v5488
  %v5490 = vpop.f32.mrb[0].mxu0
  %v5491 = vpop.f32.mrb[0].mxu0
  %v5492 = vadd.f32 0.0, %v5491
  %v5493 = vpop.f32.mrb[0].mxu0
  %5494 = vmatprep.mubr.bf16.mxu0 0
  %5495 = vmatmul.mubr.bf16.gmra.mrb[0].mxu0 %v5416
  %v5496 = vpop.f32.mrb[0].mxu0
  %v5497 = vadd.f32 0.0, %v5496
  %v5498 = vpop.f32.mrb[0].mxu0
  %v5499 = vpop.f32.mrb[0].mxu0
  %v5500 = vadd.f32 0.0, %v5499
  %v5501 = vpop.f32.mrb[0].mxu0
  %5502 = vmatprep.mubr.bf16.mxu0 0
  %5503 = vmatmul.mubr.bf16.gmra.mrb[0].mxu0 %v5418
  %v5504 = vpop.f32.mrb[0].mxu0
  %v5505 = vadd.f32 0.0, %v5504
  %v5506 = vpop.f32.mrb[0].mxu0
  %v5507 = vpop.f32.mrb[0].mxu0
  %v5508 = vadd.f32 0.0, %v5507
  %v5509 = vpop.f32.mrb[0].mxu0
  %5510 = vmatprep.mubr.bf16.mxu0 0
  %5511 = vmatmul.mubr.bf16.gmra.mrb[0].mxu0 %v5420
  %v5512 = vpop.f32.mrb[0].mxu0
  %v5513 = vadd.f32 0.0, %v5512
  %v5514 = vpop.f32.mrb[0].mxu0
  %v5515 = vpop.f32.mrb[0].mxu0
  %v5516 = vadd.f32 0.0, %v5515
  %v5517 = vpop.f32.mrb[0].mxu0
  %5518 = vdwg.mxu0
  %v5519 = vld [vmem:[%s23] sm:$0x1]
  %v5520 = vld [vmem:[%s24] sm:$0x1]
  %v5521 = vsel %vm159, %v5457, 0.0
  %v5522 = vsel %vm159, %v5460, 0.0
  %v5523 = vadd.f32 %v5521, %v5522
  %v5524 = vsel %vm159, %v5465, 0.0
  %v5525 = vadd.f32 %v5523, %v5524
  %v5526 = vsel %vm159, %v5468, 0.0
  %v5527 = vadd.f32 %v5525, %v5526
  %v5528 = vsel %vm159, %v5473, 0.0
  %v5529 = vadd.f32 %v5527, %v5528
  %v5530 = vsel %vm159, %v5476, 0.0
  %v5531 = vadd.f32 %v5529, %v5530
  %v5532 = vsel %vm159, %v5481, 0.0
  %v5533 = vadd.f32 %v5531, %v5532
  %v5534 = vsel %vm159, %v5484, 0.0
  %v5535 = vadd.f32 %v5533, %v5534
  %v5536 = vsel %vm159, %v5489, 0.0
  %v5537 = vadd.f32 %v5535, %v5536
  %v5538 = vsel %vm159, %v5492, 0.0
  %v5539 = vadd.f32 %v5537, %v5538
  %v5540 = vsel %vm159, %v5497, 0.0
  %v5541 = vadd.f32 %v5539, %v5540
  %v5542 = vsel %vm159, %v5500, 0.0
  %v5543 = vadd.f32 %v5541, %v5542
  %v5544 = vsel %vm159, %v5505, 0.0
  %v5545 = vadd.f32 %v5543, %v5544
  %v5546 = vsel %vm159, %v5508, 0.0
  %v5547 = vadd.f32 %v5545, %v5546
  %v5548 = vsel %vm159, %v5513, 0.0
  %v5549 = vadd.f32 %v5547, %v5548
  %v5550 = vsel %vm159, %v5516, 0.0
  %v5551 = vadd.f32 %v5549, %v5550
  %v5552 = vrot.slane %v5551, 4
  %v5553 = vadd.f32 %v5551, %v5552
  %v5554 = vrot.slane %v5553, 2
  %v5555 = vadd.f32 %v5553, %v5554
  %v5556 = vrot.slane %v5555, 1
  %v5557 = vadd.f32 %v5555, %v5556
  %v5558 = vmul.f32 %v5457, %v5457
  %v5559 = vmul.f32 %v5460, %v5460
  %v5560 = vmul.f32 %v5465, %v5465
  %v5561 = vmul.f32 %v5468, %v5468
  %v5562 = vmul.f32 %v5473, %v5473
  %v5563 = vmul.f32 %v5476, %v5476
  %v5564 = vmul.f32 %v5481, %v5481
  %v5565 = vmul.f32 %v5484, %v5484
  %v5566 = vmul.f32 %v5489, %v5489
  %v5567 = vmul.f32 %v5492, %v5492
  %v5568 = vmul.f32 %v5497, %v5497
  %v5569 = vmul.f32 %v5500, %v5500
  %v5570 = vmul.f32 %v5505, %v5505
  %v5571 = vmul.f32 %v5508, %v5508
  %v5572 = vmul.f32 %v5513, %v5513
  %v5573 = vmul.f32 %v5516, %v5516
  %v5574 = vsel %vm159, %v5558, 0.0
  %v5575 = vsel %vm159, %v5559, 0.0
  %v5576 = vadd.f32 %v5574, %v5575
  %v5577 = vsel %vm159, %v5560, 0.0
  %v5578 = vadd.f32 %v5576, %v5577
  %v5579 = vsel %vm159, %v5561, 0.0
  %v5580 = vadd.f32 %v5578, %v5579
  %v5581 = vsel %vm159, %v5562, 0.0
  %v5582 = vadd.f32 %v5580, %v5581
  %v5583 = vsel %vm159, %v5563, 0.0
  %v5584 = vadd.f32 %v5582, %v5583
  %v5585 = vsel %vm159, %v5564, 0.0
  %v5586 = vadd.f32 %v5584, %v5585
  %v5587 = vsel %vm159, %v5565, 0.0
  %v5588 = vadd.f32 %v5586, %v5587
  %v5589 = vsel %vm159, %v5566, 0.0
  %v5590 = vadd.f32 %v5588, %v5589
  %v5591 = vsel %vm159, %v5567, 0.0
  %v5592 = vadd.f32 %v5590, %v5591
  %v5593 = vsel %vm159, %v5568, 0.0
  %v5594 = vadd.f32 %v5592, %v5593
  %v5595 = vsel %vm159, %v5569, 0.0
  %v5596 = vadd.f32 %v5594, %v5595
  %v5597 = vsel %vm159, %v5570, 0.0
  %v5598 = vadd.f32 %v5596, %v5597
  %v5599 = vsel %vm159, %v5571, 0.0
  %v5600 = vadd.f32 %v5598, %v5599
  %v5601 = vsel %vm159, %v5572, 0.0
  %v5602 = vadd.f32 %v5600, %v5601
  %v5603 = vsel %vm159, %v5573, 0.0
  %v5604 = vadd.f32 %v5602, %v5603
  %v5605 = vrot.slane %v5604, 4
  %v5606 = vadd.f32 %v5604, %v5605
  %v5607 = vrot.slane %v5606, 2
  %v5608 = vadd.f32 %v5606, %v5607
  %v5609 = vrot.slane %v5608, 1
  %v5610 = vadd.f32 %v5608, %v5609
  %v5611 = vmul.f32 %v5557, 0.0078125
  %v5612 = vmul.f32 %v5610, 0.0078125
  %v5613 = vmul.f32 %v5611, %v5611
  %v5614 = vsub.f32 %v5612, %v5613
  %v5615 = vmax.f32 %v5614, 0.0
  %v5616 = vsub.f32 %v5457, %v5611
  %v5617 = vsub.f32 %v5460, %v5611
  %v5618 = vsub.f32 %v5465, %v5611
  %v5619 = vsub.f32 %v5468, %v5611
  %v5620 = vsub.f32 %v5473, %v5611
  %v5621 = vsub.f32 %v5476, %v5611
  %v5622 = vsub.f32 %v5481, %v5611
  %v5623 = vsub.f32 %v5484, %v5611
  %v5624 = vsub.f32 %v5489, %v5611
  %v5625 = vsub.f32 %v5492, %v5611
  %v5626 = vsub.f32 %v5497, %v5611
  %v5627 = vsub.f32 %v5500, %v5611
  %v5628 = vsub.f32 %v5505, %v5611
  %v5629 = vsub.f32 %v5508, %v5611
  %v5630 = vsub.f32 %v5513, %v5611
  %v5631 = vsub.f32 %v5516, %v5611
  %v5632 = vadd.f32 %v5615, 0.001
  %v5633 = vrsqrt.pop %v5632
  %v5634 = vmul.f32 %v5616, %v5633
  %v5635 = vmul.f32 %v5617, %v5633
  %v5636 = vmul.f32 %v5618, %v5633
  %v5637 = vmul.f32 %v5619, %v5633
  %v5638 = vmul.f32 %v5620, %v5633
  %v5639 = vmul.f32 %v5621, %v5633
  %v5640 = vmul.f32 %v5622, %v5633
  %v5641 = vmul.f32 %v5623, %v5633
  %v5642 = vmul.f32 %v5624, %v5633
  %v5643 = vmul.f32 %v5625, %v5633
  %v5644 = vmul.f32 %v5626, %v5633
  %v5645 = vmul.f32 %v5627, %v5633
  %v5646 = vmul.f32 %v5628, %v5633
  %v5647 = vmul.f32 %v5629, %v5633
  %v5648 = vmul.f32 %v5630, %v5633
  %v5649 = vmul.f32 %v5631, %v5633
  %v5651 = vlaneseq
  %v5652 = vshrl.u32 %v5651, 7
  %v5653 = vsub.s32 0, %v5652
  %v5654 = vrot.slane %v5519, %v5653
  %v5656 = vmul.f32 %v5634, %v5654
  %v5657 = vmul.f32 %v5635, %v5654
  %v5658 = vmul.f32 %v5636, %v5654
  %v5659 = vmul.f32 %v5637, %v5654
  %v5660 = vmul.f32 %v5638, %v5654
  %v5661 = vmul.f32 %v5639, %v5654
  %v5662 = vmul.f32 %v5640, %v5654
  %v5663 = vmul.f32 %v5641, %v5654
  %v5664 = vmul.f32 %v5642, %v5654
  %v5665 = vmul.f32 %v5643, %v5654
  %v5666 = vmul.f32 %v5644, %v5654
  %v5667 = vmul.f32 %v5645, %v5654
  %v5668 = vmul.f32 %v5646, %v5654
  %v5669 = vmul.f32 %v5647, %v5654
  %v5670 = vmul.f32 %v5648, %v5654
  %v5671 = vmul.f32 %v5649, %v5654
  %v5673 = vlaneseq
  %v5674 = vshrl.u32 %v5673, 7
  %v5675 = vsub.s32 0, %v5674
  %v5676 = vrot.slane %v5520, %v5675
  %v5678 = vadd.f32 %v5656, %v5676
  %v5679 = vadd.f32 %v5657, %v5676
  %v5680 = vadd.f32 %v5658, %v5676
  %v5681 = vadd.f32 %v5659, %v5676
  %v5682 = vadd.f32 %v5660, %v5676
  %v5683 = vadd.f32 %v5661, %v5676
  %v5684 = vadd.f32 %v5662, %v5676
  %v5685 = vadd.f32 %v5663, %v5676
  %v5686 = vadd.f32 %v5664, %v5676
  %v5687 = vadd.f32 %v5665, %v5676
  %v5688 = vadd.f32 %v5666, %v5676
  %v5689 = vadd.f32 %v5667, %v5676
  %v5690 = vadd.f32 %v5668, %v5676
  %v5691 = vadd.f32 %v5669, %v5676
  %v5692 = vadd.f32 %v5670, %v5676
  %v5693 = vadd.f32 %v5671, %v5676
  %v5694 = vxor.u32 %v5678, 2147483648
  %v5695 = vxor.u32 %v5679, 2147483648
  %v5696 = vxor.u32 %v5680, 2147483648
  %v5697 = vxor.u32 %v5681, 2147483648
  %v5698 = vxor.u32 %v5682, 2147483648
  %v5699 = vxor.u32 %v5683, 2147483648
  %v5700 = vxor.u32 %v5684, 2147483648
  %v5701 = vxor.u32 %v5685, 2147483648
  %v5702 = vxor.u32 %v5686, 2147483648
  %v5703 = vxor.u32 %v5687, 2147483648
  %v5704 = vxor.u32 %v5688, 2147483648
  %v5705 = vxor.u32 %v5689, 2147483648
  %v5706 = vxor.u32 %v5690, 2147483648
  %v5707 = vxor.u32 %v5691, 2147483648
  %v5708 = vxor.u32 %v5692, 2147483648
  %v5709 = vxor.u32 %v5693, 2147483648
  %v5710 = vmul.f32 %v5694, 1.442695
  %v5711 = vpow.pop %v5710
  %v5712 = vmul.f32 %v5695, 1.442695
  %v5713 = vpow.pop %v5712
  %v5714 = vmul.f32 %v5696, 1.442695
  %v5715 = vpow.pop %v5714
  %v5716 = vmul.f32 %v5697, 1.442695
  %v5717 = vpow.pop %v5716
  %v5718 = vmul.f32 %v5698, 1.442695
  %v5719 = vpow.pop %v5718
  %v5720 = vmul.f32 %v5699, 1.442695
  %v5721 = vpow.pop %v5720
  %v5722 = vmul.f32 %v5700, 1.442695
  %v5723 = vpow.pop %v5722
  %v5724 = vmul.f32 %v5701, 1.442695
  %v5725 = vpow.pop %v5724
  %v5726 = vmul.f32 %v5702, 1.442695
  %v5727 = vpow.pop %v5726
  %v5728 = vmul.f32 %v5703, 1.442695
  %v5729 = vpow.pop %v5728
  %v5730 = vmul.f32 %v5704, 1.442695
  %v5731 = vpow.pop %v5730
  %v5732 = vmul.f32 %v5705, 1.442695
  %v5733 = vpow.pop %v5732
  %v5734 = vmul.f32 %v5706, 1.442695
  %v5735 = vpow.pop %v5734
  %v5736 = vmul.f32 %v5707, 1.442695
  %v5737 = vpow.pop %v5736
  %v5738 = vmul.f32 %v5708, 1.442695
  %v5739 = vpow.pop %v5738
  %v5740 = vmul.f32 %v5709, 1.442695
  %v5741 = vpow.pop %v5740
  %v5742 = vadd.f32 %v5711, 1.0
  %v5743 = vadd.f32 %v5713, 1.0
  %v5744 = vadd.f32 %v5715, 1.0
  %v5745 = vadd.f32 %v5717, 1.0
  %v5746 = vadd.f32 %v5719, 1.0
  %v5747 = vadd.f32 %v5721, 1.0
  %v5748 = vadd.f32 %v5723, 1.0
  %v5749 = vadd.f32 %v5725, 1.0
  %v5750 = vadd.f32 %v5727, 1.0
  %v5751 = vadd.f32 %v5729, 1.0
  %v5752 = vadd.f32 %v5731, 1.0
  %v5753 = vadd.f32 %v5733, 1.0
  %v5754 = vadd.f32 %v5735, 1.0
  %v5755 = vadd.f32 %v5737, 1.0
  %v5756 = vadd.f32 %v5739, 1.0
  %v5757 = vadd.f32 %v5741, 1.0
  %v5758 = vrcp.pop %v5742
  %v5759 = vmul.f32 1.0, %v5758
  %v5760 = vrcp.pop %v5743
  %v5761 = vmul.f32 1.0, %v5760
  %v5762 = vrcp.pop %v5744
  %v5763 = vmul.f32 1.0, %v5762
  %v5764 = vrcp.pop %v5745
  %v5765 = vmul.f32 1.0, %v5764
  %v5766 = vrcp.pop %v5746
  %v5767 = vmul.f32 1.0, %v5766
  %v5768 = vrcp.pop %v5747
  %v5769 = vmul.f32 1.0, %v5768
  %v5770 = vrcp.pop %v5748
  %v5771 = vmul.f32 1.0, %v5770
  %v5772 = vrcp.pop %v5749
  %v5773 = vmul.f32 1.0, %v5772
  %v5774 = vrcp.pop %v5750
  %v5775 = vmul.f32 1.0, %v5774
  %v5776 = vrcp.pop %v5751
  %v5777 = vmul.f32 1.0, %v5776
  %v5778 = vrcp.pop %v5752
  %v5779 = vmul.f32 1.0, %v5778
  %v5780 = vrcp.pop %v5753
  %v5781 = vmul.f32 1.0, %v5780
  %v5782 = vrcp.pop %v5754
  %v5783 = vmul.f32 1.0, %v5782
  %v5784 = vrcp.pop %v5755
  %v5785 = vmul.f32 1.0, %v5784
  %v5786 = vrcp.pop %v5756
  %v5787 = vmul.f32 1.0, %v5786
  %v5788 = vrcp.pop %v5757
  %v5789 = vmul.f32 1.0, %v5788
  %v5790 = vmul.f32 %v5678, %v5759
  %v5791 = vmul.f32 %v5679, %v5761
  %v5792 = vmul.f32 %v5680, %v5763
  %v5793 = vmul.f32 %v5681, %v5765
  %v5794 = vmul.f32 %v5682, %v5767
  %v5795 = vmul.f32 %v5683, %v5769
  %v5796 = vmul.f32 %v5684, %v5771
  %v5797 = vmul.f32 %v5685, %v5773
  %v5798 = vmul.f32 %v5686, %v5775
  %v5799 = vmul.f32 %v5687, %v5777
  %v5800 = vmul.f32 %v5688, %v5779
  %v5801 = vmul.f32 %v5689, %v5781
  %v5802 = vmul.f32 %v5690, %v5783
  %v5803 = vmul.f32 %v5691, %v5785
  %v5804 = vmul.f32 %v5692, %v5787
  %v5805 = vmul.f32 %v5693, %v5789
  %v5806 = vpack.c.bf16 %v5791, %v5790
  %v5807 = vpack.c.bf16 %v5793, %v5792
  %v5808 = vpack.c.bf16 %v5795, %v5794
  %v5809 = vpack.c.bf16 %v5797, %v5796
  %v5810 = vpack.c.bf16 %v5799, %v5798
  %v5811 = vpack.c.bf16 %v5801, %v5800
  %v5812 = vpack.c.bf16 %v5803, %v5802
  %v5813 = vpack.c.bf16 %v5805, %v5804
  %v5814 = vld [vmem:[%s25] sm:$0xf]
  %v5815 = vld [vmem:[%s25 + $0x4] sm:$0xf]
  %v5816 = vld [vmem:[%s25 + $0x8] sm:$0xf]
  %v5817 = vld [vmem:[%s25 + $0xc] sm:$0xf]
  %v5818 = vld [vmem:[%s26] sm:$0x1]
  %v5820 = vlaneseq
  %v5821 = vshrl.u32 %v5820, 7
  %v5822 = vsub.s32 0, %v5821
  %v5823 = vrot.slane %v5818, %v5822
  %v5829 = vunpack.c.l.b16 %v5814
  %v5830 = vunpack.c.l.b16 %v5815
  %v5831 = vunpack.c.l.b16 %v5816
  %v5832 = vunpack.c.l.b16 %v5817
  %v5833 = vpack.c.b16 %v5830, %v5829
  %v5834 = vpack.c.b16 %v5832, %v5831
  %v5838 = vsel %vm159, %v5806, 0
  %v5841 = vsel %vm159, %v5807, 0
  %v5844 = vsel %vm159, %v5808, 0
  %v5847 = vsel %vm159, %v5809, 0
  %v5850 = vsel %vm159, %v5810, 0
  %v5853 = vsel %vm159, %v5811, 0
  %v5856 = vsel %vm159, %v5812, 0
  %v5859 = vsel %vm159, %v5813, 0
  %5861 = vmatprep.subr.bf16.mxu0 0
  %5862 = vmatpush1.bf16.msra.mxu0 %v5833
  %5863 = vmatprep.subr.bf16.mxu0 0
  %5864 = vmatpush1.bf16.msra.mxu0 %v5834
  %5865 = vmatprep.subr.bf16.mxu0 0
  %5866 = vmatpush1.bf16.msra.mxu0 0
  %5867 = vmatprep.subr.bf16.mxu0 0
  %5868 = vmatpush1.bf16.msra.mxu0 0
  %5869 = vmatprep.subr.bf16.mxu0 0
  %5870 = vmatpush1.bf16.msra.mxu0 0
  %5871 = vmatprep.subr.bf16.mxu0 0
  %5872 = vmatpush1.bf16.msra.mxu0 0
  %5873 = vmatprep.subr.bf16.mxu0 0
  %5874 = vmatpush1.bf16.msra.mxu0 0
  %5875 = vmatprep.subr.bf16.mxu0 0
  %5876 = vmatpush1.bf16.msra.mxu0 0
  %5877 = vmatprep.subr.bf16.mxu0 0
  %5878 = vmatpush1.bf16.msra.mxu0 0
  %5879 = vmatprep.subr.bf16.mxu0 0
  %5880 = vmatpush1.bf16.msra.mxu0 0
  %5881 = vmatprep.subr.bf16.mxu0 0
  %5882 = vmatpush1.bf16.msra.mxu0 0
  %5883 = vmatprep.subr.bf16.mxu0 0
  %5884 = vmatpush1.bf16.msra.mxu0 0
  %5885 = vmatprep.subr.bf16.mxu0 0
  %5886 = vmatpush1.bf16.msra.mxu0 0
  %5887 = vmatprep.subr.bf16.mxu0 0
  %5888 = vmatpush1.bf16.msra.mxu0 0
  %5889 = vmatprep.subr.bf16.mxu0 0
  %5890 = vmatpush1.bf16.msra.mxu0 0
  %5891 = vmatprep.subr.bf16.mxu0 0
  %5892 = vmatpush1.bf16.msra.mxu0 0
  %5893 = vmatprep.mubr.bf16.mxu0 0
  %5894 = vmatmul.mubr.bf16.gmra.mrb[0].mxu0 %v5838
  %v5895 = vpop.f32.mrb[0].mxu0
  %v5896 = vadd.f32 %v5823, %v5895
  %v5897 = vpop.f32.mrb[0].mxu0
  %v5898 = vpop.f32.mrb[0].mxu0
  %v5899 = vadd.f32 %v5823, %v5898
  %v5900 = vpop.f32.mrb[0].mxu0
  %5901 = vmatprep.mubr.bf16.mxu0 0
  %5902 = vmatmul.mubr.bf16.gmra.mrb[0].mxu0 %v5841
  %v5903 = vpop.f32.mrb[0].mxu0
  %v5904 = vadd.f32 %v5823, %v5903
  %v5905 = vpop.f32.mrb[0].mxu0
  %v5906 = vpop.f32.mrb[0].mxu0
  %v5907 = vadd.f32 %v5823, %v5906
  %v5908 = vpop.f32.mrb[0].mxu0
  %5909 = vmatprep.mubr.bf16.mxu0 0
  %5910 = vmatmul.mubr.bf16.gmra.mrb[0].mxu0 %v5844
  %v5911 = vpop.f32.mrb[0].mxu0
  %v5912 = vadd.f32 %v5823, %v5911
  %v5913 = vpop.f32.mrb[0].mxu0
  %v5914 = vpop.f32.mrb[0].mxu0
  %v5915 = vadd.f32 %v5823, %v5914
  %v5916 = vpop.f32.mrb[0].mxu0
  %5917 = vmatprep.mubr.bf16.mxu0 0
  %5918 = vmatmul.mubr.bf16.gmra.mrb[0].mxu0 %v5847
  %v5919 = vpop.f32.mrb[0].mxu0
  %v5920 = vadd.f32 %v5823, %v5919
  %v5921 = vpop.f32.mrb[0].mxu0
  %v5922 = vpop.f32.mrb[0].mxu0
  %v5923 = vadd.f32 %v5823, %v5922
  %v5924 = vpop.f32.mrb[0].mxu0
  %5925 = vmatprep.mubr.bf16.mxu0 0
  %5926 = vmatmul.mubr.bf16.gmra.mrb[0].mxu0 %v5850
  %v5927 = vpop.f32.mrb[0].mxu0
  %v5928 = vadd.f32 %v5823, %v5927
  %v5929 = vpop.f32.mrb[0].mxu0
  %v5930 = vpop.f32.mrb[0].mxu0
  %v5931 = vadd.f32 %v5823, %v5930
  %v5932 = vpop.f32.mrb[0].mxu0
  %5933 = vmatprep.mubr.bf16.mxu0 0
  %5934 = vmatmul.mubr.bf16.gmra.mrb[0].mxu0 %v5853
  %v5935 = vpop.f32.mrb[0].mxu0
  %v5936 = vadd.f32 %v5823, %v5935
  %v5937 = vpop.f32.mrb[0].mxu0
  %v5938 = vpop.f32.mrb[0].mxu0
  %v5939 = vadd.f32 %v5823, %v5938
  %v5940 = vpop.f32.mrb[0].mxu0
  %5941 = vmatprep.mubr.bf16.mxu0 0
  %5942 = vmatmul.mubr.bf16.gmra.mrb[0].mxu0 %v5856
  %v5943 = vpop.f32.mrb[0].mxu0
  %v5944 = vadd.f32 %v5823, %v5943
  %v5945 = vpop.f32.mrb[0].mxu0
  %v5946 = vpop.f32.mrb[0].mxu0
  %v5947 = vadd.f32 %v5823, %v5946
  %v5948 = vpop.f32.mrb[0].mxu0
  %5949 = vmatprep.mubr.bf16.mxu0 0
  %5950 = vmatmul.mubr.bf16.gmra.mrb[0].mxu0 %v5859
  %v5951 = vpop.f32.mrb[0].mxu0
  %v5952 = vadd.f32 %v5823, %v5951
  %v5953 = vpop.f32.mrb[0].mxu0
  %v5954 = vpop.f32.mrb[0].mxu0
  %v5955 = vadd.f32 %v5823, %v5954
  %v5956 = vpop.f32.mrb[0].mxu0
  %5957 = vdwg.mxu0
  %vm5958 = vcmask 171008
  %5959 = vst.msk [vmem:[%s27] sm:$0xff] %vm5958, %v5896
  %5960 = vst.msk [vmem:[%s27 + $0x8] sm:$0xff] %vm5958, %v5899
  %5961 = vst.msk [vmem:[%s27 + $0x10] sm:$0xff] %vm5958, %v5904
  %5962 = vst.msk [vmem:[%s27 + $0x18] sm:$0xff] %vm5958, %v5907
  %5963 = vst.msk [vmem:[%s27 + $0x20] sm:$0xff] %vm5958, %v5912
  %5964 = vst.msk [vmem:[%s27 + $0x28] sm:$0xff] %vm5958, %v5915
  %5965 = vst.msk [vmem:[%s27 + $0x30] sm:$0xff] %vm5958, %v5920
  %5966 = vst.msk [vmem:[%s27 + $0x38] sm:$0xff] %vm5958, %v5923
  %5967 = vst.msk [vmem:[%s27 + $0x40] sm:$0xff] %vm5958, %v5928
  %5968 = vst.msk [vmem:[%s27 + $0x48] sm:$0xff] %vm5958, %v5931
  %5969 = vst.msk [vmem:[%s27 + $0x50] sm:$0xff] %vm5958, %v5936
  %5970 = vst.msk [vmem:[%s27 + $0x58] sm:$0xff] %vm5958, %v5939
  %5971 = vst.msk [vmem:[%s27 + $0x60] sm:$0xff] %vm5958, %v5944
  %5972 = vst.msk [vmem:[%s27 + $0x68] sm:$0xff] %vm5958, %v5947
  %5973 = vst.msk [vmem:[%s27 + $0x70] sm:$0xff] %vm5958, %v5952
  %5974 = vst.msk [vmem:[%s27 + $0x78] sm:$0xff] %vm5958, %v5955
  // Predicated region
  $region110: #{forward.5} parent=0 // pred_check
    _
  $region111: #{forward.5} parent=0 // pred_check_branch
    %5976 = sbr.rel (0) target = $region113
  $region112: #{forward.5} parent=0 // pred_region
    _
  $region113: #{forward.5} parent=0 // pred_fallthru
    _
  // Predicated region
  $region114: #{forward.5} parent=0 // pred_check
    _
  $region115: #{forward.5} parent=0 // pred_check_branch
    %5978 = sbr.rel (0) target = $region117
  $region116: #{forward.5} parent=0 // pred_region
    _
  $region117: #{forward.5} parent=0 // pred_fallthru
    _

</llo_original>
